<compile_context>
chip_gen: v6e
topology: v6e:2x2x1
jax: 0.10.0
libtpu: 0.0.40
codegen_flags: <defaults>
</compile_context>

<pallas_src>
import jax
import jax.numpy as jnp
from jax.experimental import pallas as pl
from jax.experimental.pallas import tpu as pltpu

EMB = 1000      # emb_len in the PyTorch module
HID = 200       # hidden width of the head
BN_EPS = 1e-3

C_PAD = 128     # pooled-channel intermediate padded to one lane vreg
EMB_P = 1024    # EMB padded to a multiple of 128 (lane/MXU friendly)
HID_P = 256     # HID padded to a multiple of 128
OUT_P = 128     # final scalar output padded to one full lane vreg


def _round_up(x, m):
    return ((x + m - 1) // m) * m


# ----------------------------------------------------------------------------
# Fused kernel: pool+encode(x1), pool+encode(x2), concat-folded head (BN folded),
# ReLU, final linear — all per batch tile.
# ----------------------------------------------------------------------------
def _fused_kernel(x1_ref, x2_ref, pool_ref, we_ref, w1a_ref, w1b_ref, b1_ref,
                  w2_ref, b2_ref, o_ref):
    tb = x1_ref.shape[0]

    # f32 -> bf16 cast on the VPU (inputs arrive f32; no host-side convert pass).
    x1 = x1_ref[...].astype(jnp.bfloat16)
    x2 = x2_ref[...].astype(jnp.bfloat16)
    pool = pool_ref[...]

    # Global mean-pool via a block-diagonal 1/HW matrix on the MXU
    # (avoids an XLU cross-lane reduce).  -> (tb, C_PAD) each, f32.
    p1 = jnp.dot(x1, pool, preferred_element_type=jnp.float32)
    p2 = jnp.dot(x2, pool, preferred_element_type=jnp.float32)

    # Stand-in encoder projection + ReLU: merge both images into one
    # (2*tb, C_PAD) x (C_PAD, EMB_P) dot (halves MXU push/drain here).
    pooled = jnp.concatenate([p1, p2], axis=0).astype(jnp.bfloat16)
    emb = jnp.maximum(
        jnp.dot(pooled, we_ref[...], preferred_element_type=jnp.float32), 0.0)
    e1 = emb[:tb].astype(jnp.bfloat16)
    e2 = emb[tb:].astype(jnp.bfloat16)

    # Head: cat(e1, e2) @ W1 == e1 @ W1[:EMB] + e2 @ W1[EMB:] (bias=False),
    # with eval-mode BatchNorm1d folded into w1a/w1b and b1 on the host.
    h = (jnp.dot(e1, w1a_ref[...], preferred_element_type=jnp.float32)
         + jnp.dot(e2, w1b_ref[...], preferred_element_type=jnp.float32)
         + b1_ref[...])
    h = jnp.maximum(h, 0.0).astype(jnp.bfloat16)

    # Linear(HID -> 1) with bias, output padded to 128 lanes so the store is
    # unmasked; the real scalar lives in column 0 (sliced outside the kernel).
    o_ref[...] = (jnp.dot(h, w2_ref[...], preferred_element_type=jnp.float32)
                  + b2_ref[...])


# ----------------------------------------------------------------------------
# Wrapper
# ----------------------------------------------------------------------------
def siamese_net_attention(x1, x2, params):
    B, C, H, W = x1.shape
    k_in = C * H * W

    # Batch tile: multiple of 8 sublanes, up to 256 rows (fills the 256-wide
    # v6e/v7x MXU and amortizes the ~0.35 µs per-step overhead), but keep at
    # least 2 grid steps when the batch allows it so the "parallel" axis can
    # shard across v7x's two TensorCores.
    b8 = _round_up(B, 8)
    if b8 >= 16:
        tb = min(256, _round_up((b8 + 1) // 2, 8))
    else:
        tb = b8
    b_pad = _round_up(B, tb)
    grid = (b_pad // tb,)

    def prep(x):
        # Flatten NCHW -> (B, C*H*W).  Keep f32: the bf16 cast happens on the
        # VPU inside the kernel (single 4 B/elem HBM read, no convert pass).
        xf = x.reshape(B, k_in)
        if b_pad != B:
            xf = jnp.pad(xf, ((0, b_pad - B), (0, 0)))
        return xf

    x1f, x2f = prep(x1), prep(x2)

    # VMEM budget: double-buffered input/output tiles, (conservatively
    # double-buffered) resident weights, and the kernel intermediates.
    bf16, f32 = 2, 4
    weights = ((k_in * C_PAD + C_PAD * EMB_P + 2 * EMB_P * HID_P
                + HID_P * OUT_P) * bf16
               + 8 * (HID_P + OUT_P) * f32)                 # biases, sublane-padded
    tiles = (2 * 2 * tb * k_in * f32                        # x1, x2 tiles (dbl-buf)
             + 2 * tb * OUT_P * f32)                        # output tile (dbl-buf)
    interm = (2 * tb * k_in * bf16                          # bf16 copies of x1/x2
              + 2 * 2 * tb * C_PAD * (f32 + bf16)           # p1, p2, pooled
              + 2 * tb * EMB_P * (f32 + bf16)               # emb, e1/e2
              + tb * HID_P * (f32 + bf16)                   # h (f32 + bf16)
              + tb * OUT_P * f32)                           # pre-store result
    est = 2 * weights + tiles + interm
    vmem_limit = int(min(est + (8 << 20), 56 << 20))        # cap below v7x 64 MiB

    def make_call(single_buffer_weights):
        def fixed_spec(shape):
            kwargs = {}
            if single_buffer_weights and hasattr(pl, "Buffered"):
                # Invariant (constant-index) weights don't need double buffers.
                kwargs["pipeline_mode"] = pl.Buffered(1)
            return pl.BlockSpec(shape, lambda i: (0,) * len(shape), **kwargs)

        def batch_spec(shape):
            return pl.BlockSpec(shape, lambda i: (i, 0))

        # TODO(synk): for a real backbone / large images add a K-reduction grid
        # axis ("arbitrary", last) + f32 VMEM accumulator so the encoder weight
        # streams in tk chunks instead of being fully resident.
        return pl.pallas_call(
            _fused_kernel,
            out_shape=jax.ShapeDtypeStruct((b_pad, OUT_P), jnp.float32),
            grid=grid,
            in_specs=[
                batch_spec((tb, k_in)),          # x1 tile (f32)
                batch_spec((tb, k_in)),          # x2 tile (f32)
                fixed_spec((k_in, C_PAD)),       # block-diag 1/HW pool matrix
                fixed_spec((C_PAD, EMB_P)),      # encoder projection
                fixed_spec((EMB_P, HID_P)),      # w1a (BN folded)
                fixed_spec((EMB_P, HID_P)),      # w1b (BN folded)
                fixed_spec((1, HID_P)),          # b1  (BN folded)
                fixed_spec((HID_P, OUT_P)),      # w2  (padded)
                fixed_spec((1, OUT_P)),          # b2  (padded)
            ],
            out_specs=batch_spec((tb, OUT_P)),
            compiler_params=pltpu.CompilerParams(
                dimension_semantics=("parallel",),
                vmem_limit_bytes=vmem_limit),
        )

    args = (x1f, x2f, params["pool"], params["w_enc"], params["w1a"],
            params["w1b"], params["b1"], params["w2"], params["b2"])
    try:
        out = make_call(True)(*args)
    except Exception:
        # pl.Buffered(1) not supported by this jax build — plain double-buffered
        # specs (weights are only ~1.6 MiB here, so this is just a VMEM nicety).
        out = make_call(False)(*args)

    return out[:B, :1]


# ----------------------------------------------------------------------------
# Deterministic parameter init (host-side BN folding + lane padding)
# ----------------------------------------------------------------------------
def init_params(key, in_channels, height, width):
    k_enc, k_w1, k_w2 = jax.random.split(key, 3)
    hw = height * width
    k_in = in_channels * hw

    # Block-diagonal mean-pool matrix: row (c*HW + s) has 1/HW in column c.
    rows = jnp.arange(k_in)
    pool = jnp.zeros((k_in, C_PAD), jnp.float32).at[rows, rows // hw].set(1.0 / hw)

    # --- stand-in encoder: relu(mean_pool(x) @ w_enc), w_enc (C, EMB) ---
    # TODO(synk): real resnet18(fuse_type='DAF') backbone is not available.
    w_enc = 0.1 * jax.random.normal(k_enc, (in_channels, EMB), jnp.float32)
    w_enc_p = jnp.pad(w_enc, ((0, C_PAD - in_channels), (0, EMB_P - EMB)))

    # --- head Linear(2*EMB -> HID, bias=False) with eval-mode BN folded in ---
    w1 = 0.02 * jax.random.normal(k_w1, (2 * EMB, HID), jnp.float32)
    gamma = jnp.ones((HID,), jnp.float32)          # PyTorch BN defaults /
    beta = jnp.zeros((HID,), jnp.float32)          # fresh running stats
    run_mean = jnp.zeros((HID,), jnp.float32)
    run_var = jnp.ones((HID,), jnp.float32)
    s = gamma * jax.lax.rsqrt(run_var + BN_EPS)                     # (HID,)
    w1_f = w1 * s[None, :]
    b1_f = beta - run_mean * s
    w1a = jnp.pad(w1_f[:EMB], ((0, EMB_P - EMB), (0, HID_P - HID)))
    w1b = jnp.pad(w1_f[EMB:], ((0, EMB_P - EMB), (0, HID_P - HID)))
    b1 = jnp.pad(b1_f[None, :], ((0, 0), (0, HID_P - HID)))

    # --- head Linear(HID -> 1) with bias, padded to 128 output lanes ---
    w2 = 0.1 * jax.random.normal(k_w2, (HID, 1), jnp.float32)
    b2 = jnp.zeros((1, 1), jnp.float32)
    w2_p = jnp.pad(w2, ((0, HID_P - HID), (0, OUT_P - 1)))
    b2_p = jnp.pad(b2, ((0, 0), (0, OUT_P - 1)))

    return {
        "pool": pool.astype(jnp.bfloat16),
        "w_enc": w_enc_p.astype(jnp.bfloat16),
        "w1a": w1a.astype(jnp.bfloat16),
        "w1b": w1b.astype(jnp.bfloat16),
        "b1": b1,                                  # f32
        "w2": w2_p.astype(jnp.bfloat16),
        "b2": b2_p,                                # f32
    }


if __name__ == "__main__":
    key = jax.random.PRNGKey(0)
    k_x1, k_x2, k_p = jax.random.split(key, 3)

    B, C, H, W = 2, 4, 16, 16          # small NCHW example inputs
    x1 = jax.random.normal(k_x1, (B, C, H, W), jnp.float32)
    x2 = jax.random.normal(k_x2, (B, C, H, W), jnp.float32)
    params = init_params(k_p, C, H, W)

    out = siamese_net_attention(x1, x2, params)
    out = jax.block_until_ready(out)
    assert out.shape == (B, 1) and out.dtype == jnp.float32
    print("KERNEL_OK")
</pallas_src>

<mosaic_0001>
module attributes {stable_mosaic.version = 11 : i64} {
  func.func @_fused_kernel(%arg0: i32, %arg1: memref<8x1024xf32, #tpu.memory_space<vmem>>, %arg2: memref<8x1024xf32, #tpu.memory_space<vmem>>, %arg3: memref<1024x128xbf16, #tpu.memory_space<vmem>>, %arg4: memref<128x1024xbf16, #tpu.memory_space<vmem>>, %arg5: memref<1024x256xbf16, #tpu.memory_space<vmem>>, %arg6: memref<1024x256xbf16, #tpu.memory_space<vmem>>, %arg7: memref<1x256xf32, #tpu.memory_space<vmem>>, %arg8: memref<256x128xbf16, #tpu.memory_space<vmem>>, %arg9: memref<1x128xf32, #tpu.memory_space<vmem>>, %arg10: memref<8x128xf32, #tpu.memory_space<vmem>>) attributes {dimension_semantics = [#tpu.dimension_semantics<parallel>], iteration_bounds = array<i64: 1>, scalar_prefetch = 0 : i64, scratch_operands = 0 : i64, tpu.core_type = #tpu.core_type<tc>, window_params = [{transform_indices = @transform_0, window_bounds = array<i64: 8, 1024>}, {transform_indices = @transform_1, window_bounds = array<i64: 8, 1024>}, {pipeline_mode = #tpu.pipeline_mode<synchronous>, transform_indices = @transform_2, window_bounds = array<i64: 1024, 128>}, {pipeline_mode = #tpu.pipeline_mode<synchronous>, transform_indices = @transform_3, window_bounds = array<i64: 128, 1024>}, {pipeline_mode = #tpu.pipeline_mode<synchronous>, transform_indices = @transform_4, window_bounds = array<i64: 1024, 256>}, {pipeline_mode = #tpu.pipeline_mode<synchronous>, transform_indices = @transform_5, window_bounds = array<i64: 1024, 256>}, {pipeline_mode = #tpu.pipeline_mode<synchronous>, transform_indices = @transform_6, window_bounds = array<i64: 1, 256>}, {pipeline_mode = #tpu.pipeline_mode<synchronous>, transform_indices = @transform_7, window_bounds = array<i64: 256, 128>}, {pipeline_mode = #tpu.pipeline_mode<synchronous>, transform_indices = @transform_8, window_bounds = array<i64: 1, 128>}, {transform_indices = @transform_9, window_bounds = array<i64: 8, 128>}]} {
    %c0 = arith.constant 0 : index
    %c0_0 = arith.constant 0 : index
    %0 = vector.load %arg1[%c0, %c0_0] : memref<8x1024xf32, #tpu.memory_space<vmem>>, vector<8x1024xf32>
    %1 = arith.truncf %0 : vector<8x1024xf32> to vector<8x1024xbf16>
    %c0_1 = arith.constant 0 : index
    %c0_2 = arith.constant 0 : index
    %2 = vector.load %arg2[%c0_1, %c0_2] : memref<8x1024xf32, #tpu.memory_space<vmem>>, vector<8x1024xf32>
    %3 = arith.truncf %2 : vector<8x1024xf32> to vector<8x1024xbf16>
    %c0_3 = arith.constant 0 : index
    %c0_4 = arith.constant 0 : index
    %4 = vector.load %arg3[%c0_3, %c0_4] : memref<1024x128xbf16, #tpu.memory_space<vmem>>, vector<1024x128xbf16>
    %cst = arith.constant dense<0.000000e+00> : vector<8x128xf32>
    %5 = tpu.matmul %1, %4, %cst {dimension_numbers = #tpu.dot_dimension_numbers<[1], [0], [0], [1], [0, 0, 1, 1], [], []>} : vector<8x1024xbf16>, vector<1024x128xbf16>, vector<8x128xf32> -> vector<8x128xf32>
    %cst_5 = arith.constant dense<0.000000e+00> : vector<8x128xf32>
    %6 = tpu.matmul %3, %4, %cst_5 {dimension_numbers = #tpu.dot_dimension_numbers<[1], [0], [0], [1], [0, 0, 1, 1], [], []>} : vector<8x1024xbf16>, vector<1024x128xbf16>, vector<8x128xf32> -> vector<8x128xf32>
    %7 = tpu.concatenate %5, %6 in 0 : vector<8x128xf32>, vector<8x128xf32> -> vector<16x128xf32>
    %8 = arith.truncf %7 : vector<16x128xf32> to vector<16x128xbf16>
    %c0_6 = arith.constant 0 : index
    %c0_7 = arith.constant 0 : index
    %9 = vector.load %arg4[%c0_6, %c0_7] : memref<128x1024xbf16, #tpu.memory_space<vmem>>, vector<128x1024xbf16>
    %cst_8 = arith.constant dense<0.000000e+00> : vector<16x1024xf32>
    %10 = tpu.matmul %8, %9, %cst_8 {dimension_numbers = #tpu.dot_dimension_numbers<[1], [0], [0], [1], [0, 0, 1, 1], [], []>} : vector<16x128xbf16>, vector<128x1024xbf16>, vector<16x1024xf32> -> vector<16x1024xf32>
    %cst_9 = arith.constant 0.000000e+00 : f32
    %11 = vector.broadcast %cst_9 : f32 to vector<16x1024xf32>
    %12 = arith.maximumf %10, %11 : vector<16x1024xf32>
    %13 = vector.extract_strided_slice %12 {offsets = [0, 0], sizes = [8, 1024], strides = [1, 1]} : vector<16x1024xf32> to vector<8x1024xf32>
    %14 = arith.truncf %13 : vector<8x1024xf32> to vector<8x1024xbf16>
    %15 = vector.extract_strided_slice %12 {offsets = [8, 0], sizes = [8, 1024], strides = [1, 1]} : vector<16x1024xf32> to vector<8x1024xf32>
    %16 = arith.truncf %15 : vector<8x1024xf32> to vector<8x1024xbf16>
    %c0_10 = arith.constant 0 : index
    %c0_11 = arith.constant 0 : index
    %17 = vector.load %arg5[%c0_10, %c0_11] : memref<1024x256xbf16, #tpu.memory_space<vmem>>, vector<1024x256xbf16>
    %cst_12 = arith.constant dense<0.000000e+00> : vector<8x256xf32>
    %18 = tpu.matmul %14, %17, %cst_12 {dimension_numbers = #tpu.dot_dimension_numbers<[1], [0], [0], [1], [0, 0, 1, 1], [], []>} : vector<8x1024xbf16>, vector<1024x256xbf16>, vector<8x256xf32> -> vector<8x256xf32>
    %c0_13 = arith.constant 0 : index
    %c0_14 = arith.constant 0 : index
    %19 = vector.load %arg6[%c0_13, %c0_14] : memref<1024x256xbf16, #tpu.memory_space<vmem>>, vector<1024x256xbf16>
    %cst_15 = arith.constant dense<0.000000e+00> : vector<8x256xf32>
    %20 = tpu.matmul %16, %19, %cst_15 {dimension_numbers = #tpu.dot_dimension_numbers<[1], [0], [0], [1], [0, 0, 1, 1], [], []>} : vector<8x1024xbf16>, vector<1024x256xbf16>, vector<8x256xf32> -> vector<8x256xf32>
    %21 = arith.addf %18, %20 : vector<8x256xf32>
    %c0_16 = arith.constant 0 : index
    %c0_17 = arith.constant 0 : index
    %22 = vector.load %arg7[%c0_16, %c0_17] : memref<1x256xf32, #tpu.memory_space<vmem>>, vector<1x256xf32>
    %23 = vector.broadcast %22 : vector<1x256xf32> to vector<8x256xf32>
    %24 = arith.addf %21, %23 : vector<8x256xf32>
    %cst_18 = arith.constant 0.000000e+00 : f32
    %25 = vector.broadcast %cst_18 : f32 to vector<8x256xf32>
    %26 = arith.maximumf %24, %25 : vector<8x256xf32>
    %27 = arith.truncf %26 : vector<8x256xf32> to vector<8x256xbf16>
    %c0_19 = arith.constant 0 : index
    %c0_20 = arith.constant 0 : index
    %28 = vector.load %arg8[%c0_19, %c0_20] : memref<256x128xbf16, #tpu.memory_space<vmem>>, vector<256x128xbf16>
    %cst_21 = arith.constant dense<0.000000e+00> : vector<8x128xf32>
    %29 = tpu.matmul %27, %28, %cst_21 {dimension_numbers = #tpu.dot_dimension_numbers<[1], [0], [0], [1], [0, 0, 1, 1], [], []>} : vector<8x256xbf16>, vector<256x128xbf16>, vector<8x128xf32> -> vector<8x128xf32>
    %c0_22 = arith.constant 0 : index
    %c0_23 = arith.constant 0 : index
    %30 = vector.load %arg9[%c0_22, %c0_23] : memref<1x128xf32, #tpu.memory_space<vmem>>, vector<1x128xf32>
    %31 = vector.broadcast %30 : vector<1x128xf32> to vector<8x128xf32>
    %32 = arith.addf %29, %31 : vector<8x128xf32>
    %c0_24 = arith.constant 0 : index
    %c0_25 = arith.constant 0 : index
    %33 = vector.load %arg10[%c0_24, %c0_25] : memref<8x128xf32, #tpu.memory_space<vmem>>, vector<8x128xf32>
    tpu.vector_store %arg10[%c0_24, %c0_25], %32 {strides = array<i32>} : memref<8x128xf32, #tpu.memory_space<vmem>>, vector<8x128xf32>,
    return
  }
  func.func @transform_0(%arg0: i32) -> (i32, i32) {
    %c0_i32 = arith.constant 0 : i32
    %c0_i32_0 = arith.constant 0 : i32
    return %arg0, %c0_i32 : i32, i32
  }
  func.func @transform_1(%arg0: i32) -> (i32, i32) {
    %c0_i32 = arith.constant 0 : i32
    %c0_i32_0 = arith.constant 0 : i32
    return %arg0, %c0_i32 : i32, i32
  }
  func.func @transform_2(%arg0: i32) -> (i32, i32) {
    %c0_i32 = arith.constant 0 : i32
    %c0_i32_0 = arith.constant 0 : i32
    %c0_i32_1 = arith.constant 0 : i32
    return %c0_i32, %c0_i32_0 : i32, i32
  }
  func.func @transform_3(%arg0: i32) -> (i32, i32) {
    %c0_i32 = arith.constant 0 : i32
    %c0_i32_0 = arith.constant 0 : i32
    %c0_i32_1 = arith.constant 0 : i32
    return %c0_i32, %c0_i32_0 : i32, i32
  }
  func.func @transform_4(%arg0: i32) -> (i32, i32) {
    %c0_i32 = arith.constant 0 : i32
    %c0_i32_0 = arith.constant 0 : i32
    %c0_i32_1 = arith.constant 0 : i32
    return %c0_i32, %c0_i32_0 : i32, i32
  }
  func.func @transform_5(%arg0: i32) -> (i32, i32) {
    %c0_i32 = arith.constant 0 : i32
    %c0_i32_0 = arith.constant 0 : i32
    %c0_i32_1 = arith.constant 0 : i32
    return %c0_i32, %c0_i32_0 : i32, i32
  }
  func.func @transform_6(%arg0: i32) -> (i32, i32) {
    %c0_i32 = arith.constant 0 : i32
    %c0_i32_0 = arith.constant 0 : i32
    %c0_i32_1 = arith.constant 0 : i32
    return %c0_i32, %c0_i32_0 : i32, i32
  }
  func.func @transform_7(%arg0: i32) -> (i32, i32) {
    %c0_i32 = arith.constant 0 : i32
    %c0_i32_0 = arith.constant 0 : i32
    %c0_i32_1 = arith.constant 0 : i32
    return %c0_i32, %c0_i32_0 : i32, i32
  }
  func.func @transform_8(%arg0: i32) -> (i32, i32) {
    %c0_i32 = arith.constant 0 : i32
    %c0_i32_0 = arith.constant 0 : i32
    %c0_i32_1 = arith.constant 0 : i32
    return %c0_i32, %c0_i32_0 : i32, i32
  }
  func.func @transform_9(%arg0: i32) -> (i32, i32) {
    %c0_i32 = arith.constant 0 : i32
    %c0_i32_0 = arith.constant 0 : i32
    return %arg0, %c0_i32 : i32, i32
  }
}

module attributes {stable_mosaic.version = 11 : i64} {
  func.func @_fused_kernel(%arg0: i32, %arg1: memref<8x1024xf32, #tpu.memory_space<vmem>>, %arg2: memref<8x1024xf32, #tpu.memory_space<vmem>>, %arg3: memref<1024x128xbf16, #tpu.memory_space<vmem>>, %arg4: memref<128x1024xbf16, #tpu.memory_space<vmem>>, %arg5: memref<1024x256xbf16, #tpu.memory_space<vmem>>, %arg6: memref<1024x256xbf16, #tpu.memory_space<vmem>>, %arg7: memref<1x256xf32, #tpu.memory_space<vmem>>, %arg8: memref<256x128xbf16, #tpu.memory_space<vmem>>, %arg9: memref<1x128xf32, #tpu.memory_space<vmem>>, %arg10: memref<8x128xf32, #tpu.memory_space<vmem>>) attributes {dimension_semantics = [#tpu.dimension_semantics<parallel>], iteration_bounds = array<i64: 1>, scalar_prefetch = 0 : i64, scratch_operands = 0 : i64, tpu.core_type = #tpu.core_type<tc>, window_params = [{transform_indices = @transform_0, window_bounds = array<i64: 8, 1024>}, {transform_indices = @transform_1, window_bounds = array<i64: 8, 1024>}, {pipeline_mode = #tpu.pipeline_mode<synchronous>, transform_indices = @transform_2, window_bounds = array<i64: 1024, 128>}, {pipeline_mode = #tpu.pipeline_mode<synchronous>, transform_indices = @transform_3, window_bounds = array<i64: 128, 1024>}, {pipeline_mode = #tpu.pipeline_mode<synchronous>, transform_indices = @transform_4, window_bounds = array<i64: 1024, 256>}, {pipeline_mode = #tpu.pipeline_mode<synchronous>, transform_indices = @transform_5, window_bounds = array<i64: 1024, 256>}, {pipeline_mode = #tpu.pipeline_mode<synchronous>, transform_indices = @transform_6, window_bounds = array<i64: 1, 256>}, {pipeline_mode = #tpu.pipeline_mode<synchronous>, transform_indices = @transform_7, window_bounds = array<i64: 256, 128>}, {pipeline_mode = #tpu.pipeline_mode<synchronous>, transform_indices = @transform_8, window_bounds = array<i64: 1, 128>}, {transform_indices = @transform_9, window_bounds = array<i64: 8, 128>}]} {
    %c0 = arith.constant 0 : index
    %c0_0 = arith.constant 0 : index
    %0 = vector.load %arg1[%c0, %c0_0] : memref<8x1024xf32, #tpu.memory_space<vmem>>, vector<8x1024xf32>
    %1 = arith.truncf %0 : vector<8x1024xf32> to vector<8x1024xbf16>
    %c0_1 = arith.constant 0 : index
    %c0_2 = arith.constant 0 : index
    %2 = vector.load %arg2[%c0_1, %c0_2] : memref<8x1024xf32, #tpu.memory_space<vmem>>, vector<8x1024xf32>
    %3 = arith.truncf %2 : vector<8x1024xf32> to vector<8x1024xbf16>
    %c0_3 = arith.constant 0 : index
    %c0_4 = arith.constant 0 : index
    %4 = vector.load %arg3[%c0_3, %c0_4] : memref<1024x128xbf16, #tpu.memory_space<vmem>>, vector<1024x128xbf16>
    %cst = arith.constant dense<0.000000e+00> : vector<8x128xf32>
    %5 = tpu.matmul %1, %4, %cst {dimension_numbers = #tpu.dot_dimension_numbers<[1], [0], [0], [1], [0, 0, 1, 1], [], []>} : vector<8x1024xbf16>, vector<1024x128xbf16>, vector<8x128xf32> -> vector<8x128xf32>
    %cst_5 = arith.constant dense<0.000000e+00> : vector<8x128xf32>
    %6 = tpu.matmul %3, %4, %cst_5 {dimension_numbers = #tpu.dot_dimension_numbers<[1], [0], [0], [1], [0, 0, 1, 1], [], []>} : vector<8x1024xbf16>, vector<1024x128xbf16>, vector<8x128xf32> -> vector<8x128xf32>
    %7 = tpu.concatenate %5, %6 in 0 : vector<8x128xf32>, vector<8x128xf32> -> vector<16x128xf32>
    %8 = arith.truncf %7 : vector<16x128xf32> to vector<16x128xbf16>
    %c0_6 = arith.constant 0 : index
    %c0_7 = arith.constant 0 : index
    %9 = vector.load %arg4[%c0_6, %c0_7] : memref<128x1024xbf16, #tpu.memory_space<vmem>>, vector<128x1024xbf16>
    %cst_8 = arith.constant dense<0.000000e+00> : vector<16x1024xf32>
    %10 = tpu.matmul %8, %9, %cst_8 {dimension_numbers = #tpu.dot_dimension_numbers<[1], [0], [0], [1], [0, 0, 1, 1], [], []>} : vector<16x128xbf16>, vector<128x1024xbf16>, vector<16x1024xf32> -> vector<16x1024xf32>
    %cst_9 = arith.constant 0.000000e+00 : f32
    %11 = vector.broadcast %cst_9 : f32 to vector<16x1024xf32>
    %12 = arith.maximumf %10, %11 : vector<16x1024xf32>
    %13 = vector.extract_strided_slice %12 {offsets = [0, 0], sizes = [8, 1024], strides = [1, 1]} : vector<16x1024xf32> to vector<8x1024xf32>
    %14 = arith.truncf %13 : vector<8x1024xf32> to vector<8x1024xbf16>
    %15 = vector.extract_strided_slice %12 {offsets = [8, 0], sizes = [8, 1024], strides = [1, 1]} : vector<16x1024xf32> to vector<8x1024xf32>
    %16 = arith.truncf %15 : vector<8x1024xf32> to vector<8x1024xbf16>
    %c0_10 = arith.constant 0 : index
    %c0_11 = arith.constant 0 : index
    %17 = vector.load %arg5[%c0_10, %c0_11] : memref<1024x256xbf16, #tpu.memory_space<vmem>>, vector<1024x256xbf16>
    %cst_12 = arith.constant dense<0.000000e+00> : vector<8x256xf32>
    %18 = tpu.matmul %14, %17, %cst_12 {dimension_numbers = #tpu.dot_dimension_numbers<[1], [0], [0], [1], [0, 0, 1, 1], [], []>} : vector<8x1024xbf16>, vector<1024x256xbf16>, vector<8x256xf32> -> vector<8x256xf32>
    %c0_13 = arith.constant 0 : index
    %c0_14 = arith.constant 0 : index
    %19 = vector.load %arg6[%c0_13, %c0_14] : memref<1024x256xbf16, #tpu.memory_space<vmem>>, vector<1024x256xbf16>
    %cst_15 = arith.constant dense<0.000000e+00> : vector<8x256xf32>
    %20 = tpu.matmul %16, %19, %cst_15 {dimension_numbers = #tpu.dot_dimension_numbers<[1], [0], [0], [1], [0, 0, 1, 1], [], []>} : vector<8x1024xbf16>, vector<1024x256xbf16>, vector<8x256xf32> -> vector<8x256xf32>
    %21 = arith.addf %18, %20 : vector<8x256xf32>
    %c0_16 = arith.constant 0 : index
    %c0_17 = arith.constant 0 : index
    %22 = vector.load %arg7[%c0_16, %c0_17] : memref<1x256xf32, #tpu.memory_space<vmem>>, vector<1x256xf32>
    %23 = vector.broadcast %22 : vector<1x256xf32> to vector<8x256xf32>
    %24 = arith.addf %21, %23 : vector<8x256xf32>
    %cst_18 = arith.constant 0.000000e+00 : f32
    %25 = vector.broadcast %cst_18 : f32 to vector<8x256xf32>
    %26 = arith.maximumf %24, %25 : vector<8x256xf32>
    %27 = arith.truncf %26 : vector<8x256xf32> to vector<8x256xbf16>
    %c0_19 = arith.constant 0 : index
    %c0_20 = arith.constant 0 : index
    %28 = vector.load %arg8[%c0_19, %c0_20] : memref<256x128xbf16, #tpu.memory_space<vmem>>, vector<256x128xbf16>
    %cst_21 = arith.constant dense<0.000000e+00> : vector<8x128xf32>
    %29 = tpu.matmul %27, %28, %cst_21 {dimension_numbers = #tpu.dot_dimension_numbers<[1], [0], [0], [1], [0, 0, 1, 1], [], []>} : vector<8x256xbf16>, vector<256x128xbf16>, vector<8x128xf32> -> vector<8x128xf32>
    %c0_22 = arith.constant 0 : index
    %c0_23 = arith.constant 0 : index
    %30 = vector.load %arg9[%c0_22, %c0_23] : memref<1x128xf32, #tpu.memory_space<vmem>>, vector<1x128xf32>
    %31 = vector.broadcast %30 : vector<1x128xf32> to vector<8x128xf32>
    %32 = arith.addf %29, %31 : vector<8x128xf32>
    %c0_24 = arith.constant 0 : index
    %c0_25 = arith.constant 0 : index
    %33 = vector.load %arg10[%c0_24, %c0_25] : memref<8x128xf32, #tpu.memory_space<vmem>>, vector<8x128xf32>
    tpu.vector_store %arg10[%c0_24, %c0_25], %32 {strides = array<i32>} : memref<8x128xf32, #tpu.memory_space<vmem>>, vector<8x128xf32>,
    return
  }
  func.func @transform_0(%arg0: i32) -> (i32, i32) {
    %c0_i32 = arith.constant 0 : i32
    %c0_i32_0 = arith.constant 0 : i32
    return %arg0, %c0_i32 : i32, i32
  }
  func.func @transform_1(%arg0: i32) -> (i32, i32) {
    %c0_i32 = arith.constant 0 : i32
    %c0_i32_0 = arith.constant 0 : i32
    return %arg0, %c0_i32 : i32, i32
  }
  func.func @transform_2(%arg0: i32) -> (i32, i32) {
    %c0_i32 = arith.constant 0 : i32
    %c0_i32_0 = arith.constant 0 : i32
    %c0_i32_1 = arith.constant 0 : i32
    return %c0_i32, %c0_i32_0 : i32, i32
  }
  func.func @transform_3(%arg0: i32) -> (i32, i32) {
    %c0_i32 = arith.constant 0 : i32
    %c0_i32_0 = arith.constant 0 : i32
    %c0_i32_1 = arith.constant 0 : i32
    return %c0_i32, %c0_i32_0 : i32, i32
  }
  func.func @transform_4(%arg0: i32) -> (i32, i32) {
    %c0_i32 = arith.constant 0 : i32
    %c0_i32_0 = arith.constant 0 : i32
    %c0_i32_1 = arith.constant 0 : i32
    return %c0_i32, %c0_i32_0 : i32, i32
  }
  func.func @transform_5(%arg0: i32) -> (i32, i32) {
    %c0_i32 = arith.constant 0 : i32
    %c0_i32_0 = arith.constant 0 : i32
    %c0_i32_1 = arith.constant 0 : i32
    return %c0_i32, %c0_i32_0 : i32, i32
  }
  func.func @transform_6(%arg0: i32) -> (i32, i32) {
    %c0_i32 = arith.constant 0 : i32
    %c0_i32_0 = arith.constant 0 : i32
    %c0_i32_1 = arith.constant 0 : i32
    return %c0_i32, %c0_i32_0 : i32, i32
  }
  func.func @transform_7(%arg0: i32) -> (i32, i32) {
    %c0_i32 = arith.constant 0 : i32
    %c0_i32_0 = arith.constant 0 : i32
    %c0_i32_1 = arith.constant 0 : i32
    return %c0_i32, %c0_i32_0 : i32, i32
  }
  func.func @transform_8(%arg0: i32) -> (i32, i32) {
    %c0_i32 = arith.constant 0 : i32
    %c0_i32_0 = arith.constant 0 : i32
    %c0_i32_1 = arith.constant 0 : i32
    return %c0_i32, %c0_i32_0 : i32, i32
  }
  func.func @transform_9(%arg0: i32) -> (i32, i32) {
    %c0_i32 = arith.constant 0 : i32
    %c0_i32_0 = arith.constant 0 : i32
    return %arg0, %c0_i32 : i32, i32
  }
}

</mosaic_0001>

<llo_original>
// kernel: tpu_custom_call.1
$region0: #{tpu_custom_call.1}
  #allocation0 [shape = 'u32[]', space=smem, size = 0x4, offset = 0x4, fixed_abs, tag = 'smem constant byte address 0x4 - core index']
  #allocation1 [shape = 'u32[144,128]{1,0:T(1,128)}', space=vmem, size = 0x12000, scoped, tag = 'internal scratch']
  %s0 = inlined_call_operand.hbm [shape: f32[8,1024], index: 0, kind: input, shape index: {}]
  %s1 = inlined_call_operand.hbm [shape: f32[8,1024], index: 1, kind: input, shape index: {}]
  %s2 = inlined_call_operand.hbm [shape: bf16[1024,128], index: 2, kind: input, shape index: {}]
  %s3 = inlined_call_operand.hbm [shape: bf16[128,1024], index: 3, kind: input, shape index: {}]
  %s4 = inlined_call_operand.hbm [shape: bf16[1024,256], index: 4, kind: input, shape index: {}]
  %s5 = inlined_call_operand.hbm [shape: bf16[1024,256], index: 5, kind: input, shape index: {}]
  %s6 = inlined_call_operand.vmem [shape: f32[1,256], index: 6, kind: input, shape index: {}]
  %s7 = inlined_call_operand.hbm [shape: bf16[256,128], index: 7, kind: input, shape index: {}]
  %s8 = inlined_call_operand.vmem [shape: f32[1,128], index: 8, kind: input, shape index: {}]
  %s9 = inlined_call_operand.hbm [shape: f32[8,128], index: 9, kind: output, shape index: {}]
  %s10 = sld [smem:[#allocation0]]
  $region74: #{tpu_custom_call.1} parent=0
    _
  %s12 = ssub.s32 1, %s10
  %s13 = scalar_select 0, %s12, %s10
  $region1: #{tpu_custom_call.1} parent=0
    #allocation2 [shape = 'u8[32768]{0}', space=vmem, size = 0x8000, scoped, tag = 'input window, operand 0, single buffered']
    #allocation3 [shape = 's32[1]{0}', space=sflag, size = 0x4, scoped, tag = 'scoped memory for tpu_custom_call.1']
    #allocation4 [shape = 's32[1]{0}', space=sflag, size = 0x4, scoped, tag = 'scoped memory for tpu_custom_call.1']
    #allocation5 [shape = 'u8[32768]{0}', space=vmem, size = 0x8000, scoped, tag = 'input window, operand 1, single buffered']
    #allocation6 [shape = 's32[1]{0}', space=sflag, size = 0x4, scoped, tag = 'scoped memory for tpu_custom_call.1']
    #allocation7 [shape = 'u8[262144]{0}', space=vmem, size = 0x40000, scoped, tag = 'input window, operand 2, single buffered']
    #allocation8 [shape = 'u8[262144]{0}', space=vmem, size = 0x40000, scoped, tag = 'input window, operand 3, single buffered']
    #allocation9 [shape = 's32[1]{0}', space=sflag, size = 0x4, scoped, tag = 'scoped memory for tpu_custom_call.1']
    #allocation10 [shape = 'u8[524288]{0}', space=vmem, size = 0x80000, scoped, tag = 'input window, operand 4, single buffered']
    #allocation11 [shape = 'u8[524288]{0}', space=vmem, size = 0x80000, scoped, tag = 'input window, operand 5, single buffered']
    #allocation12 [shape = 's32[1]{0}', space=sflag, size = 0x4, scoped, tag = 'scoped memory for tpu_custom_call.1']
    #allocation13 [shape = 'u8[65536]{0}', space=vmem, size = 0x10000, scoped, tag = 'input window, operand 7, single buffered']
    #allocation14 [shape = 'u8[4096]{0}', space=vmem, size = 0x1000, scoped, tag = 'output window, operand 0, single buffered']
    %14 = vsyncpa [#allocation3], 0
    %15 = vsyncpa [#allocation6], 0
    %16 = vsyncpa [#allocation9], 0
    %17 = vsyncpa [#allocation12], 0
    %18 = vsyncpa [#allocation4], 0
    // Predicated region
    $region2: #{tpu_custom_call.1} parent=1 // pred_check
      _
    $region3: #{tpu_custom_call.1} parent=1 // pred_check_branch
      %20 = sbr.rel (0) target = $region5
    $region4: #{tpu_custom_call.1} parent=1 // pred_region
      %s22 = ssub.s32 1024, 1024
      %23 = vsyncadd [#allocation3], %s22
      %s25 = sshll.u32 [#allocation2], 4
      %s26 = int_to_ptr.vmem [resolvable:$true] %s25
      %28 = dma.hbm_to_vmem [thread:$0]  %s0, 1024, %s26, [#allocation3]
    $region5: #{tpu_custom_call.1} parent=1 // pred_fallthru
      _
    // Predicated region
    $region6: #{tpu_custom_call.1} parent=1 // pred_check
      _
    $region7: #{tpu_custom_call.1} parent=1 // pred_check_branch
      %30 = sbr.rel (0) target = $region9
    $region8: #{tpu_custom_call.1} parent=1 // pred_region
      %s32 = ssub.s32 1024, 1024
      %33 = vsyncadd [#allocation6], %s32
      %s35 = sshll.u32 [#allocation5], 4
      %s36 = int_to_ptr.vmem [resolvable:$true] %s35
      %38 = dma.hbm_to_vmem [thread:$0]  %s1, 1024, %s36, [#allocation6]
    $region9: #{tpu_custom_call.1} parent=1 // pred_fallthru
      _
    // Predicated region
    $region10: #{tpu_custom_call.1} parent=1 // pred_check
      _
    $region11: #{tpu_custom_call.1} parent=1 // pred_check_branch
      %40 = sbr.rel (0) target = $region13
    $region12: #{tpu_custom_call.1} parent=1 // pred_region
      %s42 = ssub.s32 8192, 8192
      %43 = vsyncadd [#allocation6], %s42
      %s44 = sshll.u32 [#allocation7], 4
      %s45 = int_to_ptr.vmem [resolvable:$true] %s44
      %50 = dma.hbm_to_vmem [thread:$0]  %s2, 8192, %s45, [#allocation6], 64, 64, 4
    $region13: #{tpu_custom_call.1} parent=1 // pred_fallthru
      _
    // Predicated region
    $region14: #{tpu_custom_call.1} parent=1 // pred_check
      _
    $region15: #{tpu_custom_call.1} parent=1 // pred_check_branch
      %52 = sbr.rel (0) target = $region17
    $region16: #{tpu_custom_call.1} parent=1 // pred_region
      %s54 = ssub.s32 8192, 8192
      %55 = vsyncadd [#allocation9], %s54
      %s56 = sshll.u32 [#allocation8], 4
      %s57 = int_to_ptr.vmem [resolvable:$true] %s56
      %62 = dma.hbm_to_vmem [thread:$0]  %s3, 8192, %s57, [#allocation9], 512, 512, 32
    $region17: #{tpu_custom_call.1} parent=1 // pred_fallthru
      _
    // Predicated region
    $region18: #{tpu_custom_call.1} parent=1 // pred_check
      _
    $region19: #{tpu_custom_call.1} parent=1 // pred_check_branch
      %64 = sbr.rel (0) target = $region21
    $region20: #{tpu_custom_call.1} parent=1 // pred_region
      %s66 = ssub.s32 16384, 16384
      %67 = vsyncadd [#allocation9], %s66
      %s68 = sshll.u32 [#allocation10], 4
      %s69 = int_to_ptr.vmem [resolvable:$true] %s68
      %74 = dma.hbm_to_vmem [thread:$0]  %s4, 16384, %s69, [#allocation9], 128, 128, 8
    $region21: #{tpu_custom_call.1} parent=1 // pred_fallthru
      _
    // Predicated region
    $region22: #{tpu_custom_call.1} parent=1 // pred_check
      _
    $region23: #{tpu_custom_call.1} parent=1 // pred_check_branch
      %76 = sbr.rel (0) target = $region25
    $region24: #{tpu_custom_call.1} parent=1 // pred_region
      %s78 = ssub.s32 16384, 16384
      %79 = vsyncadd [#allocation12], %s78
      %s80 = sshll.u32 [#allocation11], 4
      %s81 = int_to_ptr.vmem [resolvable:$true] %s80
      %86 = dma.hbm_to_vmem [thread:$0]  %s5, 16384, %s81, [#allocation12], 128, 128, 8
    $region25: #{tpu_custom_call.1} parent=1 // pred_fallthru
      _
    // Predicated region
    $region26: #{tpu_custom_call.1} parent=1 // pred_check
      _
    $region27: #{tpu_custom_call.1} parent=1 // pred_check_branch
      %88 = sbr.rel (0) target = $region29
    $region28: #{tpu_custom_call.1} parent=1 // pred_region
      _
    $region29: #{tpu_custom_call.1} parent=1 // pred_fallthru
      _
    // Predicated region
    $region30: #{tpu_custom_call.1} parent=1 // pred_check
      _
    $region31: #{tpu_custom_call.1} parent=1 // pred_check_branch
      %90 = sbr.rel (0) target = $region33
    $region32: #{tpu_custom_call.1} parent=1 // pred_region
      %s92 = ssub.s32 2048, 2048
      %93 = vsyncadd [#allocation12], %s92
      %s94 = sshll.u32 [#allocation13], 4
      %s95 = int_to_ptr.vmem [resolvable:$true] %s94
      %100 = dma.hbm_to_vmem [thread:$0]  %s7, 2048, %s95, [#allocation12], 64, 64, 4
    $region33: #{tpu_custom_call.1} parent=1 // pred_fallthru
      _
    // Predicated region
    $region34: #{tpu_custom_call.1} parent=1 // pred_check
      _
    $region35: #{tpu_custom_call.1} parent=1 // pred_check_branch
      %102 = sbr.rel (0) target = $region37
    $region36: #{tpu_custom_call.1} parent=1 // pred_region
      _
    $region37: #{tpu_custom_call.1} parent=1 // pred_fallthru
      _
    // Predicated region
    $region38: #{tpu_custom_call.1} parent=1 // pred_check
      _
    $region39: #{tpu_custom_call.1} parent=1 // pred_check_branch
      %104 = sbr.rel (0) target = $region41
    $region40: #{tpu_custom_call.1} parent=1 // pred_region
      %105 = dma.done [#allocation3], 1024
    $region41: #{tpu_custom_call.1} parent=1 // pred_fallthru
      _
    // Predicated region
    $region42: #{tpu_custom_call.1} parent=1 // pred_check
      _
    $region43: #{tpu_custom_call.1} parent=1 // pred_check_branch
      %107 = sbr.rel (0) target = $region45
    $region44: #{tpu_custom_call.1} parent=1 // pred_region
      %108 = dma.done [#allocation6], 1024
    $region45: #{tpu_custom_call.1} parent=1 // pred_fallthru
      _
    // Predicated region
    $region46: #{tpu_custom_call.1} parent=1 // pred_check
      _
    $region47: #{tpu_custom_call.1} parent=1 // pred_check_branch
      %110 = sbr.rel (0) target = $region49
    $region48: #{tpu_custom_call.1} parent=1 // pred_region
      %111 = dma.done [#allocation6], 8192
    $region49: #{tpu_custom_call.1} parent=1 // pred_fallthru
      _
    // Predicated region
    $region50: #{tpu_custom_call.1} parent=1 // pred_check
      _
    $region51: #{tpu_custom_call.1} parent=1 // pred_check_branch
      %113 = sbr.rel (0) target = $region53
    $region52: #{tpu_custom_call.1} parent=1 // pred_region
      %114 = dma.done [#allocation9], 8192
    $region53: #{tpu_custom_call.1} parent=1 // pred_fallthru
      _
    // Predicated region
    $region54: #{tpu_custom_call.1} parent=1 // pred_check
      _
    $region55: #{tpu_custom_call.1} parent=1 // pred_check_branch
      %116 = sbr.rel (0) target = $region57
    $region56: #{tpu_custom_call.1} parent=1 // pred_region
      %117 = dma.done [#allocation9], 16384
    $region57: #{tpu_custom_call.1} parent=1 // pred_fallthru
      _
    // Predicated region
    $region58: #{tpu_custom_call.1} parent=1 // pred_check
      _
    $region59: #{tpu_custom_call.1} parent=1 // pred_check_branch
      %119 = sbr.rel (0) target = $region61
    $region60: #{tpu_custom_call.1} parent=1 // pred_region
      %120 = dma.done [#allocation12], 16384
    $region61: #{tpu_custom_call.1} parent=1 // pred_fallthru
      _
    // Predicated region
    $region62: #{tpu_custom_call.1} parent=1 // pred_check
      _
    $region63: #{tpu_custom_call.1} parent=1 // pred_check_branch
      %122 = sbr.rel (0) target = $region65
    $region64: #{tpu_custom_call.1} parent=1 // pred_region
      %123 = dma.done [#allocation12], 2048
    $region65: #{tpu_custom_call.1} parent=1 // pred_fallthru
      _
    %v125 = vld [vmem:[#allocation2] sm:$0xff]
    %v126 = vld [vmem:[#allocation2 + $0x8] sm:$0xff]
    %v127 = vld [vmem:[#allocation2 + $0x10] sm:$0xff]
    %v128 = vld [vmem:[#allocation2 + $0x18] sm:$0xff]
    %v129 = vld [vmem:[#allocation2 + $0x20] sm:$0xff]
    %v130 = vld [vmem:[#allocation2 + $0x28] sm:$0xff]
    %v131 = vld [vmem:[#allocation2 + $0x30] sm:$0xff]
    %v132 = vld [vmem:[#allocation2 + $0x38] sm:$0xff]
    %v133 = vpack.c.bf16 %v125, %v125
    %v134 = vpack.c.bf16 %v126, %v126
    %v135 = vpack.c.bf16 %v127, %v127
    %v136 = vpack.c.bf16 %v128, %v128
    %v137 = vpack.c.bf16 %v129, %v129
    %v138 = vpack.c.bf16 %v130, %v130
    %v139 = vpack.c.bf16 %v131, %v131
    %v140 = vpack.c.bf16 %v132, %v132
    %v141 = vld [vmem:[#allocation5] sm:$0xff]
    %v142 = vld [vmem:[#allocation5 + $0x8] sm:$0xff]
    %v143 = vld [vmem:[#allocation5 + $0x10] sm:$0xff]
    %v144 = vld [vmem:[#allocation5 + $0x18] sm:$0xff]
    %v145 = vld [vmem:[#allocation5 + $0x20] sm:$0xff]
    %v146 = vld [vmem:[#allocation5 + $0x28] sm:$0xff]
    %v147 = vld [vmem:[#allocation5 + $0x30] sm:$0xff]
    %v148 = vld [vmem:[#allocation5 + $0x38] sm:$0xff]
    %v149 = vpack.c.bf16 %v141, %v141
    %v150 = vpack.c.bf16 %v142, %v142
    %v151 = vpack.c.bf16 %v143, %v143
    %v152 = vpack.c.bf16 %v144, %v144
    %v153 = vpack.c.bf16 %v145, %v145
    %v154 = vpack.c.bf16 %v146, %v146
    %v155 = vpack.c.bf16 %v147, %v147
    %v156 = vpack.c.bf16 %v148, %v148
    %v157 = vld [vmem:[#allocation7] sm:$0xf]
    %v158 = vld [vmem:[#allocation7 + $0x4] sm:$0xf]
    %v159 = vld [vmem:[#allocation7 + $0x8] sm:$0xf]
    %v160 = vld [vmem:[#allocation7 + $0xc] sm:$0xf]
    %v161 = vld [vmem:[#allocation7 + $0x10] sm:$0xf]
    %v162 = vld [vmem:[#allocation7 + $0x14] sm:$0xf]
    %v163 = vld [vmem:[#allocation7 + $0x18] sm:$0xf]
    %v164 = vld [vmem:[#allocation7 + $0x1c] sm:$0xf]
    %v165 = vld [vmem:[#allocation7 + $0x20] sm:$0xf]
    %v166 = vld [vmem:[#allocation7 + $0x24] sm:$0xf]
    %v167 = vld [vmem:[#allocation7 + $0x28] sm:$0xf]
    %v168 = vld [vmem:[#allocation7 + $0x2c] sm:$0xf]
    %v169 = vld [vmem:[#allocation7 + $0x30] sm:$0xf]
    %v170 = vld [vmem:[#allocation7 + $0x34] sm:$0xf]
    %v171 = vld [vmem:[#allocation7 + $0x38] sm:$0xf]
    %v172 = vld [vmem:[#allocation7 + $0x3c] sm:$0xf]
    %v173 = vld [vmem:[#allocation7 + $0x40] sm:$0xf]
    %v174 = vld [vmem:[#allocation7 + $0x44] sm:$0xf]
    %v175 = vld [vmem:[#allocation7 + $0x48] sm:$0xf]
    %v176 = vld [vmem:[#allocation7 + $0x4c] sm:$0xf]
    %v177 = vld [vmem:[#allocation7 + $0x50] sm:$0xf]
    %v178 = vld [vmem:[#allocation7 + $0x54] sm:$0xf]
    %v179 = vld [vmem:[#allocation7 + $0x58] sm:$0xf]
    %v180 = vld [vmem:[#allocation7 + $0x5c] sm:$0xf]
    %v181 = vld [vmem:[#allocation7 + $0x60] sm:$0xf]
    %v182 = vld [vmem:[#allocation7 + $0x64] sm:$0xf]
    %v183 = vld [vmem:[#allocation7 + $0x68] sm:$0xf]
    %v184 = vld [vmem:[#allocation7 + $0x6c] sm:$0xf]
    %v185 = vld [vmem:[#allocation7 + $0x70] sm:$0xf]
    %v186 = vld [vmem:[#allocation7 + $0x74] sm:$0xf]
    %v187 = vld [vmem:[#allocation7 + $0x78] sm:$0xf]
    %v188 = vld [vmem:[#allocation7 + $0x7c] sm:$0xf]
    %v189 = vld [vmem:[#allocation7 + $0x80] sm:$0xf]
    %v190 = vld [vmem:[#allocation7 + $0x84] sm:$0xf]
    %v191 = vld [vmem:[#allocation7 + $0x88] sm:$0xf]
    %v192 = vld [vmem:[#allocation7 + $0x8c] sm:$0xf]
    %v193 = vld [vmem:[#allocation7 + $0x90] sm:$0xf]
    %v194 = vld [vmem:[#allocation7 + $0x94] sm:$0xf]
    %v195 = vld [vmem:[#allocation7 + $0x98] sm:$0xf]
    %v196 = vld [vmem:[#allocation7 + $0x9c] sm:$0xf]
    %v197 = vld [vmem:[#allocation7 + $0xa0] sm:$0xf]
    %v198 = vld [vmem:[#allocation7 + $0xa4] sm:$0xf]
    %v199 = vld [vmem:[#allocation7 + $0xa8] sm:$0xf]
    %v200 = vld [vmem:[#allocation7 + $0xac] sm:$0xf]
    %v201 = vld [vmem:[#allocation7 + $0xb0] sm:$0xf]
    %v202 = vld [vmem:[#allocation7 + $0xb4] sm:$0xf]
    %v203 = vld [vmem:[#allocation7 + $0xb8] sm:$0xf]
    %v204 = vld [vmem:[#allocation7 + $0xbc] sm:$0xf]
    %v205 = vld [vmem:[#allocation7 + $0xc0] sm:$0xf]
    %v206 = vld [vmem:[#allocation7 + $0xc4] sm:$0xf]
    %v207 = vld [vmem:[#allocation7 + $0xc8] sm:$0xf]
    %v208 = vld [vmem:[#allocation7 + $0xcc] sm:$0xf]
    %v209 = vld [vmem:[#allocation7 + $0xd0] sm:$0xf]
    %v210 = vld [vmem:[#allocation7 + $0xd4] sm:$0xf]
    %v211 = vld [vmem:[#allocation7 + $0xd8] sm:$0xf]
    %v212 = vld [vmem:[#allocation7 + $0xdc] sm:$0xf]
    %v213 = vld [vmem:[#allocation7 + $0xe0] sm:$0xf]
    %v214 = vld [vmem:[#allocation7 + $0xe4] sm:$0xf]
    %v215 = vld [vmem:[#allocation7 + $0xe8] sm:$0xf]
    %v216 = vld [vmem:[#allocation7 + $0xec] sm:$0xf]
    %v217 = vld [vmem:[#allocation7 + $0xf0] sm:$0xf]
    %v218 = vld [vmem:[#allocation7 + $0xf4] sm:$0xf]
    %v219 = vld [vmem:[#allocation7 + $0xf8] sm:$0xf]
    %v220 = vld [vmem:[#allocation7 + $0xfc] sm:$0xf]
    %v221 = vld [vmem:[#allocation7 + $0x100] sm:$0xf]
    %v222 = vld [vmem:[#allocation7 + $0x104] sm:$0xf]
    %v223 = vld [vmem:[#allocation7 + $0x108] sm:$0xf]
    %v224 = vld [vmem:[#allocation7 + $0x10c] sm:$0xf]
    %v225 = vld [vmem:[#allocation7 + $0x110] sm:$0xf]
    %v226 = vld [vmem:[#allocation7 + $0x114] sm:$0xf]
    %v227 = vld [vmem:[#allocation7 + $0x118] sm:$0xf]
    %v228 = vld [vmem:[#allocation7 + $0x11c] sm:$0xf]
    %v229 = vld [vmem:[#allocation7 + $0x120] sm:$0xf]
    %v230 = vld [vmem:[#allocation7 + $0x124] sm:$0xf]
    %v231 = vld [vmem:[#allocation7 + $0x128] sm:$0xf]
    %v232 = vld [vmem:[#allocation7 + $0x12c] sm:$0xf]
    %v233 = vld [vmem:[#allocation7 + $0x130] sm:$0xf]
    %v234 = vld [vmem:[#allocation7 + $0x134] sm:$0xf]
    %v235 = vld [vmem:[#allocation7 + $0x138] sm:$0xf]
    %v236 = vld [vmem:[#allocation7 + $0x13c] sm:$0xf]
    %v237 = vld [vmem:[#allocation7 + $0x140] sm:$0xf]
    %v238 = vld [vmem:[#allocation7 + $0x144] sm:$0xf]
    %v239 = vld [vmem:[#allocation7 + $0x148] sm:$0xf]
    %v240 = vld [vmem:[#allocation7 + $0x14c] sm:$0xf]
    %v241 = vld [vmem:[#allocation7 + $0x150] sm:$0xf]
    %v242 = vld [vmem:[#allocation7 + $0x154] sm:$0xf]
    %v243 = vld [vmem:[#allocation7 + $0x158] sm:$0xf]
    %v244 = vld [vmem:[#allocation7 + $0x15c] sm:$0xf]
    %v245 = vld [vmem:[#allocation7 + $0x160] sm:$0xf]
    %v246 = vld [vmem:[#allocation7 + $0x164] sm:$0xf]
    %v247 = vld [vmem:[#allocation7 + $0x168] sm:$0xf]
    %v248 = vld [vmem:[#allocation7 + $0x16c] sm:$0xf]
    %v249 = vld [vmem:[#allocation7 + $0x170] sm:$0xf]
    %v250 = vld [vmem:[#allocation7 + $0x174] sm:$0xf]
    %v251 = vld [vmem:[#allocation7 + $0x178] sm:$0xf]
    %v252 = vld [vmem:[#allocation7 + $0x17c] sm:$0xf]
    %v253 = vld [vmem:[#allocation7 + $0x180] sm:$0xf]
    %v254 = vld [vmem:[#allocation7 + $0x184] sm:$0xf]
    %v255 = vld [vmem:[#allocation7 + $0x188] sm:$0xf]
    %v256 = vld [vmem:[#allocation7 + $0x18c] sm:$0xf]
    %v257 = vld [vmem:[#allocation7 + $0x190] sm:$0xf]
    %v258 = vld [vmem:[#allocation7 + $0x194] sm:$0xf]
    %v259 = vld [vmem:[#allocation7 + $0x198] sm:$0xf]
    %v260 = vld [vmem:[#allocation7 + $0x19c] sm:$0xf]
    %v261 = vld [vmem:[#allocation7 + $0x1a0] sm:$0xf]
    %v262 = vld [vmem:[#allocation7 + $0x1a4] sm:$0xf]
    %v263 = vld [vmem:[#allocation7 + $0x1a8] sm:$0xf]
    %v264 = vld [vmem:[#allocation7 + $0x1ac] sm:$0xf]
    %v265 = vld [vmem:[#allocation7 + $0x1b0] sm:$0xf]
    %v266 = vld [vmem:[#allocation7 + $0x1b4] sm:$0xf]
    %v267 = vld [vmem:[#allocation7 + $0x1b8] sm:$0xf]
    %v268 = vld [vmem:[#allocation7 + $0x1bc] sm:$0xf]
    %v269 = vld [vmem:[#allocation7 + $0x1c0] sm:$0xf]
    %v270 = vld [vmem:[#allocation7 + $0x1c4] sm:$0xf]
    %v271 = vld [vmem:[#allocation7 + $0x1c8] sm:$0xf]
    %v272 = vld [vmem:[#allocation7 + $0x1cc] sm:$0xf]
    %v273 = vld [vmem:[#allocation7 + $0x1d0] sm:$0xf]
    %v274 = vld [vmem:[#allocation7 + $0x1d4] sm:$0xf]
    %v275 = vld [vmem:[#allocation7 + $0x1d8] sm:$0xf]
    %v276 = vld [vmem:[#allocation7 + $0x1dc] sm:$0xf]
    %v277 = vld [vmem:[#allocation7 + $0x1e0] sm:$0xf]
    %v278 = vld [vmem:[#allocation7 + $0x1e4] sm:$0xf]
    %v279 = vld [vmem:[#allocation7 + $0x1e8] sm:$0xf]
    %v280 = vld [vmem:[#allocation7 + $0x1ec] sm:$0xf]
    %v281 = vld [vmem:[#allocation7 + $0x1f0] sm:$0xf]
    %v282 = vld [vmem:[#allocation7 + $0x1f4] sm:$0xf]
    %v283 = vld [vmem:[#allocation7 + $0x1f8] sm:$0xf]
    %v284 = vld [vmem:[#allocation7 + $0x1fc] sm:$0xf]
    %v413 = vunpack.c.l.b16 %v157
    %v414 = vunpack.c.l.b16 %v158
    %v415 = vunpack.c.l.b16 %v159
    %v416 = vunpack.c.l.b16 %v160
    %v417 = vunpack.c.l.b16 %v161
    %v418 = vunpack.c.l.b16 %v162
    %v419 = vunpack.c.l.b16 %v163
    %v420 = vunpack.c.l.b16 %v164
    %v421 = vunpack.c.l.b16 %v165
    %v422 = vunpack.c.l.b16 %v166
    %v423 = vunpack.c.l.b16 %v167
    %v424 = vunpack.c.l.b16 %v168
    %v425 = vunpack.c.l.b16 %v169
    %v426 = vunpack.c.l.b16 %v170
    %v427 = vunpack.c.l.b16 %v171
    %v428 = vunpack.c.l.b16 %v172
    %v429 = vunpack.c.l.b16 %v173
    %v430 = vunpack.c.l.b16 %v174
    %v431 = vunpack.c.l.b16 %v175
    %v432 = vunpack.c.l.b16 %v176
    %v433 = vunpack.c.l.b16 %v177
    %v434 = vunpack.c.l.b16 %v178
    %v435 = vunpack.c.l.b16 %v179
    %v436 = vunpack.c.l.b16 %v180
    %v437 = vunpack.c.l.b16 %v181
    %v438 = vunpack.c.l.b16 %v182
    %v439 = vunpack.c.l.b16 %v183
    %v440 = vunpack.c.l.b16 %v184
    %v441 = vunpack.c.l.b16 %v185
    %v442 = vunpack.c.l.b16 %v186
    %v443 = vunpack.c.l.b16 %v187
    %v444 = vunpack.c.l.b16 %v188
    %v445 = vunpack.c.l.b16 %v189
    %v446 = vunpack.c.l.b16 %v190
    %v447 = vunpack.c.l.b16 %v191
    %v448 = vunpack.c.l.b16 %v192
    %v449 = vunpack.c.l.b16 %v193
    %v450 = vunpack.c.l.b16 %v194
    %v451 = vunpack.c.l.b16 %v195
    %v452 = vunpack.c.l.b16 %v196
    %v453 = vunpack.c.l.b16 %v197
    %v454 = vunpack.c.l.b16 %v198
    %v455 = vunpack.c.l.b16 %v199
    %v456 = vunpack.c.l.b16 %v200
    %v457 = vunpack.c.l.b16 %v201
    %v458 = vunpack.c.l.b16 %v202
    %v459 = vunpack.c.l.b16 %v203
    %v460 = vunpack.c.l.b16 %v204
    %v461 = vunpack.c.l.b16 %v205
    %v462 = vunpack.c.l.b16 %v206
    %v463 = vunpack.c.l.b16 %v207
    %v464 = vunpack.c.l.b16 %v208
    %v465 = vunpack.c.l.b16 %v209
    %v466 = vunpack.c.l.b16 %v210
    %v467 = vunpack.c.l.b16 %v211
    %v468 = vunpack.c.l.b16 %v212
    %v469 = vunpack.c.l.b16 %v213
    %v470 = vunpack.c.l.b16 %v214
    %v471 = vunpack.c.l.b16 %v215
    %v472 = vunpack.c.l.b16 %v216
    %v473 = vunpack.c.l.b16 %v217
    %v474 = vunpack.c.l.b16 %v218
    %v475 = vunpack.c.l.b16 %v219
    %v476 = vunpack.c.l.b16 %v220
    %v477 = vunpack.c.l.b16 %v221
    %v478 = vunpack.c.l.b16 %v222
    %v479 = vunpack.c.l.b16 %v223
    %v480 = vunpack.c.l.b16 %v224
    %v481 = vunpack.c.l.b16 %v225
    %v482 = vunpack.c.l.b16 %v226
    %v483 = vunpack.c.l.b16 %v227
    %v484 = vunpack.c.l.b16 %v228
    %v485 = vunpack.c.l.b16 %v229
    %v486 = vunpack.c.l.b16 %v230
    %v487 = vunpack.c.l.b16 %v231
    %v488 = vunpack.c.l.b16 %v232
    %v489 = vunpack.c.l.b16 %v233
    %v490 = vunpack.c.l.b16 %v234
    %v491 = vunpack.c.l.b16 %v235
    %v492 = vunpack.c.l.b16 %v236
    %v493 = vunpack.c.l.b16 %v237
    %v494 = vunpack.c.l.b16 %v238
    %v495 = vunpack.c.l.b16 %v239
    %v496 = vunpack.c.l.b16 %v240
    %v497 = vunpack.c.l.b16 %v241
    %v498 = vunpack.c.l.b16 %v242
    %v499 = vunpack.c.l.b16 %v243
    %v500 = vunpack.c.l.b16 %v244
    %v501 = vunpack.c.l.b16 %v245
    %v502 = vunpack.c.l.b16 %v246
    %v503 = vunpack.c.l.b16 %v247
    %v504 = vunpack.c.l.b16 %v248
    %v505 = vunpack.c.l.b16 %v249
    %v506 = vunpack.c.l.b16 %v250
    %v507 = vunpack.c.l.b16 %v251
    %v508 = vunpack.c.l.b16 %v252
    %v509 = vunpack.c.l.b16 %v253
    %v510 = vunpack.c.l.b16 %v254
    %v511 = vunpack.c.l.b16 %v255
    %v512 = vunpack.c.l.b16 %v256
    %v513 = vunpack.c.l.b16 %v257
    %v514 = vunpack.c.l.b16 %v258
    %v515 = vunpack.c.l.b16 %v259
    %v516 = vunpack.c.l.b16 %v260
    %v517 = vunpack.c.l.b16 %v261
    %v518 = vunpack.c.l.b16 %v262
    %v519 = vunpack.c.l.b16 %v263
    %v520 = vunpack.c.l.b16 %v264
    %v521 = vunpack.c.l.b16 %v265
    %v522 = vunpack.c.l.b16 %v266
    %v523 = vunpack.c.l.b16 %v267
    %v524 = vunpack.c.l.b16 %v268
    %v525 = vunpack.c.l.b16 %v269
    %v526 = vunpack.c.l.b16 %v270
    %v527 = vunpack.c.l.b16 %v271
    %v528 = vunpack.c.l.b16 %v272
    %v529 = vunpack.c.l.b16 %v273
    %v530 = vunpack.c.l.b16 %v274
    %v531 = vunpack.c.l.b16 %v275
    %v532 = vunpack.c.l.b16 %v276
    %v533 = vunpack.c.l.b16 %v277
    %v534 = vunpack.c.l.b16 %v278
    %v535 = vunpack.c.l.b16 %v279
    %v536 = vunpack.c.l.b16 %v280
    %v537 = vunpack.c.l.b16 %v281
    %v538 = vunpack.c.l.b16 %v282
    %v539 = vunpack.c.l.b16 %v283
    %v540 = vunpack.c.l.b16 %v284
    %v541 = vpack.c.b16 %v414, %v413
    %v542 = vpack.c.b16 %v416, %v415
    %v543 = vpack.c.b16 %v418, %v417
    %v544 = vpack.c.b16 %v420, %v419
    %v545 = vpack.c.b16 %v422, %v421
    %v546 = vpack.c.b16 %v424, %v423
    %v547 = vpack.c.b16 %v426, %v425
    %v548 = vpack.c.b16 %v428, %v427
    %v549 = vpack.c.b16 %v430, %v429
    %v550 = vpack.c.b16 %v432, %v431
    %v551 = vpack.c.b16 %v434, %v433
    %v552 = vpack.c.b16 %v436, %v435
    %v553 = vpack.c.b16 %v438, %v437
    %v554 = vpack.c.b16 %v440, %v439
    %v555 = vpack.c.b16 %v442, %v441
    %v556 = vpack.c.b16 %v444, %v443
    %v557 = vpack.c.b16 %v446, %v445
    %v558 = vpack.c.b16 %v448, %v447
    %v559 = vpack.c.b16 %v450, %v449
    %v560 = vpack.c.b16 %v452, %v451
    %v561 = vpack.c.b16 %v454, %v453
    %v562 = vpack.c.b16 %v456, %v455
    %v563 = vpack.c.b16 %v458, %v457
    %v564 = vpack.c.b16 %v460, %v459
    %v565 = vpack.c.b16 %v462, %v461
    %v566 = vpack.c.b16 %v464, %v463
    %v567 = vpack.c.b16 %v466, %v465
    %v568 = vpack.c.b16 %v468, %v467
    %v569 = vpack.c.b16 %v470, %v469
    %v570 = vpack.c.b16 %v472, %v471
    %v571 = vpack.c.b16 %v474, %v473
    %v572 = vpack.c.b16 %v476, %v475
    %v573 = vpack.c.b16 %v478, %v477
    %v574 = vpack.c.b16 %v480, %v479
    %v575 = vpack.c.b16 %v482, %v481
    %v576 = vpack.c.b16 %v484, %v483
    %v577 = vpack.c.b16 %v486, %v485
    %v578 = vpack.c.b16 %v488, %v487
    %v579 = vpack.c.b16 %v490, %v489
    %v580 = vpack.c.b16 %v492, %v491
    %v581 = vpack.c.b16 %v494, %v493
    %v582 = vpack.c.b16 %v496, %v495
    %v583 = vpack.c.b16 %v498, %v497
    %v584 = vpack.c.b16 %v500, %v499
    %v585 = vpack.c.b16 %v502, %v501
    %v586 = vpack.c.b16 %v504, %v503
    %v587 = vpack.c.b16 %v506, %v505
    %v588 = vpack.c.b16 %v508, %v507
    %v589 = vpack.c.b16 %v510, %v509
    %v590 = vpack.c.b16 %v512, %v511
    %v591 = vpack.c.b16 %v514, %v513
    %v592 = vpack.c.b16 %v516, %v515
    %v593 = vpack.c.b16 %v518, %v517
    %v594 = vpack.c.b16 %v520, %v519
    %v595 = vpack.c.b16 %v522, %v521
    %v596 = vpack.c.b16 %v524, %v523
    %v597 = vpack.c.b16 %v526, %v525
    %v598 = vpack.c.b16 %v528, %v527
    %v599 = vpack.c.b16 %v530, %v529
    %v600 = vpack.c.b16 %v532, %v531
    %v601 = vpack.c.b16 %v534, %v533
    %v602 = vpack.c.b16 %v536, %v535
    %v603 = vpack.c.b16 %v538, %v537
    %v604 = vpack.c.b16 %v540, %v539
    %669 = vmatprep.subr.bf16.mxu0 0
    %670 = vmatpush1.bf16.msra.mxu0 %v548
    %671 = vmatprep.subr.bf16.mxu0 0
    %672 = vmatpush1.bf16.msra.mxu0 %v547
    %673 = vmatprep.subr.bf16.mxu0 0
    %674 = vmatpush1.bf16.msra.mxu0 %v546
    %675 = vmatprep.subr.bf16.mxu0 0
    %676 = vmatpush1.bf16.msra.mxu0 %v545
    %677 = vmatprep.subr.bf16.mxu0 0
    %678 = vmatpush1.bf16.msra.mxu0 %v544
    %679 = vmatprep.subr.bf16.mxu0 0
    %680 = vmatpush1.bf16.msra.mxu0 %v543
    %681 = vmatprep.subr.bf16.mxu0 0
    %682 = vmatpush1.bf16.msra.mxu0 %v542
    %683 = vmatprep.subr.bf16.mxu0 0
    %684 = vmatpush1.bf16.msra.mxu0 %v541
    %685 = vmatprep.subr.bf16.mxu0 0
    %686 = vmatpush2.bf16.msra.mxu0 %v556
    %687 = vmatprep.subr.bf16.mxu0 0
    %688 = vmatpush2.bf16.msra.mxu0 %v555
    %689 = vmatprep.subr.bf16.mxu0 0
    %690 = vmatpush2.bf16.msra.mxu0 %v554
    %691 = vmatprep.subr.bf16.mxu0 0
    %692 = vmatpush2.bf16.msra.mxu0 %v553
    %693 = vmatprep.subr.bf16.mxu0 0
    %694 = vmatpush2.bf16.msra.mxu0 %v552
    %695 = vmatprep.subr.bf16.mxu0 0
    %696 = vmatpush2.bf16.msra.mxu0 %v551
    %697 = vmatprep.subr.bf16.mxu0 0
    %698 = vmatpush2.bf16.msra.mxu0 %v550
    %699 = vmatprep.subr.bf16.mxu0 0
    %700 = vmatpush2.bf16.msra.mxu0 %v549
    %701 = vmatprep.mubr.bf16.mxu0 %v134
    %702 = vmatmul.mubr.bf16.gmra.mxu0 %v133
    %v703 = vpop.f32.mrf.mxu0
    %v704 = vadd.f32 0.0, %v703
    %v705 = vpop.f32.mrf.mxu0
    %v706 = vpop.f32.mrf.mxu0
    %v707 = vpop.f32.mrf.mxu0
    %708 = vdwg.mxu0
    %709 = vmatprep.subr.bf16.mxu0 0
    %710 = vmatpush1.bf16.msra.mxu0 %v564
    %711 = vmatprep.subr.bf16.mxu0 0
    %712 = vmatpush1.bf16.msra.mxu0 %v563
    %713 = vmatprep.subr.bf16.mxu0 0
    %714 = vmatpush1.bf16.msra.mxu0 %v562
    %715 = vmatprep.subr.bf16.mxu0 0
    %716 = vmatpush1.bf16.msra.mxu0 %v561
    %717 = vmatprep.subr.bf16.mxu0 0
    %718 = vmatpush1.bf16.msra.mxu0 %v560
    %719 = vmatprep.subr.bf16.mxu0 0
    %720 = vmatpush1.bf16.msra.mxu0 %v559
    %721 = vmatprep.subr.bf16.mxu0 0
    %722 = vmatpush1.bf16.msra.mxu0 %v558
    %723 = vmatprep.subr.bf16.mxu0 0
    %724 = vmatpush1.bf16.msra.mxu0 %v557
    %725 = vmatprep.subr.bf16.mxu0 0
    %726 = vmatpush2.bf16.msra.mxu0 %v572
    %727 = vmatprep.subr.bf16.mxu0 0
    %728 = vmatpush2.bf16.msra.mxu0 %v571
    %729 = vmatprep.subr.bf16.mxu0 0
    %730 = vmatpush2.bf16.msra.mxu0 %v570
    %731 = vmatprep.subr.bf16.mxu0 0
    %732 = vmatpush2.bf16.msra.mxu0 %v569
    %733 = vmatprep.subr.bf16.mxu0 0
    %734 = vmatpush2.bf16.msra.mxu0 %v568
    %735 = vmatprep.subr.bf16.mxu0 0
    %736 = vmatpush2.bf16.msra.mxu0 %v567
    %737 = vmatprep.subr.bf16.mxu0 0
    %738 = vmatpush2.bf16.msra.mxu0 %v566
    %739 = vmatprep.subr.bf16.mxu0 0
    %740 = vmatpush2.bf16.msra.mxu0 %v565
    %741 = vmatprep.mubr.bf16.mxu0 %v136
    %742 = vmatmul.mubr.bf16.gmra.mxu0 %v135
    %v743 = vpop.f32.mrf.mxu0
    %v744 = vadd.f32 %v704, %v743
    %v745 = vpop.f32.mrf.mxu0
    %v746 = vpop.f32.mrf.mxu0
    %v747 = vpop.f32.mrf.mxu0
    %748 = vdwg.mxu0
    %749 = vmatprep.subr.bf16.mxu0 0
    %750 = vmatpush1.bf16.msra.mxu0 %v580
    %751 = vmatprep.subr.bf16.mxu0 0
    %752 = vmatpush1.bf16.msra.mxu0 %v579
    %753 = vmatprep.subr.bf16.mxu0 0
    %754 = vmatpush1.bf16.msra.mxu0 %v578
    %755 = vmatprep.subr.bf16.mxu0 0
    %756 = vmatpush1.bf16.msra.mxu0 %v577
    %757 = vmatprep.subr.bf16.mxu0 0
    %758 = vmatpush1.bf16.msra.mxu0 %v576
    %759 = vmatprep.subr.bf16.mxu0 0
    %760 = vmatpush1.bf16.msra.mxu0 %v575
    %761 = vmatprep.subr.bf16.mxu0 0
    %762 = vmatpush1.bf16.msra.mxu0 %v574
    %763 = vmatprep.subr.bf16.mxu0 0
    %764 = vmatpush1.bf16.msra.mxu0 %v573
    %765 = vmatprep.subr.bf16.mxu0 0
    %766 = vmatpush2.bf16.msra.mxu0 %v588
    %767 = vmatprep.subr.bf16.mxu0 0
    %768 = vmatpush2.bf16.msra.mxu0 %v587
    %769 = vmatprep.subr.bf16.mxu0 0
    %770 = vmatpush2.bf16.msra.mxu0 %v586
    %771 = vmatprep.subr.bf16.mxu0 0
    %772 = vmatpush2.bf16.msra.mxu0 %v585
    %773 = vmatprep.subr.bf16.mxu0 0
    %774 = vmatpush2.bf16.msra.mxu0 %v584
    %775 = vmatprep.subr.bf16.mxu0 0
    %776 = vmatpush2.bf16.msra.mxu0 %v583
    %777 = vmatprep.subr.bf16.mxu0 0
    %778 = vmatpush2.bf16.msra.mxu0 %v582
    %779 = vmatprep.subr.bf16.mxu0 0
    %780 = vmatpush2.bf16.msra.mxu0 %v581
    %781 = vmatprep.mubr.bf16.mxu0 %v138
    %782 = vmatmul.mubr.bf16.gmra.mxu0 %v137
    %v783 = vpop.f32.mrf.mxu0
    %v784 = vadd.f32 %v744, %v783
    %v785 = vpop.f32.mrf.mxu0
    %v786 = vpop.f32.mrf.mxu0
    %v787 = vpop.f32.mrf.mxu0
    %788 = vdwg.mxu0
    %789 = vmatprep.subr.bf16.mxu0 0
    %790 = vmatpush1.bf16.msra.mxu0 %v596
    %791 = vmatprep.subr.bf16.mxu0 0
    %792 = vmatpush1.bf16.msra.mxu0 %v595
    %793 = vmatprep.subr.bf16.mxu0 0
    %794 = vmatpush1.bf16.msra.mxu0 %v594
    %795 = vmatprep.subr.bf16.mxu0 0
    %796 = vmatpush1.bf16.msra.mxu0 %v593
    %797 = vmatprep.subr.bf16.mxu0 0
    %798 = vmatpush1.bf16.msra.mxu0 %v592
    %799 = vmatprep.subr.bf16.mxu0 0
    %800 = vmatpush1.bf16.msra.mxu0 %v591
    %801 = vmatprep.subr.bf16.mxu0 0
    %802 = vmatpush1.bf16.msra.mxu0 %v590
    %803 = vmatprep.subr.bf16.mxu0 0
    %804 = vmatpush1.bf16.msra.mxu0 %v589
    %805 = vmatprep.subr.bf16.mxu0 0
    %806 = vmatpush2.bf16.msra.mxu0 %v604
    %807 = vmatprep.subr.bf16.mxu0 0
    %808 = vmatpush2.bf16.msra.mxu0 %v603
    %809 = vmatprep.subr.bf16.mxu0 0
    %810 = vmatpush2.bf16.msra.mxu0 %v602
    %811 = vmatprep.subr.bf16.mxu0 0
    %812 = vmatpush2.bf16.msra.mxu0 %v601
    %813 = vmatprep.subr.bf16.mxu0 0
    %814 = vmatpush2.bf16.msra.mxu0 %v600
    %815 = vmatprep.subr.bf16.mxu0 0
    %816 = vmatpush2.bf16.msra.mxu0 %v599
    %817 = vmatprep.subr.bf16.mxu0 0
    %818 = vmatpush2.bf16.msra.mxu0 %v598
    %819 = vmatprep.subr.bf16.mxu0 0
    %820 = vmatpush2.bf16.msra.mxu0 %v597
    %821 = vmatprep.mubr.bf16.mxu0 %v140
    %822 = vmatmul.mubr.bf16.gmra.mxu0 %v139
    %v823 = vpop.f32.mrf.mxu0
    %v824 = vadd.f32 %v784, %v823
    %v825 = vpop.f32.mrf.mxu0
    %v826 = vpop.f32.mrf.mxu0
    %v827 = vpop.f32.mrf.mxu0
    %828 = vdwg.mxu0
    %829 = vmatprep.subr.bf16.mxu0 0
    %830 = vmatpush1.bf16.msra.mxu0 %v548
    %831 = vmatprep.subr.bf16.mxu0 0
    %832 = vmatpush1.bf16.msra.mxu0 %v547
    %833 = vmatprep.subr.bf16.mxu0 0
    %834 = vmatpush1.bf16.msra.mxu0 %v546
    %835 = vmatprep.subr.bf16.mxu0 0
    %836 = vmatpush1.bf16.msra.mxu0 %v545
    %837 = vmatprep.subr.bf16.mxu0 0
    %838 = vmatpush1.bf16.msra.mxu0 %v544
    %839 = vmatprep.subr.bf16.mxu0 0
    %840 = vmatpush1.bf16.msra.mxu0 %v543
    %841 = vmatprep.subr.bf16.mxu0 0
    %842 = vmatpush1.bf16.msra.mxu0 %v542
    %843 = vmatprep.subr.bf16.mxu0 0
    %844 = vmatpush1.bf16.msra.mxu0 %v541
    %845 = vmatprep.subr.bf16.mxu0 0
    %846 = vmatpush2.bf16.msra.mxu0 %v556
    %847 = vmatprep.subr.bf16.mxu0 0
    %848 = vmatpush2.bf16.msra.mxu0 %v555
    %849 = vmatprep.subr.bf16.mxu0 0
    %850 = vmatpush2.bf16.msra.mxu0 %v554
    %851 = vmatprep.subr.bf16.mxu0 0
    %852 = vmatpush2.bf16.msra.mxu0 %v553
    %853 = vmatprep.subr.bf16.mxu0 0
    %854 = vmatpush2.bf16.msra.mxu0 %v552
    %855 = vmatprep.subr.bf16.mxu0 0
    %856 = vmatpush2.bf16.msra.mxu0 %v551
    %857 = vmatprep.subr.bf16.mxu0 0
    %858 = vmatpush2.bf16.msra.mxu0 %v550
    %859 = vmatprep.subr.bf16.mxu0 0
    %860 = vmatpush2.bf16.msra.mxu0 %v549
    %861 = vmatprep.mubr.bf16.mxu0 %v150
    %862 = vmatmul.mubr.bf16.gmra.mxu0 %v149
    %v863 = vpop.f32.mrf.mxu0
    %v864 = vadd.f32 0.0, %v863
    %v865 = vpop.f32.mrf.mxu0
    %v866 = vpop.f32.mrf.mxu0
    %v867 = vpop.f32.mrf.mxu0
    %868 = vdwg.mxu0
    %869 = vmatprep.subr.bf16.mxu0 0
    %870 = vmatpush1.bf16.msra.mxu0 %v564
    %871 = vmatprep.subr.bf16.mxu0 0
    %872 = vmatpush1.bf16.msra.mxu0 %v563
    %873 = vmatprep.subr.bf16.mxu0 0
    %874 = vmatpush1.bf16.msra.mxu0 %v562
    %875 = vmatprep.subr.bf16.mxu0 0
    %876 = vmatpush1.bf16.msra.mxu0 %v561
    %877 = vmatprep.subr.bf16.mxu0 0
    %878 = vmatpush1.bf16.msra.mxu0 %v560
    %879 = vmatprep.subr.bf16.mxu0 0
    %880 = vmatpush1.bf16.msra.mxu0 %v559
    %881 = vmatprep.subr.bf16.mxu0 0
    %882 = vmatpush1.bf16.msra.mxu0 %v558
    %883 = vmatprep.subr.bf16.mxu0 0
    %884 = vmatpush1.bf16.msra.mxu0 %v557
    %885 = vmatprep.subr.bf16.mxu0 0
    %886 = vmatpush2.bf16.msra.mxu0 %v572
    %887 = vmatprep.subr.bf16.mxu0 0
    %888 = vmatpush2.bf16.msra.mxu0 %v571
    %889 = vmatprep.subr.bf16.mxu0 0
    %890 = vmatpush2.bf16.msra.mxu0 %v570
    %891 = vmatprep.subr.bf16.mxu0 0
    %892 = vmatpush2.bf16.msra.mxu0 %v569
    %893 = vmatprep.subr.bf16.mxu0 0
    %894 = vmatpush2.bf16.msra.mxu0 %v568
    %895 = vmatprep.subr.bf16.mxu0 0
    %896 = vmatpush2.bf16.msra.mxu0 %v567
    %897 = vmatprep.subr.bf16.mxu0 0
    %898 = vmatpush2.bf16.msra.mxu0 %v566
    %899 = vmatprep.subr.bf16.mxu0 0
    %900 = vmatpush2.bf16.msra.mxu0 %v565
    %901 = vmatprep.mubr.bf16.mxu0 %v152
    %902 = vmatmul.mubr.bf16.gmra.mxu0 %v151
    %v903 = vpop.f32.mrf.mxu0
    %v904 = vadd.f32 %v864, %v903
    %v905 = vpop.f32.mrf.mxu0
    %v906 = vpop.f32.mrf.mxu0
    %v907 = vpop.f32.mrf.mxu0
    %908 = vdwg.mxu0
    %909 = vmatprep.subr.bf16.mxu0 0
    %910 = vmatpush1.bf16.msra.mxu0 %v580
    %911 = vmatprep.subr.bf16.mxu0 0
    %912 = vmatpush1.bf16.msra.mxu0 %v579
    %913 = vmatprep.subr.bf16.mxu0 0
    %914 = vmatpush1.bf16.msra.mxu0 %v578
    %915 = vmatprep.subr.bf16.mxu0 0
    %916 = vmatpush1.bf16.msra.mxu0 %v577
    %917 = vmatprep.subr.bf16.mxu0 0
    %918 = vmatpush1.bf16.msra.mxu0 %v576
    %919 = vmatprep.subr.bf16.mxu0 0
    %920 = vmatpush1.bf16.msra.mxu0 %v575
    %921 = vmatprep.subr.bf16.mxu0 0
    %922 = vmatpush1.bf16.msra.mxu0 %v574
    %923 = vmatprep.subr.bf16.mxu0 0
    %924 = vmatpush1.bf16.msra.mxu0 %v573
    %925 = vmatprep.subr.bf16.mxu0 0
    %926 = vmatpush2.bf16.msra.mxu0 %v588
    %927 = vmatprep.subr.bf16.mxu0 0
    %928 = vmatpush2.bf16.msra.mxu0 %v587
    %929 = vmatprep.subr.bf16.mxu0 0
    %930 = vmatpush2.bf16.msra.mxu0 %v586
    %931 = vmatprep.subr.bf16.mxu0 0
    %932 = vmatpush2.bf16.msra.mxu0 %v585
    %933 = vmatprep.subr.bf16.mxu0 0
    %934 = vmatpush2.bf16.msra.mxu0 %v584
    %935 = vmatprep.subr.bf16.mxu0 0
    %936 = vmatpush2.bf16.msra.mxu0 %v583
    %937 = vmatprep.subr.bf16.mxu0 0
    %938 = vmatpush2.bf16.msra.mxu0 %v582
    %939 = vmatprep.subr.bf16.mxu0 0
    %940 = vmatpush2.bf16.msra.mxu0 %v581
    %941 = vmatprep.mubr.bf16.mxu0 %v154
    %942 = vmatmul.mubr.bf16.gmra.mxu0 %v153
    %v943 = vpop.f32.mrf.mxu0
    %v944 = vadd.f32 %v904, %v943
    %v945 = vpop.f32.mrf.mxu0
    %v946 = vpop.f32.mrf.mxu0
    %v947 = vpop.f32.mrf.mxu0
    %948 = vdwg.mxu0
    %949 = vmatprep.subr.bf16.mxu0 0
    %950 = vmatpush1.bf16.msra.mxu0 %v596
    %951 = vmatprep.subr.bf16.mxu0 0
    %952 = vmatpush1.bf16.msra.mxu0 %v595
    %953 = vmatprep.subr.bf16.mxu0 0
    %954 = vmatpush1.bf16.msra.mxu0 %v594
    %955 = vmatprep.subr.bf16.mxu0 0
    %956 = vmatpush1.bf16.msra.mxu0 %v593
    %957 = vmatprep.subr.bf16.mxu0 0
    %958 = vmatpush1.bf16.msra.mxu0 %v592
    %959 = vmatprep.subr.bf16.mxu0 0
    %960 = vmatpush1.bf16.msra.mxu0 %v591
    %961 = vmatprep.subr.bf16.mxu0 0
    %962 = vmatpush1.bf16.msra.mxu0 %v590
    %963 = vmatprep.subr.bf16.mxu0 0
    %964 = vmatpush1.bf16.msra.mxu0 %v589
    %965 = vmatprep.subr.bf16.mxu0 0
    %966 = vmatpush2.bf16.msra.mxu0 %v604
    %967 = vmatprep.subr.bf16.mxu0 0
    %968 = vmatpush2.bf16.msra.mxu0 %v603
    %969 = vmatprep.subr.bf16.mxu0 0
    %970 = vmatpush2.bf16.msra.mxu0 %v602
    %971 = vmatprep.subr.bf16.mxu0 0
    %972 = vmatpush2.bf16.msra.mxu0 %v601
    %973 = vmatprep.subr.bf16.mxu0 0
    %974 = vmatpush2.bf16.msra.mxu0 %v600
    %975 = vmatprep.subr.bf16.mxu0 0
    %976 = vmatpush2.bf16.msra.mxu0 %v599
    %977 = vmatprep.subr.bf16.mxu0 0
    %978 = vmatpush2.bf16.msra.mxu0 %v598
    %979 = vmatprep.subr.bf16.mxu0 0
    %980 = vmatpush2.bf16.msra.mxu0 %v597
    %981 = vmatprep.mubr.bf16.mxu0 %v156
    %982 = vmatmul.mubr.bf16.gmra.mxu0 %v155
    %v983 = vpop.f32.mrf.mxu0
    %v984 = vadd.f32 %v944, %v983
    %v985 = vpop.f32.mrf.mxu0
    %v986 = vpop.f32.mrf.mxu0
    %v987 = vpop.f32.mrf.mxu0
    %988 = vdwg.mxu0
    %v989 = vpack.c.bf16 %v984, %v824
    %v990 = vld [vmem:[#allocation8] sm:$0xff]
    %v991 = vld [vmem:[#allocation8 + $0x8] sm:$0xff]
    %v992 = vld [vmem:[#allocation8 + $0x10] sm:$0xff]
    %v993 = vld [vmem:[#allocation8 + $0x18] sm:$0xff]
    %v994 = vld [vmem:[#allocation8 + $0x20] sm:$0xff]
    %v995 = vld [vmem:[#allocation8 + $0x28] sm:$0xff]
    %v996 = vld [vmem:[#allocation8 + $0x30] sm:$0xff]
    %v997 = vld [vmem:[#allocation8 + $0x38] sm:$0xff]
    %v998 = vld [vmem:[#allocation8 + $0x40] sm:$0xff]
    %v999 = vld [vmem:[#allocation8 + $0x48] sm:$0xff]
    %v1000 = vld [vmem:[#allocation8 + $0x50] sm:$0xff]
    %v1001 = vld [vmem:[#allocation8 + $0x58] sm:$0xff]
    %v1002 = vld [vmem:[#allocation8 + $0x60] sm:$0xff]
    %v1003 = vld [vmem:[#allocation8 + $0x68] sm:$0xff]
    %v1004 = vld [vmem:[#allocation8 + $0x70] sm:$0xff]
    %v1005 = vld [vmem:[#allocation8 + $0x78] sm:$0xff]
    %v1006 = vld [vmem:[#allocation8 + $0x80] sm:$0xff]
    %v1007 = vld [vmem:[#allocation8 + $0x88] sm:$0xff]
    %v1008 = vld [vmem:[#allocation8 + $0x90] sm:$0xff]
    %v1009 = vld [vmem:[#allocation8 + $0x98] sm:$0xff]
    %v1010 = vld [vmem:[#allocation8 + $0xa0] sm:$0xff]
    %v1011 = vld [vmem:[#allocation8 + $0xa8] sm:$0xff]
    %v1012 = vld [vmem:[#allocation8 + $0xb0] sm:$0xff]
    %v1013 = vld [vmem:[#allocation8 + $0xb8] sm:$0xff]
    %v1014 = vld [vmem:[#allocation8 + $0xc0] sm:$0xff]
    %v1015 = vld [vmem:[#allocation8 + $0xc8] sm:$0xff]
    %v1016 = vld [vmem:[#allocation8 + $0xd0] sm:$0xff]
    %v1017 = vld [vmem:[#allocation8 + $0xd8] sm:$0xff]
    %v1018 = vld [vmem:[#allocation8 + $0xe0] sm:$0xff]
    %v1019 = vld [vmem:[#allocation8 + $0xe8] sm:$0xff]
    %v1020 = vld [vmem:[#allocation8 + $0xf0] sm:$0xff]
    %v1021 = vld [vmem:[#allocation8 + $0xf8] sm:$0xff]
    %v1022 = vld [vmem:[#allocation8 + $0x100] sm:$0xff]
    %v1023 = vld [vmem:[#allocation8 + $0x108] sm:$0xff]
    %v1024 = vld [vmem:[#allocation8 + $0x110] sm:$0xff]
    %v1025 = vld [vmem:[#allocation8 + $0x118] sm:$0xff]
    %v1026 = vld [vmem:[#allocation8 + $0x120] sm:$0xff]
    %v1027 = vld [vmem:[#allocation8 + $0x128] sm:$0xff]
    %v1028 = vld [vmem:[#allocation8 + $0x130] sm:$0xff]
    %v1029 = vld [vmem:[#allocation8 + $0x138] sm:$0xff]
    %v1030 = vld [vmem:[#allocation8 + $0x140] sm:$0xff]
    %v1031 = vld [vmem:[#allocation8 + $0x148] sm:$0xff]
    %v1032 = vld [vmem:[#allocation8 + $0x150] sm:$0xff]
    %v1033 = vld [vmem:[#allocation8 + $0x158] sm:$0xff]
    %v1034 = vld [vmem:[#allocation8 + $0x160] sm:$0xff]
    %v1035 = vld [vmem:[#allocation8 + $0x168] sm:$0xff]
    %v1036 = vld [vmem:[#allocation8 + $0x170] sm:$0xff]
    %v1037 = vld [vmem:[#allocation8 + $0x178] sm:$0xff]
    %v1038 = vld [vmem:[#allocation8 + $0x180] sm:$0xff]
    %v1039 = vld [vmem:[#allocation8 + $0x188] sm:$0xff]
    %v1040 = vld [vmem:[#allocation8 + $0x190] sm:$0xff]
    %v1041 = vld [vmem:[#allocation8 + $0x198] sm:$0xff]
    %v1042 = vld [vmem:[#allocation8 + $0x1a0] sm:$0xff]
    %v1043 = vld [vmem:[#allocation8 + $0x1a8] sm:$0xff]
    %v1044 = vld [vmem:[#allocation8 + $0x1b0] sm:$0xff]
    %v1045 = vld [vmem:[#allocation8 + $0x1b8] sm:$0xff]
    %v1046 = vld [vmem:[#allocation8 + $0x1c0] sm:$0xff]
    %v1047 = vld [vmem:[#allocation8 + $0x1c8] sm:$0xff]
    %v1048 = vld [vmem:[#allocation8 + $0x1d0] sm:$0xff]
    %v1049 = vld [vmem:[#allocation8 + $0x1d8] sm:$0xff]
    %v1050 = vld [vmem:[#allocation8 + $0x1e0] sm:$0xff]
    %v1051 = vld [vmem:[#allocation8 + $0x1e8] sm:$0xff]
    %v1052 = vld [vmem:[#allocation8 + $0x1f0] sm:$0xff]
    %v1053 = vld [vmem:[#allocation8 + $0x1f8] sm:$0xff]
    %v1118 = vunpack.c.l.b16 %v990
    %v1119 = vunpack.c.h.b16 %v990
    %v1120 = vunpack.c.l.b16 %v991
    %v1121 = vunpack.c.h.b16 %v991
    %v1122 = vunpack.c.l.b16 %v992
    %v1123 = vunpack.c.h.b16 %v992
    %v1124 = vunpack.c.l.b16 %v993
    %v1125 = vunpack.c.h.b16 %v993
    %v1126 = vunpack.c.l.b16 %v994
    %v1127 = vunpack.c.h.b16 %v994
    %v1128 = vunpack.c.l.b16 %v995
    %v1129 = vunpack.c.h.b16 %v995
    %v1130 = vunpack.c.l.b16 %v996
    %v1131 = vunpack.c.h.b16 %v996
    %v1132 = vunpack.c.l.b16 %v997
    %v1133 = vunpack.c.h.b16 %v997
    %v1134 = vunpack.c.l.b16 %v998
    %v1135 = vunpack.c.h.b16 %v998
    %v1136 = vunpack.c.l.b16 %v999
    %v1137 = vunpack.c.h.b16 %v999
    %v1138 = vunpack.c.l.b16 %v1000
    %v1139 = vunpack.c.h.b16 %v1000
    %v1140 = vunpack.c.l.b16 %v1001
    %v1141 = vunpack.c.h.b16 %v1001
    %v1142 = vunpack.c.l.b16 %v1002
    %v1143 = vunpack.c.h.b16 %v1002
    %v1144 = vunpack.c.l.b16 %v1003
    %v1145 = vunpack.c.h.b16 %v1003
    %v1146 = vunpack.c.l.b16 %v1004
    %v1147 = vunpack.c.h.b16 %v1004
    %v1148 = vunpack.c.l.b16 %v1005
    %v1149 = vunpack.c.h.b16 %v1005
    %v1150 = vunpack.c.l.b16 %v1006
    %v1151 = vunpack.c.h.b16 %v1006
    %v1152 = vunpack.c.l.b16 %v1007
    %v1153 = vunpack.c.h.b16 %v1007
    %v1154 = vunpack.c.l.b16 %v1008
    %v1155 = vunpack.c.h.b16 %v1008
    %v1156 = vunpack.c.l.b16 %v1009
    %v1157 = vunpack.c.h.b16 %v1009
    %v1158 = vunpack.c.l.b16 %v1010
    %v1159 = vunpack.c.h.b16 %v1010
    %v1160 = vunpack.c.l.b16 %v1011
    %v1161 = vunpack.c.h.b16 %v1011
    %v1162 = vunpack.c.l.b16 %v1012
    %v1163 = vunpack.c.h.b16 %v1012
    %v1164 = vunpack.c.l.b16 %v1013
    %v1165 = vunpack.c.h.b16 %v1013
    %v1166 = vunpack.c.l.b16 %v1014
    %v1167 = vunpack.c.h.b16 %v1014
    %v1168 = vunpack.c.l.b16 %v1015
    %v1169 = vunpack.c.h.b16 %v1015
    %v1170 = vunpack.c.l.b16 %v1016
    %v1171 = vunpack.c.h.b16 %v1016
    %v1172 = vunpack.c.l.b16 %v1017
    %v1173 = vunpack.c.h.b16 %v1017
    %v1174 = vunpack.c.l.b16 %v1018
    %v1175 = vunpack.c.h.b16 %v1018
    %v1176 = vunpack.c.l.b16 %v1019
    %v1177 = vunpack.c.h.b16 %v1019
    %v1178 = vunpack.c.l.b16 %v1020
    %v1179 = vunpack.c.h.b16 %v1020
    %v1180 = vunpack.c.l.b16 %v1021
    %v1181 = vunpack.c.h.b16 %v1021
    %v1182 = vunpack.c.l.b16 %v1022
    %v1183 = vunpack.c.h.b16 %v1022
    %v1184 = vunpack.c.l.b16 %v1023
    %v1185 = vunpack.c.h.b16 %v1023
    %v1186 = vunpack.c.l.b16 %v1024
    %v1187 = vunpack.c.h.b16 %v1024
    %v1188 = vunpack.c.l.b16 %v1025
    %v1189 = vunpack.c.h.b16 %v1025
    %v1190 = vunpack.c.l.b16 %v1026
    %v1191 = vunpack.c.h.b16 %v1026
    %v1192 = vunpack.c.l.b16 %v1027
    %v1193 = vunpack.c.h.b16 %v1027
    %v1194 = vunpack.c.l.b16 %v1028
    %v1195 = vunpack.c.h.b16 %v1028
    %v1196 = vunpack.c.l.b16 %v1029
    %v1197 = vunpack.c.h.b16 %v1029
    %v1198 = vunpack.c.l.b16 %v1030
    %v1199 = vunpack.c.h.b16 %v1030
    %v1200 = vunpack.c.l.b16 %v1031
    %v1201 = vunpack.c.h.b16 %v1031
    %v1202 = vunpack.c.l.b16 %v1032
    %v1203 = vunpack.c.h.b16 %v1032
    %v1204 = vunpack.c.l.b16 %v1033
    %v1205 = vunpack.c.h.b16 %v1033
    %v1206 = vunpack.c.l.b16 %v1034
    %v1207 = vunpack.c.h.b16 %v1034
    %v1208 = vunpack.c.l.b16 %v1035
    %v1209 = vunpack.c.h.b16 %v1035
    %v1210 = vunpack.c.l.b16 %v1036
    %v1211 = vunpack.c.h.b16 %v1036
    %v1212 = vunpack.c.l.b16 %v1037
    %v1213 = vunpack.c.h.b16 %v1037
    %v1214 = vunpack.c.l.b16 %v1038
    %v1215 = vunpack.c.h.b16 %v1038
    %v1216 = vunpack.c.l.b16 %v1039
    %v1217 = vunpack.c.h.b16 %v1039
    %v1218 = vunpack.c.l.b16 %v1040
    %v1219 = vunpack.c.h.b16 %v1040
    %v1220 = vunpack.c.l.b16 %v1041
    %v1221 = vunpack.c.h.b16 %v1041
    %v1222 = vunpack.c.l.b16 %v1042
    %v1223 = vunpack.c.h.b16 %v1042
    %v1224 = vunpack.c.l.b16 %v1043
    %v1225 = vunpack.c.h.b16 %v1043
    %v1226 = vunpack.c.l.b16 %v1044
    %v1227 = vunpack.c.h.b16 %v1044
    %v1228 = vunpack.c.l.b16 %v1045
    %v1229 = vunpack.c.h.b16 %v1045
    %v1230 = vunpack.c.l.b16 %v1046
    %v1231 = vunpack.c.h.b16 %v1046
    %v1232 = vunpack.c.l.b16 %v1047
    %v1233 = vunpack.c.h.b16 %v1047
    %v1234 = vunpack.c.l.b16 %v1048
    %v1235 = vunpack.c.h.b16 %v1048
    %v1236 = vunpack.c.l.b16 %v1049
    %v1237 = vunpack.c.h.b16 %v1049
    %v1238 = vunpack.c.l.b16 %v1050
    %v1239 = vunpack.c.h.b16 %v1050
    %v1240 = vunpack.c.l.b16 %v1051
    %v1241 = vunpack.c.h.b16 %v1051
    %v1242 = vunpack.c.l.b16 %v1052
    %v1243 = vunpack.c.h.b16 %v1052
    %v1244 = vunpack.c.l.b16 %v1053
    %v1245 = vunpack.c.h.b16 %v1053
    %v1246 = vpack.c.b16 %v1126, %v1118
    %v1247 = vpack.c.b16 %v1127, %v1119
    %v1248 = vpack.c.b16 %v1128, %v1120
    %v1249 = vpack.c.b16 %v1129, %v1121
    %v1250 = vpack.c.b16 %v1130, %v1122
    %v1251 = vpack.c.b16 %v1131, %v1123
    %v1252 = vpack.c.b16 %v1132, %v1124
    %v1253 = vpack.c.b16 %v1133, %v1125
    %v1254 = vpack.c.b16 %v1142, %v1134
    %v1255 = vpack.c.b16 %v1143, %v1135
    %v1256 = vpack.c.b16 %v1144, %v1136
    %v1257 = vpack.c.b16 %v1145, %v1137
    %v1258 = vpack.c.b16 %v1146, %v1138
    %v1259 = vpack.c.b16 %v1147, %v1139
    %v1260 = vpack.c.b16 %v1148, %v1140
    %v1261 = vpack.c.b16 %v1149, %v1141
    %v1262 = vpack.c.b16 %v1158, %v1150
    %v1263 = vpack.c.b16 %v1159, %v1151
    %v1264 = vpack.c.b16 %v1160, %v1152
    %v1265 = vpack.c.b16 %v1161, %v1153
    %v1266 = vpack.c.b16 %v1162, %v1154
    %v1267 = vpack.c.b16 %v1163, %v1155
    %v1268 = vpack.c.b16 %v1164, %v1156
    %v1269 = vpack.c.b16 %v1165, %v1157
    %v1270 = vpack.c.b16 %v1174, %v1166
    %v1271 = vpack.c.b16 %v1175, %v1167
    %v1272 = vpack.c.b16 %v1176, %v1168
    %v1273 = vpack.c.b16 %v1177, %v1169
    %v1274 = vpack.c.b16 %v1178, %v1170
    %v1275 = vpack.c.b16 %v1179, %v1171
    %v1276 = vpack.c.b16 %v1180, %v1172
    %v1277 = vpack.c.b16 %v1181, %v1173
    %v1278 = vpack.c.b16 %v1190, %v1182
    %v1279 = vpack.c.b16 %v1191, %v1183
    %v1280 = vpack.c.b16 %v1192, %v1184
    %v1281 = vpack.c.b16 %v1193, %v1185
    %v1282 = vpack.c.b16 %v1194, %v1186
    %v1283 = vpack.c.b16 %v1195, %v1187
    %v1284 = vpack.c.b16 %v1196, %v1188
    %v1285 = vpack.c.b16 %v1197, %v1189
    %v1286 = vpack.c.b16 %v1206, %v1198
    %v1287 = vpack.c.b16 %v1207, %v1199
    %v1288 = vpack.c.b16 %v1208, %v1200
    %v1289 = vpack.c.b16 %v1209, %v1201
    %v1290 = vpack.c.b16 %v1210, %v1202
    %v1291 = vpack.c.b16 %v1211, %v1203
    %v1292 = vpack.c.b16 %v1212, %v1204
    %v1293 = vpack.c.b16 %v1213, %v1205
    %v1294 = vpack.c.b16 %v1222, %v1214
    %v1295 = vpack.c.b16 %v1223, %v1215
    %v1296 = vpack.c.b16 %v1224, %v1216
    %v1297 = vpack.c.b16 %v1225, %v1217
    %v1298 = vpack.c.b16 %v1226, %v1218
    %v1299 = vpack.c.b16 %v1227, %v1219
    %v1300 = vpack.c.b16 %v1228, %v1220
    %v1301 = vpack.c.b16 %v1229, %v1221
    %v1302 = vpack.c.b16 %v1238, %v1230
    %v1303 = vpack.c.b16 %v1239, %v1231
    %v1304 = vpack.c.b16 %v1240, %v1232
    %v1305 = vpack.c.b16 %v1241, %v1233
    %v1306 = vpack.c.b16 %v1242, %v1234
    %v1307 = vpack.c.b16 %v1243, %v1235
    %v1308 = vpack.c.b16 %v1244, %v1236
    %v1309 = vpack.c.b16 %v1245, %v1237
    %1374 = vmatprep.subr.bf16.mxu0 %v1303
    %1375 = vmatpush1.bf16.msra.mxu0 %v1302
    %1376 = vmatprep.subr.bf16.mxu0 %v1295
    %1377 = vmatpush1.bf16.msra.mxu0 %v1294
    %1378 = vmatprep.subr.bf16.mxu0 %v1287
    %1379 = vmatpush1.bf16.msra.mxu0 %v1286
    %1380 = vmatprep.subr.bf16.mxu0 %v1279
    %1381 = vmatpush1.bf16.msra.mxu0 %v1278
    %1382 = vmatprep.subr.bf16.mxu0 %v1271
    %1383 = vmatpush1.bf16.msra.mxu0 %v1270
    %1384 = vmatprep.subr.bf16.mxu0 %v1263
    %1385 = vmatpush1.bf16.msra.mxu0 %v1262
    %1386 = vmatprep.subr.bf16.mxu0 %v1255
    %1387 = vmatpush1.bf16.msra.mxu0 %v1254
    %1388 = vmatprep.subr.bf16.mxu0 %v1247
    %1389 = vmatpush1.bf16.msra.mxu0 %v1246
    %1390 = vmatprep.subr.bf16.mxu0 0
    %1391 = vmatpush2.bf16.msra.mxu0 0
    %1392 = vmatprep.subr.bf16.mxu0 0
    %1393 = vmatpush2.bf16.msra.mxu0 0
    %1394 = vmatprep.subr.bf16.mxu0 0
    %1395 = vmatpush2.bf16.msra.mxu0 0
    %1396 = vmatprep.subr.bf16.mxu0 0
    %1397 = vmatpush2.bf16.msra.mxu0 0
    %1398 = vmatprep.subr.bf16.mxu0 0
    %1399 = vmatpush2.bf16.msra.mxu0 0
    %1400 = vmatprep.subr.bf16.mxu0 0
    %1401 = vmatpush2.bf16.msra.mxu0 0
    %1402 = vmatprep.subr.bf16.mxu0 0
    %1403 = vmatpush2.bf16.msra.mxu0 0
    %1404 = vmatprep.subr.bf16.mxu0 0
    %1405 = vmatpush2.bf16.msra.mxu0 0
    %1406 = vmatprep.mubr.bf16.mxu0 0
    %1407 = vmatmul.mubr.bf16.gmra.mxu0 %v989
    %v1408 = vpop.f32.mrf.mxu0
    %v1409 = vadd.f32 0.0, %v1408
    %v1410 = vpop.f32.mrf.mxu0
    %v1411 = vadd.f32 0.0, %v1410
    %v1412 = vpop.f32.mrf.mxu0
    %v1413 = vadd.f32 0.0, %v1412
    %v1414 = vpop.f32.mrf.mxu0
    %v1415 = vadd.f32 0.0, %v1414
    %1416 = vdwg.mxu0
    %1417 = vmatprep.subr.bf16.mxu0 %v1305
    %1418 = vmatpush1.bf16.msra.mxu0 %v1304
    %1419 = vmatprep.subr.bf16.mxu0 %v1297
    %1420 = vmatpush1.bf16.msra.mxu0 %v1296
    %1421 = vmatprep.subr.bf16.mxu0 %v1289
    %1422 = vmatpush1.bf16.msra.mxu0 %v1288
    %1423 = vmatprep.subr.bf16.mxu0 %v1281
    %1424 = vmatpush1.bf16.msra.mxu0 %v1280
    %1425 = vmatprep.subr.bf16.mxu0 %v1273
    %1426 = vmatpush1.bf16.msra.mxu0 %v1272
    %1427 = vmatprep.subr.bf16.mxu0 %v1265
    %1428 = vmatpush1.bf16.msra.mxu0 %v1264
    %1429 = vmatprep.subr.bf16.mxu0 %v1257
    %1430 = vmatpush1.bf16.msra.mxu0 %v1256
    %1431 = vmatprep.subr.bf16.mxu0 %v1249
    %1432 = vmatpush1.bf16.msra.mxu0 %v1248
    %1433 = vmatprep.subr.bf16.mxu0 0
    %1434 = vmatpush2.bf16.msra.mxu0 0
    %1435 = vmatprep.subr.bf16.mxu0 0
    %1436 = vmatpush2.bf16.msra.mxu0 0
    %1437 = vmatprep.subr.bf16.mxu0 0
    %1438 = vmatpush2.bf16.msra.mxu0 0
    %1439 = vmatprep.subr.bf16.mxu0 0
    %1440 = vmatpush2.bf16.msra.mxu0 0
    %1441 = vmatprep.subr.bf16.mxu0 0
    %1442 = vmatpush2.bf16.msra.mxu0 0
    %1443 = vmatprep.subr.bf16.mxu0 0
    %1444 = vmatpush2.bf16.msra.mxu0 0
    %1445 = vmatprep.subr.bf16.mxu0 0
    %1446 = vmatpush2.bf16.msra.mxu0 0
    %1447 = vmatprep.subr.bf16.mxu0 0
    %1448 = vmatpush2.bf16.msra.mxu0 0
    %1449 = vmatprep.mubr.bf16.mxu0 0
    %1450 = vmatmul.mubr.bf16.gmra.mxu0 %v989
    %v1451 = vpop.f32.mrf.mxu0
    %v1452 = vadd.f32 0.0, %v1451
    %v1453 = vpop.f32.mrf.mxu0
    %v1454 = vadd.f32 0.0, %v1453
    %v1455 = vpop.f32.mrf.mxu0
    %v1456 = vadd.f32 0.0, %v1455
    %v1457 = vpop.f32.mrf.mxu0
    %v1458 = vadd.f32 0.0, %v1457
    %1459 = vdwg.mxu0
    %1460 = vmatprep.subr.bf16.mxu0 %v1307
    %1461 = vmatpush1.bf16.msra.mxu0 %v1306
    %1462 = vmatprep.subr.bf16.mxu0 %v1299
    %1463 = vmatpush1.bf16.msra.mxu0 %v1298
    %1464 = vmatprep.subr.bf16.mxu0 %v1291
    %1465 = vmatpush1.bf16.msra.mxu0 %v1290
    %1466 = vmatprep.subr.bf16.mxu0 %v1283
    %1467 = vmatpush1.bf16.msra.mxu0 %v1282
    %1468 = vmatprep.subr.bf16.mxu0 %v1275
    %1469 = vmatpush1.bf16.msra.mxu0 %v1274
    %1470 = vmatprep.subr.bf16.mxu0 %v1267
    %1471 = vmatpush1.bf16.msra.mxu0 %v1266
    %1472 = vmatprep.subr.bf16.mxu0 %v1259
    %1473 = vmatpush1.bf16.msra.mxu0 %v1258
    %1474 = vmatprep.subr.bf16.mxu0 %v1251
    %1475 = vmatpush1.bf16.msra.mxu0 %v1250
    %1476 = vmatprep.subr.bf16.mxu0 0
    %1477 = vmatpush2.bf16.msra.mxu0 0
    %1478 = vmatprep.subr.bf16.mxu0 0
    %1479 = vmatpush2.bf16.msra.mxu0 0
    %1480 = vmatprep.subr.bf16.mxu0 0
    %1481 = vmatpush2.bf16.msra.mxu0 0
    %1482 = vmatprep.subr.bf16.mxu0 0
    %1483 = vmatpush2.bf16.msra.mxu0 0
    %1484 = vmatprep.subr.bf16.mxu0 0
    %1485 = vmatpush2.bf16.msra.mxu0 0
    %1486 = vmatprep.subr.bf16.mxu0 0
    %1487 = vmatpush2.bf16.msra.mxu0 0
    %1488 = vmatprep.subr.bf16.mxu0 0
    %1489 = vmatpush2.bf16.msra.mxu0 0
    %1490 = vmatprep.subr.bf16.mxu0 0
    %1491 = vmatpush2.bf16.msra.mxu0 0
    %1492 = vmatprep.mubr.bf16.mxu0 0
    %1493 = vmatmul.mubr.bf16.gmra.mxu0 %v989
    %v1494 = vpop.f32.mrf.mxu0
    %v1495 = vadd.f32 0.0, %v1494
    %v1496 = vpop.f32.mrf.mxu0
    %v1497 = vadd.f32 0.0, %v1496
    %v1498 = vpop.f32.mrf.mxu0
    %v1499 = vadd.f32 0.0, %v1498
    %v1500 = vpop.f32.mrf.mxu0
    %v1501 = vadd.f32 0.0, %v1500
    %1502 = vdwg.mxu0
    %1503 = vmatprep.subr.bf16.mxu0 %v1309
    %1504 = vmatpush1.bf16.msra.mxu0 %v1308
    %1505 = vmatprep.subr.bf16.mxu0 %v1301
    %1506 = vmatpush1.bf16.msra.mxu0 %v1300
    %1507 = vmatprep.subr.bf16.mxu0 %v1293
    %1508 = vmatpush1.bf16.msra.mxu0 %v1292
    %1509 = vmatprep.subr.bf16.mxu0 %v1285
    %1510 = vmatpush1.bf16.msra.mxu0 %v1284
    %1511 = vmatprep.subr.bf16.mxu0 %v1277
    %1512 = vmatpush1.bf16.msra.mxu0 %v1276
    %1513 = vmatprep.subr.bf16.mxu0 %v1269
    %1514 = vmatpush1.bf16.msra.mxu0 %v1268
    %1515 = vmatprep.subr.bf16.mxu0 %v1261
    %1516 = vmatpush1.bf16.msra.mxu0 %v1260
    %1517 = vmatprep.subr.bf16.mxu0 %v1253
    %1518 = vmatpush1.bf16.msra.mxu0 %v1252
    %1519 = vmatprep.subr.bf16.mxu0 0
    %1520 = vmatpush2.bf16.msra.mxu0 0
    %1521 = vmatprep.subr.bf16.mxu0 0
    %1522 = vmatpush2.bf16.msra.mxu0 0
    %1523 = vmatprep.subr.bf16.mxu0 0
    %1524 = vmatpush2.bf16.msra.mxu0 0
    %1525 = vmatprep.subr.bf16.mxu0 0
    %1526 = vmatpush2.bf16.msra.mxu0 0
    %1527 = vmatprep.subr.bf16.mxu0 0
    %1528 = vmatpush2.bf16.msra.mxu0 0
    %1529 = vmatprep.subr.bf16.mxu0 0
    %1530 = vmatpush2.bf16.msra.mxu0 0
    %1531 = vmatprep.subr.bf16.mxu0 0
    %1532 = vmatpush2.bf16.msra.mxu0 0
    %1533 = vmatprep.subr.bf16.mxu0 0
    %1534 = vmatpush2.bf16.msra.mxu0 0
    %1535 = vmatprep.mubr.bf16.mxu0 0
    %1536 = vmatmul.mubr.bf16.gmra.mxu0 %v989
    %v1537 = vpop.f32.mrf.mxu0
    %v1538 = vadd.f32 0.0, %v1537
    %v1539 = vpop.f32.mrf.mxu0
    %v1540 = vadd.f32 0.0, %v1539
    %v1541 = vpop.f32.mrf.mxu0
    %v1542 = vadd.f32 0.0, %v1541
    %v1543 = vpop.f32.mrf.mxu0
    %v1544 = vadd.f32 0.0, %v1543
    %1545 = vdwg.mxu0
    %v1546 = vmax.f32 %v1409, 0.0
    %v1547 = vmax.f32 %v1411, 0.0
    %v1548 = vmax.f32 %v1452, 0.0
    %v1549 = vmax.f32 %v1454, 0.0
    %v1550 = vmax.f32 %v1495, 0.0
    %v1551 = vmax.f32 %v1497, 0.0
    %v1552 = vmax.f32 %v1538, 0.0
    %v1553 = vmax.f32 %v1540, 0.0
    %v1554 = vmax.f32 %v1413, 0.0
    %v1555 = vmax.f32 %v1415, 0.0
    %v1556 = vmax.f32 %v1456, 0.0
    %v1557 = vmax.f32 %v1458, 0.0
    %v1558 = vmax.f32 %v1499, 0.0
    %v1559 = vmax.f32 %v1501, 0.0
    %v1560 = vmax.f32 %v1542, 0.0
    %v1561 = vmax.f32 %v1544, 0.0
    %v1562 = vpack.c.bf16 %v1546, %v1546
    %v1563 = vpack.c.bf16 %v1547, %v1547
    %v1564 = vpack.c.bf16 %v1548, %v1548
    %v1565 = vpack.c.bf16 %v1549, %v1549
    %v1566 = vpack.c.bf16 %v1550, %v1550
    %v1567 = vpack.c.bf16 %v1551, %v1551
    %v1568 = vpack.c.bf16 %v1552, %v1552
    %v1569 = vpack.c.bf16 %v1553, %v1553
    %v1570 = vpack.c.bf16 %v1554, %v1554
    %v1571 = vpack.c.bf16 %v1555, %v1555
    %v1572 = vpack.c.bf16 %v1556, %v1556
    %v1573 = vpack.c.bf16 %v1557, %v1557
    %v1574 = vpack.c.bf16 %v1558, %v1558
    %v1575 = vpack.c.bf16 %v1559, %v1559
    %v1576 = vpack.c.bf16 %v1560, %v1560
    %v1577 = vpack.c.bf16 %v1561, %v1561
    %v1578 = vld [vmem:[#allocation10] sm:$0xff]
    %v1579 = vld [vmem:[#allocation10 + $0x8] sm:$0xff]
    %v1580 = vld [vmem:[#allocation10 + $0x10] sm:$0xff]
    %v1581 = vld [vmem:[#allocation10 + $0x18] sm:$0xff]
    %v1582 = vld [vmem:[#allocation10 + $0x20] sm:$0xff]
    %v1583 = vld [vmem:[#allocation10 + $0x28] sm:$0xff]
    %v1584 = vld [vmem:[#allocation10 + $0x30] sm:$0xff]
    %v1585 = vld [vmem:[#allocation10 + $0x38] sm:$0xff]
    %v1586 = vld [vmem:[#allocation10 + $0x40] sm:$0xff]
    %v1587 = vld [vmem:[#allocation10 + $0x48] sm:$0xff]
    %v1588 = vld [vmem:[#allocation10 + $0x50] sm:$0xff]
    %v1589 = vld [vmem:[#allocation10 + $0x58] sm:$0xff]
    %v1590 = vld [vmem:[#allocation10 + $0x60] sm:$0xff]
    %v1591 = vld [vmem:[#allocation10 + $0x68] sm:$0xff]
    %v1592 = vld [vmem:[#allocation10 + $0x70] sm:$0xff]
    %v1593 = vld [vmem:[#allocation10 + $0x78] sm:$0xff]
    %v1594 = vld [vmem:[#allocation10 + $0x80] sm:$0xff]
    %v1595 = vld [vmem:[#allocation10 + $0x88] sm:$0xff]
    %v1596 = vld [vmem:[#allocation10 + $0x90] sm:$0xff]
    %v1597 = vld [vmem:[#allocation10 + $0x98] sm:$0xff]
    %v1598 = vld [vmem:[#allocation10 + $0xa0] sm:$0xff]
    %v1599 = vld [vmem:[#allocation10 + $0xa8] sm:$0xff]
    %v1600 = vld [vmem:[#allocation10 + $0xb0] sm:$0xff]
    %v1601 = vld [vmem:[#allocation10 + $0xb8] sm:$0xff]
    %v1602 = vld [vmem:[#allocation10 + $0xc0] sm:$0xff]
    %v1603 = vld [vmem:[#allocation10 + $0xc8] sm:$0xff]
    %v1604 = vld [vmem:[#allocation10 + $0xd0] sm:$0xff]
    %v1605 = vld [vmem:[#allocation10 + $0xd8] sm:$0xff]
    %v1606 = vld [vmem:[#allocation10 + $0xe0] sm:$0xff]
    %v1607 = vld [vmem:[#allocation10 + $0xe8] sm:$0xff]
    %v1608 = vld [vmem:[#allocation10 + $0xf0] sm:$0xff]
    %v1609 = vld [vmem:[#allocation10 + $0xf8] sm:$0xff]
    %v1610 = vld [vmem:[#allocation10 + $0x100] sm:$0xff]
    %v1611 = vld [vmem:[#allocation10 + $0x108] sm:$0xff]
    %v1612 = vld [vmem:[#allocation10 + $0x110] sm:$0xff]
    %v1613 = vld [vmem:[#allocation10 + $0x118] sm:$0xff]
    %v1614 = vld [vmem:[#allocation10 + $0x120] sm:$0xff]
    %v1615 = vld [vmem:[#allocation10 + $0x128] sm:$0xff]
    %v1616 = vld [vmem:[#allocation10 + $0x130] sm:$0xff]
    %v1617 = vld [vmem:[#allocation10 + $0x138] sm:$0xff]
    %v1618 = vld [vmem:[#allocation10 + $0x140] sm:$0xff]
    %v1619 = vld [vmem:[#allocation10 + $0x148] sm:$0xff]
    %v1620 = vld [vmem:[#allocation10 + $0x150] sm:$0xff]
    %v1621 = vld [vmem:[#allocation10 + $0x158] sm:$0xff]
    %v1622 = vld [vmem:[#allocation10 + $0x160] sm:$0xff]
    %v1623 = vld [vmem:[#allocation10 + $0x168] sm:$0xff]
    %v1624 = vld [vmem:[#allocation10 + $0x170] sm:$0xff]
    %v1625 = vld [vmem:[#allocation10 + $0x178] sm:$0xff]
    %v1626 = vld [vmem:[#allocation10 + $0x180] sm:$0xff]
    %v1627 = vld [vmem:[#allocation10 + $0x188] sm:$0xff]
    %v1628 = vld [vmem:[#allocation10 + $0x190] sm:$0xff]
    %v1629 = vld [vmem:[#allocation10 + $0x198] sm:$0xff]
    %v1630 = vld [vmem:[#allocation10 + $0x1a0] sm:$0xff]
    %v1631 = vld [vmem:[#allocation10 + $0x1a8] sm:$0xff]
    %v1632 = vld [vmem:[#allocation10 + $0x1b0] sm:$0xff]
    %v1633 = vld [vmem:[#allocation10 + $0x1b8] sm:$0xff]
    %v1634 = vld [vmem:[#allocation10 + $0x1c0] sm:$0xff]
    %v1635 = vld [vmem:[#allocation10 + $0x1c8] sm:$0xff]
    %v1636 = vld [vmem:[#allocation10 + $0x1d0] sm:$0xff]
    %v1637 = vld [vmem:[#allocation10 + $0x1d8] sm:$0xff]
    %v1638 = vld [vmem:[#allocation10 + $0x1e0] sm:$0xff]
    %v1639 = vld [vmem:[#allocation10 + $0x1e8] sm:$0xff]
    %v1640 = vld [vmem:[#allocation10 + $0x1f0] sm:$0xff]
    %v1641 = vld [vmem:[#allocation10 + $0x1f8] sm:$0xff]
    %v1642 = vld [vmem:[#allocation10 + $0x200] sm:$0xff]
    %v1643 = vld [vmem:[#allocation10 + $0x208] sm:$0xff]
    %v1644 = vld [vmem:[#allocation10 + $0x210] sm:$0xff]
    %v1645 = vld [vmem:[#allocation10 + $0x218] sm:$0xff]
    %v1646 = vld [vmem:[#allocation10 + $0x220] sm:$0xff]
    %v1647 = vld [vmem:[#allocation10 + $0x228] sm:$0xff]
    %v1648 = vld [vmem:[#allocation10 + $0x230] sm:$0xff]
    %v1649 = vld [vmem:[#allocation10 + $0x238] sm:$0xff]
    %v1650 = vld [vmem:[#allocation10 + $0x240] sm:$0xff]
    %v1651 = vld [vmem:[#allocation10 + $0x248] sm:$0xff]
    %v1652 = vld [vmem:[#allocation10 + $0x250] sm:$0xff]
    %v1653 = vld [vmem:[#allocation10 + $0x258] sm:$0xff]
    %v1654 = vld [vmem:[#allocation10 + $0x260] sm:$0xff]
    %v1655 = vld [vmem:[#allocation10 + $0x268] sm:$0xff]
    %v1656 = vld [vmem:[#allocation10 + $0x270] sm:$0xff]
    %v1657 = vld [vmem:[#allocation10 + $0x278] sm:$0xff]
    %v1658 = vld [vmem:[#allocation10 + $0x280] sm:$0xff]
    %v1659 = vld [vmem:[#allocation10 + $0x288] sm:$0xff]
    %v1660 = vld [vmem:[#allocation10 + $0x290] sm:$0xff]
    %v1661 = vld [vmem:[#allocation10 + $0x298] sm:$0xff]
    %v1662 = vld [vmem:[#allocation10 + $0x2a0] sm:$0xff]
    %v1663 = vld [vmem:[#allocation10 + $0x2a8] sm:$0xff]
    %v1664 = vld [vmem:[#allocation10 + $0x2b0] sm:$0xff]
    %v1665 = vld [vmem:[#allocation10 + $0x2b8] sm:$0xff]
    %v1666 = vld [vmem:[#allocation10 + $0x2c0] sm:$0xff]
    %v1667 = vld [vmem:[#allocation10 + $0x2c8] sm:$0xff]
    %v1668 = vld [vmem:[#allocation10 + $0x2d0] sm:$0xff]
    %v1669 = vld [vmem:[#allocation10 + $0x2d8] sm:$0xff]
    %v1670 = vld [vmem:[#allocation10 + $0x2e0] sm:$0xff]
    %v1671 = vld [vmem:[#allocation10 + $0x2e8] sm:$0xff]
    %v1672 = vld [vmem:[#allocation10 + $0x2f0] sm:$0xff]
    %v1673 = vld [vmem:[#allocation10 + $0x2f8] sm:$0xff]
    %v1674 = vld [vmem:[#allocation10 + $0x300] sm:$0xff]
    %v1675 = vld [vmem:[#allocation10 + $0x308] sm:$0xff]
    %v1676 = vld [vmem:[#allocation10 + $0x310] sm:$0xff]
    %v1677 = vld [vmem:[#allocation10 + $0x318] sm:$0xff]
    %v1678 = vld [vmem:[#allocation10 + $0x320] sm:$0xff]
    %v1679 = vld [vmem:[#allocation10 + $0x328] sm:$0xff]
    %v1680 = vld [vmem:[#allocation10 + $0x330] sm:$0xff]
    %v1681 = vld [vmem:[#allocation10 + $0x338] sm:$0xff]
    %v1682 = vld [vmem:[#allocation10 + $0x340] sm:$0xff]
    %v1683 = vld [vmem:[#allocation10 + $0x348] sm:$0xff]
    %v1684 = vld [vmem:[#allocation10 + $0x350] sm:$0xff]
    %v1685 = vld [vmem:[#allocation10 + $0x358] sm:$0xff]
    %v1686 = vld [vmem:[#allocation10 + $0x360] sm:$0xff]
    %v1687 = vld [vmem:[#allocation10 + $0x368] sm:$0xff]
    %v1688 = vld [vmem:[#allocation10 + $0x370] sm:$0xff]
    %v1689 = vld [vmem:[#allocation10 + $0x378] sm:$0xff]
    %v1690 = vld [vmem:[#allocation10 + $0x380] sm:$0xff]
    %v1691 = vld [vmem:[#allocation10 + $0x388] sm:$0xff]
    %v1692 = vld [vmem:[#allocation10 + $0x390] sm:$0xff]
    %v1693 = vld [vmem:[#allocation10 + $0x398] sm:$0xff]
    %v1694 = vld [vmem:[#allocation10 + $0x3a0] sm:$0xff]
    %v1695 = vld [vmem:[#allocation10 + $0x3a8] sm:$0xff]
    %v1696 = vld [vmem:[#allocation10 + $0x3b0] sm:$0xff]
    %v1697 = vld [vmem:[#allocation10 + $0x3b8] sm:$0xff]
    %v1698 = vld [vmem:[#allocation10 + $0x3c0] sm:$0xff]
    %v1699 = vld [vmem:[#allocation10 + $0x3c8] sm:$0xff]
    %v1700 = vld [vmem:[#allocation10 + $0x3d0] sm:$0xff]
    %v1701 = vld [vmem:[#allocation10 + $0x3d8] sm:$0xff]
    %v1702 = vld [vmem:[#allocation10 + $0x3e0] sm:$0xff]
    %v1703 = vld [vmem:[#allocation10 + $0x3e8] sm:$0xff]
    %v1704 = vld [vmem:[#allocation10 + $0x3f0] sm:$0xff]
    %v1705 = vld [vmem:[#allocation10 + $0x3f8] sm:$0xff]
    %v1706 = vld [vmem:[#allocation11] sm:$0xff]
    %v1707 = vld [vmem:[#allocation11 + $0x8] sm:$0xff]
    %v1708 = vld [vmem:[#allocation11 + $0x10] sm:$0xff]
    %v1709 = vld [vmem:[#allocation11 + $0x18] sm:$0xff]
    %v1710 = vld [vmem:[#allocation11 + $0x20] sm:$0xff]
    %v1711 = vld [vmem:[#allocation11 + $0x28] sm:$0xff]
    %v1712 = vld [vmem:[#allocation11 + $0x30] sm:$0xff]
    %v1713 = vld [vmem:[#allocation11 + $0x38] sm:$0xff]
    %v1714 = vld [vmem:[#allocation11 + $0x40] sm:$0xff]
    %v1715 = vld [vmem:[#allocation11 + $0x48] sm:$0xff]
    %v1716 = vld [vmem:[#allocation11 + $0x50] sm:$0xff]
    %v1717 = vld [vmem:[#allocation11 + $0x58] sm:$0xff]
    %v1718 = vld [vmem:[#allocation11 + $0x60] sm:$0xff]
    %v1719 = vld [vmem:[#allocation11 + $0x68] sm:$0xff]
    %v1720 = vld [vmem:[#allocation11 + $0x70] sm:$0xff]
    %v1721 = vld [vmem:[#allocation11 + $0x78] sm:$0xff]
    %v1722 = vld [vmem:[#allocation11 + $0x80] sm:$0xff]
    %v1723 = vld [vmem:[#allocation11 + $0x88] sm:$0xff]
    %v1724 = vld [vmem:[#allocation11 + $0x90] sm:$0xff]
    %v1725 = vld [vmem:[#allocation11 + $0x98] sm:$0xff]
    %v1726 = vld [vmem:[#allocation11 + $0xa0] sm:$0xff]
    %v1727 = vld [vmem:[#allocation11 + $0xa8] sm:$0xff]
    %v1728 = vld [vmem:[#allocation11 + $0xb0] sm:$0xff]
    %v1729 = vld [vmem:[#allocation11 + $0xb8] sm:$0xff]
    %v1730 = vld [vmem:[#allocation11 + $0xc0] sm:$0xff]
    %v1731 = vld [vmem:[#allocation11 + $0xc8] sm:$0xff]
    %v1732 = vld [vmem:[#allocation11 + $0xd0] sm:$0xff]
    %v1733 = vld [vmem:[#allocation11 + $0xd8] sm:$0xff]
    %v1734 = vld [vmem:[#allocation11 + $0xe0] sm:$0xff]
    %v1735 = vld [vmem:[#allocation11 + $0xe8] sm:$0xff]
    %v1736 = vld [vmem:[#allocation11 + $0xf0] sm:$0xff]
    %v1737 = vld [vmem:[#allocation11 + $0xf8] sm:$0xff]
    %v1738 = vld [vmem:[#allocation11 + $0x100] sm:$0xff]
    %v1739 = vld [vmem:[#allocation11 + $0x108] sm:$0xff]
    %v1740 = vld [vmem:[#allocation11 + $0x110] sm:$0xff]
    %v1741 = vld [vmem:[#allocation11 + $0x118] sm:$0xff]
    %v1742 = vld [vmem:[#allocation11 + $0x120] sm:$0xff]
    %v1743 = vld [vmem:[#allocation11 + $0x128] sm:$0xff]
    %v1744 = vld [vmem:[#allocation11 + $0x130] sm:$0xff]
    %v1745 = vld [vmem:[#allocation11 + $0x138] sm:$0xff]
    %v1746 = vld [vmem:[#allocation11 + $0x140] sm:$0xff]
    %v1747 = vld [vmem:[#allocation11 + $0x148] sm:$0xff]
    %v1748 = vld [vmem:[#allocation11 + $0x150] sm:$0xff]
    %v1749 = vld [vmem:[#allocation11 + $0x158] sm:$0xff]
    %v1750 = vld [vmem:[#allocation11 + $0x160] sm:$0xff]
    %v1751 = vld [vmem:[#allocation11 + $0x168] sm:$0xff]
    %v1752 = vld [vmem:[#allocation11 + $0x170] sm:$0xff]
    %v1753 = vld [vmem:[#allocation11 + $0x178] sm:$0xff]
    %v1754 = vld [vmem:[#allocation11 + $0x180] sm:$0xff]
    %v1755 = vld [vmem:[#allocation11 + $0x188] sm:$0xff]
    %v1756 = vld [vmem:[#allocation11 + $0x190] sm:$0xff]
    %v1757 = vld [vmem:[#allocation11 + $0x198] sm:$0xff]
    %v1758 = vld [vmem:[#allocation11 + $0x1a0] sm:$0xff]
    %v1759 = vld [vmem:[#allocation11 + $0x1a8] sm:$0xff]
    %v1760 = vld [vmem:[#allocation11 + $0x1b0] sm:$0xff]
    %v1761 = vld [vmem:[#allocation11 + $0x1b8] sm:$0xff]
    %v1762 = vld [vmem:[#allocation11 + $0x1c0] sm:$0xff]
    %v1763 = vld [vmem:[#allocation11 + $0x1c8] sm:$0xff]
    %v1764 = vld [vmem:[#allocation11 + $0x1d0] sm:$0xff]
    %v1765 = vld [vmem:[#allocation11 + $0x1d8] sm:$0xff]
    %v1766 = vld [vmem:[#allocation11 + $0x1e0] sm:$0xff]
    %v1767 = vld [vmem:[#allocation11 + $0x1e8] sm:$0xff]
    %v1768 = vld [vmem:[#allocation11 + $0x1f0] sm:$0xff]
    %v1769 = vld [vmem:[#allocation11 + $0x1f8] sm:$0xff]
    %v1770 = vld [vmem:[#allocation11 + $0x200] sm:$0xff]
    %v1771 = vld [vmem:[#allocation11 + $0x208] sm:$0xff]
    %v1772 = vld [vmem:[#allocation11 + $0x210] sm:$0xff]
    %v1773 = vld [vmem:[#allocation11 + $0x218] sm:$0xff]
    %v1774 = vld [vmem:[#allocation11 + $0x220] sm:$0xff]
    %v1775 = vld [vmem:[#allocation11 + $0x228] sm:$0xff]
    %v1776 = vld [vmem:[#allocation11 + $0x230] sm:$0xff]
    %v1777 = vld [vmem:[#allocation11 + $0x238] sm:$0xff]
    %v1778 = vld [vmem:[#allocation11 + $0x240] sm:$0xff]
    %v1779 = vld [vmem:[#allocation11 + $0x248] sm:$0xff]
    %v1780 = vld [vmem:[#allocation11 + $0x250] sm:$0xff]
    %v1781 = vld [vmem:[#allocation11 + $0x258] sm:$0xff]
    %v1782 = vld [vmem:[#allocation11 + $0x260] sm:$0xff]
    %v1783 = vld [vmem:[#allocation11 + $0x268] sm:$0xff]
    %v1784 = vld [vmem:[#allocation11 + $0x270] sm:$0xff]
    %v1785 = vld [vmem:[#allocation11 + $0x278] sm:$0xff]
    %v1786 = vld [vmem:[#allocation11 + $0x280] sm:$0xff]
    %v1787 = vld [vmem:[#allocation11 + $0x288] sm:$0xff]
    %v1788 = vld [vmem:[#allocation11 + $0x290] sm:$0xff]
    %v1789 = vld [vmem:[#allocation11 + $0x298] sm:$0xff]
    %v1790 = vld [vmem:[#allocation11 + $0x2a0] sm:$0xff]
    %v1791 = vld [vmem:[#allocation11 + $0x2a8] sm:$0xff]
    %v1792 = vld [vmem:[#allocation11 + $0x2b0] sm:$0xff]
    %v1793 = vld [vmem:[#allocation11 + $0x2b8] sm:$0xff]
    %v1794 = vld [vmem:[#allocation11 + $0x2c0] sm:$0xff]
    %v1795 = vld [vmem:[#allocation11 + $0x2c8] sm:$0xff]
    %v1796 = vld [vmem:[#allocation11 + $0x2d0] sm:$0xff]
    %v1797 = vld [vmem:[#allocation11 + $0x2d8] sm:$0xff]
    %v1798 = vld [vmem:[#allocation11 + $0x2e0] sm:$0xff]
    %v1799 = vld [vmem:[#allocation11 + $0x2e8] sm:$0xff]
    %v1800 = vld [vmem:[#allocation11 + $0x2f0] sm:$0xff]
    %v1801 = vld [vmem:[#allocation11 + $0x2f8] sm:$0xff]
    %v1802 = vld [vmem:[#allocation11 + $0x300] sm:$0xff]
    %v1803 = vld [vmem:[#allocation11 + $0x308] sm:$0xff]
    %v1804 = vld [vmem:[#allocation11 + $0x310] sm:$0xff]
    %v1805 = vld [vmem:[#allocation11 + $0x318] sm:$0xff]
    %v1806 = vld [vmem:[#allocation11 + $0x320] sm:$0xff]
    %v1807 = vld [vmem:[#allocation11 + $0x328] sm:$0xff]
    %v1808 = vld [vmem:[#allocation11 + $0x330] sm:$0xff]
    %v1809 = vld [vmem:[#allocation11 + $0x338] sm:$0xff]
    %v1810 = vld [vmem:[#allocation11 + $0x340] sm:$0xff]
    %v1811 = vld [vmem:[#allocation11 + $0x348] sm:$0xff]
    %v1812 = vld [vmem:[#allocation11 + $0x350] sm:$0xff]
    %v1813 = vld [vmem:[#allocation11 + $0x358] sm:$0xff]
    %v1814 = vld [vmem:[#allocation11 + $0x360] sm:$0xff]
    %v1815 = vld [vmem:[#allocation11 + $0x368] sm:$0xff]
    %v1816 = vld [vmem:[#allocation11 + $0x370] sm:$0xff]
    %v1817 = vld [vmem:[#allocation11 + $0x378] sm:$0xff]
    %v1818 = vld [vmem:[#allocation11 + $0x380] sm:$0xff]
    %v1819 = vld [vmem:[#allocation11 + $0x388] sm:$0xff]
    %v1820 = vld [vmem:[#allocation11 + $0x390] sm:$0xff]
    %v1821 = vld [vmem:[#allocation11 + $0x398] sm:$0xff]
    %v1822 = vld [vmem:[#allocation11 + $0x3a0] sm:$0xff]
    %v1823 = vld [vmem:[#allocation11 + $0x3a8] sm:$0xff]
    %v1824 = vld [vmem:[#allocation11 + $0x3b0] sm:$0xff]
    %v1825 = vld [vmem:[#allocation11 + $0x3b8] sm:$0xff]
    %v1826 = vld [vmem:[#allocation11 + $0x3c0] sm:$0xff]
    %v1827 = vld [vmem:[#allocation11 + $0x3c8] sm:$0xff]
    %v1828 = vld [vmem:[#allocation11 + $0x3d0] sm:$0xff]
    %v1829 = vld [vmem:[#allocation11 + $0x3d8] sm:$0xff]
    %v1830 = vld [vmem:[#allocation11 + $0x3e0] sm:$0xff]
    %v1831 = vld [vmem:[#allocation11 + $0x3e8] sm:$0xff]
    %v1832 = vld [vmem:[#allocation11 + $0x3f0] sm:$0xff]
    %v1833 = vld [vmem:[#allocation11 + $0x3f8] sm:$0xff]
    %v1962 = vunpack.c.l.b16 %v1706
    %v1963 = vunpack.c.h.b16 %v1706
    %v1964 = vunpack.c.l.b16 %v1707
    %v1965 = vunpack.c.h.b16 %v1707
    %v1966 = vunpack.c.l.b16 %v1708
    %v1967 = vunpack.c.h.b16 %v1708
    %v1968 = vunpack.c.l.b16 %v1709
    %v1969 = vunpack.c.h.b16 %v1709
    %v1970 = vunpack.c.l.b16 %v1710
    %v1971 = vunpack.c.h.b16 %v1710
    %v1972 = vunpack.c.l.b16 %v1711
    %v1973 = vunpack.c.h.b16 %v1711
    %v1974 = vunpack.c.l.b16 %v1712
    %v1975 = vunpack.c.h.b16 %v1712
    %v1976 = vunpack.c.l.b16 %v1713
    %v1977 = vunpack.c.h.b16 %v1713
    %v1978 = vunpack.c.l.b16 %v1714
    %v1979 = vunpack.c.h.b16 %v1714
    %v1980 = vunpack.c.l.b16 %v1715
    %v1981 = vunpack.c.h.b16 %v1715
    %v1982 = vunpack.c.l.b16 %v1716
    %v1983 = vunpack.c.h.b16 %v1716
    %v1984 = vunpack.c.l.b16 %v1717
    %v1985 = vunpack.c.h.b16 %v1717
    %v1986 = vunpack.c.l.b16 %v1718
    %v1987 = vunpack.c.h.b16 %v1718
    %v1988 = vunpack.c.l.b16 %v1719
    %v1989 = vunpack.c.h.b16 %v1719
    %v1990 = vunpack.c.l.b16 %v1720
    %v1991 = vunpack.c.h.b16 %v1720
    %v1992 = vunpack.c.l.b16 %v1721
    %v1993 = vunpack.c.h.b16 %v1721
    %v1994 = vunpack.c.l.b16 %v1722
    %v1995 = vunpack.c.h.b16 %v1722
    %v1996 = vunpack.c.l.b16 %v1723
    %v1997 = vunpack.c.h.b16 %v1723
    %v1998 = vunpack.c.l.b16 %v1724
    %v1999 = vunpack.c.h.b16 %v1724
    %v2000 = vunpack.c.l.b16 %v1725
    %v2001 = vunpack.c.h.b16 %v1725
    %v2002 = vunpack.c.l.b16 %v1726
    %v2003 = vunpack.c.h.b16 %v1726
    %v2004 = vunpack.c.l.b16 %v1727
    %v2005 = vunpack.c.h.b16 %v1727
    %v2006 = vunpack.c.l.b16 %v1728
    %v2007 = vunpack.c.h.b16 %v1728
    %v2008 = vunpack.c.l.b16 %v1729
    %v2009 = vunpack.c.h.b16 %v1729
    %v2010 = vunpack.c.l.b16 %v1730
    %v2011 = vunpack.c.h.b16 %v1730
    %v2012 = vunpack.c.l.b16 %v1731
    %v2013 = vunpack.c.h.b16 %v1731
    %v2014 = vunpack.c.l.b16 %v1732
    %v2015 = vunpack.c.h.b16 %v1732
    %v2016 = vunpack.c.l.b16 %v1733
    %v2017 = vunpack.c.h.b16 %v1733
    %v2018 = vunpack.c.l.b16 %v1734
    %v2019 = vunpack.c.h.b16 %v1734
    %v2020 = vunpack.c.l.b16 %v1735
    %v2021 = vunpack.c.h.b16 %v1735
    %v2022 = vunpack.c.l.b16 %v1736
    %v2023 = vunpack.c.h.b16 %v1736
    %v2024 = vunpack.c.l.b16 %v1737
    %v2025 = vunpack.c.h.b16 %v1737
    %v2026 = vunpack.c.l.b16 %v1738
    %v2027 = vunpack.c.h.b16 %v1738
    %v2028 = vunpack.c.l.b16 %v1739
    %v2029 = vunpack.c.h.b16 %v1739
    %v2030 = vunpack.c.l.b16 %v1740
    %v2031 = vunpack.c.h.b16 %v1740
    %v2032 = vunpack.c.l.b16 %v1741
    %v2033 = vunpack.c.h.b16 %v1741
    %v2034 = vunpack.c.l.b16 %v1742
    %v2035 = vunpack.c.h.b16 %v1742
    %v2036 = vunpack.c.l.b16 %v1743
    %v2037 = vunpack.c.h.b16 %v1743
    %v2038 = vunpack.c.l.b16 %v1744
    %v2039 = vunpack.c.h.b16 %v1744
    %v2040 = vunpack.c.l.b16 %v1745
    %v2041 = vunpack.c.h.b16 %v1745
    %v2042 = vunpack.c.l.b16 %v1746
    %v2043 = vunpack.c.h.b16 %v1746
    %v2044 = vunpack.c.l.b16 %v1747
    %v2045 = vunpack.c.h.b16 %v1747
    %v2046 = vunpack.c.l.b16 %v1748
    %v2047 = vunpack.c.h.b16 %v1748
    %v2048 = vunpack.c.l.b16 %v1749
    %v2049 = vunpack.c.h.b16 %v1749
    %v2050 = vunpack.c.l.b16 %v1750
    %v2051 = vunpack.c.h.b16 %v1750
    %v2052 = vunpack.c.l.b16 %v1751
    %v2053 = vunpack.c.h.b16 %v1751
    %v2054 = vunpack.c.l.b16 %v1752
    %v2055 = vunpack.c.h.b16 %v1752
    %v2056 = vunpack.c.l.b16 %v1753
    %v2057 = vunpack.c.h.b16 %v1753
    %v2058 = vunpack.c.l.b16 %v1754
    %v2059 = vunpack.c.h.b16 %v1754
    %v2060 = vunpack.c.l.b16 %v1755
    %v2061 = vunpack.c.h.b16 %v1755
    %v2062 = vunpack.c.l.b16 %v1756
    %v2063 = vunpack.c.h.b16 %v1756
    %v2064 = vunpack.c.l.b16 %v1757
    %v2065 = vunpack.c.h.b16 %v1757
    %v2066 = vunpack.c.l.b16 %v1758
    %v2067 = vunpack.c.h.b16 %v1758
    %v2068 = vunpack.c.l.b16 %v1759
    %v2069 = vunpack.c.h.b16 %v1759
    %v2070 = vunpack.c.l.b16 %v1760
    %v2071 = vunpack.c.h.b16 %v1760
    %v2072 = vunpack.c.l.b16 %v1761
    %v2073 = vunpack.c.h.b16 %v1761
    %v2074 = vunpack.c.l.b16 %v1762
    %v2075 = vunpack.c.h.b16 %v1762
    %v2076 = vunpack.c.l.b16 %v1763
    %v2077 = vunpack.c.h.b16 %v1763
    %v2078 = vunpack.c.l.b16 %v1764
    %v2079 = vunpack.c.h.b16 %v1764
    %v2080 = vunpack.c.l.b16 %v1765
    %v2081 = vunpack.c.h.b16 %v1765
    %v2082 = vunpack.c.l.b16 %v1766
    %v2083 = vunpack.c.h.b16 %v1766
    %v2084 = vunpack.c.l.b16 %v1767
    %v2085 = vunpack.c.h.b16 %v1767
    %v2086 = vunpack.c.l.b16 %v1768
    %v2087 = vunpack.c.h.b16 %v1768
    %v2088 = vunpack.c.l.b16 %v1769
    %v2089 = vunpack.c.h.b16 %v1769
    %v2090 = vunpack.c.l.b16 %v1770
    %v2091 = vunpack.c.h.b16 %v1770
    %v2092 = vunpack.c.l.b16 %v1771
    %v2093 = vunpack.c.h.b16 %v1771
    %v2094 = vunpack.c.l.b16 %v1772
    %v2095 = vunpack.c.h.b16 %v1772
    %v2096 = vunpack.c.l.b16 %v1773
    %v2097 = vunpack.c.h.b16 %v1773
    %v2098 = vunpack.c.l.b16 %v1774
    %v2099 = vunpack.c.h.b16 %v1774
    %v2100 = vunpack.c.l.b16 %v1775
    %v2101 = vunpack.c.h.b16 %v1775
    %v2102 = vunpack.c.l.b16 %v1776
    %v2103 = vunpack.c.h.b16 %v1776
    %v2104 = vunpack.c.l.b16 %v1777
    %v2105 = vunpack.c.h.b16 %v1777
    %v2106 = vunpack.c.l.b16 %v1778
    %v2107 = vunpack.c.h.b16 %v1778
    %v2108 = vunpack.c.l.b16 %v1779
    %v2109 = vunpack.c.h.b16 %v1779
    %v2110 = vunpack.c.l.b16 %v1780
    %v2111 = vunpack.c.h.b16 %v1780
    %v2112 = vunpack.c.l.b16 %v1781
    %v2113 = vunpack.c.h.b16 %v1781
    %v2114 = vunpack.c.l.b16 %v1782
    %v2115 = vunpack.c.h.b16 %v1782
    %v2116 = vunpack.c.l.b16 %v1783
    %v2117 = vunpack.c.h.b16 %v1783
    %v2118 = vunpack.c.l.b16 %v1784
    %v2119 = vunpack.c.h.b16 %v1784
    %v2120 = vunpack.c.l.b16 %v1785
    %v2121 = vunpack.c.h.b16 %v1785
    %v2122 = vunpack.c.l.b16 %v1786
    %v2123 = vunpack.c.h.b16 %v1786
    %v2124 = vunpack.c.l.b16 %v1787
    %v2125 = vunpack.c.h.b16 %v1787
    %v2126 = vunpack.c.l.b16 %v1788
    %v2127 = vunpack.c.h.b16 %v1788
    %v2128 = vunpack.c.l.b16 %v1789
    %v2129 = vunpack.c.h.b16 %v1789
    %v2130 = vunpack.c.l.b16 %v1790
    %v2131 = vunpack.c.h.b16 %v1790
    %v2132 = vunpack.c.l.b16 %v1791
    %v2133 = vunpack.c.h.b16 %v1791
    %v2134 = vunpack.c.l.b16 %v1792
    %v2135 = vunpack.c.h.b16 %v1792
    %v2136 = vunpack.c.l.b16 %v1793
    %v2137 = vunpack.c.h.b16 %v1793
    %v2138 = vunpack.c.l.b16 %v1794
    %v2139 = vunpack.c.h.b16 %v1794
    %v2140 = vunpack.c.l.b16 %v1795
    %v2141 = vunpack.c.h.b16 %v1795
    %v2142 = vunpack.c.l.b16 %v1796
    %v2143 = vunpack.c.h.b16 %v1796
    %v2144 = vunpack.c.l.b16 %v1797
    %v2145 = vunpack.c.h.b16 %v1797
    %v2146 = vunpack.c.l.b16 %v1798
    %v2147 = vunpack.c.h.b16 %v1798
    %v2148 = vunpack.c.l.b16 %v1799
    %v2149 = vunpack.c.h.b16 %v1799
    %v2150 = vunpack.c.l.b16 %v1800
    %v2151 = vunpack.c.h.b16 %v1800
    %v2152 = vunpack.c.l.b16 %v1801
    %v2153 = vunpack.c.h.b16 %v1801
    %v2154 = vunpack.c.l.b16 %v1802
    %v2155 = vunpack.c.h.b16 %v1802
    %v2156 = vunpack.c.l.b16 %v1803
    %v2157 = vunpack.c.h.b16 %v1803
    %v2158 = vunpack.c.l.b16 %v1804
    %v2159 = vunpack.c.h.b16 %v1804
    %v2160 = vunpack.c.l.b16 %v1805
    %v2161 = vunpack.c.h.b16 %v1805
    %v2162 = vunpack.c.l.b16 %v1806
    %v2163 = vunpack.c.h.b16 %v1806
    %v2164 = vunpack.c.l.b16 %v1807
    %v2165 = vunpack.c.h.b16 %v1807
    %v2166 = vunpack.c.l.b16 %v1808
    %v2167 = vunpack.c.h.b16 %v1808
    %v2168 = vunpack.c.l.b16 %v1809
    %v2169 = vunpack.c.h.b16 %v1809
    %v2170 = vunpack.c.l.b16 %v1810
    %v2171 = vunpack.c.h.b16 %v1810
    %v2172 = vunpack.c.l.b16 %v1811
    %v2173 = vunpack.c.h.b16 %v1811
    %v2174 = vunpack.c.l.b16 %v1812
    %v2175 = vunpack.c.h.b16 %v1812
    %v2176 = vunpack.c.l.b16 %v1813
    %v2177 = vunpack.c.h.b16 %v1813
    %v2178 = vunpack.c.l.b16 %v1814
    %v2179 = vunpack.c.h.b16 %v1814
    %v2180 = vunpack.c.l.b16 %v1815
    %v2181 = vunpack.c.h.b16 %v1815
    %v2182 = vunpack.c.l.b16 %v1816
    %v2183 = vunpack.c.h.b16 %v1816
    %v2184 = vunpack.c.l.b16 %v1817
    %v2185 = vunpack.c.h.b16 %v1817
    %v2186 = vunpack.c.l.b16 %v1818
    %v2187 = vunpack.c.h.b16 %v1818
    %v2188 = vunpack.c.l.b16 %v1819
    %v2189 = vunpack.c.h.b16 %v1819
    %v2190 = vunpack.c.l.b16 %v1820
    %v2191 = vunpack.c.h.b16 %v1820
    %v2192 = vunpack.c.l.b16 %v1821
    %v2193 = vunpack.c.h.b16 %v1821
    %v2194 = vunpack.c.l.b16 %v1822
    %v2195 = vunpack.c.h.b16 %v1822
    %v2196 = vunpack.c.l.b16 %v1823
    %v2197 = vunpack.c.h.b16 %v1823
    %v2198 = vunpack.c.l.b16 %v1824
    %v2199 = vunpack.c.h.b16 %v1824
    %v2200 = vunpack.c.l.b16 %v1825
    %v2201 = vunpack.c.h.b16 %v1825
    %v2202 = vunpack.c.l.b16 %v1826
    %v2203 = vunpack.c.h.b16 %v1826
    %v2204 = vunpack.c.l.b16 %v1827
    %v2205 = vunpack.c.h.b16 %v1827
    %v2206 = vunpack.c.l.b16 %v1828
    %v2207 = vunpack.c.h.b16 %v1828
    %v2208 = vunpack.c.l.b16 %v1829
    %v2209 = vunpack.c.h.b16 %v1829
    %v2210 = vunpack.c.l.b16 %v1830
    %v2211 = vunpack.c.h.b16 %v1830
    %v2212 = vunpack.c.l.b16 %v1831
    %v2213 = vunpack.c.h.b16 %v1831
    %v2214 = vunpack.c.l.b16 %v1832
    %v2215 = vunpack.c.h.b16 %v1832
    %v2216 = vunpack.c.l.b16 %v1833
    %v2217 = vunpack.c.h.b16 %v1833
    %v2218 = vpack.c.b16 %v1964, %v1962
    %v2219 = vpack.c.b16 %v1965, %v1963
    %v2220 = vpack.c.b16 %v1968, %v1966
    %v2221 = vpack.c.b16 %v1969, %v1967
    %v2222 = vpack.c.b16 %v1972, %v1970
    %v2223 = vpack.c.b16 %v1973, %v1971
    %v2224 = vpack.c.b16 %v1976, %v1974
    %v2225 = vpack.c.b16 %v1977, %v1975
    %v2226 = vpack.c.b16 %v1980, %v1978
    %v2227 = vpack.c.b16 %v1981, %v1979
    %v2228 = vpack.c.b16 %v1984, %v1982
    %v2229 = vpack.c.b16 %v1985, %v1983
    %v2230 = vpack.c.b16 %v1988, %v1986
    %v2231 = vpack.c.b16 %v1989, %v1987
    %v2232 = vpack.c.b16 %v1992, %v1990
    %v2233 = vpack.c.b16 %v1993, %v1991
    %v2234 = vpack.c.b16 %v1996, %v1994
    %v2235 = vpack.c.b16 %v1997, %v1995
    %v2236 = vpack.c.b16 %v2000, %v1998
    %v2237 = vpack.c.b16 %v2001, %v1999
    %v2238 = vpack.c.b16 %v2004, %v2002
    %v2239 = vpack.c.b16 %v2005, %v2003
    %v2240 = vpack.c.b16 %v2008, %v2006
    %v2241 = vpack.c.b16 %v2009, %v2007
    %v2242 = vpack.c.b16 %v2012, %v2010
    %v2243 = vpack.c.b16 %v2013, %v2011
    %v2244 = vpack.c.b16 %v2016, %v2014
    %v2245 = vpack.c.b16 %v2017, %v2015
    %v2246 = vpack.c.b16 %v2020, %v2018
    %v2247 = vpack.c.b16 %v2021, %v2019
    %v2248 = vpack.c.b16 %v2024, %v2022
    %v2249 = vpack.c.b16 %v2025, %v2023
    %v2250 = vpack.c.b16 %v2028, %v2026
    %v2251 = vpack.c.b16 %v2029, %v2027
    %v2252 = vpack.c.b16 %v2032, %v2030
    %v2253 = vpack.c.b16 %v2033, %v2031
    %v2254 = vpack.c.b16 %v2036, %v2034
    %v2255 = vpack.c.b16 %v2037, %v2035
    %v2256 = vpack.c.b16 %v2040, %v2038
    %v2257 = vpack.c.b16 %v2041, %v2039
    %v2258 = vpack.c.b16 %v2044, %v2042
    %v2259 = vpack.c.b16 %v2045, %v2043
    %v2260 = vpack.c.b16 %v2048, %v2046
    %v2261 = vpack.c.b16 %v2049, %v2047
    %v2262 = vpack.c.b16 %v2052, %v2050
    %v2263 = vpack.c.b16 %v2053, %v2051
    %v2264 = vpack.c.b16 %v2056, %v2054
    %v2265 = vpack.c.b16 %v2057, %v2055
    %v2266 = vpack.c.b16 %v2060, %v2058
    %v2267 = vpack.c.b16 %v2061, %v2059
    %v2268 = vpack.c.b16 %v2064, %v2062
    %v2269 = vpack.c.b16 %v2065, %v2063
    %v2270 = vpack.c.b16 %v2068, %v2066
    %v2271 = vpack.c.b16 %v2069, %v2067
    %v2272 = vpack.c.b16 %v2072, %v2070
    %v2273 = vpack.c.b16 %v2073, %v2071
    %v2274 = vpack.c.b16 %v2076, %v2074
    %v2275 = vpack.c.b16 %v2077, %v2075
    %v2276 = vpack.c.b16 %v2080, %v2078
    %v2277 = vpack.c.b16 %v2081, %v2079
    %v2278 = vpack.c.b16 %v2084, %v2082
    %v2279 = vpack.c.b16 %v2085, %v2083
    %v2280 = vpack.c.b16 %v2088, %v2086
    %v2281 = vpack.c.b16 %v2089, %v2087
    %v2282 = vpack.c.b16 %v2092, %v2090
    %v2283 = vpack.c.b16 %v2093, %v2091
    %v2284 = vpack.c.b16 %v2096, %v2094
    %v2285 = vpack.c.b16 %v2097, %v2095
    %v2286 = vpack.c.b16 %v2100, %v2098
    %v2287 = vpack.c.b16 %v2101, %v2099
    %v2288 = vpack.c.b16 %v2104, %v2102
    %v2289 = vpack.c.b16 %v2105, %v2103
    %v2290 = vpack.c.b16 %v2108, %v2106
    %v2291 = vpack.c.b16 %v2109, %v2107
    %v2292 = vpack.c.b16 %v2112, %v2110
    %v2293 = vpack.c.b16 %v2113, %v2111
    %v2294 = vpack.c.b16 %v2116, %v2114
    %v2295 = vpack.c.b16 %v2117, %v2115
    %v2296 = vpack.c.b16 %v2120, %v2118
    %v2297 = vpack.c.b16 %v2121, %v2119
    %v2298 = vpack.c.b16 %v2124, %v2122
    %v2299 = vpack.c.b16 %v2125, %v2123
    %v2300 = vpack.c.b16 %v2128, %v2126
    %v2301 = vpack.c.b16 %v2129, %v2127
    %v2302 = vpack.c.b16 %v2132, %v2130
    %v2303 = vpack.c.b16 %v2133, %v2131
    %v2304 = vpack.c.b16 %v2136, %v2134
    %v2305 = vpack.c.b16 %v2137, %v2135
    %v2306 = vpack.c.b16 %v2140, %v2138
    %v2307 = vpack.c.b16 %v2141, %v2139
    %v2308 = vpack.c.b16 %v2144, %v2142
    %v2309 = vpack.c.b16 %v2145, %v2143
    %v2310 = vpack.c.b16 %v2148, %v2146
    %v2311 = vpack.c.b16 %v2149, %v2147
    %v2312 = vpack.c.b16 %v2152, %v2150
    %v2313 = vpack.c.b16 %v2153, %v2151
    %v2314 = vpack.c.b16 %v2156, %v2154
    %v2315 = vpack.c.b16 %v2157, %v2155
    %v2316 = vpack.c.b16 %v2160, %v2158
    %v2317 = vpack.c.b16 %v2161, %v2159
    %v2318 = vpack.c.b16 %v2164, %v2162
    %v2319 = vpack.c.b16 %v2165, %v2163
    %v2320 = vpack.c.b16 %v2168, %v2166
    %v2321 = vpack.c.b16 %v2169, %v2167
    %v2322 = vpack.c.b16 %v2172, %v2170
    %v2323 = vpack.c.b16 %v2173, %v2171
    %v2324 = vpack.c.b16 %v2176, %v2174
    %v2325 = vpack.c.b16 %v2177, %v2175
    %v2326 = vpack.c.b16 %v2180, %v2178
    %v2327 = vpack.c.b16 %v2181, %v2179
    %v2328 = vpack.c.b16 %v2184, %v2182
    %v2329 = vpack.c.b16 %v2185, %v2183
    %v2330 = vpack.c.b16 %v2188, %v2186
    %v2331 = vpack.c.b16 %v2189, %v2187
    %v2332 = vpack.c.b16 %v2192, %v2190
    %v2333 = vpack.c.b16 %v2193, %v2191
    %v2334 = vpack.c.b16 %v2196, %v2194
    %v2335 = vpack.c.b16 %v2197, %v2195
    %v2336 = vpack.c.b16 %v2200, %v2198
    %v2337 = vpack.c.b16 %v2201, %v2199
    %v2338 = vpack.c.b16 %v2204, %v2202
    %v2339 = vpack.c.b16 %v2205, %v2203
    %v2340 = vpack.c.b16 %v2208, %v2206
    %v2341 = vpack.c.b16 %v2209, %v2207
    %v2342 = vpack.c.b16 %v2212, %v2210
    %v2343 = vpack.c.b16 %v2213, %v2211
    %v2344 = vpack.c.b16 %v2216, %v2214
    %v2345 = vpack.c.b16 %v2217, %v2215
    %2474 = vmatprep.subr.bf16.mxu0 %v2233
    %2475 = vmatpush1.bf16.msra.mxu0 %v2232
    %2476 = vmatprep.subr.bf16.mxu0 %v2231
    %2477 = vmatpush1.bf16.msra.mxu0 %v2230
    %2478 = vmatprep.subr.bf16.mxu0 %v2229
    %2479 = vmatpush1.bf16.msra.mxu0 %v2228
    %2480 = vmatprep.subr.bf16.mxu0 %v2227
    %2481 = vmatpush1.bf16.msra.mxu0 %v2226
    %2482 = vmatprep.subr.bf16.mxu0 %v2225
    %2483 = vmatpush1.bf16.msra.mxu0 %v2224
    %2484 = vmatprep.subr.bf16.mxu0 %v2223
    %2485 = vmatpush1.bf16.msra.mxu0 %v2222
    %2486 = vmatprep.subr.bf16.mxu0 %v2221
    %2487 = vmatpush1.bf16.msra.mxu0 %v2220
    %2488 = vmatprep.subr.bf16.mxu0 %v2219
    %2489 = vmatpush1.bf16.msra.mxu0 %v2218
    %2490 = vmatprep.subr.bf16.mxu0 %v2249
    %2491 = vmatpush2.bf16.msra.mxu0 %v2248
    %2492 = vmatprep.subr.bf16.mxu0 %v2247
    %2493 = vmatpush2.bf16.msra.mxu0 %v2246
    %2494 = vmatprep.subr.bf16.mxu0 %v2245
    %2495 = vmatpush2.bf16.msra.mxu0 %v2244
    %2496 = vmatprep.subr.bf16.mxu0 %v2243
    %2497 = vmatpush2.bf16.msra.mxu0 %v2242
    %2498 = vmatprep.subr.bf16.mxu0 %v2241
    %2499 = vmatpush2.bf16.msra.mxu0 %v2240
    %2500 = vmatprep.subr.bf16.mxu0 %v2239
    %2501 = vmatpush2.bf16.msra.mxu0 %v2238
    %2502 = vmatprep.subr.bf16.mxu0 %v2237
    %2503 = vmatpush2.bf16.msra.mxu0 %v2236
    %2504 = vmatprep.subr.bf16.mxu0 %v2235
    %2505 = vmatpush2.bf16.msra.mxu0 %v2234
    %2506 = vmatprep.mubr.bf16.mxu0 %v1571
    %2507 = vmatmul.mubr.bf16.gmra.mxu0 %v1570
    %v2508 = vpop.f32.mrf.mxu0
    %v2509 = vadd.f32 0.0, %v2508
    %v2510 = vpop.f32.mrf.mxu0
    %v2511 = vadd.f32 0.0, %v2510
    %v2512 = vpop.f32.mrf.mxu0
    %v2513 = vpop.f32.mrf.mxu0
    %2514 = vdwg.mxu0
    %2515 = vmatprep.subr.bf16.mxu0 %v2265
    %2516 = vmatpush1.bf16.msra.mxu0 %v2264
    %2517 = vmatprep.subr.bf16.mxu0 %v2263
    %2518 = vmatpush1.bf16.msra.mxu0 %v2262
    %2519 = vmatprep.subr.bf16.mxu0 %v2261
    %2520 = vmatpush1.bf16.msra.mxu0 %v2260
    %2521 = vmatprep.subr.bf16.mxu0 %v2259
    %2522 = vmatpush1.bf16.msra.mxu0 %v2258
    %2523 = vmatprep.subr.bf16.mxu0 %v2257
    %2524 = vmatpush1.bf16.msra.mxu0 %v2256
    %2525 = vmatprep.subr.bf16.mxu0 %v2255
    %2526 = vmatpush1.bf16.msra.mxu0 %v2254
    %2527 = vmatprep.subr.bf16.mxu0 %v2253
    %2528 = vmatpush1.bf16.msra.mxu0 %v2252
    %2529 = vmatprep.subr.bf16.mxu0 %v2251
    %2530 = vmatpush1.bf16.msra.mxu0 %v2250
    %2531 = vmatprep.subr.bf16.mxu0 %v2281
    %2532 = vmatpush2.bf16.msra.mxu0 %v2280
    %2533 = vmatprep.subr.bf16.mxu0 %v2279
    %2534 = vmatpush2.bf16.msra.mxu0 %v2278
    %2535 = vmatprep.subr.bf16.mxu0 %v2277
    %2536 = vmatpush2.bf16.msra.mxu0 %v2276
    %2537 = vmatprep.subr.bf16.mxu0 %v2275
    %2538 = vmatpush2.bf16.msra.mxu0 %v2274
    %2539 = vmatprep.subr.bf16.mxu0 %v2273
    %2540 = vmatpush2.bf16.msra.mxu0 %v2272
    %2541 = vmatprep.subr.bf16.mxu0 %v2271
    %2542 = vmatpush2.bf16.msra.mxu0 %v2270
    %2543 = vmatprep.subr.bf16.mxu0 %v2269
    %2544 = vmatpush2.bf16.msra.mxu0 %v2268
    %2545 = vmatprep.subr.bf16.mxu0 %v2267
    %2546 = vmatpush2.bf16.msra.mxu0 %v2266
    %2547 = vmatprep.mubr.bf16.mxu0 %v1573
    %2548 = vmatmul.mubr.bf16.gmra.mxu0 %v1572
    %v2549 = vpop.f32.mrf.mxu0
    %v2550 = vadd.f32 %v2509, %v2549
    %v2551 = vpop.f32.mrf.mxu0
    %v2552 = vadd.f32 %v2511, %v2551
    %v2553 = vpop.f32.mrf.mxu0
    %v2554 = vpop.f32.mrf.mxu0
    %2555 = vdwg.mxu0
    %2556 = vmatprep.subr.bf16.mxu0 %v2297
    %2557 = vmatpush1.bf16.msra.mxu0 %v2296
    %2558 = vmatprep.subr.bf16.mxu0 %v2295
    %2559 = vmatpush1.bf16.msra.mxu0 %v2294
    %2560 = vmatprep.subr.bf16.mxu0 %v2293
    %2561 = vmatpush1.bf16.msra.mxu0 %v2292
    %2562 = vmatprep.subr.bf16.mxu0 %v2291
    %2563 = vmatpush1.bf16.msra.mxu0 %v2290
    %2564 = vmatprep.subr.bf16.mxu0 %v2289
    %2565 = vmatpush1.bf16.msra.mxu0 %v2288
    %2566 = vmatprep.subr.bf16.mxu0 %v2287
    %2567 = vmatpush1.bf16.msra.mxu0 %v2286
    %2568 = vmatprep.subr.bf16.mxu0 %v2285
    %2569 = vmatpush1.bf16.msra.mxu0 %v2284
    %2570 = vmatprep.subr.bf16.mxu0 %v2283
    %2571 = vmatpush1.bf16.msra.mxu0 %v2282
    %2572 = vmatprep.subr.bf16.mxu0 %v2313
    %2573 = vmatpush2.bf16.msra.mxu0 %v2312
    %2574 = vmatprep.subr.bf16.mxu0 %v2311
    %2575 = vmatpush2.bf16.msra.mxu0 %v2310
    %2576 = vmatprep.subr.bf16.mxu0 %v2309
    %2577 = vmatpush2.bf16.msra.mxu0 %v2308
    %2578 = vmatprep.subr.bf16.mxu0 %v2307
    %2579 = vmatpush2.bf16.msra.mxu0 %v2306
    %2580 = vmatprep.subr.bf16.mxu0 %v2305
    %2581 = vmatpush2.bf16.msra.mxu0 %v2304
    %2582 = vmatprep.subr.bf16.mxu0 %v2303
    %2583 = vmatpush2.bf16.msra.mxu0 %v2302
    %2584 = vmatprep.subr.bf16.mxu0 %v2301
    %2585 = vmatpush2.bf16.msra.mxu0 %v2300
    %2586 = vmatprep.subr.bf16.mxu0 %v2299
    %2587 = vmatpush2.bf16.msra.mxu0 %v2298
    %2588 = vmatprep.mubr.bf16.mxu0 %v1575
    %2589 = vmatmul.mubr.bf16.gmra.mxu0 %v1574
    %v2590 = vpop.f32.mrf.mxu0
    %v2591 = vadd.f32 %v2550, %v2590
    %v2592 = vpop.f32.mrf.mxu0
    %v2593 = vadd.f32 %v2552, %v2592
    %v2594 = vpop.f32.mrf.mxu0
    %v2595 = vpop.f32.mrf.mxu0
    %2596 = vdwg.mxu0
    %2597 = vmatprep.subr.bf16.mxu0 %v2329
    %2598 = vmatpush1.bf16.msra.mxu0 %v2328
    %2599 = vmatprep.subr.bf16.mxu0 %v2327
    %2600 = vmatpush1.bf16.msra.mxu0 %v2326
    %2601 = vmatprep.subr.bf16.mxu0 %v2325
    %2602 = vmatpush1.bf16.msra.mxu0 %v2324
    %2603 = vmatprep.subr.bf16.mxu0 %v2323
    %2604 = vmatpush1.bf16.msra.mxu0 %v2322
    %2605 = vmatprep.subr.bf16.mxu0 %v2321
    %2606 = vmatpush1.bf16.msra.mxu0 %v2320
    %2607 = vmatprep.subr.bf16.mxu0 %v2319
    %2608 = vmatpush1.bf16.msra.mxu0 %v2318
    %2609 = vmatprep.subr.bf16.mxu0 %v2317
    %2610 = vmatpush1.bf16.msra.mxu0 %v2316
    %2611 = vmatprep.subr.bf16.mxu0 %v2315
    %2612 = vmatpush1.bf16.msra.mxu0 %v2314
    %2613 = vmatprep.subr.bf16.mxu0 %v2345
    %2614 = vmatpush2.bf16.msra.mxu0 %v2344
    %2615 = vmatprep.subr.bf16.mxu0 %v2343
    %2616 = vmatpush2.bf16.msra.mxu0 %v2342
    %2617 = vmatprep.subr.bf16.mxu0 %v2341
    %2618 = vmatpush2.bf16.msra.mxu0 %v2340
    %2619 = vmatprep.subr.bf16.mxu0 %v2339
    %2620 = vmatpush2.bf16.msra.mxu0 %v2338
    %2621 = vmatprep.subr.bf16.mxu0 %v2337
    %2622 = vmatpush2.bf16.msra.mxu0 %v2336
    %2623 = vmatprep.subr.bf16.mxu0 %v2335
    %2624 = vmatpush2.bf16.msra.mxu0 %v2334
    %2625 = vmatprep.subr.bf16.mxu0 %v2333
    %2626 = vmatpush2.bf16.msra.mxu0 %v2332
    %2627 = vmatprep.subr.bf16.mxu0 %v2331
    %2628 = vmatpush2.bf16.msra.mxu0 %v2330
    %2629 = vmatprep.mubr.bf16.mxu0 %v1577
    %2630 = vmatmul.mubr.bf16.gmra.mxu0 %v1576
    %v2631 = vpop.f32.mrf.mxu0
    %v2632 = vadd.f32 %v2591, %v2631
    %v2633 = vpop.f32.mrf.mxu0
    %v2634 = vadd.f32 %v2593, %v2633
    %v2635 = vpop.f32.mrf.mxu0
    %v2636 = vpop.f32.mrf.mxu0
    %2637 = vdwg.mxu0
    %v2766 = vunpack.c.l.b16 %v1578
    %v2767 = vunpack.c.h.b16 %v1578
    %v2768 = vunpack.c.l.b16 %v1579
    %v2769 = vunpack.c.h.b16 %v1579
    %v2770 = vunpack.c.l.b16 %v1580
    %v2771 = vunpack.c.h.b16 %v1580
    %v2772 = vunpack.c.l.b16 %v1581
    %v2773 = vunpack.c.h.b16 %v1581
    %v2774 = vunpack.c.l.b16 %v1582
    %v2775 = vunpack.c.h.b16 %v1582
    %v2776 = vunpack.c.l.b16 %v1583
    %v2777 = vunpack.c.h.b16 %v1583
    %v2778 = vunpack.c.l.b16 %v1584
    %v2779 = vunpack.c.h.b16 %v1584
    %v2780 = vunpack.c.l.b16 %v1585
    %v2781 = vunpack.c.h.b16 %v1585
    %v2782 = vunpack.c.l.b16 %v1586
    %v2783 = vunpack.c.h.b16 %v1586
    %v2784 = vunpack.c.l.b16 %v1587
    %v2785 = vunpack.c.h.b16 %v1587
    %v2786 = vunpack.c.l.b16 %v1588
    %v2787 = vunpack.c.h.b16 %v1588
    %v2788 = vunpack.c.l.b16 %v1589
    %v2789 = vunpack.c.h.b16 %v1589
    %v2790 = vunpack.c.l.b16 %v1590
    %v2791 = vunpack.c.h.b16 %v1590
    %v2792 = vunpack.c.l.b16 %v1591
    %v2793 = vunpack.c.h.b16 %v1591
    %v2794 = vunpack.c.l.b16 %v1592
    %v2795 = vunpack.c.h.b16 %v1592
    %v2796 = vunpack.c.l.b16 %v1593
    %v2797 = vunpack.c.h.b16 %v1593
    %v2798 = vunpack.c.l.b16 %v1594
    %v2799 = vunpack.c.h.b16 %v1594
    %v2800 = vunpack.c.l.b16 %v1595
    %v2801 = vunpack.c.h.b16 %v1595
    %v2802 = vunpack.c.l.b16 %v1596
    %v2803 = vunpack.c.h.b16 %v1596
    %v2804 = vunpack.c.l.b16 %v1597
    %v2805 = vunpack.c.h.b16 %v1597
    %v2806 = vunpack.c.l.b16 %v1598
    %v2807 = vunpack.c.h.b16 %v1598
    %v2808 = vunpack.c.l.b16 %v1599
    %v2809 = vunpack.c.h.b16 %v1599
    %v2810 = vunpack.c.l.b16 %v1600
    %v2811 = vunpack.c.h.b16 %v1600
    %v2812 = vunpack.c.l.b16 %v1601
    %v2813 = vunpack.c.h.b16 %v1601
    %v2814 = vunpack.c.l.b16 %v1602
    %v2815 = vunpack.c.h.b16 %v1602
    %v2816 = vunpack.c.l.b16 %v1603
    %v2817 = vunpack.c.h.b16 %v1603
    %v2818 = vunpack.c.l.b16 %v1604
    %v2819 = vunpack.c.h.b16 %v1604
    %v2820 = vunpack.c.l.b16 %v1605
    %v2821 = vunpack.c.h.b16 %v1605
    %v2822 = vunpack.c.l.b16 %v1606
    %v2823 = vunpack.c.h.b16 %v1606
    %v2824 = vunpack.c.l.b16 %v1607
    %v2825 = vunpack.c.h.b16 %v1607
    %v2826 = vunpack.c.l.b16 %v1608
    %v2827 = vunpack.c.h.b16 %v1608
    %v2828 = vunpack.c.l.b16 %v1609
    %v2829 = vunpack.c.h.b16 %v1609
    %v2830 = vunpack.c.l.b16 %v1610
    %v2831 = vunpack.c.h.b16 %v1610
    %v2832 = vunpack.c.l.b16 %v1611
    %v2833 = vunpack.c.h.b16 %v1611
    %v2834 = vunpack.c.l.b16 %v1612
    %v2835 = vunpack.c.h.b16 %v1612
    %v2836 = vunpack.c.l.b16 %v1613
    %v2837 = vunpack.c.h.b16 %v1613
    %v2838 = vunpack.c.l.b16 %v1614
    %v2839 = vunpack.c.h.b16 %v1614
    %v2840 = vunpack.c.l.b16 %v1615
    %v2841 = vunpack.c.h.b16 %v1615
    %v2842 = vunpack.c.l.b16 %v1616
    %v2843 = vunpack.c.h.b16 %v1616
    %v2844 = vunpack.c.l.b16 %v1617
    %v2845 = vunpack.c.h.b16 %v1617
    %v2846 = vunpack.c.l.b16 %v1618
    %v2847 = vunpack.c.h.b16 %v1618
    %v2848 = vunpack.c.l.b16 %v1619
    %v2849 = vunpack.c.h.b16 %v1619
    %v2850 = vunpack.c.l.b16 %v1620
    %v2851 = vunpack.c.h.b16 %v1620
    %v2852 = vunpack.c.l.b16 %v1621
    %v2853 = vunpack.c.h.b16 %v1621
    %v2854 = vunpack.c.l.b16 %v1622
    %v2855 = vunpack.c.h.b16 %v1622
    %v2856 = vunpack.c.l.b16 %v1623
    %v2857 = vunpack.c.h.b16 %v1623
    %v2858 = vunpack.c.l.b16 %v1624
    %v2859 = vunpack.c.h.b16 %v1624
    %v2860 = vunpack.c.l.b16 %v1625
    %v2861 = vunpack.c.h.b16 %v1625
    %v2862 = vunpack.c.l.b16 %v1626
    %v2863 = vunpack.c.h.b16 %v1626
    %v2864 = vunpack.c.l.b16 %v1627
    %v2865 = vunpack.c.h.b16 %v1627
    %v2866 = vunpack.c.l.b16 %v1628
    %v2867 = vunpack.c.h.b16 %v1628
    %v2868 = vunpack.c.l.b16 %v1629
    %v2869 = vunpack.c.h.b16 %v1629
    %v2870 = vunpack.c.l.b16 %v1630
    %v2871 = vunpack.c.h.b16 %v1630
    %v2872 = vunpack.c.l.b16 %v1631
    %v2873 = vunpack.c.h.b16 %v1631
    %v2874 = vunpack.c.l.b16 %v1632
    %v2875 = vunpack.c.h.b16 %v1632
    %v2876 = vunpack.c.l.b16 %v1633
    %v2877 = vunpack.c.h.b16 %v1633
    %v2878 = vunpack.c.l.b16 %v1634
    %v2879 = vunpack.c.h.b16 %v1634
    %v2880 = vunpack.c.l.b16 %v1635
    %v2881 = vunpack.c.h.b16 %v1635
    %v2882 = vunpack.c.l.b16 %v1636
    %v2883 = vunpack.c.h.b16 %v1636
    %v2884 = vunpack.c.l.b16 %v1637
    %v2885 = vunpack.c.h.b16 %v1637
    %v2886 = vunpack.c.l.b16 %v1638
    %v2887 = vunpack.c.h.b16 %v1638
    %v2888 = vunpack.c.l.b16 %v1639
    %v2889 = vunpack.c.h.b16 %v1639
    %v2890 = vunpack.c.l.b16 %v1640
    %v2891 = vunpack.c.h.b16 %v1640
    %v2892 = vunpack.c.l.b16 %v1641
    %v2893 = vunpack.c.h.b16 %v1641
    %v2894 = vunpack.c.l.b16 %v1642
    %v2895 = vunpack.c.h.b16 %v1642
    %v2896 = vunpack.c.l.b16 %v1643
    %v2897 = vunpack.c.h.b16 %v1643
    %v2898 = vunpack.c.l.b16 %v1644
    %v2899 = vunpack.c.h.b16 %v1644
    %v2900 = vunpack.c.l.b16 %v1645
    %v2901 = vunpack.c.h.b16 %v1645
    %v2902 = vunpack.c.l.b16 %v1646
    %v2903 = vunpack.c.h.b16 %v1646
    %v2904 = vunpack.c.l.b16 %v1647
    %v2905 = vunpack.c.h.b16 %v1647
    %v2906 = vunpack.c.l.b16 %v1648
    %v2907 = vunpack.c.h.b16 %v1648
    %v2908 = vunpack.c.l.b16 %v1649
    %v2909 = vunpack.c.h.b16 %v1649
    %v2910 = vunpack.c.l.b16 %v1650
    %v2911 = vunpack.c.h.b16 %v1650
    %v2912 = vunpack.c.l.b16 %v1651
    %v2913 = vunpack.c.h.b16 %v1651
    %v2914 = vunpack.c.l.b16 %v1652
    %v2915 = vunpack.c.h.b16 %v1652
    %v2916 = vunpack.c.l.b16 %v1653
    %v2917 = vunpack.c.h.b16 %v1653
    %v2918 = vunpack.c.l.b16 %v1654
    %v2919 = vunpack.c.h.b16 %v1654
    %v2920 = vunpack.c.l.b16 %v1655
    %v2921 = vunpack.c.h.b16 %v1655
    %v2922 = vunpack.c.l.b16 %v1656
    %v2923 = vunpack.c.h.b16 %v1656
    %v2924 = vunpack.c.l.b16 %v1657
    %v2925 = vunpack.c.h.b16 %v1657
    %v2926 = vunpack.c.l.b16 %v1658
    %v2927 = vunpack.c.h.b16 %v1658
    %v2928 = vunpack.c.l.b16 %v1659
    %v2929 = vunpack.c.h.b16 %v1659
    %v2930 = vunpack.c.l.b16 %v1660
    %v2931 = vunpack.c.h.b16 %v1660
    %v2932 = vunpack.c.l.b16 %v1661
    %v2933 = vunpack.c.h.b16 %v1661
    %v2934 = vunpack.c.l.b16 %v1662
    %v2935 = vunpack.c.h.b16 %v1662
    %v2936 = vunpack.c.l.b16 %v1663
    %v2937 = vunpack.c.h.b16 %v1663
    %v2938 = vunpack.c.l.b16 %v1664
    %v2939 = vunpack.c.h.b16 %v1664
    %v2940 = vunpack.c.l.b16 %v1665
    %v2941 = vunpack.c.h.b16 %v1665
    %v2942 = vunpack.c.l.b16 %v1666
    %v2943 = vunpack.c.h.b16 %v1666
    %v2944 = vunpack.c.l.b16 %v1667
    %v2945 = vunpack.c.h.b16 %v1667
    %v2946 = vunpack.c.l.b16 %v1668
    %v2947 = vunpack.c.h.b16 %v1668
    %v2948 = vunpack.c.l.b16 %v1669
    %v2949 = vunpack.c.h.b16 %v1669
    %v2950 = vunpack.c.l.b16 %v1670
    %v2951 = vunpack.c.h.b16 %v1670
    %v2952 = vunpack.c.l.b16 %v1671
    %v2953 = vunpack.c.h.b16 %v1671
    %v2954 = vunpack.c.l.b16 %v1672
    %v2955 = vunpack.c.h.b16 %v1672
    %v2956 = vunpack.c.l.b16 %v1673
    %v2957 = vunpack.c.h.b16 %v1673
    %v2958 = vunpack.c.l.b16 %v1674
    %v2959 = vunpack.c.h.b16 %v1674
    %v2960 = vunpack.c.l.b16 %v1675
    %v2961 = vunpack.c.h.b16 %v1675
    %v2962 = vunpack.c.l.b16 %v1676
    %v2963 = vunpack.c.h.b16 %v1676
    %v2964 = vunpack.c.l.b16 %v1677
    %v2965 = vunpack.c.h.b16 %v1677
    %v2966 = vunpack.c.l.b16 %v1678
    %v2967 = vunpack.c.h.b16 %v1678
    %v2968 = vunpack.c.l.b16 %v1679
    %v2969 = vunpack.c.h.b16 %v1679
    %v2970 = vunpack.c.l.b16 %v1680
    %v2971 = vunpack.c.h.b16 %v1680
    %v2972 = vunpack.c.l.b16 %v1681
    %v2973 = vunpack.c.h.b16 %v1681
    %v2974 = vunpack.c.l.b16 %v1682
    %v2975 = vunpack.c.h.b16 %v1682
    %v2976 = vunpack.c.l.b16 %v1683
    %v2977 = vunpack.c.h.b16 %v1683
    %v2978 = vunpack.c.l.b16 %v1684
    %v2979 = vunpack.c.h.b16 %v1684
    %v2980 = vunpack.c.l.b16 %v1685
    %v2981 = vunpack.c.h.b16 %v1685
    %v2982 = vunpack.c.l.b16 %v1686
    %v2983 = vunpack.c.h.b16 %v1686
    %v2984 = vunpack.c.l.b16 %v1687
    %v2985 = vunpack.c.h.b16 %v1687
    %v2986 = vunpack.c.l.b16 %v1688
    %v2987 = vunpack.c.h.b16 %v1688
    %v2988 = vunpack.c.l.b16 %v1689
    %v2989 = vunpack.c.h.b16 %v1689
    %v2990 = vunpack.c.l.b16 %v1690
    %v2991 = vunpack.c.h.b16 %v1690
    %v2992 = vunpack.c.l.b16 %v1691
    %v2993 = vunpack.c.h.b16 %v1691
    %v2994 = vunpack.c.l.b16 %v1692
    %v2995 = vunpack.c.h.b16 %v1692
    %v2996 = vunpack.c.l.b16 %v1693
    %v2997 = vunpack.c.h.b16 %v1693
    %v2998 = vunpack.c.l.b16 %v1694
    %v2999 = vunpack.c.h.b16 %v1694
    %v3000 = vunpack.c.l.b16 %v1695
    %v3001 = vunpack.c.h.b16 %v1695
    %v3002 = vunpack.c.l.b16 %v1696
    %v3003 = vunpack.c.h.b16 %v1696
    %v3004 = vunpack.c.l.b16 %v1697
    %v3005 = vunpack.c.h.b16 %v1697
    %v3006 = vunpack.c.l.b16 %v1698
    %v3007 = vunpack.c.h.b16 %v1698
    %v3008 = vunpack.c.l.b16 %v1699
    %v3009 = vunpack.c.h.b16 %v1699
    %v3010 = vunpack.c.l.b16 %v1700
    %v3011 = vunpack.c.h.b16 %v1700
    %v3012 = vunpack.c.l.b16 %v1701
    %v3013 = vunpack.c.h.b16 %v1701
    %v3014 = vunpack.c.l.b16 %v1702
    %v3015 = vunpack.c.h.b16 %v1702
    %v3016 = vunpack.c.l.b16 %v1703
    %v3017 = vunpack.c.h.b16 %v1703
    %v3018 = vunpack.c.l.b16 %v1704
    %v3019 = vunpack.c.h.b16 %v1704
    %v3020 = vunpack.c.l.b16 %v1705
    %v3021 = vunpack.c.h.b16 %v1705
    %v3022 = vpack.c.b16 %v2768, %v2766
    %v3023 = vpack.c.b16 %v2769, %v2767
    %v3024 = vpack.c.b16 %v2772, %v2770
    %v3025 = vpack.c.b16 %v2773, %v2771
    %v3026 = vpack.c.b16 %v2776, %v2774
    %v3027 = vpack.c.b16 %v2777, %v2775
    %v3028 = vpack.c.b16 %v2780, %v2778
    %v3029 = vpack.c.b16 %v2781, %v2779
    %v3030 = vpack.c.b16 %v2784, %v2782
    %v3031 = vpack.c.b16 %v2785, %v2783
    %v3032 = vpack.c.b16 %v2788, %v2786
    %v3033 = vpack.c.b16 %v2789, %v2787
    %v3034 = vpack.c.b16 %v2792, %v2790
    %v3035 = vpack.c.b16 %v2793, %v2791
    %v3036 = vpack.c.b16 %v2796, %v2794
    %v3037 = vpack.c.b16 %v2797, %v2795
    %v3038 = vpack.c.b16 %v2800, %v2798
    %v3039 = vpack.c.b16 %v2801, %v2799
    %v3040 = vpack.c.b16 %v2804, %v2802
    %v3041 = vpack.c.b16 %v2805, %v2803
    %v3042 = vpack.c.b16 %v2808, %v2806
    %v3043 = vpack.c.b16 %v2809, %v2807
    %v3044 = vpack.c.b16 %v2812, %v2810
    %v3045 = vpack.c.b16 %v2813, %v2811
    %v3046 = vpack.c.b16 %v2816, %v2814
    %v3047 = vpack.c.b16 %v2817, %v2815
    %v3048 = vpack.c.b16 %v2820, %v2818
    %v3049 = vpack.c.b16 %v2821, %v2819
    %v3050 = vpack.c.b16 %v2824, %v2822
    %v3051 = vpack.c.b16 %v2825, %v2823
    %v3052 = vpack.c.b16 %v2828, %v2826
    %v3053 = vpack.c.b16 %v2829, %v2827
    %v3054 = vpack.c.b16 %v2832, %v2830
    %v3055 = vpack.c.b16 %v2833, %v2831
    %v3056 = vpack.c.b16 %v2836, %v2834
    %v3057 = vpack.c.b16 %v2837, %v2835
    %v3058 = vpack.c.b16 %v2840, %v2838
    %v3059 = vpack.c.b16 %v2841, %v2839
    %v3060 = vpack.c.b16 %v2844, %v2842
    %v3061 = vpack.c.b16 %v2845, %v2843
    %v3062 = vpack.c.b16 %v2848, %v2846
    %v3063 = vpack.c.b16 %v2849, %v2847
    %v3064 = vpack.c.b16 %v2852, %v2850
    %v3065 = vpack.c.b16 %v2853, %v2851
    %v3066 = vpack.c.b16 %v2856, %v2854
    %v3067 = vpack.c.b16 %v2857, %v2855
    %v3068 = vpack.c.b16 %v2860, %v2858
    %v3069 = vpack.c.b16 %v2861, %v2859
    %v3070 = vpack.c.b16 %v2864, %v2862
    %v3071 = vpack.c.b16 %v2865, %v2863
    %v3072 = vpack.c.b16 %v2868, %v2866
    %v3073 = vpack.c.b16 %v2869, %v2867
    %v3074 = vpack.c.b16 %v2872, %v2870
    %v3075 = vpack.c.b16 %v2873, %v2871
    %v3076 = vpack.c.b16 %v2876, %v2874
    %v3077 = vpack.c.b16 %v2877, %v2875
    %v3078 = vpack.c.b16 %v2880, %v2878
    %v3079 = vpack.c.b16 %v2881, %v2879
    %v3080 = vpack.c.b16 %v2884, %v2882
    %v3081 = vpack.c.b16 %v2885, %v2883
    %v3082 = vpack.c.b16 %v2888, %v2886
    %v3083 = vpack.c.b16 %v2889, %v2887
    %v3084 = vpack.c.b16 %v2892, %v2890
    %v3085 = vpack.c.b16 %v2893, %v2891
    %v3086 = vpack.c.b16 %v2896, %v2894
    %v3087 = vpack.c.b16 %v2897, %v2895
    %v3088 = vpack.c.b16 %v2900, %v2898
    %v3089 = vpack.c.b16 %v2901, %v2899
    %v3090 = vpack.c.b16 %v2904, %v2902
    %v3091 = vpack.c.b16 %v2905, %v2903
    %v3092 = vpack.c.b16 %v2908, %v2906
    %v3093 = vpack.c.b16 %v2909, %v2907
    %v3094 = vpack.c.b16 %v2912, %v2910
    %v3095 = vpack.c.b16 %v2913, %v2911
    %v3096 = vpack.c.b16 %v2916, %v2914
    %v3097 = vpack.c.b16 %v2917, %v2915
    %v3098 = vpack.c.b16 %v2920, %v2918
    %v3099 = vpack.c.b16 %v2921, %v2919
    %v3100 = vpack.c.b16 %v2924, %v2922
    %v3101 = vpack.c.b16 %v2925, %v2923
    %v3102 = vpack.c.b16 %v2928, %v2926
    %v3103 = vpack.c.b16 %v2929, %v2927
    %v3104 = vpack.c.b16 %v2932, %v2930
    %v3105 = vpack.c.b16 %v2933, %v2931
    %v3106 = vpack.c.b16 %v2936, %v2934
    %v3107 = vpack.c.b16 %v2937, %v2935
    %v3108 = vpack.c.b16 %v2940, %v2938
    %v3109 = vpack.c.b16 %v2941, %v2939
    %v3110 = vpack.c.b16 %v2944, %v2942
    %v3111 = vpack.c.b16 %v2945, %v2943
    %v3112 = vpack.c.b16 %v2948, %v2946
    %v3113 = vpack.c.b16 %v2949, %v2947
    %v3114 = vpack.c.b16 %v2952, %v2950
    %v3115 = vpack.c.b16 %v2953, %v2951
    %v3116 = vpack.c.b16 %v2956, %v2954
    %v3117 = vpack.c.b16 %v2957, %v2955
    %v3118 = vpack.c.b16 %v2960, %v2958
    %v3119 = vpack.c.b16 %v2961, %v2959
    %v3120 = vpack.c.b16 %v2964, %v2962
    %v3121 = vpack.c.b16 %v2965, %v2963
    %v3122 = vpack.c.b16 %v2968, %v2966
    %v3123 = vpack.c.b16 %v2969, %v2967
    %v3124 = vpack.c.b16 %v2972, %v2970
    %v3125 = vpack.c.b16 %v2973, %v2971
    %v3126 = vpack.c.b16 %v2976, %v2974
    %v3127 = vpack.c.b16 %v2977, %v2975
    %v3128 = vpack.c.b16 %v2980, %v2978
    %v3129 = vpack.c.b16 %v2981, %v2979
    %v3130 = vpack.c.b16 %v2984, %v2982
    %v3131 = vpack.c.b16 %v2985, %v2983
    %v3132 = vpack.c.b16 %v2988, %v2986
    %v3133 = vpack.c.b16 %v2989, %v2987
    %v3134 = vpack.c.b16 %v2992, %v2990
    %v3135 = vpack.c.b16 %v2993, %v2991
    %v3136 = vpack.c.b16 %v2996, %v2994
    %v3137 = vpack.c.b16 %v2997, %v2995
    %v3138 = vpack.c.b16 %v3000, %v2998
    %v3139 = vpack.c.b16 %v3001, %v2999
    %v3140 = vpack.c.b16 %v3004, %v3002
    %v3141 = vpack.c.b16 %v3005, %v3003
    %v3142 = vpack.c.b16 %v3008, %v3006
    %v3143 = vpack.c.b16 %v3009, %v3007
    %v3144 = vpack.c.b16 %v3012, %v3010
    %v3145 = vpack.c.b16 %v3013, %v3011
    %v3146 = vpack.c.b16 %v3016, %v3014
    %v3147 = vpack.c.b16 %v3017, %v3015
    %v3148 = vpack.c.b16 %v3020, %v3018
    %v3149 = vpack.c.b16 %v3021, %v3019
    %3278 = vmatprep.subr.bf16.mxu0 %v3037
    %3279 = vmatpush1.bf16.msra.mxu0 %v3036
    %3280 = vmatprep.subr.bf16.mxu0 %v3035
    %3281 = vmatpush1.bf16.msra.mxu0 %v3034
    %3282 = vmatprep.subr.bf16.mxu0 %v3033
    %3283 = vmatpush1.bf16.msra.mxu0 %v3032
    %3284 = vmatprep.subr.bf16.mxu0 %v3031
    %3285 = vmatpush1.bf16.msra.mxu0 %v3030
    %3286 = vmatprep.subr.bf16.mxu0 %v3029
    %3287 = vmatpush1.bf16.msra.mxu0 %v3028
    %3288 = vmatprep.subr.bf16.mxu0 %v3027
    %3289 = vmatpush1.bf16.msra.mxu0 %v3026
    %3290 = vmatprep.subr.bf16.mxu0 %v3025
    %3291 = vmatpush1.bf16.msra.mxu0 %v3024
    %3292 = vmatprep.subr.bf16.mxu0 %v3023
    %3293 = vmatpush1.bf16.msra.mxu0 %v3022
    %3294 = vmatprep.subr.bf16.mxu0 %v3053
    %3295 = vmatpush2.bf16.msra.mxu0 %v3052
    %3296 = vmatprep.subr.bf16.mxu0 %v3051
    %3297 = vmatpush2.bf16.msra.mxu0 %v3050
    %3298 = vmatprep.subr.bf16.mxu0 %v3049
    %3299 = vmatpush2.bf16.msra.mxu0 %v3048
    %3300 = vmatprep.subr.bf16.mxu0 %v3047
    %3301 = vmatpush2.bf16.msra.mxu0 %v3046
    %3302 = vmatprep.subr.bf16.mxu0 %v3045
    %3303 = vmatpush2.bf16.msra.mxu0 %v3044
    %3304 = vmatprep.subr.bf16.mxu0 %v3043
    %3305 = vmatpush2.bf16.msra.mxu0 %v3042
    %3306 = vmatprep.subr.bf16.mxu0 %v3041
    %3307 = vmatpush2.bf16.msra.mxu0 %v3040
    %3308 = vmatprep.subr.bf16.mxu0 %v3039
    %3309 = vmatpush2.bf16.msra.mxu0 %v3038
    %3310 = vmatprep.mubr.bf16.mxu0 %v1563
    %3311 = vmatmul.mubr.bf16.gmra.mxu0 %v1562
    %v3312 = vpop.f32.mrf.mxu0
    %v3313 = vadd.f32 %v2632, %v3312
    %v3314 = vpop.f32.mrf.mxu0
    %v3315 = vadd.f32 %v2634, %v3314
    %v3316 = vpop.f32.mrf.mxu0
    %v3317 = vpop.f32.mrf.mxu0
    %3318 = vdwg.mxu0
    %3319 = vmatprep.subr.bf16.mxu0 %v3069
    %3320 = vmatpush1.bf16.msra.mxu0 %v3068
    %3321 = vmatprep.subr.bf16.mxu0 %v3067
    %3322 = vmatpush1.bf16.msra.mxu0 %v3066
    %3323 = vmatprep.subr.bf16.mxu0 %v3065
    %3324 = vmatpush1.bf16.msra.mxu0 %v3064
    %3325 = vmatprep.subr.bf16.mxu0 %v3063
    %3326 = vmatpush1.bf16.msra.mxu0 %v3062
    %3327 = vmatprep.subr.bf16.mxu0 %v3061
    %3328 = vmatpush1.bf16.msra.mxu0 %v3060
    %3329 = vmatprep.subr.bf16.mxu0 %v3059
    %3330 = vmatpush1.bf16.msra.mxu0 %v3058
    %3331 = vmatprep.subr.bf16.mxu0 %v3057
    %3332 = vmatpush1.bf16.msra.mxu0 %v3056
    %3333 = vmatprep.subr.bf16.mxu0 %v3055
    %3334 = vmatpush1.bf16.msra.mxu0 %v3054
    %3335 = vmatprep.subr.bf16.mxu0 %v3085
    %3336 = vmatpush2.bf16.msra.mxu0 %v3084
    %3337 = vmatprep.subr.bf16.mxu0 %v3083
    %3338 = vmatpush2.bf16.msra.mxu0 %v3082
    %3339 = vmatprep.subr.bf16.mxu0 %v3081
    %3340 = vmatpush2.bf16.msra.mxu0 %v3080
    %3341 = vmatprep.subr.bf16.mxu0 %v3079
    %3342 = vmatpush2.bf16.msra.mxu0 %v3078
    %3343 = vmatprep.subr.bf16.mxu0 %v3077
    %3344 = vmatpush2.bf16.msra.mxu0 %v3076
    %3345 = vmatprep.subr.bf16.mxu0 %v3075
    %3346 = vmatpush2.bf16.msra.mxu0 %v3074
    %3347 = vmatprep.subr.bf16.mxu0 %v3073
    %3348 = vmatpush2.bf16.msra.mxu0 %v3072
    %3349 = vmatprep.subr.bf16.mxu0 %v3071
    %3350 = vmatpush2.bf16.msra.mxu0 %v3070
    %3351 = vmatprep.mubr.bf16.mxu0 %v1565
    %3352 = vmatmul.mubr.bf16.gmra.mxu0 %v1564
    %v3353 = vpop.f32.mrf.mxu0
    %v3354 = vadd.f32 %v3313, %v3353
    %v3355 = vpop.f32.mrf.mxu0
    %v3356 = vadd.f32 %v3315, %v3355
    %v3357 = vpop.f32.mrf.mxu0
    %v3358 = vpop.f32.mrf.mxu0
    %3359 = vdwg.mxu0
    %3360 = vmatprep.subr.bf16.mxu0 %v3101
    %3361 = vmatpush1.bf16.msra.mxu0 %v3100
    %3362 = vmatprep.subr.bf16.mxu0 %v3099
    %3363 = vmatpush1.bf16.msra.mxu0 %v3098
    %3364 = vmatprep.subr.bf16.mxu0 %v3097
    %3365 = vmatpush1.bf16.msra.mxu0 %v3096
    %3366 = vmatprep.subr.bf16.mxu0 %v3095
    %3367 = vmatpush1.bf16.msra.mxu0 %v3094
    %3368 = vmatprep.subr.bf16.mxu0 %v3093
    %3369 = vmatpush1.bf16.msra.mxu0 %v3092
    %3370 = vmatprep.subr.bf16.mxu0 %v3091
    %3371 = vmatpush1.bf16.msra.mxu0 %v3090
    %3372 = vmatprep.subr.bf16.mxu0 %v3089
    %3373 = vmatpush1.bf16.msra.mxu0 %v3088
    %3374 = vmatprep.subr.bf16.mxu0 %v3087
    %3375 = vmatpush1.bf16.msra.mxu0 %v3086
    %3376 = vmatprep.subr.bf16.mxu0 %v3117
    %3377 = vmatpush2.bf16.msra.mxu0 %v3116
    %3378 = vmatprep.subr.bf16.mxu0 %v3115
    %3379 = vmatpush2.bf16.msra.mxu0 %v3114
    %3380 = vmatprep.subr.bf16.mxu0 %v3113
    %3381 = vmatpush2.bf16.msra.mxu0 %v3112
    %3382 = vmatprep.subr.bf16.mxu0 %v3111
    %3383 = vmatpush2.bf16.msra.mxu0 %v3110
    %3384 = vmatprep.subr.bf16.mxu0 %v3109
    %3385 = vmatpush2.bf16.msra.mxu0 %v3108
    %3386 = vmatprep.subr.bf16.mxu0 %v3107
    %3387 = vmatpush2.bf16.msra.mxu0 %v3106
    %3388 = vmatprep.subr.bf16.mxu0 %v3105
    %3389 = vmatpush2.bf16.msra.mxu0 %v3104
    %3390 = vmatprep.subr.bf16.mxu0 %v3103
    %3391 = vmatpush2.bf16.msra.mxu0 %v3102
    %3392 = vmatprep.mubr.bf16.mxu0 %v1567
    %3393 = vmatmul.mubr.bf16.gmra.mxu0 %v1566
    %v3394 = vpop.f32.mrf.mxu0
    %v3395 = vadd.f32 %v3354, %v3394
    %v3396 = vpop.f32.mrf.mxu0
    %v3397 = vadd.f32 %v3356, %v3396
    %v3398 = vpop.f32.mrf.mxu0
    %v3399 = vpop.f32.mrf.mxu0
    %3400 = vdwg.mxu0
    %3401 = vmatprep.subr.bf16.mxu0 %v3133
    %3402 = vmatpush1.bf16.msra.mxu0 %v3132
    %3403 = vmatprep.subr.bf16.mxu0 %v3131
    %3404 = vmatpush1.bf16.msra.mxu0 %v3130
    %3405 = vmatprep.subr.bf16.mxu0 %v3129
    %3406 = vmatpush1.bf16.msra.mxu0 %v3128
    %3407 = vmatprep.subr.bf16.mxu0 %v3127
    %3408 = vmatpush1.bf16.msra.mxu0 %v3126
    %3409 = vmatprep.subr.bf16.mxu0 %v3125
    %3410 = vmatpush1.bf16.msra.mxu0 %v3124
    %3411 = vmatprep.subr.bf16.mxu0 %v3123
    %3412 = vmatpush1.bf16.msra.mxu0 %v3122
    %3413 = vmatprep.subr.bf16.mxu0 %v3121
    %3414 = vmatpush1.bf16.msra.mxu0 %v3120
    %3415 = vmatprep.subr.bf16.mxu0 %v3119
    %3416 = vmatpush1.bf16.msra.mxu0 %v3118
    %3417 = vmatprep.subr.bf16.mxu0 %v3149
    %3418 = vmatpush2.bf16.msra.mxu0 %v3148
    %3419 = vmatprep.subr.bf16.mxu0 %v3147
    %3420 = vmatpush2.bf16.msra.mxu0 %v3146
    %3421 = vmatprep.subr.bf16.mxu0 %v3145
    %3422 = vmatpush2.bf16.msra.mxu0 %v3144
    %3423 = vmatprep.subr.bf16.mxu0 %v3143
    %3424 = vmatpush2.bf16.msra.mxu0 %v3142
    %3425 = vmatprep.subr.bf16.mxu0 %v3141
    %3426 = vmatpush2.bf16.msra.mxu0 %v3140
    %3427 = vmatprep.subr.bf16.mxu0 %v3139
    %3428 = vmatpush2.bf16.msra.mxu0 %v3138
    %3429 = vmatprep.subr.bf16.mxu0 %v3137
    %3430 = vmatpush2.bf16.msra.mxu0 %v3136
    %3431 = vmatprep.subr.bf16.mxu0 %v3135
    %3432 = vmatpush2.bf16.msra.mxu0 %v3134
    %3433 = vmatprep.mubr.bf16.mxu0 %v1569
    %3434 = vmatmul.mubr.bf16.gmra.mxu0 %v1568
    %v3435 = vpop.f32.mrf.mxu0
    %v3436 = vadd.f32 %v3395, %v3435
    %v3437 = vpop.f32.mrf.mxu0
    %v3438 = vadd.f32 %v3397, %v3437
    %v3439 = vpop.f32.mrf.mxu0
    %v3440 = vpop.f32.mrf.mxu0
    %3441 = vdwg.mxu0
    %v3442 = vld [vmem:[%s6] sm:$0x3]
    %v3444 = vlaneseq
    %v3445 = vshrl.u32 %v3444, 7
    %v3446 = vsub.s32 0, %v3445
    %v3447 = vrot.slane %v3442, %v3446
    %v3448 = vlaneseq
    %v3449 = vshrl.u32 %v3448, 7
    %v3450 = vsub.s32 1, %v3449
    %v3451 = vrot.slane %v3442, %v3450
    %v3454 = vadd.f32 %v3436, %v3447
    %v3455 = vadd.f32 %v3438, %v3451
    %v3456 = vmax.f32 %v3454, 0.0
    %v3457 = vmax.f32 %v3455, 0.0
    %v3458 = vpack.c.bf16 %v3456, %v3456
    %v3459 = vpack.c.bf16 %v3457, %v3457
    %v3460 = vld [vmem:[#allocation13] sm:$0xf]
    %v3461 = vld [vmem:[#allocation13 + $0x4] sm:$0xf]
    %v3462 = vld [vmem:[#allocation13 + $0x8] sm:$0xf]
    %v3463 = vld [vmem:[#allocation13 + $0xc] sm:$0xf]
    %v3464 = vld [vmem:[#allocation13 + $0x10] sm:$0xf]
    %v3465 = vld [vmem:[#allocation13 + $0x14] sm:$0xf]
    %v3466 = vld [vmem:[#allocation13 + $0x18] sm:$0xf]
    %v3467 = vld [vmem:[#allocation13 + $0x1c] sm:$0xf]
    %v3468 = vld [vmem:[#allocation13 + $0x20] sm:$0xf]
    %v3469 = vld [vmem:[#allocation13 + $0x24] sm:$0xf]
    %v3470 = vld [vmem:[#allocation13 + $0x28] sm:$0xf]
    %v3471 = vld [vmem:[#allocation13 + $0x2c] sm:$0xf]
    %v3472 = vld [vmem:[#allocation13 + $0x30] sm:$0xf]
    %v3473 = vld [vmem:[#allocation13 + $0x34] sm:$0xf]
    %v3474 = vld [vmem:[#allocation13 + $0x38] sm:$0xf]
    %v3475 = vld [vmem:[#allocation13 + $0x3c] sm:$0xf]
    %v3476 = vld [vmem:[#allocation13 + $0x40] sm:$0xf]
    %v3477 = vld [vmem:[#allocation13 + $0x44] sm:$0xf]
    %v3478 = vld [vmem:[#allocation13 + $0x48] sm:$0xf]
    %v3479 = vld [vmem:[#allocation13 + $0x4c] sm:$0xf]
    %v3480 = vld [vmem:[#allocation13 + $0x50] sm:$0xf]
    %v3481 = vld [vmem:[#allocation13 + $0x54] sm:$0xf]
    %v3482 = vld [vmem:[#allocation13 + $0x58] sm:$0xf]
    %v3483 = vld [vmem:[#allocation13 + $0x5c] sm:$0xf]
    %v3484 = vld [vmem:[#allocation13 + $0x60] sm:$0xf]
    %v3485 = vld [vmem:[#allocation13 + $0x64] sm:$0xf]
    %v3486 = vld [vmem:[#allocation13 + $0x68] sm:$0xf]
    %v3487 = vld [vmem:[#allocation13 + $0x6c] sm:$0xf]
    %v3488 = vld [vmem:[#allocation13 + $0x70] sm:$0xf]
    %v3489 = vld [vmem:[#allocation13 + $0x74] sm:$0xf]
    %v3490 = vld [vmem:[#allocation13 + $0x78] sm:$0xf]
    %v3491 = vld [vmem:[#allocation13 + $0x7c] sm:$0xf]
    %v3492 = vld [vmem:[%s8] sm:$0x1]
    %v3494 = vlaneseq
    %v3495 = vshrl.u32 %v3494, 7
    %v3496 = vsub.s32 0, %v3495
    %v3497 = vrot.slane %v3492, %v3496
    %v3531 = vunpack.c.l.b16 %v3460
    %v3532 = vunpack.c.l.b16 %v3461
    %v3533 = vunpack.c.l.b16 %v3462
    %v3534 = vunpack.c.l.b16 %v3463
    %v3535 = vunpack.c.l.b16 %v3464
    %v3536 = vunpack.c.l.b16 %v3465
    %v3537 = vunpack.c.l.b16 %v3466
    %v3538 = vunpack.c.l.b16 %v3467
    %v3539 = vunpack.c.l.b16 %v3468
    %v3540 = vunpack.c.l.b16 %v3469
    %v3541 = vunpack.c.l.b16 %v3470
    %v3542 = vunpack.c.l.b16 %v3471
    %v3543 = vunpack.c.l.b16 %v3472
    %v3544 = vunpack.c.l.b16 %v3473
    %v3545 = vunpack.c.l.b16 %v3474
    %v3546 = vunpack.c.l.b16 %v3475
    %v3547 = vunpack.c.l.b16 %v3476
    %v3548 = vunpack.c.l.b16 %v3477
    %v3549 = vunpack.c.l.b16 %v3478
    %v3550 = vunpack.c.l.b16 %v3479
    %v3551 = vunpack.c.l.b16 %v3480
    %v3552 = vunpack.c.l.b16 %v3481
    %v3553 = vunpack.c.l.b16 %v3482
    %v3554 = vunpack.c.l.b16 %v3483
    %v3555 = vunpack.c.l.b16 %v3484
    %v3556 = vunpack.c.l.b16 %v3485
    %v3557 = vunpack.c.l.b16 %v3486
    %v3558 = vunpack.c.l.b16 %v3487
    %v3559 = vunpack.c.l.b16 %v3488
    %v3560 = vunpack.c.l.b16 %v3489
    %v3561 = vunpack.c.l.b16 %v3490
    %v3562 = vunpack.c.l.b16 %v3491
    %v3563 = vpack.c.b16 %v3532, %v3531
    %v3564 = vpack.c.b16 %v3534, %v3533
    %v3565 = vpack.c.b16 %v3536, %v3535
    %v3566 = vpack.c.b16 %v3538, %v3537
    %v3567 = vpack.c.b16 %v3540, %v3539
    %v3568 = vpack.c.b16 %v3542, %v3541
    %v3569 = vpack.c.b16 %v3544, %v3543
    %v3570 = vpack.c.b16 %v3546, %v3545
    %v3571 = vpack.c.b16 %v3548, %v3547
    %v3572 = vpack.c.b16 %v3550, %v3549
    %v3573 = vpack.c.b16 %v3552, %v3551
    %v3574 = vpack.c.b16 %v3554, %v3553
    %v3575 = vpack.c.b16 %v3556, %v3555
    %v3576 = vpack.c.b16 %v3558, %v3557
    %v3577 = vpack.c.b16 %v3560, %v3559
    %v3578 = vpack.c.b16 %v3562, %v3561
    %3595 = vmatprep.subr.bf16.mxu0 0
    %3596 = vmatpush1.bf16.msra.mxu0 %v3570
    %3597 = vmatprep.subr.bf16.mxu0 0
    %3598 = vmatpush1.bf16.msra.mxu0 %v3569
    %3599 = vmatprep.subr.bf16.mxu0 0
    %3600 = vmatpush1.bf16.msra.mxu0 %v3568
    %3601 = vmatprep.subr.bf16.mxu0 0
    %3602 = vmatpush1.bf16.msra.mxu0 %v3567
    %3603 = vmatprep.subr.bf16.mxu0 0
    %3604 = vmatpush1.bf16.msra.mxu0 %v3566
    %3605 = vmatprep.subr.bf16.mxu0 0
    %3606 = vmatpush1.bf16.msra.mxu0 %v3565
    %3607 = vmatprep.subr.bf16.mxu0 0
    %3608 = vmatpush1.bf16.msra.mxu0 %v3564
    %3609 = vmatprep.subr.bf16.mxu0 0
    %3610 = vmatpush1.bf16.msra.mxu0 %v3563
    %3611 = vmatprep.subr.bf16.mxu0 0
    %3612 = vmatpush2.bf16.msra.mxu0 %v3578
    %3613 = vmatprep.subr.bf16.mxu0 0
    %3614 = vmatpush2.bf16.msra.mxu0 %v3577
    %3615 = vmatprep.subr.bf16.mxu0 0
    %3616 = vmatpush2.bf16.msra.mxu0 %v3576
    %3617 = vmatprep.subr.bf16.mxu0 0
    %3618 = vmatpush2.bf16.msra.mxu0 %v3575
    %3619 = vmatprep.subr.bf16.mxu0 0
    %3620 = vmatpush2.bf16.msra.mxu0 %v3574
    %3621 = vmatprep.subr.bf16.mxu0 0
    %3622 = vmatpush2.bf16.msra.mxu0 %v3573
    %3623 = vmatprep.subr.bf16.mxu0 0
    %3624 = vmatpush2.bf16.msra.mxu0 %v3572
    %3625 = vmatprep.subr.bf16.mxu0 0
    %3626 = vmatpush2.bf16.msra.mxu0 %v3571
    %3627 = vmatprep.mubr.bf16.mxu0 %v3459
    %3628 = vmatmul.mubr.bf16.gmra.mxu0 %v3458
    %v3629 = vpop.f32.mrf.mxu0
    %v3630 = vadd.f32 %v3497, %v3629
    %v3631 = vpop.f32.mrf.mxu0
    %v3632 = vpop.f32.mrf.mxu0
    %v3633 = vpop.f32.mrf.mxu0
    %3634 = vdwg.mxu0
    %3635 = vst [vmem:[#allocation14] sm:$0xff] %v3630
    // Predicated region
    $region66: #{tpu_custom_call.1} parent=1 // pred_check
      _
    $region67: #{tpu_custom_call.1} parent=1 // pred_check_branch
      %3637 = sbr.rel (0) target = $region69
    $region68: #{tpu_custom_call.1} parent=1 // pred_region
      %s3639 = ssub.s32 128, 128
      %3640 = vsyncadd [#allocation4], %s3639
      %s3642 = sshll.u32 [#allocation14], 4
      %s3643 = int_to_ptr.vmem [resolvable:$true] %s3642
      %3645 = dma.vmem_to_hbm [thread:$0]  %s3643, 128, %s9, [#allocation4]
    $region69: #{tpu_custom_call.1} parent=1 // pred_fallthru
      _
    // Predicated region
    $region70: #{tpu_custom_call.1} parent=1 // pred_check
      _
    $region71: #{tpu_custom_call.1} parent=1 // pred_check_branch
      %3647 = sbr.rel (0) target = $region73
    $region72: #{tpu_custom_call.1} parent=1 // pred_region
      %3648 = dma.done [#allocation4], 128
    $region73: #{tpu_custom_call.1} parent=1 // pred_fallthru
      _
    %3649 = vsyncpa [#allocation3], 1
    %3650 = vsyncpa [#allocation6], 1
    %3651 = vsyncpa [#allocation9], 1
    %3652 = vsyncpa [#allocation12], 1
    %3653 = vsyncpa [#allocation4], 1

// kernel: tpu_custom_call.1
$region0: #{tpu_custom_call.1}
  #allocation0 [shape = 'u32[]', space=smem, size = 0x4, offset = 0x4, fixed_abs, tag = 'smem constant byte address 0x4 - core index']
  #allocation1 [shape = 'u32[144,128]{1,0:T(1,128)}', space=vmem, size = 0x12000, scoped, tag = 'internal scratch']
  %s0 = inlined_call_operand.hbm [shape: f32[8,1024], index: 0, kind: input, shape index: {}]
  %s1 = inlined_call_operand.hbm [shape: f32[8,1024], index: 1, kind: input, shape index: {}]
  %s2 = inlined_call_operand.hbm [shape: bf16[1024,128], index: 2, kind: input, shape index: {}]
  %s3 = inlined_call_operand.hbm [shape: bf16[128,1024], index: 3, kind: input, shape index: {}]
  %s4 = inlined_call_operand.hbm [shape: bf16[1024,256], index: 4, kind: input, shape index: {}]
  %s5 = inlined_call_operand.hbm [shape: bf16[1024,256], index: 5, kind: input, shape index: {}]
  %s6 = inlined_call_operand.vmem [shape: f32[1,256], index: 6, kind: input, shape index: {}]
  %s7 = inlined_call_operand.hbm [shape: bf16[256,128], index: 7, kind: input, shape index: {}]
  %s8 = inlined_call_operand.vmem [shape: f32[1,128], index: 8, kind: input, shape index: {}]
  %s9 = inlined_call_operand.hbm [shape: f32[8,128], index: 9, kind: output, shape index: {}]
  %s10 = sld [smem:[#allocation0]]
  $region74: #{tpu_custom_call.1} parent=0
    _
  %s12 = ssub.s32 1, %s10
  %s13 = scalar_select 0, %s12, %s10
  $region1: #{tpu_custom_call.1} parent=0
    #allocation2 [shape = 'u8[32768]{0}', space=vmem, size = 0x8000, scoped, tag = 'input window, operand 0, single buffered']
    #allocation3 [shape = 's32[1]{0}', space=sflag, size = 0x4, scoped, tag = 'scoped memory for tpu_custom_call.1']
    #allocation4 [shape = 's32[1]{0}', space=sflag, size = 0x4, scoped, tag = 'scoped memory for tpu_custom_call.1']
    #allocation5 [shape = 'u8[32768]{0}', space=vmem, size = 0x8000, scoped, tag = 'input window, operand 1, single buffered']
    #allocation6 [shape = 's32[1]{0}', space=sflag, size = 0x4, scoped, tag = 'scoped memory for tpu_custom_call.1']
    #allocation7 [shape = 'u8[262144]{0}', space=vmem, size = 0x40000, scoped, tag = 'input window, operand 2, single buffered']
    #allocation8 [shape = 'u8[262144]{0}', space=vmem, size = 0x40000, scoped, tag = 'input window, operand 3, single buffered']
    #allocation9 [shape = 's32[1]{0}', space=sflag, size = 0x4, scoped, tag = 'scoped memory for tpu_custom_call.1']
    #allocation10 [shape = 'u8[524288]{0}', space=vmem, size = 0x80000, scoped, tag = 'input window, operand 4, single buffered']
    #allocation11 [shape = 'u8[524288]{0}', space=vmem, size = 0x80000, scoped, tag = 'input window, operand 5, single buffered']
    #allocation12 [shape = 's32[1]{0}', space=sflag, size = 0x4, scoped, tag = 'scoped memory for tpu_custom_call.1']
    #allocation13 [shape = 'u8[65536]{0}', space=vmem, size = 0x10000, scoped, tag = 'input window, operand 7, single buffered']
    #allocation14 [shape = 'u8[4096]{0}', space=vmem, size = 0x1000, scoped, tag = 'output window, operand 0, single buffered']
    %14 = vsyncpa [#allocation3], 0
    %15 = vsyncpa [#allocation6], 0
    %16 = vsyncpa [#allocation9], 0
    %17 = vsyncpa [#allocation12], 0
    %18 = vsyncpa [#allocation4], 0
    // Predicated region
    $region2: #{tpu_custom_call.1} parent=1 // pred_check
      _
    $region3: #{tpu_custom_call.1} parent=1 // pred_check_branch
      %20 = sbr.rel (0) target = $region5
    $region4: #{tpu_custom_call.1} parent=1 // pred_region
      %s22 = ssub.s32 1024, 1024
      %23 = vsyncadd [#allocation3], %s22
      %s25 = sshll.u32 [#allocation2], 4
      %s26 = int_to_ptr.vmem [resolvable:$true] %s25
      %28 = dma.hbm_to_vmem [thread:$0]  %s0, 1024, %s26, [#allocation3]
    $region5: #{tpu_custom_call.1} parent=1 // pred_fallthru
      _
    // Predicated region
    $region6: #{tpu_custom_call.1} parent=1 // pred_check
      _
    $region7: #{tpu_custom_call.1} parent=1 // pred_check_branch
      %30 = sbr.rel (0) target = $region9
    $region8: #{tpu_custom_call.1} parent=1 // pred_region
      %s32 = ssub.s32 1024, 1024
      %33 = vsyncadd [#allocation6], %s32
      %s35 = sshll.u32 [#allocation5], 4
      %s36 = int_to_ptr.vmem [resolvable:$true] %s35
      %38 = dma.hbm_to_vmem [thread:$0]  %s1, 1024, %s36, [#allocation6]
    $region9: #{tpu_custom_call.1} parent=1 // pred_fallthru
      _
    // Predicated region
    $region10: #{tpu_custom_call.1} parent=1 // pred_check
      _
    $region11: #{tpu_custom_call.1} parent=1 // pred_check_branch
      %40 = sbr.rel (0) target = $region13
    $region12: #{tpu_custom_call.1} parent=1 // pred_region
      %s42 = ssub.s32 8192, 8192
      %43 = vsyncadd [#allocation6], %s42
      %s44 = sshll.u32 [#allocation7], 4
      %s45 = int_to_ptr.vmem [resolvable:$true] %s44
      %50 = dma.hbm_to_vmem [thread:$0]  %s2, 8192, %s45, [#allocation6], 64, 64, 4
    $region13: #{tpu_custom_call.1} parent=1 // pred_fallthru
      _
    // Predicated region
    $region14: #{tpu_custom_call.1} parent=1 // pred_check
      _
    $region15: #{tpu_custom_call.1} parent=1 // pred_check_branch
      %52 = sbr.rel (0) target = $region17
    $region16: #{tpu_custom_call.1} parent=1 // pred_region
      %s54 = ssub.s32 8192, 8192
      %55 = vsyncadd [#allocation9], %s54
      %s56 = sshll.u32 [#allocation8], 4
      %s57 = int_to_ptr.vmem [resolvable:$true] %s56
      %62 = dma.hbm_to_vmem [thread:$0]  %s3, 8192, %s57, [#allocation9], 512, 512, 32
    $region17: #{tpu_custom_call.1} parent=1 // pred_fallthru
      _
    // Predicated region
    $region18: #{tpu_custom_call.1} parent=1 // pred_check
      _
    $region19: #{tpu_custom_call.1} parent=1 // pred_check_branch
      %64 = sbr.rel (0) target = $region21
    $region20: #{tpu_custom_call.1} parent=1 // pred_region
      %s66 = ssub.s32 16384, 16384
      %67 = vsyncadd [#allocation9], %s66
      %s68 = sshll.u32 [#allocation10], 4
      %s69 = int_to_ptr.vmem [resolvable:$true] %s68
      %74 = dma.hbm_to_vmem [thread:$0]  %s4, 16384, %s69, [#allocation9], 128, 128, 8
    $region21: #{tpu_custom_call.1} parent=1 // pred_fallthru
      _
    // Predicated region
    $region22: #{tpu_custom_call.1} parent=1 // pred_check
      _
    $region23: #{tpu_custom_call.1} parent=1 // pred_check_branch
      %76 = sbr.rel (0) target = $region25
    $region24: #{tpu_custom_call.1} parent=1 // pred_region
      %s78 = ssub.s32 16384, 16384
      %79 = vsyncadd [#allocation12], %s78
      %s80 = sshll.u32 [#allocation11], 4
      %s81 = int_to_ptr.vmem [resolvable:$true] %s80
      %86 = dma.hbm_to_vmem [thread:$0]  %s5, 16384, %s81, [#allocation12], 128, 128, 8
    $region25: #{tpu_custom_call.1} parent=1 // pred_fallthru
      _
    // Predicated region
    $region26: #{tpu_custom_call.1} parent=1 // pred_check
      _
    $region27: #{tpu_custom_call.1} parent=1 // pred_check_branch
      %88 = sbr.rel (0) target = $region29
    $region28: #{tpu_custom_call.1} parent=1 // pred_region
      _
    $region29: #{tpu_custom_call.1} parent=1 // pred_fallthru
      _
    // Predicated region
    $region30: #{tpu_custom_call.1} parent=1 // pred_check
      _
    $region31: #{tpu_custom_call.1} parent=1 // pred_check_branch
      %90 = sbr.rel (0) target = $region33
    $region32: #{tpu_custom_call.1} parent=1 // pred_region
      %s92 = ssub.s32 2048, 2048
      %93 = vsyncadd [#allocation12], %s92
      %s94 = sshll.u32 [#allocation13], 4
      %s95 = int_to_ptr.vmem [resolvable:$true] %s94
      %100 = dma.hbm_to_vmem [thread:$0]  %s7, 2048, %s95, [#allocation12], 64, 64, 4
    $region33: #{tpu_custom_call.1} parent=1 // pred_fallthru
      _
    // Predicated region
    $region34: #{tpu_custom_call.1} parent=1 // pred_check
      _
    $region35: #{tpu_custom_call.1} parent=1 // pred_check_branch
      %102 = sbr.rel (0) target = $region37
    $region36: #{tpu_custom_call.1} parent=1 // pred_region
      _
    $region37: #{tpu_custom_call.1} parent=1 // pred_fallthru
      _
    // Predicated region
    $region38: #{tpu_custom_call.1} parent=1 // pred_check
      _
    $region39: #{tpu_custom_call.1} parent=1 // pred_check_branch
      %104 = sbr.rel (0) target = $region41
    $region40: #{tpu_custom_call.1} parent=1 // pred_region
      %105 = dma.done [#allocation3], 1024
    $region41: #{tpu_custom_call.1} parent=1 // pred_fallthru
      _
    // Predicated region
    $region42: #{tpu_custom_call.1} parent=1 // pred_check
      _
    $region43: #{tpu_custom_call.1} parent=1 // pred_check_branch
      %107 = sbr.rel (0) target = $region45
    $region44: #{tpu_custom_call.1} parent=1 // pred_region
      %108 = dma.done [#allocation6], 1024
    $region45: #{tpu_custom_call.1} parent=1 // pred_fallthru
      _
    // Predicated region
    $region46: #{tpu_custom_call.1} parent=1 // pred_check
      _
    $region47: #{tpu_custom_call.1} parent=1 // pred_check_branch
      %110 = sbr.rel (0) target = $region49
    $region48: #{tpu_custom_call.1} parent=1 // pred_region
      %111 = dma.done [#allocation6], 8192
    $region49: #{tpu_custom_call.1} parent=1 // pred_fallthru
      _
    // Predicated region
    $region50: #{tpu_custom_call.1} parent=1 // pred_check
      _
    $region51: #{tpu_custom_call.1} parent=1 // pred_check_branch
      %113 = sbr.rel (0) target = $region53
    $region52: #{tpu_custom_call.1} parent=1 // pred_region
      %114 = dma.done [#allocation9], 8192
    $region53: #{tpu_custom_call.1} parent=1 // pred_fallthru
      _
    // Predicated region
    $region54: #{tpu_custom_call.1} parent=1 // pred_check
      _
    $region55: #{tpu_custom_call.1} parent=1 // pred_check_branch
      %116 = sbr.rel (0) target = $region57
    $region56: #{tpu_custom_call.1} parent=1 // pred_region
      %117 = dma.done [#allocation9], 16384
    $region57: #{tpu_custom_call.1} parent=1 // pred_fallthru
      _
    // Predicated region
    $region58: #{tpu_custom_call.1} parent=1 // pred_check
      _
    $region59: #{tpu_custom_call.1} parent=1 // pred_check_branch
      %119 = sbr.rel (0) target = $region61
    $region60: #{tpu_custom_call.1} parent=1 // pred_region
      %120 = dma.done [#allocation12], 16384
    $region61: #{tpu_custom_call.1} parent=1 // pred_fallthru
      _
    // Predicated region
    $region62: #{tpu_custom_call.1} parent=1 // pred_check
      _
    $region63: #{tpu_custom_call.1} parent=1 // pred_check_branch
      %122 = sbr.rel (0) target = $region65
    $region64: #{tpu_custom_call.1} parent=1 // pred_region
      %123 = dma.done [#allocation12], 2048
    $region65: #{tpu_custom_call.1} parent=1 // pred_fallthru
      _
    %v125 = vld [vmem:[#allocation2] sm:$0xff]
    %v126 = vld [vmem:[#allocation2 + $0x8] sm:$0xff]
    %v127 = vld [vmem:[#allocation2 + $0x10] sm:$0xff]
    %v128 = vld [vmem:[#allocation2 + $0x18] sm:$0xff]
    %v129 = vld [vmem:[#allocation2 + $0x20] sm:$0xff]
    %v130 = vld [vmem:[#allocation2 + $0x28] sm:$0xff]
    %v131 = vld [vmem:[#allocation2 + $0x30] sm:$0xff]
    %v132 = vld [vmem:[#allocation2 + $0x38] sm:$0xff]
    %v133 = vpack.c.bf16 %v125, %v125
    %v134 = vpack.c.bf16 %v126, %v126
    %v135 = vpack.c.bf16 %v127, %v127
    %v136 = vpack.c.bf16 %v128, %v128
    %v137 = vpack.c.bf16 %v129, %v129
    %v138 = vpack.c.bf16 %v130, %v130
    %v139 = vpack.c.bf16 %v131, %v131
    %v140 = vpack.c.bf16 %v132, %v132
    %v141 = vld [vmem:[#allocation5] sm:$0xff]
    %v142 = vld [vmem:[#allocation5 + $0x8] sm:$0xff]
    %v143 = vld [vmem:[#allocation5 + $0x10] sm:$0xff]
    %v144 = vld [vmem:[#allocation5 + $0x18] sm:$0xff]
    %v145 = vld [vmem:[#allocation5 + $0x20] sm:$0xff]
    %v146 = vld [vmem:[#allocation5 + $0x28] sm:$0xff]
    %v147 = vld [vmem:[#allocation5 + $0x30] sm:$0xff]
    %v148 = vld [vmem:[#allocation5 + $0x38] sm:$0xff]
    %v149 = vpack.c.bf16 %v141, %v141
    %v150 = vpack.c.bf16 %v142, %v142
    %v151 = vpack.c.bf16 %v143, %v143
    %v152 = vpack.c.bf16 %v144, %v144
    %v153 = vpack.c.bf16 %v145, %v145
    %v154 = vpack.c.bf16 %v146, %v146
    %v155 = vpack.c.bf16 %v147, %v147
    %v156 = vpack.c.bf16 %v148, %v148
    %v157 = vld [vmem:[#allocation7] sm:$0xf]
    %v158 = vld [vmem:[#allocation7 + $0x4] sm:$0xf]
    %v159 = vld [vmem:[#allocation7 + $0x8] sm:$0xf]
    %v160 = vld [vmem:[#allocation7 + $0xc] sm:$0xf]
    %v161 = vld [vmem:[#allocation7 + $0x10] sm:$0xf]
    %v162 = vld [vmem:[#allocation7 + $0x14] sm:$0xf]
    %v163 = vld [vmem:[#allocation7 + $0x18] sm:$0xf]
    %v164 = vld [vmem:[#allocation7 + $0x1c] sm:$0xf]
    %v165 = vld [vmem:[#allocation7 + $0x20] sm:$0xf]
    %v166 = vld [vmem:[#allocation7 + $0x24] sm:$0xf]
    %v167 = vld [vmem:[#allocation7 + $0x28] sm:$0xf]
    %v168 = vld [vmem:[#allocation7 + $0x2c] sm:$0xf]
    %v169 = vld [vmem:[#allocation7 + $0x30] sm:$0xf]
    %v170 = vld [vmem:[#allocation7 + $0x34] sm:$0xf]
    %v171 = vld [vmem:[#allocation7 + $0x38] sm:$0xf]
    %v172 = vld [vmem:[#allocation7 + $0x3c] sm:$0xf]
    %v173 = vld [vmem:[#allocation7 + $0x40] sm:$0xf]
    %v174 = vld [vmem:[#allocation7 + $0x44] sm:$0xf]
    %v175 = vld [vmem:[#allocation7 + $0x48] sm:$0xf]
    %v176 = vld [vmem:[#allocation7 + $0x4c] sm:$0xf]
    %v177 = vld [vmem:[#allocation7 + $0x50] sm:$0xf]
    %v178 = vld [vmem:[#allocation7 + $0x54] sm:$0xf]
    %v179 = vld [vmem:[#allocation7 + $0x58] sm:$0xf]
    %v180 = vld [vmem:[#allocation7 + $0x5c] sm:$0xf]
    %v181 = vld [vmem:[#allocation7 + $0x60] sm:$0xf]
    %v182 = vld [vmem:[#allocation7 + $0x64] sm:$0xf]
    %v183 = vld [vmem:[#allocation7 + $0x68] sm:$0xf]
    %v184 = vld [vmem:[#allocation7 + $0x6c] sm:$0xf]
    %v185 = vld [vmem:[#allocation7 + $0x70] sm:$0xf]
    %v186 = vld [vmem:[#allocation7 + $0x74] sm:$0xf]
    %v187 = vld [vmem:[#allocation7 + $0x78] sm:$0xf]
    %v188 = vld [vmem:[#allocation7 + $0x7c] sm:$0xf]
    %v189 = vld [vmem:[#allocation7 + $0x80] sm:$0xf]
    %v190 = vld [vmem:[#allocation7 + $0x84] sm:$0xf]
    %v191 = vld [vmem:[#allocation7 + $0x88] sm:$0xf]
    %v192 = vld [vmem:[#allocation7 + $0x8c] sm:$0xf]
    %v193 = vld [vmem:[#allocation7 + $0x90] sm:$0xf]
    %v194 = vld [vmem:[#allocation7 + $0x94] sm:$0xf]
    %v195 = vld [vmem:[#allocation7 + $0x98] sm:$0xf]
    %v196 = vld [vmem:[#allocation7 + $0x9c] sm:$0xf]
    %v197 = vld [vmem:[#allocation7 + $0xa0] sm:$0xf]
    %v198 = vld [vmem:[#allocation7 + $0xa4] sm:$0xf]
    %v199 = vld [vmem:[#allocation7 + $0xa8] sm:$0xf]
    %v200 = vld [vmem:[#allocation7 + $0xac] sm:$0xf]
    %v201 = vld [vmem:[#allocation7 + $0xb0] sm:$0xf]
    %v202 = vld [vmem:[#allocation7 + $0xb4] sm:$0xf]
    %v203 = vld [vmem:[#allocation7 + $0xb8] sm:$0xf]
    %v204 = vld [vmem:[#allocation7 + $0xbc] sm:$0xf]
    %v205 = vld [vmem:[#allocation7 + $0xc0] sm:$0xf]
    %v206 = vld [vmem:[#allocation7 + $0xc4] sm:$0xf]
    %v207 = vld [vmem:[#allocation7 + $0xc8] sm:$0xf]
    %v208 = vld [vmem:[#allocation7 + $0xcc] sm:$0xf]
    %v209 = vld [vmem:[#allocation7 + $0xd0] sm:$0xf]
    %v210 = vld [vmem:[#allocation7 + $0xd4] sm:$0xf]
    %v211 = vld [vmem:[#allocation7 + $0xd8] sm:$0xf]
    %v212 = vld [vmem:[#allocation7 + $0xdc] sm:$0xf]
    %v213 = vld [vmem:[#allocation7 + $0xe0] sm:$0xf]
    %v214 = vld [vmem:[#allocation7 + $0xe4] sm:$0xf]
    %v215 = vld [vmem:[#allocation7 + $0xe8] sm:$0xf]
    %v216 = vld [vmem:[#allocation7 + $0xec] sm:$0xf]
    %v217 = vld [vmem:[#allocation7 + $0xf0] sm:$0xf]
    %v218 = vld [vmem:[#allocation7 + $0xf4] sm:$0xf]
    %v219 = vld [vmem:[#allocation7 + $0xf8] sm:$0xf]
    %v220 = vld [vmem:[#allocation7 + $0xfc] sm:$0xf]
    %v221 = vld [vmem:[#allocation7 + $0x100] sm:$0xf]
    %v222 = vld [vmem:[#allocation7 + $0x104] sm:$0xf]
    %v223 = vld [vmem:[#allocation7 + $0x108] sm:$0xf]
    %v224 = vld [vmem:[#allocation7 + $0x10c] sm:$0xf]
    %v225 = vld [vmem:[#allocation7 + $0x110] sm:$0xf]
    %v226 = vld [vmem:[#allocation7 + $0x114] sm:$0xf]
    %v227 = vld [vmem:[#allocation7 + $0x118] sm:$0xf]
    %v228 = vld [vmem:[#allocation7 + $0x11c] sm:$0xf]
    %v229 = vld [vmem:[#allocation7 + $0x120] sm:$0xf]
    %v230 = vld [vmem:[#allocation7 + $0x124] sm:$0xf]
    %v231 = vld [vmem:[#allocation7 + $0x128] sm:$0xf]
    %v232 = vld [vmem:[#allocation7 + $0x12c] sm:$0xf]
    %v233 = vld [vmem:[#allocation7 + $0x130] sm:$0xf]
    %v234 = vld [vmem:[#allocation7 + $0x134] sm:$0xf]
    %v235 = vld [vmem:[#allocation7 + $0x138] sm:$0xf]
    %v236 = vld [vmem:[#allocation7 + $0x13c] sm:$0xf]
    %v237 = vld [vmem:[#allocation7 + $0x140] sm:$0xf]
    %v238 = vld [vmem:[#allocation7 + $0x144] sm:$0xf]
    %v239 = vld [vmem:[#allocation7 + $0x148] sm:$0xf]
    %v240 = vld [vmem:[#allocation7 + $0x14c] sm:$0xf]
    %v241 = vld [vmem:[#allocation7 + $0x150] sm:$0xf]
    %v242 = vld [vmem:[#allocation7 + $0x154] sm:$0xf]
    %v243 = vld [vmem:[#allocation7 + $0x158] sm:$0xf]
    %v244 = vld [vmem:[#allocation7 + $0x15c] sm:$0xf]
    %v245 = vld [vmem:[#allocation7 + $0x160] sm:$0xf]
    %v246 = vld [vmem:[#allocation7 + $0x164] sm:$0xf]
    %v247 = vld [vmem:[#allocation7 + $0x168] sm:$0xf]
    %v248 = vld [vmem:[#allocation7 + $0x16c] sm:$0xf]
    %v249 = vld [vmem:[#allocation7 + $0x170] sm:$0xf]
    %v250 = vld [vmem:[#allocation7 + $0x174] sm:$0xf]
    %v251 = vld [vmem:[#allocation7 + $0x178] sm:$0xf]
    %v252 = vld [vmem:[#allocation7 + $0x17c] sm:$0xf]
    %v253 = vld [vmem:[#allocation7 + $0x180] sm:$0xf]
    %v254 = vld [vmem:[#allocation7 + $0x184] sm:$0xf]
    %v255 = vld [vmem:[#allocation7 + $0x188] sm:$0xf]
    %v256 = vld [vmem:[#allocation7 + $0x18c] sm:$0xf]
    %v257 = vld [vmem:[#allocation7 + $0x190] sm:$0xf]
    %v258 = vld [vmem:[#allocation7 + $0x194] sm:$0xf]
    %v259 = vld [vmem:[#allocation7 + $0x198] sm:$0xf]
    %v260 = vld [vmem:[#allocation7 + $0x19c] sm:$0xf]
    %v261 = vld [vmem:[#allocation7 + $0x1a0] sm:$0xf]
    %v262 = vld [vmem:[#allocation7 + $0x1a4] sm:$0xf]
    %v263 = vld [vmem:[#allocation7 + $0x1a8] sm:$0xf]
    %v264 = vld [vmem:[#allocation7 + $0x1ac] sm:$0xf]
    %v265 = vld [vmem:[#allocation7 + $0x1b0] sm:$0xf]
    %v266 = vld [vmem:[#allocation7 + $0x1b4] sm:$0xf]
    %v267 = vld [vmem:[#allocation7 + $0x1b8] sm:$0xf]
    %v268 = vld [vmem:[#allocation7 + $0x1bc] sm:$0xf]
    %v269 = vld [vmem:[#allocation7 + $0x1c0] sm:$0xf]
    %v270 = vld [vmem:[#allocation7 + $0x1c4] sm:$0xf]
    %v271 = vld [vmem:[#allocation7 + $0x1c8] sm:$0xf]
    %v272 = vld [vmem:[#allocation7 + $0x1cc] sm:$0xf]
    %v273 = vld [vmem:[#allocation7 + $0x1d0] sm:$0xf]
    %v274 = vld [vmem:[#allocation7 + $0x1d4] sm:$0xf]
    %v275 = vld [vmem:[#allocation7 + $0x1d8] sm:$0xf]
    %v276 = vld [vmem:[#allocation7 + $0x1dc] sm:$0xf]
    %v277 = vld [vmem:[#allocation7 + $0x1e0] sm:$0xf]
    %v278 = vld [vmem:[#allocation7 + $0x1e4] sm:$0xf]
    %v279 = vld [vmem:[#allocation7 + $0x1e8] sm:$0xf]
    %v280 = vld [vmem:[#allocation7 + $0x1ec] sm:$0xf]
    %v281 = vld [vmem:[#allocation7 + $0x1f0] sm:$0xf]
    %v282 = vld [vmem:[#allocation7 + $0x1f4] sm:$0xf]
    %v283 = vld [vmem:[#allocation7 + $0x1f8] sm:$0xf]
    %v284 = vld [vmem:[#allocation7 + $0x1fc] sm:$0xf]
    %v413 = vunpack.c.l.b16 %v157
    %v414 = vunpack.c.l.b16 %v158
    %v415 = vunpack.c.l.b16 %v159
    %v416 = vunpack.c.l.b16 %v160
    %v417 = vunpack.c.l.b16 %v161
    %v418 = vunpack.c.l.b16 %v162
    %v419 = vunpack.c.l.b16 %v163
    %v420 = vunpack.c.l.b16 %v164
    %v421 = vunpack.c.l.b16 %v165
    %v422 = vunpack.c.l.b16 %v166
    %v423 = vunpack.c.l.b16 %v167
    %v424 = vunpack.c.l.b16 %v168
    %v425 = vunpack.c.l.b16 %v169
    %v426 = vunpack.c.l.b16 %v170
    %v427 = vunpack.c.l.b16 %v171
    %v428 = vunpack.c.l.b16 %v172
    %v429 = vunpack.c.l.b16 %v173
    %v430 = vunpack.c.l.b16 %v174
    %v431 = vunpack.c.l.b16 %v175
    %v432 = vunpack.c.l.b16 %v176
    %v433 = vunpack.c.l.b16 %v177
    %v434 = vunpack.c.l.b16 %v178
    %v435 = vunpack.c.l.b16 %v179
    %v436 = vunpack.c.l.b16 %v180
    %v437 = vunpack.c.l.b16 %v181
    %v438 = vunpack.c.l.b16 %v182
    %v439 = vunpack.c.l.b16 %v183
    %v440 = vunpack.c.l.b16 %v184
    %v441 = vunpack.c.l.b16 %v185
    %v442 = vunpack.c.l.b16 %v186
    %v443 = vunpack.c.l.b16 %v187
    %v444 = vunpack.c.l.b16 %v188
    %v445 = vunpack.c.l.b16 %v189
    %v446 = vunpack.c.l.b16 %v190
    %v447 = vunpack.c.l.b16 %v191
    %v448 = vunpack.c.l.b16 %v192
    %v449 = vunpack.c.l.b16 %v193
    %v450 = vunpack.c.l.b16 %v194
    %v451 = vunpack.c.l.b16 %v195
    %v452 = vunpack.c.l.b16 %v196
    %v453 = vunpack.c.l.b16 %v197
    %v454 = vunpack.c.l.b16 %v198
    %v455 = vunpack.c.l.b16 %v199
    %v456 = vunpack.c.l.b16 %v200
    %v457 = vunpack.c.l.b16 %v201
    %v458 = vunpack.c.l.b16 %v202
    %v459 = vunpack.c.l.b16 %v203
    %v460 = vunpack.c.l.b16 %v204
    %v461 = vunpack.c.l.b16 %v205
    %v462 = vunpack.c.l.b16 %v206
    %v463 = vunpack.c.l.b16 %v207
    %v464 = vunpack.c.l.b16 %v208
    %v465 = vunpack.c.l.b16 %v209
    %v466 = vunpack.c.l.b16 %v210
    %v467 = vunpack.c.l.b16 %v211
    %v468 = vunpack.c.l.b16 %v212
    %v469 = vunpack.c.l.b16 %v213
    %v470 = vunpack.c.l.b16 %v214
    %v471 = vunpack.c.l.b16 %v215
    %v472 = vunpack.c.l.b16 %v216
    %v473 = vunpack.c.l.b16 %v217
    %v474 = vunpack.c.l.b16 %v218
    %v475 = vunpack.c.l.b16 %v219
    %v476 = vunpack.c.l.b16 %v220
    %v477 = vunpack.c.l.b16 %v221
    %v478 = vunpack.c.l.b16 %v222
    %v479 = vunpack.c.l.b16 %v223
    %v480 = vunpack.c.l.b16 %v224
    %v481 = vunpack.c.l.b16 %v225
    %v482 = vunpack.c.l.b16 %v226
    %v483 = vunpack.c.l.b16 %v227
    %v484 = vunpack.c.l.b16 %v228
    %v485 = vunpack.c.l.b16 %v229
    %v486 = vunpack.c.l.b16 %v230
    %v487 = vunpack.c.l.b16 %v231
    %v488 = vunpack.c.l.b16 %v232
    %v489 = vunpack.c.l.b16 %v233
    %v490 = vunpack.c.l.b16 %v234
    %v491 = vunpack.c.l.b16 %v235
    %v492 = vunpack.c.l.b16 %v236
    %v493 = vunpack.c.l.b16 %v237
    %v494 = vunpack.c.l.b16 %v238
    %v495 = vunpack.c.l.b16 %v239
    %v496 = vunpack.c.l.b16 %v240
    %v497 = vunpack.c.l.b16 %v241
    %v498 = vunpack.c.l.b16 %v242
    %v499 = vunpack.c.l.b16 %v243
    %v500 = vunpack.c.l.b16 %v244
    %v501 = vunpack.c.l.b16 %v245
    %v502 = vunpack.c.l.b16 %v246
    %v503 = vunpack.c.l.b16 %v247
    %v504 = vunpack.c.l.b16 %v248
    %v505 = vunpack.c.l.b16 %v249
    %v506 = vunpack.c.l.b16 %v250
    %v507 = vunpack.c.l.b16 %v251
    %v508 = vunpack.c.l.b16 %v252
    %v509 = vunpack.c.l.b16 %v253
    %v510 = vunpack.c.l.b16 %v254
    %v511 = vunpack.c.l.b16 %v255
    %v512 = vunpack.c.l.b16 %v256
    %v513 = vunpack.c.l.b16 %v257
    %v514 = vunpack.c.l.b16 %v258
    %v515 = vunpack.c.l.b16 %v259
    %v516 = vunpack.c.l.b16 %v260
    %v517 = vunpack.c.l.b16 %v261
    %v518 = vunpack.c.l.b16 %v262
    %v519 = vunpack.c.l.b16 %v263
    %v520 = vunpack.c.l.b16 %v264
    %v521 = vunpack.c.l.b16 %v265
    %v522 = vunpack.c.l.b16 %v266
    %v523 = vunpack.c.l.b16 %v267
    %v524 = vunpack.c.l.b16 %v268
    %v525 = vunpack.c.l.b16 %v269
    %v526 = vunpack.c.l.b16 %v270
    %v527 = vunpack.c.l.b16 %v271
    %v528 = vunpack.c.l.b16 %v272
    %v529 = vunpack.c.l.b16 %v273
    %v530 = vunpack.c.l.b16 %v274
    %v531 = vunpack.c.l.b16 %v275
    %v532 = vunpack.c.l.b16 %v276
    %v533 = vunpack.c.l.b16 %v277
    %v534 = vunpack.c.l.b16 %v278
    %v535 = vunpack.c.l.b16 %v279
    %v536 = vunpack.c.l.b16 %v280
    %v537 = vunpack.c.l.b16 %v281
    %v538 = vunpack.c.l.b16 %v282
    %v539 = vunpack.c.l.b16 %v283
    %v540 = vunpack.c.l.b16 %v284
    %v541 = vpack.c.b16 %v414, %v413
    %v542 = vpack.c.b16 %v416, %v415
    %v543 = vpack.c.b16 %v418, %v417
    %v544 = vpack.c.b16 %v420, %v419
    %v545 = vpack.c.b16 %v422, %v421
    %v546 = vpack.c.b16 %v424, %v423
    %v547 = vpack.c.b16 %v426, %v425
    %v548 = vpack.c.b16 %v428, %v427
    %v549 = vpack.c.b16 %v430, %v429
    %v550 = vpack.c.b16 %v432, %v431
    %v551 = vpack.c.b16 %v434, %v433
    %v552 = vpack.c.b16 %v436, %v435
    %v553 = vpack.c.b16 %v438, %v437
    %v554 = vpack.c.b16 %v440, %v439
    %v555 = vpack.c.b16 %v442, %v441
    %v556 = vpack.c.b16 %v444, %v443
    %v557 = vpack.c.b16 %v446, %v445
    %v558 = vpack.c.b16 %v448, %v447
    %v559 = vpack.c.b16 %v450, %v449
    %v560 = vpack.c.b16 %v452, %v451
    %v561 = vpack.c.b16 %v454, %v453
    %v562 = vpack.c.b16 %v456, %v455
    %v563 = vpack.c.b16 %v458, %v457
    %v564 = vpack.c.b16 %v460, %v459
    %v565 = vpack.c.b16 %v462, %v461
    %v566 = vpack.c.b16 %v464, %v463
    %v567 = vpack.c.b16 %v466, %v465
    %v568 = vpack.c.b16 %v468, %v467
    %v569 = vpack.c.b16 %v470, %v469
    %v570 = vpack.c.b16 %v472, %v471
    %v571 = vpack.c.b16 %v474, %v473
    %v572 = vpack.c.b16 %v476, %v475
    %v573 = vpack.c.b16 %v478, %v477
    %v574 = vpack.c.b16 %v480, %v479
    %v575 = vpack.c.b16 %v482, %v481
    %v576 = vpack.c.b16 %v484, %v483
    %v577 = vpack.c.b16 %v486, %v485
    %v578 = vpack.c.b16 %v488, %v487
    %v579 = vpack.c.b16 %v490, %v489
    %v580 = vpack.c.b16 %v492, %v491
    %v581 = vpack.c.b16 %v494, %v493
    %v582 = vpack.c.b16 %v496, %v495
    %v583 = vpack.c.b16 %v498, %v497
    %v584 = vpack.c.b16 %v500, %v499
    %v585 = vpack.c.b16 %v502, %v501
    %v586 = vpack.c.b16 %v504, %v503
    %v587 = vpack.c.b16 %v506, %v505
    %v588 = vpack.c.b16 %v508, %v507
    %v589 = vpack.c.b16 %v510, %v509
    %v590 = vpack.c.b16 %v512, %v511
    %v591 = vpack.c.b16 %v514, %v513
    %v592 = vpack.c.b16 %v516, %v515
    %v593 = vpack.c.b16 %v518, %v517
    %v594 = vpack.c.b16 %v520, %v519
    %v595 = vpack.c.b16 %v522, %v521
    %v596 = vpack.c.b16 %v524, %v523
    %v597 = vpack.c.b16 %v526, %v525
    %v598 = vpack.c.b16 %v528, %v527
    %v599 = vpack.c.b16 %v530, %v529
    %v600 = vpack.c.b16 %v532, %v531
    %v601 = vpack.c.b16 %v534, %v533
    %v602 = vpack.c.b16 %v536, %v535
    %v603 = vpack.c.b16 %v538, %v537
    %v604 = vpack.c.b16 %v540, %v539
    %669 = vmatprep.subr.bf16.mxu0 0
    %670 = vmatpush1.bf16.msra.mxu0 %v548
    %671 = vmatprep.subr.bf16.mxu0 0
    %672 = vmatpush1.bf16.msra.mxu0 %v547
    %673 = vmatprep.subr.bf16.mxu0 0
    %674 = vmatpush1.bf16.msra.mxu0 %v546
    %675 = vmatprep.subr.bf16.mxu0 0
    %676 = vmatpush1.bf16.msra.mxu0 %v545
    %677 = vmatprep.subr.bf16.mxu0 0
    %678 = vmatpush1.bf16.msra.mxu0 %v544
    %679 = vmatprep.subr.bf16.mxu0 0
    %680 = vmatpush1.bf16.msra.mxu0 %v543
    %681 = vmatprep.subr.bf16.mxu0 0
    %682 = vmatpush1.bf16.msra.mxu0 %v542
    %683 = vmatprep.subr.bf16.mxu0 0
    %684 = vmatpush1.bf16.msra.mxu0 %v541
    %685 = vmatprep.subr.bf16.mxu0 0
    %686 = vmatpush2.bf16.msra.mxu0 %v556
    %687 = vmatprep.subr.bf16.mxu0 0
    %688 = vmatpush2.bf16.msra.mxu0 %v555
    %689 = vmatprep.subr.bf16.mxu0 0
    %690 = vmatpush2.bf16.msra.mxu0 %v554
    %691 = vmatprep.subr.bf16.mxu0 0
    %692 = vmatpush2.bf16.msra.mxu0 %v553
    %693 = vmatprep.subr.bf16.mxu0 0
    %694 = vmatpush2.bf16.msra.mxu0 %v552
    %695 = vmatprep.subr.bf16.mxu0 0
    %696 = vmatpush2.bf16.msra.mxu0 %v551
    %697 = vmatprep.subr.bf16.mxu0 0
    %698 = vmatpush2.bf16.msra.mxu0 %v550
    %699 = vmatprep.subr.bf16.mxu0 0
    %700 = vmatpush2.bf16.msra.mxu0 %v549
    %701 = vmatprep.mubr.bf16.mxu0 %v134
    %702 = vmatmul.mubr.bf16.gmra.mxu0 %v133
    %v703 = vpop.f32.mrf.mxu0
    %v704 = vadd.f32 0.0, %v703
    %v705 = vpop.f32.mrf.mxu0
    %v706 = vpop.f32.mrf.mxu0
    %v707 = vpop.f32.mrf.mxu0
    %708 = vdwg.mxu0
    %709 = vmatprep.subr.bf16.mxu0 0
    %710 = vmatpush1.bf16.msra.mxu0 %v564
    %711 = vmatprep.subr.bf16.mxu0 0
    %712 = vmatpush1.bf16.msra.mxu0 %v563
    %713 = vmatprep.subr.bf16.mxu0 0
    %714 = vmatpush1.bf16.msra.mxu0 %v562
    %715 = vmatprep.subr.bf16.mxu0 0
    %716 = vmatpush1.bf16.msra.mxu0 %v561
    %717 = vmatprep.subr.bf16.mxu0 0
    %718 = vmatpush1.bf16.msra.mxu0 %v560
    %719 = vmatprep.subr.bf16.mxu0 0
    %720 = vmatpush1.bf16.msra.mxu0 %v559
    %721 = vmatprep.subr.bf16.mxu0 0
    %722 = vmatpush1.bf16.msra.mxu0 %v558
    %723 = vmatprep.subr.bf16.mxu0 0
    %724 = vmatpush1.bf16.msra.mxu0 %v557
    %725 = vmatprep.subr.bf16.mxu0 0
    %726 = vmatpush2.bf16.msra.mxu0 %v572
    %727 = vmatprep.subr.bf16.mxu0 0
    %728 = vmatpush2.bf16.msra.mxu0 %v571
    %729 = vmatprep.subr.bf16.mxu0 0
    %730 = vmatpush2.bf16.msra.mxu0 %v570
    %731 = vmatprep.subr.bf16.mxu0 0
    %732 = vmatpush2.bf16.msra.mxu0 %v569
    %733 = vmatprep.subr.bf16.mxu0 0
    %734 = vmatpush2.bf16.msra.mxu0 %v568
    %735 = vmatprep.subr.bf16.mxu0 0
    %736 = vmatpush2.bf16.msra.mxu0 %v567
    %737 = vmatprep.subr.bf16.mxu0 0
    %738 = vmatpush2.bf16.msra.mxu0 %v566
    %739 = vmatprep.subr.bf16.mxu0 0
    %740 = vmatpush2.bf16.msra.mxu0 %v565
    %741 = vmatprep.mubr.bf16.mxu0 %v136
    %742 = vmatmul.mubr.bf16.gmra.mxu0 %v135
    %v743 = vpop.f32.mrf.mxu0
    %v744 = vadd.f32 %v704, %v743
    %v745 = vpop.f32.mrf.mxu0
    %v746 = vpop.f32.mrf.mxu0
    %v747 = vpop.f32.mrf.mxu0
    %748 = vdwg.mxu0
    %749 = vmatprep.subr.bf16.mxu0 0
    %750 = vmatpush1.bf16.msra.mxu0 %v580
    %751 = vmatprep.subr.bf16.mxu0 0
    %752 = vmatpush1.bf16.msra.mxu0 %v579
    %753 = vmatprep.subr.bf16.mxu0 0
    %754 = vmatpush1.bf16.msra.mxu0 %v578
    %755 = vmatprep.subr.bf16.mxu0 0
    %756 = vmatpush1.bf16.msra.mxu0 %v577
    %757 = vmatprep.subr.bf16.mxu0 0
    %758 = vmatpush1.bf16.msra.mxu0 %v576
    %759 = vmatprep.subr.bf16.mxu0 0
    %760 = vmatpush1.bf16.msra.mxu0 %v575
    %761 = vmatprep.subr.bf16.mxu0 0
    %762 = vmatpush1.bf16.msra.mxu0 %v574
    %763 = vmatprep.subr.bf16.mxu0 0
    %764 = vmatpush1.bf16.msra.mxu0 %v573
    %765 = vmatprep.subr.bf16.mxu0 0
    %766 = vmatpush2.bf16.msra.mxu0 %v588
    %767 = vmatprep.subr.bf16.mxu0 0
    %768 = vmatpush2.bf16.msra.mxu0 %v587
    %769 = vmatprep.subr.bf16.mxu0 0
    %770 = vmatpush2.bf16.msra.mxu0 %v586
    %771 = vmatprep.subr.bf16.mxu0 0
    %772 = vmatpush2.bf16.msra.mxu0 %v585
    %773 = vmatprep.subr.bf16.mxu0 0
    %774 = vmatpush2.bf16.msra.mxu0 %v584
    %775 = vmatprep.subr.bf16.mxu0 0
    %776 = vmatpush2.bf16.msra.mxu0 %v583
    %777 = vmatprep.subr.bf16.mxu0 0
    %778 = vmatpush2.bf16.msra.mxu0 %v582
    %779 = vmatprep.subr.bf16.mxu0 0
    %780 = vmatpush2.bf16.msra.mxu0 %v581
    %781 = vmatprep.mubr.bf16.mxu0 %v138
    %782 = vmatmul.mubr.bf16.gmra.mxu0 %v137
    %v783 = vpop.f32.mrf.mxu0
    %v784 = vadd.f32 %v744, %v783
    %v785 = vpop.f32.mrf.mxu0
    %v786 = vpop.f32.mrf.mxu0
    %v787 = vpop.f32.mrf.mxu0
    %788 = vdwg.mxu0
    %789 = vmatprep.subr.bf16.mxu0 0
    %790 = vmatpush1.bf16.msra.mxu0 %v596
    %791 = vmatprep.subr.bf16.mxu0 0
    %792 = vmatpush1.bf16.msra.mxu0 %v595
    %793 = vmatprep.subr.bf16.mxu0 0
    %794 = vmatpush1.bf16.msra.mxu0 %v594
    %795 = vmatprep.subr.bf16.mxu0 0
    %796 = vmatpush1.bf16.msra.mxu0 %v593
    %797 = vmatprep.subr.bf16.mxu0 0
    %798 = vmatpush1.bf16.msra.mxu0 %v592
    %799 = vmatprep.subr.bf16.mxu0 0
    %800 = vmatpush1.bf16.msra.mxu0 %v591
    %801 = vmatprep.subr.bf16.mxu0 0
    %802 = vmatpush1.bf16.msra.mxu0 %v590
    %803 = vmatprep.subr.bf16.mxu0 0
    %804 = vmatpush1.bf16.msra.mxu0 %v589
    %805 = vmatprep.subr.bf16.mxu0 0
    %806 = vmatpush2.bf16.msra.mxu0 %v604
    %807 = vmatprep.subr.bf16.mxu0 0
    %808 = vmatpush2.bf16.msra.mxu0 %v603
    %809 = vmatprep.subr.bf16.mxu0 0
    %810 = vmatpush2.bf16.msra.mxu0 %v602
    %811 = vmatprep.subr.bf16.mxu0 0
    %812 = vmatpush2.bf16.msra.mxu0 %v601
    %813 = vmatprep.subr.bf16.mxu0 0
    %814 = vmatpush2.bf16.msra.mxu0 %v600
    %815 = vmatprep.subr.bf16.mxu0 0
    %816 = vmatpush2.bf16.msra.mxu0 %v599
    %817 = vmatprep.subr.bf16.mxu0 0
    %818 = vmatpush2.bf16.msra.mxu0 %v598
    %819 = vmatprep.subr.bf16.mxu0 0
    %820 = vmatpush2.bf16.msra.mxu0 %v597
    %821 = vmatprep.mubr.bf16.mxu0 %v140
    %822 = vmatmul.mubr.bf16.gmra.mxu0 %v139
    %v823 = vpop.f32.mrf.mxu0
    %v824 = vadd.f32 %v784, %v823
    %v825 = vpop.f32.mrf.mxu0
    %v826 = vpop.f32.mrf.mxu0
    %v827 = vpop.f32.mrf.mxu0
    %828 = vdwg.mxu0
    %829 = vmatprep.subr.bf16.mxu0 0
    %830 = vmatpush1.bf16.msra.mxu0 %v548
    %831 = vmatprep.subr.bf16.mxu0 0
    %832 = vmatpush1.bf16.msra.mxu0 %v547
    %833 = vmatprep.subr.bf16.mxu0 0
    %834 = vmatpush1.bf16.msra.mxu0 %v546
    %835 = vmatprep.subr.bf16.mxu0 0
    %836 = vmatpush1.bf16.msra.mxu0 %v545
    %837 = vmatprep.subr.bf16.mxu0 0
    %838 = vmatpush1.bf16.msra.mxu0 %v544
    %839 = vmatprep.subr.bf16.mxu0 0
    %840 = vmatpush1.bf16.msra.mxu0 %v543
    %841 = vmatprep.subr.bf16.mxu0 0
    %842 = vmatpush1.bf16.msra.mxu0 %v542
    %843 = vmatprep.subr.bf16.mxu0 0
    %844 = vmatpush1.bf16.msra.mxu0 %v541
    %845 = vmatprep.subr.bf16.mxu0 0
    %846 = vmatpush2.bf16.msra.mxu0 %v556
    %847 = vmatprep.subr.bf16.mxu0 0
    %848 = vmatpush2.bf16.msra.mxu0 %v555
    %849 = vmatprep.subr.bf16.mxu0 0
    %850 = vmatpush2.bf16.msra.mxu0 %v554
    %851 = vmatprep.subr.bf16.mxu0 0
    %852 = vmatpush2.bf16.msra.mxu0 %v553
    %853 = vmatprep.subr.bf16.mxu0 0
    %854 = vmatpush2.bf16.msra.mxu0 %v552
    %855 = vmatprep.subr.bf16.mxu0 0
    %856 = vmatpush2.bf16.msra.mxu0 %v551
    %857 = vmatprep.subr.bf16.mxu0 0
    %858 = vmatpush2.bf16.msra.mxu0 %v550
    %859 = vmatprep.subr.bf16.mxu0 0
    %860 = vmatpush2.bf16.msra.mxu0 %v549
    %861 = vmatprep.mubr.bf16.mxu0 %v150
    %862 = vmatmul.mubr.bf16.gmra.mxu0 %v149
    %v863 = vpop.f32.mrf.mxu0
    %v864 = vadd.f32 0.0, %v863
    %v865 = vpop.f32.mrf.mxu0
    %v866 = vpop.f32.mrf.mxu0
    %v867 = vpop.f32.mrf.mxu0
    %868 = vdwg.mxu0
    %869 = vmatprep.subr.bf16.mxu0 0
    %870 = vmatpush1.bf16.msra.mxu0 %v564
    %871 = vmatprep.subr.bf16.mxu0 0
    %872 = vmatpush1.bf16.msra.mxu0 %v563
    %873 = vmatprep.subr.bf16.mxu0 0
    %874 = vmatpush1.bf16.msra.mxu0 %v562
    %875 = vmatprep.subr.bf16.mxu0 0
    %876 = vmatpush1.bf16.msra.mxu0 %v561
    %877 = vmatprep.subr.bf16.mxu0 0
    %878 = vmatpush1.bf16.msra.mxu0 %v560
    %879 = vmatprep.subr.bf16.mxu0 0
    %880 = vmatpush1.bf16.msra.mxu0 %v559
    %881 = vmatprep.subr.bf16.mxu0 0
    %882 = vmatpush1.bf16.msra.mxu0 %v558
    %883 = vmatprep.subr.bf16.mxu0 0
    %884 = vmatpush1.bf16.msra.mxu0 %v557
    %885 = vmatprep.subr.bf16.mxu0 0
    %886 = vmatpush2.bf16.msra.mxu0 %v572
    %887 = vmatprep.subr.bf16.mxu0 0
    %888 = vmatpush2.bf16.msra.mxu0 %v571
    %889 = vmatprep.subr.bf16.mxu0 0
    %890 = vmatpush2.bf16.msra.mxu0 %v570
    %891 = vmatprep.subr.bf16.mxu0 0
    %892 = vmatpush2.bf16.msra.mxu0 %v569
    %893 = vmatprep.subr.bf16.mxu0 0
    %894 = vmatpush2.bf16.msra.mxu0 %v568
    %895 = vmatprep.subr.bf16.mxu0 0
    %896 = vmatpush2.bf16.msra.mxu0 %v567
    %897 = vmatprep.subr.bf16.mxu0 0
    %898 = vmatpush2.bf16.msra.mxu0 %v566
    %899 = vmatprep.subr.bf16.mxu0 0
    %900 = vmatpush2.bf16.msra.mxu0 %v565
    %901 = vmatprep.mubr.bf16.mxu0 %v152
    %902 = vmatmul.mubr.bf16.gmra.mxu0 %v151
    %v903 = vpop.f32.mrf.mxu0
    %v904 = vadd.f32 %v864, %v903
    %v905 = vpop.f32.mrf.mxu0
    %v906 = vpop.f32.mrf.mxu0
    %v907 = vpop.f32.mrf.mxu0
    %908 = vdwg.mxu0
    %909 = vmatprep.subr.bf16.mxu0 0
    %910 = vmatpush1.bf16.msra.mxu0 %v580
    %911 = vmatprep.subr.bf16.mxu0 0
    %912 = vmatpush1.bf16.msra.mxu0 %v579
    %913 = vmatprep.subr.bf16.mxu0 0
    %914 = vmatpush1.bf16.msra.mxu0 %v578
    %915 = vmatprep.subr.bf16.mxu0 0
    %916 = vmatpush1.bf16.msra.mxu0 %v577
    %917 = vmatprep.subr.bf16.mxu0 0
    %918 = vmatpush1.bf16.msra.mxu0 %v576
    %919 = vmatprep.subr.bf16.mxu0 0
    %920 = vmatpush1.bf16.msra.mxu0 %v575
    %921 = vmatprep.subr.bf16.mxu0 0
    %922 = vmatpush1.bf16.msra.mxu0 %v574
    %923 = vmatprep.subr.bf16.mxu0 0
    %924 = vmatpush1.bf16.msra.mxu0 %v573
    %925 = vmatprep.subr.bf16.mxu0 0
    %926 = vmatpush2.bf16.msra.mxu0 %v588
    %927 = vmatprep.subr.bf16.mxu0 0
    %928 = vmatpush2.bf16.msra.mxu0 %v587
    %929 = vmatprep.subr.bf16.mxu0 0
    %930 = vmatpush2.bf16.msra.mxu0 %v586
    %931 = vmatprep.subr.bf16.mxu0 0
    %932 = vmatpush2.bf16.msra.mxu0 %v585
    %933 = vmatprep.subr.bf16.mxu0 0
    %934 = vmatpush2.bf16.msra.mxu0 %v584
    %935 = vmatprep.subr.bf16.mxu0 0
    %936 = vmatpush2.bf16.msra.mxu0 %v583
    %937 = vmatprep.subr.bf16.mxu0 0
    %938 = vmatpush2.bf16.msra.mxu0 %v582
    %939 = vmatprep.subr.bf16.mxu0 0
    %940 = vmatpush2.bf16.msra.mxu0 %v581
    %941 = vmatprep.mubr.bf16.mxu0 %v154
    %942 = vmatmul.mubr.bf16.gmra.mxu0 %v153
    %v943 = vpop.f32.mrf.mxu0
    %v944 = vadd.f32 %v904, %v943
    %v945 = vpop.f32.mrf.mxu0
    %v946 = vpop.f32.mrf.mxu0
    %v947 = vpop.f32.mrf.mxu0
    %948 = vdwg.mxu0
    %949 = vmatprep.subr.bf16.mxu0 0
    %950 = vmatpush1.bf16.msra.mxu0 %v596
    %951 = vmatprep.subr.bf16.mxu0 0
    %952 = vmatpush1.bf16.msra.mxu0 %v595
    %953 = vmatprep.subr.bf16.mxu0 0
    %954 = vmatpush1.bf16.msra.mxu0 %v594
    %955 = vmatprep.subr.bf16.mxu0 0
    %956 = vmatpush1.bf16.msra.mxu0 %v593
    %957 = vmatprep.subr.bf16.mxu0 0
    %958 = vmatpush1.bf16.msra.mxu0 %v592
    %959 = vmatprep.subr.bf16.mxu0 0
    %960 = vmatpush1.bf16.msra.mxu0 %v591
    %961 = vmatprep.subr.bf16.mxu0 0
    %962 = vmatpush1.bf16.msra.mxu0 %v590
    %963 = vmatprep.subr.bf16.mxu0 0
    %964 = vmatpush1.bf16.msra.mxu0 %v589
    %965 = vmatprep.subr.bf16.mxu0 0
    %966 = vmatpush2.bf16.msra.mxu0 %v604
    %967 = vmatprep.subr.bf16.mxu0 0
    %968 = vmatpush2.bf16.msra.mxu0 %v603
    %969 = vmatprep.subr.bf16.mxu0 0
    %970 = vmatpush2.bf16.msra.mxu0 %v602
    %971 = vmatprep.subr.bf16.mxu0 0
    %972 = vmatpush2.bf16.msra.mxu0 %v601
    %973 = vmatprep.subr.bf16.mxu0 0
    %974 = vmatpush2.bf16.msra.mxu0 %v600
    %975 = vmatprep.subr.bf16.mxu0 0
    %976 = vmatpush2.bf16.msra.mxu0 %v599
    %977 = vmatprep.subr.bf16.mxu0 0
    %978 = vmatpush2.bf16.msra.mxu0 %v598
    %979 = vmatprep.subr.bf16.mxu0 0
    %980 = vmatpush2.bf16.msra.mxu0 %v597
    %981 = vmatprep.mubr.bf16.mxu0 %v156
    %982 = vmatmul.mubr.bf16.gmra.mxu0 %v155
    %v983 = vpop.f32.mrf.mxu0
    %v984 = vadd.f32 %v944, %v983
    %v985 = vpop.f32.mrf.mxu0
    %v986 = vpop.f32.mrf.mxu0
    %v987 = vpop.f32.mrf.mxu0
    %988 = vdwg.mxu0
    %v989 = vpack.c.bf16 %v984, %v824
    %v990 = vld [vmem:[#allocation8] sm:$0xff]
    %v991 = vld [vmem:[#allocation8 + $0x8] sm:$0xff]
    %v992 = vld [vmem:[#allocation8 + $0x10] sm:$0xff]
    %v993 = vld [vmem:[#allocation8 + $0x18] sm:$0xff]
    %v994 = vld [vmem:[#allocation8 + $0x20] sm:$0xff]
    %v995 = vld [vmem:[#allocation8 + $0x28] sm:$0xff]
    %v996 = vld [vmem:[#allocation8 + $0x30] sm:$0xff]
    %v997 = vld [vmem:[#allocation8 + $0x38] sm:$0xff]
    %v998 = vld [vmem:[#allocation8 + $0x40] sm:$0xff]
    %v999 = vld [vmem:[#allocation8 + $0x48] sm:$0xff]
    %v1000 = vld [vmem:[#allocation8 + $0x50] sm:$0xff]
    %v1001 = vld [vmem:[#allocation8 + $0x58] sm:$0xff]
    %v1002 = vld [vmem:[#allocation8 + $0x60] sm:$0xff]
    %v1003 = vld [vmem:[#allocation8 + $0x68] sm:$0xff]
    %v1004 = vld [vmem:[#allocation8 + $0x70] sm:$0xff]
    %v1005 = vld [vmem:[#allocation8 + $0x78] sm:$0xff]
    %v1006 = vld [vmem:[#allocation8 + $0x80] sm:$0xff]
    %v1007 = vld [vmem:[#allocation8 + $0x88] sm:$0xff]
    %v1008 = vld [vmem:[#allocation8 + $0x90] sm:$0xff]
    %v1009 = vld [vmem:[#allocation8 + $0x98] sm:$0xff]
    %v1010 = vld [vmem:[#allocation8 + $0xa0] sm:$0xff]
    %v1011 = vld [vmem:[#allocation8 + $0xa8] sm:$0xff]
    %v1012 = vld [vmem:[#allocation8 + $0xb0] sm:$0xff]
    %v1013 = vld [vmem:[#allocation8 + $0xb8] sm:$0xff]
    %v1014 = vld [vmem:[#allocation8 + $0xc0] sm:$0xff]
    %v1015 = vld [vmem:[#allocation8 + $0xc8] sm:$0xff]
    %v1016 = vld [vmem:[#allocation8 + $0xd0] sm:$0xff]
    %v1017 = vld [vmem:[#allocation8 + $0xd8] sm:$0xff]
    %v1018 = vld [vmem:[#allocation8 + $0xe0] sm:$0xff]
    %v1019 = vld [vmem:[#allocation8 + $0xe8] sm:$0xff]
    %v1020 = vld [vmem:[#allocation8 + $0xf0] sm:$0xff]
    %v1021 = vld [vmem:[#allocation8 + $0xf8] sm:$0xff]
    %v1022 = vld [vmem:[#allocation8 + $0x100] sm:$0xff]
    %v1023 = vld [vmem:[#allocation8 + $0x108] sm:$0xff]
    %v1024 = vld [vmem:[#allocation8 + $0x110] sm:$0xff]
    %v1025 = vld [vmem:[#allocation8 + $0x118] sm:$0xff]
    %v1026 = vld [vmem:[#allocation8 + $0x120] sm:$0xff]
    %v1027 = vld [vmem:[#allocation8 + $0x128] sm:$0xff]
    %v1028 = vld [vmem:[#allocation8 + $0x130] sm:$0xff]
    %v1029 = vld [vmem:[#allocation8 + $0x138] sm:$0xff]
    %v1030 = vld [vmem:[#allocation8 + $0x140] sm:$0xff]
    %v1031 = vld [vmem:[#allocation8 + $0x148] sm:$0xff]
    %v1032 = vld [vmem:[#allocation8 + $0x150] sm:$0xff]
    %v1033 = vld [vmem:[#allocation8 + $0x158] sm:$0xff]
    %v1034 = vld [vmem:[#allocation8 + $0x160] sm:$0xff]
    %v1035 = vld [vmem:[#allocation8 + $0x168] sm:$0xff]
    %v1036 = vld [vmem:[#allocation8 + $0x170] sm:$0xff]
    %v1037 = vld [vmem:[#allocation8 + $0x178] sm:$0xff]
    %v1038 = vld [vmem:[#allocation8 + $0x180] sm:$0xff]
    %v1039 = vld [vmem:[#allocation8 + $0x188] sm:$0xff]
    %v1040 = vld [vmem:[#allocation8 + $0x190] sm:$0xff]
    %v1041 = vld [vmem:[#allocation8 + $0x198] sm:$0xff]
    %v1042 = vld [vmem:[#allocation8 + $0x1a0] sm:$0xff]
    %v1043 = vld [vmem:[#allocation8 + $0x1a8] sm:$0xff]
    %v1044 = vld [vmem:[#allocation8 + $0x1b0] sm:$0xff]
    %v1045 = vld [vmem:[#allocation8 + $0x1b8] sm:$0xff]
    %v1046 = vld [vmem:[#allocation8 + $0x1c0] sm:$0xff]
    %v1047 = vld [vmem:[#allocation8 + $0x1c8] sm:$0xff]
    %v1048 = vld [vmem:[#allocation8 + $0x1d0] sm:$0xff]
    %v1049 = vld [vmem:[#allocation8 + $0x1d8] sm:$0xff]
    %v1050 = vld [vmem:[#allocation8 + $0x1e0] sm:$0xff]
    %v1051 = vld [vmem:[#allocation8 + $0x1e8] sm:$0xff]
    %v1052 = vld [vmem:[#allocation8 + $0x1f0] sm:$0xff]
    %v1053 = vld [vmem:[#allocation8 + $0x1f8] sm:$0xff]
    %v1118 = vunpack.c.l.b16 %v990
    %v1119 = vunpack.c.h.b16 %v990
    %v1120 = vunpack.c.l.b16 %v991
    %v1121 = vunpack.c.h.b16 %v991
    %v1122 = vunpack.c.l.b16 %v992
    %v1123 = vunpack.c.h.b16 %v992
    %v1124 = vunpack.c.l.b16 %v993
    %v1125 = vunpack.c.h.b16 %v993
    %v1126 = vunpack.c.l.b16 %v994
    %v1127 = vunpack.c.h.b16 %v994
    %v1128 = vunpack.c.l.b16 %v995
    %v1129 = vunpack.c.h.b16 %v995
    %v1130 = vunpack.c.l.b16 %v996
    %v1131 = vunpack.c.h.b16 %v996
    %v1132 = vunpack.c.l.b16 %v997
    %v1133 = vunpack.c.h.b16 %v997
    %v1134 = vunpack.c.l.b16 %v998
    %v1135 = vunpack.c.h.b16 %v998
    %v1136 = vunpack.c.l.b16 %v999
    %v1137 = vunpack.c.h.b16 %v999
    %v1138 = vunpack.c.l.b16 %v1000
    %v1139 = vunpack.c.h.b16 %v1000
    %v1140 = vunpack.c.l.b16 %v1001
    %v1141 = vunpack.c.h.b16 %v1001
    %v1142 = vunpack.c.l.b16 %v1002
    %v1143 = vunpack.c.h.b16 %v1002
    %v1144 = vunpack.c.l.b16 %v1003
    %v1145 = vunpack.c.h.b16 %v1003
    %v1146 = vunpack.c.l.b16 %v1004
    %v1147 = vunpack.c.h.b16 %v1004
    %v1148 = vunpack.c.l.b16 %v1005
    %v1149 = vunpack.c.h.b16 %v1005
    %v1150 = vunpack.c.l.b16 %v1006
    %v1151 = vunpack.c.h.b16 %v1006
    %v1152 = vunpack.c.l.b16 %v1007
    %v1153 = vunpack.c.h.b16 %v1007
    %v1154 = vunpack.c.l.b16 %v1008
    %v1155 = vunpack.c.h.b16 %v1008
    %v1156 = vunpack.c.l.b16 %v1009
    %v1157 = vunpack.c.h.b16 %v1009
    %v1158 = vunpack.c.l.b16 %v1010
    %v1159 = vunpack.c.h.b16 %v1010
    %v1160 = vunpack.c.l.b16 %v1011
    %v1161 = vunpack.c.h.b16 %v1011
    %v1162 = vunpack.c.l.b16 %v1012
    %v1163 = vunpack.c.h.b16 %v1012
    %v1164 = vunpack.c.l.b16 %v1013
    %v1165 = vunpack.c.h.b16 %v1013
    %v1166 = vunpack.c.l.b16 %v1014
    %v1167 = vunpack.c.h.b16 %v1014
    %v1168 = vunpack.c.l.b16 %v1015
    %v1169 = vunpack.c.h.b16 %v1015
    %v1170 = vunpack.c.l.b16 %v1016
    %v1171 = vunpack.c.h.b16 %v1016
    %v1172 = vunpack.c.l.b16 %v1017
    %v1173 = vunpack.c.h.b16 %v1017
    %v1174 = vunpack.c.l.b16 %v1018
    %v1175 = vunpack.c.h.b16 %v1018
    %v1176 = vunpack.c.l.b16 %v1019
    %v1177 = vunpack.c.h.b16 %v1019
    %v1178 = vunpack.c.l.b16 %v1020
    %v1179 = vunpack.c.h.b16 %v1020
    %v1180 = vunpack.c.l.b16 %v1021
    %v1181 = vunpack.c.h.b16 %v1021
    %v1182 = vunpack.c.l.b16 %v1022
    %v1183 = vunpack.c.h.b16 %v1022
    %v1184 = vunpack.c.l.b16 %v1023
    %v1185 = vunpack.c.h.b16 %v1023
    %v1186 = vunpack.c.l.b16 %v1024
    %v1187 = vunpack.c.h.b16 %v1024
    %v1188 = vunpack.c.l.b16 %v1025
    %v1189 = vunpack.c.h.b16 %v1025
    %v1190 = vunpack.c.l.b16 %v1026
    %v1191 = vunpack.c.h.b16 %v1026
    %v1192 = vunpack.c.l.b16 %v1027
    %v1193 = vunpack.c.h.b16 %v1027
    %v1194 = vunpack.c.l.b16 %v1028
    %v1195 = vunpack.c.h.b16 %v1028
    %v1196 = vunpack.c.l.b16 %v1029
    %v1197 = vunpack.c.h.b16 %v1029
    %v1198 = vunpack.c.l.b16 %v1030
    %v1199 = vunpack.c.h.b16 %v1030
    %v1200 = vunpack.c.l.b16 %v1031
    %v1201 = vunpack.c.h.b16 %v1031
    %v1202 = vunpack.c.l.b16 %v1032
    %v1203 = vunpack.c.h.b16 %v1032
    %v1204 = vunpack.c.l.b16 %v1033
    %v1205 = vunpack.c.h.b16 %v1033
    %v1206 = vunpack.c.l.b16 %v1034
    %v1207 = vunpack.c.h.b16 %v1034
    %v1208 = vunpack.c.l.b16 %v1035
    %v1209 = vunpack.c.h.b16 %v1035
    %v1210 = vunpack.c.l.b16 %v1036
    %v1211 = vunpack.c.h.b16 %v1036
    %v1212 = vunpack.c.l.b16 %v1037
    %v1213 = vunpack.c.h.b16 %v1037
    %v1214 = vunpack.c.l.b16 %v1038
    %v1215 = vunpack.c.h.b16 %v1038
    %v1216 = vunpack.c.l.b16 %v1039
    %v1217 = vunpack.c.h.b16 %v1039
    %v1218 = vunpack.c.l.b16 %v1040
    %v1219 = vunpack.c.h.b16 %v1040
    %v1220 = vunpack.c.l.b16 %v1041
    %v1221 = vunpack.c.h.b16 %v1041
    %v1222 = vunpack.c.l.b16 %v1042
    %v1223 = vunpack.c.h.b16 %v1042
    %v1224 = vunpack.c.l.b16 %v1043
    %v1225 = vunpack.c.h.b16 %v1043
    %v1226 = vunpack.c.l.b16 %v1044
    %v1227 = vunpack.c.h.b16 %v1044
    %v1228 = vunpack.c.l.b16 %v1045
    %v1229 = vunpack.c.h.b16 %v1045
    %v1230 = vunpack.c.l.b16 %v1046
    %v1231 = vunpack.c.h.b16 %v1046
    %v1232 = vunpack.c.l.b16 %v1047
    %v1233 = vunpack.c.h.b16 %v1047
    %v1234 = vunpack.c.l.b16 %v1048
    %v1235 = vunpack.c.h.b16 %v1048
    %v1236 = vunpack.c.l.b16 %v1049
    %v1237 = vunpack.c.h.b16 %v1049
    %v1238 = vunpack.c.l.b16 %v1050
    %v1239 = vunpack.c.h.b16 %v1050
    %v1240 = vunpack.c.l.b16 %v1051
    %v1241 = vunpack.c.h.b16 %v1051
    %v1242 = vunpack.c.l.b16 %v1052
    %v1243 = vunpack.c.h.b16 %v1052
    %v1244 = vunpack.c.l.b16 %v1053
    %v1245 = vunpack.c.h.b16 %v1053
    %v1246 = vpack.c.b16 %v1126, %v1118
    %v1247 = vpack.c.b16 %v1127, %v1119
    %v1248 = vpack.c.b16 %v1128, %v1120
    %v1249 = vpack.c.b16 %v1129, %v1121
    %v1250 = vpack.c.b16 %v1130, %v1122
    %v1251 = vpack.c.b16 %v1131, %v1123
    %v1252 = vpack.c.b16 %v1132, %v1124
    %v1253 = vpack.c.b16 %v1133, %v1125
    %v1254 = vpack.c.b16 %v1142, %v1134
    %v1255 = vpack.c.b16 %v1143, %v1135
    %v1256 = vpack.c.b16 %v1144, %v1136
    %v1257 = vpack.c.b16 %v1145, %v1137
    %v1258 = vpack.c.b16 %v1146, %v1138
    %v1259 = vpack.c.b16 %v1147, %v1139
    %v1260 = vpack.c.b16 %v1148, %v1140
    %v1261 = vpack.c.b16 %v1149, %v1141
    %v1262 = vpack.c.b16 %v1158, %v1150
    %v1263 = vpack.c.b16 %v1159, %v1151
    %v1264 = vpack.c.b16 %v1160, %v1152
    %v1265 = vpack.c.b16 %v1161, %v1153
    %v1266 = vpack.c.b16 %v1162, %v1154
    %v1267 = vpack.c.b16 %v1163, %v1155
    %v1268 = vpack.c.b16 %v1164, %v1156
    %v1269 = vpack.c.b16 %v1165, %v1157
    %v1270 = vpack.c.b16 %v1174, %v1166
    %v1271 = vpack.c.b16 %v1175, %v1167
    %v1272 = vpack.c.b16 %v1176, %v1168
    %v1273 = vpack.c.b16 %v1177, %v1169
    %v1274 = vpack.c.b16 %v1178, %v1170
    %v1275 = vpack.c.b16 %v1179, %v1171
    %v1276 = vpack.c.b16 %v1180, %v1172
    %v1277 = vpack.c.b16 %v1181, %v1173
    %v1278 = vpack.c.b16 %v1190, %v1182
    %v1279 = vpack.c.b16 %v1191, %v1183
    %v1280 = vpack.c.b16 %v1192, %v1184
    %v1281 = vpack.c.b16 %v1193, %v1185
    %v1282 = vpack.c.b16 %v1194, %v1186
    %v1283 = vpack.c.b16 %v1195, %v1187
    %v1284 = vpack.c.b16 %v1196, %v1188
    %v1285 = vpack.c.b16 %v1197, %v1189
    %v1286 = vpack.c.b16 %v1206, %v1198
    %v1287 = vpack.c.b16 %v1207, %v1199
    %v1288 = vpack.c.b16 %v1208, %v1200
    %v1289 = vpack.c.b16 %v1209, %v1201
    %v1290 = vpack.c.b16 %v1210, %v1202
    %v1291 = vpack.c.b16 %v1211, %v1203
    %v1292 = vpack.c.b16 %v1212, %v1204
    %v1293 = vpack.c.b16 %v1213, %v1205
    %v1294 = vpack.c.b16 %v1222, %v1214
    %v1295 = vpack.c.b16 %v1223, %v1215
    %v1296 = vpack.c.b16 %v1224, %v1216
    %v1297 = vpack.c.b16 %v1225, %v1217
    %v1298 = vpack.c.b16 %v1226, %v1218
    %v1299 = vpack.c.b16 %v1227, %v1219
    %v1300 = vpack.c.b16 %v1228, %v1220
    %v1301 = vpack.c.b16 %v1229, %v1221
    %v1302 = vpack.c.b16 %v1238, %v1230
    %v1303 = vpack.c.b16 %v1239, %v1231
    %v1304 = vpack.c.b16 %v1240, %v1232
    %v1305 = vpack.c.b16 %v1241, %v1233
    %v1306 = vpack.c.b16 %v1242, %v1234
    %v1307 = vpack.c.b16 %v1243, %v1235
    %v1308 = vpack.c.b16 %v1244, %v1236
    %v1309 = vpack.c.b16 %v1245, %v1237
    %1374 = vmatprep.subr.bf16.mxu0 %v1303
    %1375 = vmatpush1.bf16.msra.mxu0 %v1302
    %1376 = vmatprep.subr.bf16.mxu0 %v1295
    %1377 = vmatpush1.bf16.msra.mxu0 %v1294
    %1378 = vmatprep.subr.bf16.mxu0 %v1287
    %1379 = vmatpush1.bf16.msra.mxu0 %v1286
    %1380 = vmatprep.subr.bf16.mxu0 %v1279
    %1381 = vmatpush1.bf16.msra.mxu0 %v1278
    %1382 = vmatprep.subr.bf16.mxu0 %v1271
    %1383 = vmatpush1.bf16.msra.mxu0 %v1270
    %1384 = vmatprep.subr.bf16.mxu0 %v1263
    %1385 = vmatpush1.bf16.msra.mxu0 %v1262
    %1386 = vmatprep.subr.bf16.mxu0 %v1255
    %1387 = vmatpush1.bf16.msra.mxu0 %v1254
    %1388 = vmatprep.subr.bf16.mxu0 %v1247
    %1389 = vmatpush1.bf16.msra.mxu0 %v1246
    %1390 = vmatprep.subr.bf16.mxu0 0
    %1391 = vmatpush2.bf16.msra.mxu0 0
    %1392 = vmatprep.subr.bf16.mxu0 0
    %1393 = vmatpush2.bf16.msra.mxu0 0
    %1394 = vmatprep.subr.bf16.mxu0 0
    %1395 = vmatpush2.bf16.msra.mxu0 0
    %1396 = vmatprep.subr.bf16.mxu0 0
    %1397 = vmatpush2.bf16.msra.mxu0 0
    %1398 = vmatprep.subr.bf16.mxu0 0
    %1399 = vmatpush2.bf16.msra.mxu0 0
    %1400 = vmatprep.subr.bf16.mxu0 0
    %1401 = vmatpush2.bf16.msra.mxu0 0
    %1402 = vmatprep.subr.bf16.mxu0 0
    %1403 = vmatpush2.bf16.msra.mxu0 0
    %1404 = vmatprep.subr.bf16.mxu0 0
    %1405 = vmatpush2.bf16.msra.mxu0 0
    %1406 = vmatprep.mubr.bf16.mxu0 0
    %1407 = vmatmul.mubr.bf16.gmra.mxu0 %v989
    %v1408 = vpop.f32.mrf.mxu0
    %v1409 = vadd.f32 0.0, %v1408
    %v1410 = vpop.f32.mrf.mxu0
    %v1411 = vadd.f32 0.0, %v1410
    %v1412 = vpop.f32.mrf.mxu0
    %v1413 = vadd.f32 0.0, %v1412
    %v1414 = vpop.f32.mrf.mxu0
    %v1415 = vadd.f32 0.0, %v1414
    %1416 = vdwg.mxu0
    %1417 = vmatprep.subr.bf16.mxu0 %v1305
    %1418 = vmatpush1.bf16.msra.mxu0 %v1304
    %1419 = vmatprep.subr.bf16.mxu0 %v1297
    %1420 = vmatpush1.bf16.msra.mxu0 %v1296
    %1421 = vmatprep.subr.bf16.mxu0 %v1289
    %1422 = vmatpush1.bf16.msra.mxu0 %v1288
    %1423 = vmatprep.subr.bf16.mxu0 %v1281
    %1424 = vmatpush1.bf16.msra.mxu0 %v1280
    %1425 = vmatprep.subr.bf16.mxu0 %v1273
    %1426 = vmatpush1.bf16.msra.mxu0 %v1272
    %1427 = vmatprep.subr.bf16.mxu0 %v1265
    %1428 = vmatpush1.bf16.msra.mxu0 %v1264
    %1429 = vmatprep.subr.bf16.mxu0 %v1257
    %1430 = vmatpush1.bf16.msra.mxu0 %v1256
    %1431 = vmatprep.subr.bf16.mxu0 %v1249
    %1432 = vmatpush1.bf16.msra.mxu0 %v1248
    %1433 = vmatprep.subr.bf16.mxu0 0
    %1434 = vmatpush2.bf16.msra.mxu0 0
    %1435 = vmatprep.subr.bf16.mxu0 0
    %1436 = vmatpush2.bf16.msra.mxu0 0
    %1437 = vmatprep.subr.bf16.mxu0 0
    %1438 = vmatpush2.bf16.msra.mxu0 0
    %1439 = vmatprep.subr.bf16.mxu0 0
    %1440 = vmatpush2.bf16.msra.mxu0 0
    %1441 = vmatprep.subr.bf16.mxu0 0
    %1442 = vmatpush2.bf16.msra.mxu0 0
    %1443 = vmatprep.subr.bf16.mxu0 0
    %1444 = vmatpush2.bf16.msra.mxu0 0
    %1445 = vmatprep.subr.bf16.mxu0 0
    %1446 = vmatpush2.bf16.msra.mxu0 0
    %1447 = vmatprep.subr.bf16.mxu0 0
    %1448 = vmatpush2.bf16.msra.mxu0 0
    %1449 = vmatprep.mubr.bf16.mxu0 0
    %1450 = vmatmul.mubr.bf16.gmra.mxu0 %v989
    %v1451 = vpop.f32.mrf.mxu0
    %v1452 = vadd.f32 0.0, %v1451
    %v1453 = vpop.f32.mrf.mxu0
    %v1454 = vadd.f32 0.0, %v1453
    %v1455 = vpop.f32.mrf.mxu0
    %v1456 = vadd.f32 0.0, %v1455
    %v1457 = vpop.f32.mrf.mxu0
    %v1458 = vadd.f32 0.0, %v1457
    %1459 = vdwg.mxu0
    %1460 = vmatprep.subr.bf16.mxu0 %v1307
    %1461 = vmatpush1.bf16.msra.mxu0 %v1306
    %1462 = vmatprep.subr.bf16.mxu0 %v1299
    %1463 = vmatpush1.bf16.msra.mxu0 %v1298
    %1464 = vmatprep.subr.bf16.mxu0 %v1291
    %1465 = vmatpush1.bf16.msra.mxu0 %v1290
    %1466 = vmatprep.subr.bf16.mxu0 %v1283
    %1467 = vmatpush1.bf16.msra.mxu0 %v1282
    %1468 = vmatprep.subr.bf16.mxu0 %v1275
    %1469 = vmatpush1.bf16.msra.mxu0 %v1274
    %1470 = vmatprep.subr.bf16.mxu0 %v1267
    %1471 = vmatpush1.bf16.msra.mxu0 %v1266
    %1472 = vmatprep.subr.bf16.mxu0 %v1259
    %1473 = vmatpush1.bf16.msra.mxu0 %v1258
    %1474 = vmatprep.subr.bf16.mxu0 %v1251
    %1475 = vmatpush1.bf16.msra.mxu0 %v1250
    %1476 = vmatprep.subr.bf16.mxu0 0
    %1477 = vmatpush2.bf16.msra.mxu0 0
    %1478 = vmatprep.subr.bf16.mxu0 0
    %1479 = vmatpush2.bf16.msra.mxu0 0
    %1480 = vmatprep.subr.bf16.mxu0 0
    %1481 = vmatpush2.bf16.msra.mxu0 0
    %1482 = vmatprep.subr.bf16.mxu0 0
    %1483 = vmatpush2.bf16.msra.mxu0 0
    %1484 = vmatprep.subr.bf16.mxu0 0
    %1485 = vmatpush2.bf16.msra.mxu0 0
    %1486 = vmatprep.subr.bf16.mxu0 0
    %1487 = vmatpush2.bf16.msra.mxu0 0
    %1488 = vmatprep.subr.bf16.mxu0 0
    %1489 = vmatpush2.bf16.msra.mxu0 0
    %1490 = vmatprep.subr.bf16.mxu0 0
    %1491 = vmatpush2.bf16.msra.mxu0 0
    %1492 = vmatprep.mubr.bf16.mxu0 0
    %1493 = vmatmul.mubr.bf16.gmra.mxu0 %v989
    %v1494 = vpop.f32.mrf.mxu0
    %v1495 = vadd.f32 0.0, %v1494
    %v1496 = vpop.f32.mrf.mxu0
    %v1497 = vadd.f32 0.0, %v1496
    %v1498 = vpop.f32.mrf.mxu0
    %v1499 = vadd.f32 0.0, %v1498
    %v1500 = vpop.f32.mrf.mxu0
    %v1501 = vadd.f32 0.0, %v1500
    %1502 = vdwg.mxu0
    %1503 = vmatprep.subr.bf16.mxu0 %v1309
    %1504 = vmatpush1.bf16.msra.mxu0 %v1308
    %1505 = vmatprep.subr.bf16.mxu0 %v1301
    %1506 = vmatpush1.bf16.msra.mxu0 %v1300
    %1507 = vmatprep.subr.bf16.mxu0 %v1293
    %1508 = vmatpush1.bf16.msra.mxu0 %v1292
    %1509 = vmatprep.subr.bf16.mxu0 %v1285
    %1510 = vmatpush1.bf16.msra.mxu0 %v1284
    %1511 = vmatprep.subr.bf16.mxu0 %v1277
    %1512 = vmatpush1.bf16.msra.mxu0 %v1276
    %1513 = vmatprep.subr.bf16.mxu0 %v1269
    %1514 = vmatpush1.bf16.msra.mxu0 %v1268
    %1515 = vmatprep.subr.bf16.mxu0 %v1261
    %1516 = vmatpush1.bf16.msra.mxu0 %v1260
    %1517 = vmatprep.subr.bf16.mxu0 %v1253
    %1518 = vmatpush1.bf16.msra.mxu0 %v1252
    %1519 = vmatprep.subr.bf16.mxu0 0
    %1520 = vmatpush2.bf16.msra.mxu0 0
    %1521 = vmatprep.subr.bf16.mxu0 0
    %1522 = vmatpush2.bf16.msra.mxu0 0
    %1523 = vmatprep.subr.bf16.mxu0 0
    %1524 = vmatpush2.bf16.msra.mxu0 0
    %1525 = vmatprep.subr.bf16.mxu0 0
    %1526 = vmatpush2.bf16.msra.mxu0 0
    %1527 = vmatprep.subr.bf16.mxu0 0
    %1528 = vmatpush2.bf16.msra.mxu0 0
    %1529 = vmatprep.subr.bf16.mxu0 0
    %1530 = vmatpush2.bf16.msra.mxu0 0
    %1531 = vmatprep.subr.bf16.mxu0 0
    %1532 = vmatpush2.bf16.msra.mxu0 0
    %1533 = vmatprep.subr.bf16.mxu0 0
    %1534 = vmatpush2.bf16.msra.mxu0 0
    %1535 = vmatprep.mubr.bf16.mxu0 0
    %1536 = vmatmul.mubr.bf16.gmra.mxu0 %v989
    %v1537 = vpop.f32.mrf.mxu0
    %v1538 = vadd.f32 0.0, %v1537
    %v1539 = vpop.f32.mrf.mxu0
    %v1540 = vadd.f32 0.0, %v1539
    %v1541 = vpop.f32.mrf.mxu0
    %v1542 = vadd.f32 0.0, %v1541
    %v1543 = vpop.f32.mrf.mxu0
    %v1544 = vadd.f32 0.0, %v1543
    %1545 = vdwg.mxu0
    %v1546 = vmax.f32 %v1409, 0.0
    %v1547 = vmax.f32 %v1411, 0.0
    %v1548 = vmax.f32 %v1452, 0.0
    %v1549 = vmax.f32 %v1454, 0.0
    %v1550 = vmax.f32 %v1495, 0.0
    %v1551 = vmax.f32 %v1497, 0.0
    %v1552 = vmax.f32 %v1538, 0.0
    %v1553 = vmax.f32 %v1540, 0.0
    %v1554 = vmax.f32 %v1413, 0.0
    %v1555 = vmax.f32 %v1415, 0.0
    %v1556 = vmax.f32 %v1456, 0.0
    %v1557 = vmax.f32 %v1458, 0.0
    %v1558 = vmax.f32 %v1499, 0.0
    %v1559 = vmax.f32 %v1501, 0.0
    %v1560 = vmax.f32 %v1542, 0.0
    %v1561 = vmax.f32 %v1544, 0.0
    %v1562 = vpack.c.bf16 %v1546, %v1546
    %v1563 = vpack.c.bf16 %v1547, %v1547
    %v1564 = vpack.c.bf16 %v1548, %v1548
    %v1565 = vpack.c.bf16 %v1549, %v1549
    %v1566 = vpack.c.bf16 %v1550, %v1550
    %v1567 = vpack.c.bf16 %v1551, %v1551
    %v1568 = vpack.c.bf16 %v1552, %v1552
    %v1569 = vpack.c.bf16 %v1553, %v1553
    %v1570 = vpack.c.bf16 %v1554, %v1554
    %v1571 = vpack.c.bf16 %v1555, %v1555
    %v1572 = vpack.c.bf16 %v1556, %v1556
    %v1573 = vpack.c.bf16 %v1557, %v1557
    %v1574 = vpack.c.bf16 %v1558, %v1558
    %v1575 = vpack.c.bf16 %v1559, %v1559
    %v1576 = vpack.c.bf16 %v1560, %v1560
    %v1577 = vpack.c.bf16 %v1561, %v1561
    %v1578 = vld [vmem:[#allocation10] sm:$0xff]
    %v1579 = vld [vmem:[#allocation10 + $0x8] sm:$0xff]
    %v1580 = vld [vmem:[#allocation10 + $0x10] sm:$0xff]
    %v1581 = vld [vmem:[#allocation10 + $0x18] sm:$0xff]
    %v1582 = vld [vmem:[#allocation10 + $0x20] sm:$0xff]
    %v1583 = vld [vmem:[#allocation10 + $0x28] sm:$0xff]
    %v1584 = vld [vmem:[#allocation10 + $0x30] sm:$0xff]
    %v1585 = vld [vmem:[#allocation10 + $0x38] sm:$0xff]
    %v1586 = vld [vmem:[#allocation10 + $0x40] sm:$0xff]
    %v1587 = vld [vmem:[#allocation10 + $0x48] sm:$0xff]
    %v1588 = vld [vmem:[#allocation10 + $0x50] sm:$0xff]
    %v1589 = vld [vmem:[#allocation10 + $0x58] sm:$0xff]
    %v1590 = vld [vmem:[#allocation10 + $0x60] sm:$0xff]
    %v1591 = vld [vmem:[#allocation10 + $0x68] sm:$0xff]
    %v1592 = vld [vmem:[#allocation10 + $0x70] sm:$0xff]
    %v1593 = vld [vmem:[#allocation10 + $0x78] sm:$0xff]
    %v1594 = vld [vmem:[#allocation10 + $0x80] sm:$0xff]
    %v1595 = vld [vmem:[#allocation10 + $0x88] sm:$0xff]
    %v1596 = vld [vmem:[#allocation10 + $0x90] sm:$0xff]
    %v1597 = vld [vmem:[#allocation10 + $0x98] sm:$0xff]
    %v1598 = vld [vmem:[#allocation10 + $0xa0] sm:$0xff]
    %v1599 = vld [vmem:[#allocation10 + $0xa8] sm:$0xff]
    %v1600 = vld [vmem:[#allocation10 + $0xb0] sm:$0xff]
    %v1601 = vld [vmem:[#allocation10 + $0xb8] sm:$0xff]
    %v1602 = vld [vmem:[#allocation10 + $0xc0] sm:$0xff]
    %v1603 = vld [vmem:[#allocation10 + $0xc8] sm:$0xff]
    %v1604 = vld [vmem:[#allocation10 + $0xd0] sm:$0xff]
    %v1605 = vld [vmem:[#allocation10 + $0xd8] sm:$0xff]
    %v1606 = vld [vmem:[#allocation10 + $0xe0] sm:$0xff]
    %v1607 = vld [vmem:[#allocation10 + $0xe8] sm:$0xff]
    %v1608 = vld [vmem:[#allocation10 + $0xf0] sm:$0xff]
    %v1609 = vld [vmem:[#allocation10 + $0xf8] sm:$0xff]
    %v1610 = vld [vmem:[#allocation10 + $0x100] sm:$0xff]
    %v1611 = vld [vmem:[#allocation10 + $0x108] sm:$0xff]
    %v1612 = vld [vmem:[#allocation10 + $0x110] sm:$0xff]
    %v1613 = vld [vmem:[#allocation10 + $0x118] sm:$0xff]
    %v1614 = vld [vmem:[#allocation10 + $0x120] sm:$0xff]
    %v1615 = vld [vmem:[#allocation10 + $0x128] sm:$0xff]
    %v1616 = vld [vmem:[#allocation10 + $0x130] sm:$0xff]
    %v1617 = vld [vmem:[#allocation10 + $0x138] sm:$0xff]
    %v1618 = vld [vmem:[#allocation10 + $0x140] sm:$0xff]
    %v1619 = vld [vmem:[#allocation10 + $0x148] sm:$0xff]
    %v1620 = vld [vmem:[#allocation10 + $0x150] sm:$0xff]
    %v1621 = vld [vmem:[#allocation10 + $0x158] sm:$0xff]
    %v1622 = vld [vmem:[#allocation10 + $0x160] sm:$0xff]
    %v1623 = vld [vmem:[#allocation10 + $0x168] sm:$0xff]
    %v1624 = vld [vmem:[#allocation10 + $0x170] sm:$0xff]
    %v1625 = vld [vmem:[#allocation10 + $0x178] sm:$0xff]
    %v1626 = vld [vmem:[#allocation10 + $0x180] sm:$0xff]
    %v1627 = vld [vmem:[#allocation10 + $0x188] sm:$0xff]
    %v1628 = vld [vmem:[#allocation10 + $0x190] sm:$0xff]
    %v1629 = vld [vmem:[#allocation10 + $0x198] sm:$0xff]
    %v1630 = vld [vmem:[#allocation10 + $0x1a0] sm:$0xff]
    %v1631 = vld [vmem:[#allocation10 + $0x1a8] sm:$0xff]
    %v1632 = vld [vmem:[#allocation10 + $0x1b0] sm:$0xff]
    %v1633 = vld [vmem:[#allocation10 + $0x1b8] sm:$0xff]
    %v1634 = vld [vmem:[#allocation10 + $0x1c0] sm:$0xff]
    %v1635 = vld [vmem:[#allocation10 + $0x1c8] sm:$0xff]
    %v1636 = vld [vmem:[#allocation10 + $0x1d0] sm:$0xff]
    %v1637 = vld [vmem:[#allocation10 + $0x1d8] sm:$0xff]
    %v1638 = vld [vmem:[#allocation10 + $0x1e0] sm:$0xff]
    %v1639 = vld [vmem:[#allocation10 + $0x1e8] sm:$0xff]
    %v1640 = vld [vmem:[#allocation10 + $0x1f0] sm:$0xff]
    %v1641 = vld [vmem:[#allocation10 + $0x1f8] sm:$0xff]
    %v1642 = vld [vmem:[#allocation10 + $0x200] sm:$0xff]
    %v1643 = vld [vmem:[#allocation10 + $0x208] sm:$0xff]
    %v1644 = vld [vmem:[#allocation10 + $0x210] sm:$0xff]
    %v1645 = vld [vmem:[#allocation10 + $0x218] sm:$0xff]
    %v1646 = vld [vmem:[#allocation10 + $0x220] sm:$0xff]
    %v1647 = vld [vmem:[#allocation10 + $0x228] sm:$0xff]
    %v1648 = vld [vmem:[#allocation10 + $0x230] sm:$0xff]
    %v1649 = vld [vmem:[#allocation10 + $0x238] sm:$0xff]
    %v1650 = vld [vmem:[#allocation10 + $0x240] sm:$0xff]
    %v1651 = vld [vmem:[#allocation10 + $0x248] sm:$0xff]
    %v1652 = vld [vmem:[#allocation10 + $0x250] sm:$0xff]
    %v1653 = vld [vmem:[#allocation10 + $0x258] sm:$0xff]
    %v1654 = vld [vmem:[#allocation10 + $0x260] sm:$0xff]
    %v1655 = vld [vmem:[#allocation10 + $0x268] sm:$0xff]
    %v1656 = vld [vmem:[#allocation10 + $0x270] sm:$0xff]
    %v1657 = vld [vmem:[#allocation10 + $0x278] sm:$0xff]
    %v1658 = vld [vmem:[#allocation10 + $0x280] sm:$0xff]
    %v1659 = vld [vmem:[#allocation10 + $0x288] sm:$0xff]
    %v1660 = vld [vmem:[#allocation10 + $0x290] sm:$0xff]
    %v1661 = vld [vmem:[#allocation10 + $0x298] sm:$0xff]
    %v1662 = vld [vmem:[#allocation10 + $0x2a0] sm:$0xff]
    %v1663 = vld [vmem:[#allocation10 + $0x2a8] sm:$0xff]
    %v1664 = vld [vmem:[#allocation10 + $0x2b0] sm:$0xff]
    %v1665 = vld [vmem:[#allocation10 + $0x2b8] sm:$0xff]
    %v1666 = vld [vmem:[#allocation10 + $0x2c0] sm:$0xff]
    %v1667 = vld [vmem:[#allocation10 + $0x2c8] sm:$0xff]
    %v1668 = vld [vmem:[#allocation10 + $0x2d0] sm:$0xff]
    %v1669 = vld [vmem:[#allocation10 + $0x2d8] sm:$0xff]
    %v1670 = vld [vmem:[#allocation10 + $0x2e0] sm:$0xff]
    %v1671 = vld [vmem:[#allocation10 + $0x2e8] sm:$0xff]
    %v1672 = vld [vmem:[#allocation10 + $0x2f0] sm:$0xff]
    %v1673 = vld [vmem:[#allocation10 + $0x2f8] sm:$0xff]
    %v1674 = vld [vmem:[#allocation10 + $0x300] sm:$0xff]
    %v1675 = vld [vmem:[#allocation10 + $0x308] sm:$0xff]
    %v1676 = vld [vmem:[#allocation10 + $0x310] sm:$0xff]
    %v1677 = vld [vmem:[#allocation10 + $0x318] sm:$0xff]
    %v1678 = vld [vmem:[#allocation10 + $0x320] sm:$0xff]
    %v1679 = vld [vmem:[#allocation10 + $0x328] sm:$0xff]
    %v1680 = vld [vmem:[#allocation10 + $0x330] sm:$0xff]
    %v1681 = vld [vmem:[#allocation10 + $0x338] sm:$0xff]
    %v1682 = vld [vmem:[#allocation10 + $0x340] sm:$0xff]
    %v1683 = vld [vmem:[#allocation10 + $0x348] sm:$0xff]
    %v1684 = vld [vmem:[#allocation10 + $0x350] sm:$0xff]
    %v1685 = vld [vmem:[#allocation10 + $0x358] sm:$0xff]
    %v1686 = vld [vmem:[#allocation10 + $0x360] sm:$0xff]
    %v1687 = vld [vmem:[#allocation10 + $0x368] sm:$0xff]
    %v1688 = vld [vmem:[#allocation10 + $0x370] sm:$0xff]
    %v1689 = vld [vmem:[#allocation10 + $0x378] sm:$0xff]
    %v1690 = vld [vmem:[#allocation10 + $0x380] sm:$0xff]
    %v1691 = vld [vmem:[#allocation10 + $0x388] sm:$0xff]
    %v1692 = vld [vmem:[#allocation10 + $0x390] sm:$0xff]
    %v1693 = vld [vmem:[#allocation10 + $0x398] sm:$0xff]
    %v1694 = vld [vmem:[#allocation10 + $0x3a0] sm:$0xff]
    %v1695 = vld [vmem:[#allocation10 + $0x3a8] sm:$0xff]
    %v1696 = vld [vmem:[#allocation10 + $0x3b0] sm:$0xff]
    %v1697 = vld [vmem:[#allocation10 + $0x3b8] sm:$0xff]
    %v1698 = vld [vmem:[#allocation10 + $0x3c0] sm:$0xff]
    %v1699 = vld [vmem:[#allocation10 + $0x3c8] sm:$0xff]
    %v1700 = vld [vmem:[#allocation10 + $0x3d0] sm:$0xff]
    %v1701 = vld [vmem:[#allocation10 + $0x3d8] sm:$0xff]
    %v1702 = vld [vmem:[#allocation10 + $0x3e0] sm:$0xff]
    %v1703 = vld [vmem:[#allocation10 + $0x3e8] sm:$0xff]
    %v1704 = vld [vmem:[#allocation10 + $0x3f0] sm:$0xff]
    %v1705 = vld [vmem:[#allocation10 + $0x3f8] sm:$0xff]
    %v1706 = vld [vmem:[#allocation11] sm:$0xff]
    %v1707 = vld [vmem:[#allocation11 + $0x8] sm:$0xff]
    %v1708 = vld [vmem:[#allocation11 + $0x10] sm:$0xff]
    %v1709 = vld [vmem:[#allocation11 + $0x18] sm:$0xff]
    %v1710 = vld [vmem:[#allocation11 + $0x20] sm:$0xff]
    %v1711 = vld [vmem:[#allocation11 + $0x28] sm:$0xff]
    %v1712 = vld [vmem:[#allocation11 + $0x30] sm:$0xff]
    %v1713 = vld [vmem:[#allocation11 + $0x38] sm:$0xff]
    %v1714 = vld [vmem:[#allocation11 + $0x40] sm:$0xff]
    %v1715 = vld [vmem:[#allocation11 + $0x48] sm:$0xff]
    %v1716 = vld [vmem:[#allocation11 + $0x50] sm:$0xff]
    %v1717 = vld [vmem:[#allocation11 + $0x58] sm:$0xff]
    %v1718 = vld [vmem:[#allocation11 + $0x60] sm:$0xff]
    %v1719 = vld [vmem:[#allocation11 + $0x68] sm:$0xff]
    %v1720 = vld [vmem:[#allocation11 + $0x70] sm:$0xff]
    %v1721 = vld [vmem:[#allocation11 + $0x78] sm:$0xff]
    %v1722 = vld [vmem:[#allocation11 + $0x80] sm:$0xff]
    %v1723 = vld [vmem:[#allocation11 + $0x88] sm:$0xff]
    %v1724 = vld [vmem:[#allocation11 + $0x90] sm:$0xff]
    %v1725 = vld [vmem:[#allocation11 + $0x98] sm:$0xff]
    %v1726 = vld [vmem:[#allocation11 + $0xa0] sm:$0xff]
    %v1727 = vld [vmem:[#allocation11 + $0xa8] sm:$0xff]
    %v1728 = vld [vmem:[#allocation11 + $0xb0] sm:$0xff]
    %v1729 = vld [vmem:[#allocation11 + $0xb8] sm:$0xff]
    %v1730 = vld [vmem:[#allocation11 + $0xc0] sm:$0xff]
    %v1731 = vld [vmem:[#allocation11 + $0xc8] sm:$0xff]
    %v1732 = vld [vmem:[#allocation11 + $0xd0] sm:$0xff]
    %v1733 = vld [vmem:[#allocation11 + $0xd8] sm:$0xff]
    %v1734 = vld [vmem:[#allocation11 + $0xe0] sm:$0xff]
    %v1735 = vld [vmem:[#allocation11 + $0xe8] sm:$0xff]
    %v1736 = vld [vmem:[#allocation11 + $0xf0] sm:$0xff]
    %v1737 = vld [vmem:[#allocation11 + $0xf8] sm:$0xff]
    %v1738 = vld [vmem:[#allocation11 + $0x100] sm:$0xff]
    %v1739 = vld [vmem:[#allocation11 + $0x108] sm:$0xff]
    %v1740 = vld [vmem:[#allocation11 + $0x110] sm:$0xff]
    %v1741 = vld [vmem:[#allocation11 + $0x118] sm:$0xff]
    %v1742 = vld [vmem:[#allocation11 + $0x120] sm:$0xff]
    %v1743 = vld [vmem:[#allocation11 + $0x128] sm:$0xff]
    %v1744 = vld [vmem:[#allocation11 + $0x130] sm:$0xff]
    %v1745 = vld [vmem:[#allocation11 + $0x138] sm:$0xff]
    %v1746 = vld [vmem:[#allocation11 + $0x140] sm:$0xff]
    %v1747 = vld [vmem:[#allocation11 + $0x148] sm:$0xff]
    %v1748 = vld [vmem:[#allocation11 + $0x150] sm:$0xff]
    %v1749 = vld [vmem:[#allocation11 + $0x158] sm:$0xff]
    %v1750 = vld [vmem:[#allocation11 + $0x160] sm:$0xff]
    %v1751 = vld [vmem:[#allocation11 + $0x168] sm:$0xff]
    %v1752 = vld [vmem:[#allocation11 + $0x170] sm:$0xff]
    %v1753 = vld [vmem:[#allocation11 + $0x178] sm:$0xff]
    %v1754 = vld [vmem:[#allocation11 + $0x180] sm:$0xff]
    %v1755 = vld [vmem:[#allocation11 + $0x188] sm:$0xff]
    %v1756 = vld [vmem:[#allocation11 + $0x190] sm:$0xff]
    %v1757 = vld [vmem:[#allocation11 + $0x198] sm:$0xff]
    %v1758 = vld [vmem:[#allocation11 + $0x1a0] sm:$0xff]
    %v1759 = vld [vmem:[#allocation11 + $0x1a8] sm:$0xff]
    %v1760 = vld [vmem:[#allocation11 + $0x1b0] sm:$0xff]
    %v1761 = vld [vmem:[#allocation11 + $0x1b8] sm:$0xff]
    %v1762 = vld [vmem:[#allocation11 + $0x1c0] sm:$0xff]
    %v1763 = vld [vmem:[#allocation11 + $0x1c8] sm:$0xff]
    %v1764 = vld [vmem:[#allocation11 + $0x1d0] sm:$0xff]
    %v1765 = vld [vmem:[#allocation11 + $0x1d8] sm:$0xff]
    %v1766 = vld [vmem:[#allocation11 + $0x1e0] sm:$0xff]
    %v1767 = vld [vmem:[#allocation11 + $0x1e8] sm:$0xff]
    %v1768 = vld [vmem:[#allocation11 + $0x1f0] sm:$0xff]
    %v1769 = vld [vmem:[#allocation11 + $0x1f8] sm:$0xff]
    %v1770 = vld [vmem:[#allocation11 + $0x200] sm:$0xff]
    %v1771 = vld [vmem:[#allocation11 + $0x208] sm:$0xff]
    %v1772 = vld [vmem:[#allocation11 + $0x210] sm:$0xff]
    %v1773 = vld [vmem:[#allocation11 + $0x218] sm:$0xff]
    %v1774 = vld [vmem:[#allocation11 + $0x220] sm:$0xff]
    %v1775 = vld [vmem:[#allocation11 + $0x228] sm:$0xff]
    %v1776 = vld [vmem:[#allocation11 + $0x230] sm:$0xff]
    %v1777 = vld [vmem:[#allocation11 + $0x238] sm:$0xff]
    %v1778 = vld [vmem:[#allocation11 + $0x240] sm:$0xff]
    %v1779 = vld [vmem:[#allocation11 + $0x248] sm:$0xff]
    %v1780 = vld [vmem:[#allocation11 + $0x250] sm:$0xff]
    %v1781 = vld [vmem:[#allocation11 + $0x258] sm:$0xff]
    %v1782 = vld [vmem:[#allocation11 + $0x260] sm:$0xff]
    %v1783 = vld [vmem:[#allocation11 + $0x268] sm:$0xff]
    %v1784 = vld [vmem:[#allocation11 + $0x270] sm:$0xff]
    %v1785 = vld [vmem:[#allocation11 + $0x278] sm:$0xff]
    %v1786 = vld [vmem:[#allocation11 + $0x280] sm:$0xff]
    %v1787 = vld [vmem:[#allocation11 + $0x288] sm:$0xff]
    %v1788 = vld [vmem:[#allocation11 + $0x290] sm:$0xff]
    %v1789 = vld [vmem:[#allocation11 + $0x298] sm:$0xff]
    %v1790 = vld [vmem:[#allocation11 + $0x2a0] sm:$0xff]
    %v1791 = vld [vmem:[#allocation11 + $0x2a8] sm:$0xff]
    %v1792 = vld [vmem:[#allocation11 + $0x2b0] sm:$0xff]
    %v1793 = vld [vmem:[#allocation11 + $0x2b8] sm:$0xff]
    %v1794 = vld [vmem:[#allocation11 + $0x2c0] sm:$0xff]
    %v1795 = vld [vmem:[#allocation11 + $0x2c8] sm:$0xff]
    %v1796 = vld [vmem:[#allocation11 + $0x2d0] sm:$0xff]
    %v1797 = vld [vmem:[#allocation11 + $0x2d8] sm:$0xff]
    %v1798 = vld [vmem:[#allocation11 + $0x2e0] sm:$0xff]
    %v1799 = vld [vmem:[#allocation11 + $0x2e8] sm:$0xff]
    %v1800 = vld [vmem:[#allocation11 + $0x2f0] sm:$0xff]
    %v1801 = vld [vmem:[#allocation11 + $0x2f8] sm:$0xff]
    %v1802 = vld [vmem:[#allocation11 + $0x300] sm:$0xff]
    %v1803 = vld [vmem:[#allocation11 + $0x308] sm:$0xff]
    %v1804 = vld [vmem:[#allocation11 + $0x310] sm:$0xff]
    %v1805 = vld [vmem:[#allocation11 + $0x318] sm:$0xff]
    %v1806 = vld [vmem:[#allocation11 + $0x320] sm:$0xff]
    %v1807 = vld [vmem:[#allocation11 + $0x328] sm:$0xff]
    %v1808 = vld [vmem:[#allocation11 + $0x330] sm:$0xff]
    %v1809 = vld [vmem:[#allocation11 + $0x338] sm:$0xff]
    %v1810 = vld [vmem:[#allocation11 + $0x340] sm:$0xff]
    %v1811 = vld [vmem:[#allocation11 + $0x348] sm:$0xff]
    %v1812 = vld [vmem:[#allocation11 + $0x350] sm:$0xff]
    %v1813 = vld [vmem:[#allocation11 + $0x358] sm:$0xff]
    %v1814 = vld [vmem:[#allocation11 + $0x360] sm:$0xff]
    %v1815 = vld [vmem:[#allocation11 + $0x368] sm:$0xff]
    %v1816 = vld [vmem:[#allocation11 + $0x370] sm:$0xff]
    %v1817 = vld [vmem:[#allocation11 + $0x378] sm:$0xff]
    %v1818 = vld [vmem:[#allocation11 + $0x380] sm:$0xff]
    %v1819 = vld [vmem:[#allocation11 + $0x388] sm:$0xff]
    %v1820 = vld [vmem:[#allocation11 + $0x390] sm:$0xff]
    %v1821 = vld [vmem:[#allocation11 + $0x398] sm:$0xff]
    %v1822 = vld [vmem:[#allocation11 + $0x3a0] sm:$0xff]
    %v1823 = vld [vmem:[#allocation11 + $0x3a8] sm:$0xff]
    %v1824 = vld [vmem:[#allocation11 + $0x3b0] sm:$0xff]
    %v1825 = vld [vmem:[#allocation11 + $0x3b8] sm:$0xff]
    %v1826 = vld [vmem:[#allocation11 + $0x3c0] sm:$0xff]
    %v1827 = vld [vmem:[#allocation11 + $0x3c8] sm:$0xff]
    %v1828 = vld [vmem:[#allocation11 + $0x3d0] sm:$0xff]
    %v1829 = vld [vmem:[#allocation11 + $0x3d8] sm:$0xff]
    %v1830 = vld [vmem:[#allocation11 + $0x3e0] sm:$0xff]
    %v1831 = vld [vmem:[#allocation11 + $0x3e8] sm:$0xff]
    %v1832 = vld [vmem:[#allocation11 + $0x3f0] sm:$0xff]
    %v1833 = vld [vmem:[#allocation11 + $0x3f8] sm:$0xff]
    %v1962 = vunpack.c.l.b16 %v1706
    %v1963 = vunpack.c.h.b16 %v1706
    %v1964 = vunpack.c.l.b16 %v1707
    %v1965 = vunpack.c.h.b16 %v1707
    %v1966 = vunpack.c.l.b16 %v1708
    %v1967 = vunpack.c.h.b16 %v1708
    %v1968 = vunpack.c.l.b16 %v1709
    %v1969 = vunpack.c.h.b16 %v1709
    %v1970 = vunpack.c.l.b16 %v1710
    %v1971 = vunpack.c.h.b16 %v1710
    %v1972 = vunpack.c.l.b16 %v1711
    %v1973 = vunpack.c.h.b16 %v1711
    %v1974 = vunpack.c.l.b16 %v1712
    %v1975 = vunpack.c.h.b16 %v1712
    %v1976 = vunpack.c.l.b16 %v1713
    %v1977 = vunpack.c.h.b16 %v1713
    %v1978 = vunpack.c.l.b16 %v1714
    %v1979 = vunpack.c.h.b16 %v1714
    %v1980 = vunpack.c.l.b16 %v1715
    %v1981 = vunpack.c.h.b16 %v1715
    %v1982 = vunpack.c.l.b16 %v1716
    %v1983 = vunpack.c.h.b16 %v1716
    %v1984 = vunpack.c.l.b16 %v1717
    %v1985 = vunpack.c.h.b16 %v1717
    %v1986 = vunpack.c.l.b16 %v1718
    %v1987 = vunpack.c.h.b16 %v1718
    %v1988 = vunpack.c.l.b16 %v1719
    %v1989 = vunpack.c.h.b16 %v1719
    %v1990 = vunpack.c.l.b16 %v1720
    %v1991 = vunpack.c.h.b16 %v1720
    %v1992 = vunpack.c.l.b16 %v1721
    %v1993 = vunpack.c.h.b16 %v1721
    %v1994 = vunpack.c.l.b16 %v1722
    %v1995 = vunpack.c.h.b16 %v1722
    %v1996 = vunpack.c.l.b16 %v1723
    %v1997 = vunpack.c.h.b16 %v1723
    %v1998 = vunpack.c.l.b16 %v1724
    %v1999 = vunpack.c.h.b16 %v1724
    %v2000 = vunpack.c.l.b16 %v1725
    %v2001 = vunpack.c.h.b16 %v1725
    %v2002 = vunpack.c.l.b16 %v1726
    %v2003 = vunpack.c.h.b16 %v1726
    %v2004 = vunpack.c.l.b16 %v1727
    %v2005 = vunpack.c.h.b16 %v1727
    %v2006 = vunpack.c.l.b16 %v1728
    %v2007 = vunpack.c.h.b16 %v1728
    %v2008 = vunpack.c.l.b16 %v1729
    %v2009 = vunpack.c.h.b16 %v1729
    %v2010 = vunpack.c.l.b16 %v1730
    %v2011 = vunpack.c.h.b16 %v1730
    %v2012 = vunpack.c.l.b16 %v1731
    %v2013 = vunpack.c.h.b16 %v1731
    %v2014 = vunpack.c.l.b16 %v1732
    %v2015 = vunpack.c.h.b16 %v1732
    %v2016 = vunpack.c.l.b16 %v1733
    %v2017 = vunpack.c.h.b16 %v1733
    %v2018 = vunpack.c.l.b16 %v1734
    %v2019 = vunpack.c.h.b16 %v1734
    %v2020 = vunpack.c.l.b16 %v1735
    %v2021 = vunpack.c.h.b16 %v1735
    %v2022 = vunpack.c.l.b16 %v1736
    %v2023 = vunpack.c.h.b16 %v1736
    %v2024 = vunpack.c.l.b16 %v1737
    %v2025 = vunpack.c.h.b16 %v1737
    %v2026 = vunpack.c.l.b16 %v1738
    %v2027 = vunpack.c.h.b16 %v1738
    %v2028 = vunpack.c.l.b16 %v1739
    %v2029 = vunpack.c.h.b16 %v1739
    %v2030 = vunpack.c.l.b16 %v1740
    %v2031 = vunpack.c.h.b16 %v1740
    %v2032 = vunpack.c.l.b16 %v1741
    %v2033 = vunpack.c.h.b16 %v1741
    %v2034 = vunpack.c.l.b16 %v1742
    %v2035 = vunpack.c.h.b16 %v1742
    %v2036 = vunpack.c.l.b16 %v1743
    %v2037 = vunpack.c.h.b16 %v1743
    %v2038 = vunpack.c.l.b16 %v1744
    %v2039 = vunpack.c.h.b16 %v1744
    %v2040 = vunpack.c.l.b16 %v1745
    %v2041 = vunpack.c.h.b16 %v1745
    %v2042 = vunpack.c.l.b16 %v1746
    %v2043 = vunpack.c.h.b16 %v1746
    %v2044 = vunpack.c.l.b16 %v1747
    %v2045 = vunpack.c.h.b16 %v1747
    %v2046 = vunpack.c.l.b16 %v1748
    %v2047 = vunpack.c.h.b16 %v1748
    %v2048 = vunpack.c.l.b16 %v1749
    %v2049 = vunpack.c.h.b16 %v1749
    %v2050 = vunpack.c.l.b16 %v1750
    %v2051 = vunpack.c.h.b16 %v1750
    %v2052 = vunpack.c.l.b16 %v1751
    %v2053 = vunpack.c.h.b16 %v1751
    %v2054 = vunpack.c.l.b16 %v1752
    %v2055 = vunpack.c.h.b16 %v1752
    %v2056 = vunpack.c.l.b16 %v1753
    %v2057 = vunpack.c.h.b16 %v1753
    %v2058 = vunpack.c.l.b16 %v1754
    %v2059 = vunpack.c.h.b16 %v1754
    %v2060 = vunpack.c.l.b16 %v1755
    %v2061 = vunpack.c.h.b16 %v1755
    %v2062 = vunpack.c.l.b16 %v1756
    %v2063 = vunpack.c.h.b16 %v1756
    %v2064 = vunpack.c.l.b16 %v1757
    %v2065 = vunpack.c.h.b16 %v1757
    %v2066 = vunpack.c.l.b16 %v1758
    %v2067 = vunpack.c.h.b16 %v1758
    %v2068 = vunpack.c.l.b16 %v1759
    %v2069 = vunpack.c.h.b16 %v1759
    %v2070 = vunpack.c.l.b16 %v1760
    %v2071 = vunpack.c.h.b16 %v1760
    %v2072 = vunpack.c.l.b16 %v1761
    %v2073 = vunpack.c.h.b16 %v1761
    %v2074 = vunpack.c.l.b16 %v1762
    %v2075 = vunpack.c.h.b16 %v1762
    %v2076 = vunpack.c.l.b16 %v1763
    %v2077 = vunpack.c.h.b16 %v1763
    %v2078 = vunpack.c.l.b16 %v1764
    %v2079 = vunpack.c.h.b16 %v1764
    %v2080 = vunpack.c.l.b16 %v1765
    %v2081 = vunpack.c.h.b16 %v1765
    %v2082 = vunpack.c.l.b16 %v1766
    %v2083 = vunpack.c.h.b16 %v1766
    %v2084 = vunpack.c.l.b16 %v1767
    %v2085 = vunpack.c.h.b16 %v1767
    %v2086 = vunpack.c.l.b16 %v1768
    %v2087 = vunpack.c.h.b16 %v1768
    %v2088 = vunpack.c.l.b16 %v1769
    %v2089 = vunpack.c.h.b16 %v1769
    %v2090 = vunpack.c.l.b16 %v1770
    %v2091 = vunpack.c.h.b16 %v1770
    %v2092 = vunpack.c.l.b16 %v1771
    %v2093 = vunpack.c.h.b16 %v1771
    %v2094 = vunpack.c.l.b16 %v1772
    %v2095 = vunpack.c.h.b16 %v1772
    %v2096 = vunpack.c.l.b16 %v1773
    %v2097 = vunpack.c.h.b16 %v1773
    %v2098 = vunpack.c.l.b16 %v1774
    %v2099 = vunpack.c.h.b16 %v1774
    %v2100 = vunpack.c.l.b16 %v1775
    %v2101 = vunpack.c.h.b16 %v1775
    %v2102 = vunpack.c.l.b16 %v1776
    %v2103 = vunpack.c.h.b16 %v1776
    %v2104 = vunpack.c.l.b16 %v1777
    %v2105 = vunpack.c.h.b16 %v1777
    %v2106 = vunpack.c.l.b16 %v1778
    %v2107 = vunpack.c.h.b16 %v1778
    %v2108 = vunpack.c.l.b16 %v1779
    %v2109 = vunpack.c.h.b16 %v1779
    %v2110 = vunpack.c.l.b16 %v1780
    %v2111 = vunpack.c.h.b16 %v1780
    %v2112 = vunpack.c.l.b16 %v1781
    %v2113 = vunpack.c.h.b16 %v1781
    %v2114 = vunpack.c.l.b16 %v1782
    %v2115 = vunpack.c.h.b16 %v1782
    %v2116 = vunpack.c.l.b16 %v1783
    %v2117 = vunpack.c.h.b16 %v1783
    %v2118 = vunpack.c.l.b16 %v1784
    %v2119 = vunpack.c.h.b16 %v1784
    %v2120 = vunpack.c.l.b16 %v1785
    %v2121 = vunpack.c.h.b16 %v1785
    %v2122 = vunpack.c.l.b16 %v1786
    %v2123 = vunpack.c.h.b16 %v1786
    %v2124 = vunpack.c.l.b16 %v1787
    %v2125 = vunpack.c.h.b16 %v1787
    %v2126 = vunpack.c.l.b16 %v1788
    %v2127 = vunpack.c.h.b16 %v1788
    %v2128 = vunpack.c.l.b16 %v1789
    %v2129 = vunpack.c.h.b16 %v1789
    %v2130 = vunpack.c.l.b16 %v1790
    %v2131 = vunpack.c.h.b16 %v1790
    %v2132 = vunpack.c.l.b16 %v1791
    %v2133 = vunpack.c.h.b16 %v1791
    %v2134 = vunpack.c.l.b16 %v1792
    %v2135 = vunpack.c.h.b16 %v1792
    %v2136 = vunpack.c.l.b16 %v1793
    %v2137 = vunpack.c.h.b16 %v1793
    %v2138 = vunpack.c.l.b16 %v1794
    %v2139 = vunpack.c.h.b16 %v1794
    %v2140 = vunpack.c.l.b16 %v1795
    %v2141 = vunpack.c.h.b16 %v1795
    %v2142 = vunpack.c.l.b16 %v1796
    %v2143 = vunpack.c.h.b16 %v1796
    %v2144 = vunpack.c.l.b16 %v1797
    %v2145 = vunpack.c.h.b16 %v1797
    %v2146 = vunpack.c.l.b16 %v1798
    %v2147 = vunpack.c.h.b16 %v1798
    %v2148 = vunpack.c.l.b16 %v1799
    %v2149 = vunpack.c.h.b16 %v1799
    %v2150 = vunpack.c.l.b16 %v1800
    %v2151 = vunpack.c.h.b16 %v1800
    %v2152 = vunpack.c.l.b16 %v1801
    %v2153 = vunpack.c.h.b16 %v1801
    %v2154 = vunpack.c.l.b16 %v1802
    %v2155 = vunpack.c.h.b16 %v1802
    %v2156 = vunpack.c.l.b16 %v1803
    %v2157 = vunpack.c.h.b16 %v1803
    %v2158 = vunpack.c.l.b16 %v1804
    %v2159 = vunpack.c.h.b16 %v1804
    %v2160 = vunpack.c.l.b16 %v1805
    %v2161 = vunpack.c.h.b16 %v1805
    %v2162 = vunpack.c.l.b16 %v1806
    %v2163 = vunpack.c.h.b16 %v1806
    %v2164 = vunpack.c.l.b16 %v1807
    %v2165 = vunpack.c.h.b16 %v1807
    %v2166 = vunpack.c.l.b16 %v1808
    %v2167 = vunpack.c.h.b16 %v1808
    %v2168 = vunpack.c.l.b16 %v1809
    %v2169 = vunpack.c.h.b16 %v1809
    %v2170 = vunpack.c.l.b16 %v1810
    %v2171 = vunpack.c.h.b16 %v1810
    %v2172 = vunpack.c.l.b16 %v1811
    %v2173 = vunpack.c.h.b16 %v1811
    %v2174 = vunpack.c.l.b16 %v1812
    %v2175 = vunpack.c.h.b16 %v1812
    %v2176 = vunpack.c.l.b16 %v1813
    %v2177 = vunpack.c.h.b16 %v1813
    %v2178 = vunpack.c.l.b16 %v1814
    %v2179 = vunpack.c.h.b16 %v1814
    %v2180 = vunpack.c.l.b16 %v1815
    %v2181 = vunpack.c.h.b16 %v1815
    %v2182 = vunpack.c.l.b16 %v1816
    %v2183 = vunpack.c.h.b16 %v1816
    %v2184 = vunpack.c.l.b16 %v1817
    %v2185 = vunpack.c.h.b16 %v1817
    %v2186 = vunpack.c.l.b16 %v1818
    %v2187 = vunpack.c.h.b16 %v1818
    %v2188 = vunpack.c.l.b16 %v1819
    %v2189 = vunpack.c.h.b16 %v1819
    %v2190 = vunpack.c.l.b16 %v1820
    %v2191 = vunpack.c.h.b16 %v1820
    %v2192 = vunpack.c.l.b16 %v1821
    %v2193 = vunpack.c.h.b16 %v1821
    %v2194 = vunpack.c.l.b16 %v1822
    %v2195 = vunpack.c.h.b16 %v1822
    %v2196 = vunpack.c.l.b16 %v1823
    %v2197 = vunpack.c.h.b16 %v1823
    %v2198 = vunpack.c.l.b16 %v1824
    %v2199 = vunpack.c.h.b16 %v1824
    %v2200 = vunpack.c.l.b16 %v1825
    %v2201 = vunpack.c.h.b16 %v1825
    %v2202 = vunpack.c.l.b16 %v1826
    %v2203 = vunpack.c.h.b16 %v1826
    %v2204 = vunpack.c.l.b16 %v1827
    %v2205 = vunpack.c.h.b16 %v1827
    %v2206 = vunpack.c.l.b16 %v1828
    %v2207 = vunpack.c.h.b16 %v1828
    %v2208 = vunpack.c.l.b16 %v1829
    %v2209 = vunpack.c.h.b16 %v1829
    %v2210 = vunpack.c.l.b16 %v1830
    %v2211 = vunpack.c.h.b16 %v1830
    %v2212 = vunpack.c.l.b16 %v1831
    %v2213 = vunpack.c.h.b16 %v1831
    %v2214 = vunpack.c.l.b16 %v1832
    %v2215 = vunpack.c.h.b16 %v1832
    %v2216 = vunpack.c.l.b16 %v1833
    %v2217 = vunpack.c.h.b16 %v1833
    %v2218 = vpack.c.b16 %v1964, %v1962
    %v2219 = vpack.c.b16 %v1965, %v1963
    %v2220 = vpack.c.b16 %v1968, %v1966
    %v2221 = vpack.c.b16 %v1969, %v1967
    %v2222 = vpack.c.b16 %v1972, %v1970
    %v2223 = vpack.c.b16 %v1973, %v1971
    %v2224 = vpack.c.b16 %v1976, %v1974
    %v2225 = vpack.c.b16 %v1977, %v1975
    %v2226 = vpack.c.b16 %v1980, %v1978
    %v2227 = vpack.c.b16 %v1981, %v1979
    %v2228 = vpack.c.b16 %v1984, %v1982
    %v2229 = vpack.c.b16 %v1985, %v1983
    %v2230 = vpack.c.b16 %v1988, %v1986
    %v2231 = vpack.c.b16 %v1989, %v1987
    %v2232 = vpack.c.b16 %v1992, %v1990
    %v2233 = vpack.c.b16 %v1993, %v1991
    %v2234 = vpack.c.b16 %v1996, %v1994
    %v2235 = vpack.c.b16 %v1997, %v1995
    %v2236 = vpack.c.b16 %v2000, %v1998
    %v2237 = vpack.c.b16 %v2001, %v1999
    %v2238 = vpack.c.b16 %v2004, %v2002
    %v2239 = vpack.c.b16 %v2005, %v2003
    %v2240 = vpack.c.b16 %v2008, %v2006
    %v2241 = vpack.c.b16 %v2009, %v2007
    %v2242 = vpack.c.b16 %v2012, %v2010
    %v2243 = vpack.c.b16 %v2013, %v2011
    %v2244 = vpack.c.b16 %v2016, %v2014
    %v2245 = vpack.c.b16 %v2017, %v2015
    %v2246 = vpack.c.b16 %v2020, %v2018
    %v2247 = vpack.c.b16 %v2021, %v2019
    %v2248 = vpack.c.b16 %v2024, %v2022
    %v2249 = vpack.c.b16 %v2025, %v2023
    %v2250 = vpack.c.b16 %v2028, %v2026
    %v2251 = vpack.c.b16 %v2029, %v2027
    %v2252 = vpack.c.b16 %v2032, %v2030
    %v2253 = vpack.c.b16 %v2033, %v2031
    %v2254 = vpack.c.b16 %v2036, %v2034
    %v2255 = vpack.c.b16 %v2037, %v2035
    %v2256 = vpack.c.b16 %v2040, %v2038
    %v2257 = vpack.c.b16 %v2041, %v2039
    %v2258 = vpack.c.b16 %v2044, %v2042
    %v2259 = vpack.c.b16 %v2045, %v2043
    %v2260 = vpack.c.b16 %v2048, %v2046
    %v2261 = vpack.c.b16 %v2049, %v2047
    %v2262 = vpack.c.b16 %v2052, %v2050
    %v2263 = vpack.c.b16 %v2053, %v2051
    %v2264 = vpack.c.b16 %v2056, %v2054
    %v2265 = vpack.c.b16 %v2057, %v2055
    %v2266 = vpack.c.b16 %v2060, %v2058
    %v2267 = vpack.c.b16 %v2061, %v2059
    %v2268 = vpack.c.b16 %v2064, %v2062
    %v2269 = vpack.c.b16 %v2065, %v2063
    %v2270 = vpack.c.b16 %v2068, %v2066
    %v2271 = vpack.c.b16 %v2069, %v2067
    %v2272 = vpack.c.b16 %v2072, %v2070
    %v2273 = vpack.c.b16 %v2073, %v2071
    %v2274 = vpack.c.b16 %v2076, %v2074
    %v2275 = vpack.c.b16 %v2077, %v2075
    %v2276 = vpack.c.b16 %v2080, %v2078
    %v2277 = vpack.c.b16 %v2081, %v2079
    %v2278 = vpack.c.b16 %v2084, %v2082
    %v2279 = vpack.c.b16 %v2085, %v2083
    %v2280 = vpack.c.b16 %v2088, %v2086
    %v2281 = vpack.c.b16 %v2089, %v2087
    %v2282 = vpack.c.b16 %v2092, %v2090
    %v2283 = vpack.c.b16 %v2093, %v2091
    %v2284 = vpack.c.b16 %v2096, %v2094
    %v2285 = vpack.c.b16 %v2097, %v2095
    %v2286 = vpack.c.b16 %v2100, %v2098
    %v2287 = vpack.c.b16 %v2101, %v2099
    %v2288 = vpack.c.b16 %v2104, %v2102
    %v2289 = vpack.c.b16 %v2105, %v2103
    %v2290 = vpack.c.b16 %v2108, %v2106
    %v2291 = vpack.c.b16 %v2109, %v2107
    %v2292 = vpack.c.b16 %v2112, %v2110
    %v2293 = vpack.c.b16 %v2113, %v2111
    %v2294 = vpack.c.b16 %v2116, %v2114
    %v2295 = vpack.c.b16 %v2117, %v2115
    %v2296 = vpack.c.b16 %v2120, %v2118
    %v2297 = vpack.c.b16 %v2121, %v2119
    %v2298 = vpack.c.b16 %v2124, %v2122
    %v2299 = vpack.c.b16 %v2125, %v2123
    %v2300 = vpack.c.b16 %v2128, %v2126
    %v2301 = vpack.c.b16 %v2129, %v2127
    %v2302 = vpack.c.b16 %v2132, %v2130
    %v2303 = vpack.c.b16 %v2133, %v2131
    %v2304 = vpack.c.b16 %v2136, %v2134
    %v2305 = vpack.c.b16 %v2137, %v2135
    %v2306 = vpack.c.b16 %v2140, %v2138
    %v2307 = vpack.c.b16 %v2141, %v2139
    %v2308 = vpack.c.b16 %v2144, %v2142
    %v2309 = vpack.c.b16 %v2145, %v2143
    %v2310 = vpack.c.b16 %v2148, %v2146
    %v2311 = vpack.c.b16 %v2149, %v2147
    %v2312 = vpack.c.b16 %v2152, %v2150
    %v2313 = vpack.c.b16 %v2153, %v2151
    %v2314 = vpack.c.b16 %v2156, %v2154
    %v2315 = vpack.c.b16 %v2157, %v2155
    %v2316 = vpack.c.b16 %v2160, %v2158
    %v2317 = vpack.c.b16 %v2161, %v2159
    %v2318 = vpack.c.b16 %v2164, %v2162
    %v2319 = vpack.c.b16 %v2165, %v2163
    %v2320 = vpack.c.b16 %v2168, %v2166
    %v2321 = vpack.c.b16 %v2169, %v2167
    %v2322 = vpack.c.b16 %v2172, %v2170
    %v2323 = vpack.c.b16 %v2173, %v2171
    %v2324 = vpack.c.b16 %v2176, %v2174
    %v2325 = vpack.c.b16 %v2177, %v2175
    %v2326 = vpack.c.b16 %v2180, %v2178
    %v2327 = vpack.c.b16 %v2181, %v2179
    %v2328 = vpack.c.b16 %v2184, %v2182
    %v2329 = vpack.c.b16 %v2185, %v2183
    %v2330 = vpack.c.b16 %v2188, %v2186
    %v2331 = vpack.c.b16 %v2189, %v2187
    %v2332 = vpack.c.b16 %v2192, %v2190
    %v2333 = vpack.c.b16 %v2193, %v2191
    %v2334 = vpack.c.b16 %v2196, %v2194
    %v2335 = vpack.c.b16 %v2197, %v2195
    %v2336 = vpack.c.b16 %v2200, %v2198
    %v2337 = vpack.c.b16 %v2201, %v2199
    %v2338 = vpack.c.b16 %v2204, %v2202
    %v2339 = vpack.c.b16 %v2205, %v2203
    %v2340 = vpack.c.b16 %v2208, %v2206
    %v2341 = vpack.c.b16 %v2209, %v2207
    %v2342 = vpack.c.b16 %v2212, %v2210
    %v2343 = vpack.c.b16 %v2213, %v2211
    %v2344 = vpack.c.b16 %v2216, %v2214
    %v2345 = vpack.c.b16 %v2217, %v2215
    %2474 = vmatprep.subr.bf16.mxu0 %v2233
    %2475 = vmatpush1.bf16.msra.mxu0 %v2232
    %2476 = vmatprep.subr.bf16.mxu0 %v2231
    %2477 = vmatpush1.bf16.msra.mxu0 %v2230
    %2478 = vmatprep.subr.bf16.mxu0 %v2229
    %2479 = vmatpush1.bf16.msra.mxu0 %v2228
    %2480 = vmatprep.subr.bf16.mxu0 %v2227
    %2481 = vmatpush1.bf16.msra.mxu0 %v2226
    %2482 = vmatprep.subr.bf16.mxu0 %v2225
    %2483 = vmatpush1.bf16.msra.mxu0 %v2224
    %2484 = vmatprep.subr.bf16.mxu0 %v2223
    %2485 = vmatpush1.bf16.msra.mxu0 %v2222
    %2486 = vmatprep.subr.bf16.mxu0 %v2221
    %2487 = vmatpush1.bf16.msra.mxu0 %v2220
    %2488 = vmatprep.subr.bf16.mxu0 %v2219
    %2489 = vmatpush1.bf16.msra.mxu0 %v2218
    %2490 = vmatprep.subr.bf16.mxu0 %v2249
    %2491 = vmatpush2.bf16.msra.mxu0 %v2248
    %2492 = vmatprep.subr.bf16.mxu0 %v2247
    %2493 = vmatpush2.bf16.msra.mxu0 %v2246
    %2494 = vmatprep.subr.bf16.mxu0 %v2245
    %2495 = vmatpush2.bf16.msra.mxu0 %v2244
    %2496 = vmatprep.subr.bf16.mxu0 %v2243
    %2497 = vmatpush2.bf16.msra.mxu0 %v2242
    %2498 = vmatprep.subr.bf16.mxu0 %v2241
    %2499 = vmatpush2.bf16.msra.mxu0 %v2240
    %2500 = vmatprep.subr.bf16.mxu0 %v2239
    %2501 = vmatpush2.bf16.msra.mxu0 %v2238
    %2502 = vmatprep.subr.bf16.mxu0 %v2237
    %2503 = vmatpush2.bf16.msra.mxu0 %v2236
    %2504 = vmatprep.subr.bf16.mxu0 %v2235
    %2505 = vmatpush2.bf16.msra.mxu0 %v2234
    %2506 = vmatprep.mubr.bf16.mxu0 %v1571
    %2507 = vmatmul.mubr.bf16.gmra.mxu0 %v1570
    %v2508 = vpop.f32.mrf.mxu0
    %v2509 = vadd.f32 0.0, %v2508
    %v2510 = vpop.f32.mrf.mxu0
    %v2511 = vadd.f32 0.0, %v2510
    %v2512 = vpop.f32.mrf.mxu0
    %v2513 = vpop.f32.mrf.mxu0
    %2514 = vdwg.mxu0
    %2515 = vmatprep.subr.bf16.mxu0 %v2265
    %2516 = vmatpush1.bf16.msra.mxu0 %v2264
    %2517 = vmatprep.subr.bf16.mxu0 %v2263
    %2518 = vmatpush1.bf16.msra.mxu0 %v2262
    %2519 = vmatprep.subr.bf16.mxu0 %v2261
    %2520 = vmatpush1.bf16.msra.mxu0 %v2260
    %2521 = vmatprep.subr.bf16.mxu0 %v2259
    %2522 = vmatpush1.bf16.msra.mxu0 %v2258
    %2523 = vmatprep.subr.bf16.mxu0 %v2257
    %2524 = vmatpush1.bf16.msra.mxu0 %v2256
    %2525 = vmatprep.subr.bf16.mxu0 %v2255
    %2526 = vmatpush1.bf16.msra.mxu0 %v2254
    %2527 = vmatprep.subr.bf16.mxu0 %v2253
    %2528 = vmatpush1.bf16.msra.mxu0 %v2252
    %2529 = vmatprep.subr.bf16.mxu0 %v2251
    %2530 = vmatpush1.bf16.msra.mxu0 %v2250
    %2531 = vmatprep.subr.bf16.mxu0 %v2281
    %2532 = vmatpush2.bf16.msra.mxu0 %v2280
    %2533 = vmatprep.subr.bf16.mxu0 %v2279
    %2534 = vmatpush2.bf16.msra.mxu0 %v2278
    %2535 = vmatprep.subr.bf16.mxu0 %v2277
    %2536 = vmatpush2.bf16.msra.mxu0 %v2276
    %2537 = vmatprep.subr.bf16.mxu0 %v2275
    %2538 = vmatpush2.bf16.msra.mxu0 %v2274
    %2539 = vmatprep.subr.bf16.mxu0 %v2273
    %2540 = vmatpush2.bf16.msra.mxu0 %v2272
    %2541 = vmatprep.subr.bf16.mxu0 %v2271
    %2542 = vmatpush2.bf16.msra.mxu0 %v2270
    %2543 = vmatprep.subr.bf16.mxu0 %v2269
    %2544 = vmatpush2.bf16.msra.mxu0 %v2268
    %2545 = vmatprep.subr.bf16.mxu0 %v2267
    %2546 = vmatpush2.bf16.msra.mxu0 %v2266
    %2547 = vmatprep.mubr.bf16.mxu0 %v1573
    %2548 = vmatmul.mubr.bf16.gmra.mxu0 %v1572
    %v2549 = vpop.f32.mrf.mxu0
    %v2550 = vadd.f32 %v2509, %v2549
    %v2551 = vpop.f32.mrf.mxu0
    %v2552 = vadd.f32 %v2511, %v2551
    %v2553 = vpop.f32.mrf.mxu0
    %v2554 = vpop.f32.mrf.mxu0
    %2555 = vdwg.mxu0
    %2556 = vmatprep.subr.bf16.mxu0 %v2297
    %2557 = vmatpush1.bf16.msra.mxu0 %v2296
    %2558 = vmatprep.subr.bf16.mxu0 %v2295
    %2559 = vmatpush1.bf16.msra.mxu0 %v2294
    %2560 = vmatprep.subr.bf16.mxu0 %v2293
    %2561 = vmatpush1.bf16.msra.mxu0 %v2292
    %2562 = vmatprep.subr.bf16.mxu0 %v2291
    %2563 = vmatpush1.bf16.msra.mxu0 %v2290
    %2564 = vmatprep.subr.bf16.mxu0 %v2289
    %2565 = vmatpush1.bf16.msra.mxu0 %v2288
    %2566 = vmatprep.subr.bf16.mxu0 %v2287
    %2567 = vmatpush1.bf16.msra.mxu0 %v2286
    %2568 = vmatprep.subr.bf16.mxu0 %v2285
    %2569 = vmatpush1.bf16.msra.mxu0 %v2284
    %2570 = vmatprep.subr.bf16.mxu0 %v2283
    %2571 = vmatpush1.bf16.msra.mxu0 %v2282
    %2572 = vmatprep.subr.bf16.mxu0 %v2313
    %2573 = vmatpush2.bf16.msra.mxu0 %v2312
    %2574 = vmatprep.subr.bf16.mxu0 %v2311
    %2575 = vmatpush2.bf16.msra.mxu0 %v2310
    %2576 = vmatprep.subr.bf16.mxu0 %v2309
    %2577 = vmatpush2.bf16.msra.mxu0 %v2308
    %2578 = vmatprep.subr.bf16.mxu0 %v2307
    %2579 = vmatpush2.bf16.msra.mxu0 %v2306
    %2580 = vmatprep.subr.bf16.mxu0 %v2305
    %2581 = vmatpush2.bf16.msra.mxu0 %v2304
    %2582 = vmatprep.subr.bf16.mxu0 %v2303
    %2583 = vmatpush2.bf16.msra.mxu0 %v2302
    %2584 = vmatprep.subr.bf16.mxu0 %v2301
    %2585 = vmatpush2.bf16.msra.mxu0 %v2300
    %2586 = vmatprep.subr.bf16.mxu0 %v2299
    %2587 = vmatpush2.bf16.msra.mxu0 %v2298
    %2588 = vmatprep.mubr.bf16.mxu0 %v1575
    %2589 = vmatmul.mubr.bf16.gmra.mxu0 %v1574
    %v2590 = vpop.f32.mrf.mxu0
    %v2591 = vadd.f32 %v2550, %v2590
    %v2592 = vpop.f32.mrf.mxu0
    %v2593 = vadd.f32 %v2552, %v2592
    %v2594 = vpop.f32.mrf.mxu0
    %v2595 = vpop.f32.mrf.mxu0
    %2596 = vdwg.mxu0
    %2597 = vmatprep.subr.bf16.mxu0 %v2329
    %2598 = vmatpush1.bf16.msra.mxu0 %v2328
    %2599 = vmatprep.subr.bf16.mxu0 %v2327
    %2600 = vmatpush1.bf16.msra.mxu0 %v2326
    %2601 = vmatprep.subr.bf16.mxu0 %v2325
    %2602 = vmatpush1.bf16.msra.mxu0 %v2324
    %2603 = vmatprep.subr.bf16.mxu0 %v2323
    %2604 = vmatpush1.bf16.msra.mxu0 %v2322
    %2605 = vmatprep.subr.bf16.mxu0 %v2321
    %2606 = vmatpush1.bf16.msra.mxu0 %v2320
    %2607 = vmatprep.subr.bf16.mxu0 %v2319
    %2608 = vmatpush1.bf16.msra.mxu0 %v2318
    %2609 = vmatprep.subr.bf16.mxu0 %v2317
    %2610 = vmatpush1.bf16.msra.mxu0 %v2316
    %2611 = vmatprep.subr.bf16.mxu0 %v2315
    %2612 = vmatpush1.bf16.msra.mxu0 %v2314
    %2613 = vmatprep.subr.bf16.mxu0 %v2345
    %2614 = vmatpush2.bf16.msra.mxu0 %v2344
    %2615 = vmatprep.subr.bf16.mxu0 %v2343
    %2616 = vmatpush2.bf16.msra.mxu0 %v2342
    %2617 = vmatprep.subr.bf16.mxu0 %v2341
    %2618 = vmatpush2.bf16.msra.mxu0 %v2340
    %2619 = vmatprep.subr.bf16.mxu0 %v2339
    %2620 = vmatpush2.bf16.msra.mxu0 %v2338
    %2621 = vmatprep.subr.bf16.mxu0 %v2337
    %2622 = vmatpush2.bf16.msra.mxu0 %v2336
    %2623 = vmatprep.subr.bf16.mxu0 %v2335
    %2624 = vmatpush2.bf16.msra.mxu0 %v2334
    %2625 = vmatprep.subr.bf16.mxu0 %v2333
    %2626 = vmatpush2.bf16.msra.mxu0 %v2332
    %2627 = vmatprep.subr.bf16.mxu0 %v2331
    %2628 = vmatpush2.bf16.msra.mxu0 %v2330
    %2629 = vmatprep.mubr.bf16.mxu0 %v1577
    %2630 = vmatmul.mubr.bf16.gmra.mxu0 %v1576
    %v2631 = vpop.f32.mrf.mxu0
    %v2632 = vadd.f32 %v2591, %v2631
    %v2633 = vpop.f32.mrf.mxu0
    %v2634 = vadd.f32 %v2593, %v2633
    %v2635 = vpop.f32.mrf.mxu0
    %v2636 = vpop.f32.mrf.mxu0
    %2637 = vdwg.mxu0
    %v2766 = vunpack.c.l.b16 %v1578
    %v2767 = vunpack.c.h.b16 %v1578
    %v2768 = vunpack.c.l.b16 %v1579
    %v2769 = vunpack.c.h.b16 %v1579
    %v2770 = vunpack.c.l.b16 %v1580
    %v2771 = vunpack.c.h.b16 %v1580
    %v2772 = vunpack.c.l.b16 %v1581
    %v2773 = vunpack.c.h.b16 %v1581
    %v2774 = vunpack.c.l.b16 %v1582
    %v2775 = vunpack.c.h.b16 %v1582
    %v2776 = vunpack.c.l.b16 %v1583
    %v2777 = vunpack.c.h.b16 %v1583
    %v2778 = vunpack.c.l.b16 %v1584
    %v2779 = vunpack.c.h.b16 %v1584
    %v2780 = vunpack.c.l.b16 %v1585
    %v2781 = vunpack.c.h.b16 %v1585
    %v2782 = vunpack.c.l.b16 %v1586
    %v2783 = vunpack.c.h.b16 %v1586
    %v2784 = vunpack.c.l.b16 %v1587
    %v2785 = vunpack.c.h.b16 %v1587
    %v2786 = vunpack.c.l.b16 %v1588
    %v2787 = vunpack.c.h.b16 %v1588
    %v2788 = vunpack.c.l.b16 %v1589
    %v2789 = vunpack.c.h.b16 %v1589
    %v2790 = vunpack.c.l.b16 %v1590
    %v2791 = vunpack.c.h.b16 %v1590
    %v2792 = vunpack.c.l.b16 %v1591
    %v2793 = vunpack.c.h.b16 %v1591
    %v2794 = vunpack.c.l.b16 %v1592
    %v2795 = vunpack.c.h.b16 %v1592
    %v2796 = vunpack.c.l.b16 %v1593
    %v2797 = vunpack.c.h.b16 %v1593
    %v2798 = vunpack.c.l.b16 %v1594
    %v2799 = vunpack.c.h.b16 %v1594
    %v2800 = vunpack.c.l.b16 %v1595
    %v2801 = vunpack.c.h.b16 %v1595
    %v2802 = vunpack.c.l.b16 %v1596
    %v2803 = vunpack.c.h.b16 %v1596
    %v2804 = vunpack.c.l.b16 %v1597
    %v2805 = vunpack.c.h.b16 %v1597
    %v2806 = vunpack.c.l.b16 %v1598
    %v2807 = vunpack.c.h.b16 %v1598
    %v2808 = vunpack.c.l.b16 %v1599
    %v2809 = vunpack.c.h.b16 %v1599
    %v2810 = vunpack.c.l.b16 %v1600
    %v2811 = vunpack.c.h.b16 %v1600
    %v2812 = vunpack.c.l.b16 %v1601
    %v2813 = vunpack.c.h.b16 %v1601
    %v2814 = vunpack.c.l.b16 %v1602
    %v2815 = vunpack.c.h.b16 %v1602
    %v2816 = vunpack.c.l.b16 %v1603
    %v2817 = vunpack.c.h.b16 %v1603
    %v2818 = vunpack.c.l.b16 %v1604
    %v2819 = vunpack.c.h.b16 %v1604
    %v2820 = vunpack.c.l.b16 %v1605
    %v2821 = vunpack.c.h.b16 %v1605
    %v2822 = vunpack.c.l.b16 %v1606
    %v2823 = vunpack.c.h.b16 %v1606
    %v2824 = vunpack.c.l.b16 %v1607
    %v2825 = vunpack.c.h.b16 %v1607
    %v2826 = vunpack.c.l.b16 %v1608
    %v2827 = vunpack.c.h.b16 %v1608
    %v2828 = vunpack.c.l.b16 %v1609
    %v2829 = vunpack.c.h.b16 %v1609
    %v2830 = vunpack.c.l.b16 %v1610
    %v2831 = vunpack.c.h.b16 %v1610
    %v2832 = vunpack.c.l.b16 %v1611
    %v2833 = vunpack.c.h.b16 %v1611
    %v2834 = vunpack.c.l.b16 %v1612
    %v2835 = vunpack.c.h.b16 %v1612
    %v2836 = vunpack.c.l.b16 %v1613
    %v2837 = vunpack.c.h.b16 %v1613
    %v2838 = vunpack.c.l.b16 %v1614
    %v2839 = vunpack.c.h.b16 %v1614
    %v2840 = vunpack.c.l.b16 %v1615
    %v2841 = vunpack.c.h.b16 %v1615
    %v2842 = vunpack.c.l.b16 %v1616
    %v2843 = vunpack.c.h.b16 %v1616
    %v2844 = vunpack.c.l.b16 %v1617
    %v2845 = vunpack.c.h.b16 %v1617
    %v2846 = vunpack.c.l.b16 %v1618
    %v2847 = vunpack.c.h.b16 %v1618
    %v2848 = vunpack.c.l.b16 %v1619
    %v2849 = vunpack.c.h.b16 %v1619
    %v2850 = vunpack.c.l.b16 %v1620
    %v2851 = vunpack.c.h.b16 %v1620
    %v2852 = vunpack.c.l.b16 %v1621
    %v2853 = vunpack.c.h.b16 %v1621
    %v2854 = vunpack.c.l.b16 %v1622
    %v2855 = vunpack.c.h.b16 %v1622
    %v2856 = vunpack.c.l.b16 %v1623
    %v2857 = vunpack.c.h.b16 %v1623
    %v2858 = vunpack.c.l.b16 %v1624
    %v2859 = vunpack.c.h.b16 %v1624
    %v2860 = vunpack.c.l.b16 %v1625
    %v2861 = vunpack.c.h.b16 %v1625
    %v2862 = vunpack.c.l.b16 %v1626
    %v2863 = vunpack.c.h.b16 %v1626
    %v2864 = vunpack.c.l.b16 %v1627
    %v2865 = vunpack.c.h.b16 %v1627
    %v2866 = vunpack.c.l.b16 %v1628
    %v2867 = vunpack.c.h.b16 %v1628
    %v2868 = vunpack.c.l.b16 %v1629
    %v2869 = vunpack.c.h.b16 %v1629
    %v2870 = vunpack.c.l.b16 %v1630
    %v2871 = vunpack.c.h.b16 %v1630
    %v2872 = vunpack.c.l.b16 %v1631
    %v2873 = vunpack.c.h.b16 %v1631
    %v2874 = vunpack.c.l.b16 %v1632
    %v2875 = vunpack.c.h.b16 %v1632
    %v2876 = vunpack.c.l.b16 %v1633
    %v2877 = vunpack.c.h.b16 %v1633
    %v2878 = vunpack.c.l.b16 %v1634
    %v2879 = vunpack.c.h.b16 %v1634
    %v2880 = vunpack.c.l.b16 %v1635
    %v2881 = vunpack.c.h.b16 %v1635
    %v2882 = vunpack.c.l.b16 %v1636
    %v2883 = vunpack.c.h.b16 %v1636
    %v2884 = vunpack.c.l.b16 %v1637
    %v2885 = vunpack.c.h.b16 %v1637
    %v2886 = vunpack.c.l.b16 %v1638
    %v2887 = vunpack.c.h.b16 %v1638
    %v2888 = vunpack.c.l.b16 %v1639
    %v2889 = vunpack.c.h.b16 %v1639
    %v2890 = vunpack.c.l.b16 %v1640
    %v2891 = vunpack.c.h.b16 %v1640
    %v2892 = vunpack.c.l.b16 %v1641
    %v2893 = vunpack.c.h.b16 %v1641
    %v2894 = vunpack.c.l.b16 %v1642
    %v2895 = vunpack.c.h.b16 %v1642
    %v2896 = vunpack.c.l.b16 %v1643
    %v2897 = vunpack.c.h.b16 %v1643
    %v2898 = vunpack.c.l.b16 %v1644
    %v2899 = vunpack.c.h.b16 %v1644
    %v2900 = vunpack.c.l.b16 %v1645
    %v2901 = vunpack.c.h.b16 %v1645
    %v2902 = vunpack.c.l.b16 %v1646
    %v2903 = vunpack.c.h.b16 %v1646
    %v2904 = vunpack.c.l.b16 %v1647
    %v2905 = vunpack.c.h.b16 %v1647
    %v2906 = vunpack.c.l.b16 %v1648
    %v2907 = vunpack.c.h.b16 %v1648
    %v2908 = vunpack.c.l.b16 %v1649
    %v2909 = vunpack.c.h.b16 %v1649
    %v2910 = vunpack.c.l.b16 %v1650
    %v2911 = vunpack.c.h.b16 %v1650
    %v2912 = vunpack.c.l.b16 %v1651
    %v2913 = vunpack.c.h.b16 %v1651
    %v2914 = vunpack.c.l.b16 %v1652
    %v2915 = vunpack.c.h.b16 %v1652
    %v2916 = vunpack.c.l.b16 %v1653
    %v2917 = vunpack.c.h.b16 %v1653
    %v2918 = vunpack.c.l.b16 %v1654
    %v2919 = vunpack.c.h.b16 %v1654
    %v2920 = vunpack.c.l.b16 %v1655
    %v2921 = vunpack.c.h.b16 %v1655
    %v2922 = vunpack.c.l.b16 %v1656
    %v2923 = vunpack.c.h.b16 %v1656
    %v2924 = vunpack.c.l.b16 %v1657
    %v2925 = vunpack.c.h.b16 %v1657
    %v2926 = vunpack.c.l.b16 %v1658
    %v2927 = vunpack.c.h.b16 %v1658
    %v2928 = vunpack.c.l.b16 %v1659
    %v2929 = vunpack.c.h.b16 %v1659
    %v2930 = vunpack.c.l.b16 %v1660
    %v2931 = vunpack.c.h.b16 %v1660
    %v2932 = vunpack.c.l.b16 %v1661
    %v2933 = vunpack.c.h.b16 %v1661
    %v2934 = vunpack.c.l.b16 %v1662
    %v2935 = vunpack.c.h.b16 %v1662
    %v2936 = vunpack.c.l.b16 %v1663
    %v2937 = vunpack.c.h.b16 %v1663
    %v2938 = vunpack.c.l.b16 %v1664
    %v2939 = vunpack.c.h.b16 %v1664
    %v2940 = vunpack.c.l.b16 %v1665
    %v2941 = vunpack.c.h.b16 %v1665
    %v2942 = vunpack.c.l.b16 %v1666
    %v2943 = vunpack.c.h.b16 %v1666
    %v2944 = vunpack.c.l.b16 %v1667
    %v2945 = vunpack.c.h.b16 %v1667
    %v2946 = vunpack.c.l.b16 %v1668
    %v2947 = vunpack.c.h.b16 %v1668
    %v2948 = vunpack.c.l.b16 %v1669
    %v2949 = vunpack.c.h.b16 %v1669
    %v2950 = vunpack.c.l.b16 %v1670
    %v2951 = vunpack.c.h.b16 %v1670
    %v2952 = vunpack.c.l.b16 %v1671
    %v2953 = vunpack.c.h.b16 %v1671
    %v2954 = vunpack.c.l.b16 %v1672
    %v2955 = vunpack.c.h.b16 %v1672
    %v2956 = vunpack.c.l.b16 %v1673
    %v2957 = vunpack.c.h.b16 %v1673
    %v2958 = vunpack.c.l.b16 %v1674
    %v2959 = vunpack.c.h.b16 %v1674
    %v2960 = vunpack.c.l.b16 %v1675
    %v2961 = vunpack.c.h.b16 %v1675
    %v2962 = vunpack.c.l.b16 %v1676
    %v2963 = vunpack.c.h.b16 %v1676
    %v2964 = vunpack.c.l.b16 %v1677
    %v2965 = vunpack.c.h.b16 %v1677
    %v2966 = vunpack.c.l.b16 %v1678
    %v2967 = vunpack.c.h.b16 %v1678
    %v2968 = vunpack.c.l.b16 %v1679
    %v2969 = vunpack.c.h.b16 %v1679
    %v2970 = vunpack.c.l.b16 %v1680
    %v2971 = vunpack.c.h.b16 %v1680
    %v2972 = vunpack.c.l.b16 %v1681
    %v2973 = vunpack.c.h.b16 %v1681
    %v2974 = vunpack.c.l.b16 %v1682
    %v2975 = vunpack.c.h.b16 %v1682
    %v2976 = vunpack.c.l.b16 %v1683
    %v2977 = vunpack.c.h.b16 %v1683
    %v2978 = vunpack.c.l.b16 %v1684
    %v2979 = vunpack.c.h.b16 %v1684
    %v2980 = vunpack.c.l.b16 %v1685
    %v2981 = vunpack.c.h.b16 %v1685
    %v2982 = vunpack.c.l.b16 %v1686
    %v2983 = vunpack.c.h.b16 %v1686
    %v2984 = vunpack.c.l.b16 %v1687
    %v2985 = vunpack.c.h.b16 %v1687
    %v2986 = vunpack.c.l.b16 %v1688
    %v2987 = vunpack.c.h.b16 %v1688
    %v2988 = vunpack.c.l.b16 %v1689
    %v2989 = vunpack.c.h.b16 %v1689
    %v2990 = vunpack.c.l.b16 %v1690
    %v2991 = vunpack.c.h.b16 %v1690
    %v2992 = vunpack.c.l.b16 %v1691
    %v2993 = vunpack.c.h.b16 %v1691
    %v2994 = vunpack.c.l.b16 %v1692
    %v2995 = vunpack.c.h.b16 %v1692
    %v2996 = vunpack.c.l.b16 %v1693
    %v2997 = vunpack.c.h.b16 %v1693
    %v2998 = vunpack.c.l.b16 %v1694
    %v2999 = vunpack.c.h.b16 %v1694
    %v3000 = vunpack.c.l.b16 %v1695
    %v3001 = vunpack.c.h.b16 %v1695
    %v3002 = vunpack.c.l.b16 %v1696
    %v3003 = vunpack.c.h.b16 %v1696
    %v3004 = vunpack.c.l.b16 %v1697
    %v3005 = vunpack.c.h.b16 %v1697
    %v3006 = vunpack.c.l.b16 %v1698
    %v3007 = vunpack.c.h.b16 %v1698
    %v3008 = vunpack.c.l.b16 %v1699
    %v3009 = vunpack.c.h.b16 %v1699
    %v3010 = vunpack.c.l.b16 %v1700
    %v3011 = vunpack.c.h.b16 %v1700
    %v3012 = vunpack.c.l.b16 %v1701
    %v3013 = vunpack.c.h.b16 %v1701
    %v3014 = vunpack.c.l.b16 %v1702
    %v3015 = vunpack.c.h.b16 %v1702
    %v3016 = vunpack.c.l.b16 %v1703
    %v3017 = vunpack.c.h.b16 %v1703
    %v3018 = vunpack.c.l.b16 %v1704
    %v3019 = vunpack.c.h.b16 %v1704
    %v3020 = vunpack.c.l.b16 %v1705
    %v3021 = vunpack.c.h.b16 %v1705
    %v3022 = vpack.c.b16 %v2768, %v2766
    %v3023 = vpack.c.b16 %v2769, %v2767
    %v3024 = vpack.c.b16 %v2772, %v2770
    %v3025 = vpack.c.b16 %v2773, %v2771
    %v3026 = vpack.c.b16 %v2776, %v2774
    %v3027 = vpack.c.b16 %v2777, %v2775
    %v3028 = vpack.c.b16 %v2780, %v2778
    %v3029 = vpack.c.b16 %v2781, %v2779
    %v3030 = vpack.c.b16 %v2784, %v2782
    %v3031 = vpack.c.b16 %v2785, %v2783
    %v3032 = vpack.c.b16 %v2788, %v2786
    %v3033 = vpack.c.b16 %v2789, %v2787
    %v3034 = vpack.c.b16 %v2792, %v2790
    %v3035 = vpack.c.b16 %v2793, %v2791
    %v3036 = vpack.c.b16 %v2796, %v2794
    %v3037 = vpack.c.b16 %v2797, %v2795
    %v3038 = vpack.c.b16 %v2800, %v2798
    %v3039 = vpack.c.b16 %v2801, %v2799
    %v3040 = vpack.c.b16 %v2804, %v2802
    %v3041 = vpack.c.b16 %v2805, %v2803
    %v3042 = vpack.c.b16 %v2808, %v2806
    %v3043 = vpack.c.b16 %v2809, %v2807
    %v3044 = vpack.c.b16 %v2812, %v2810
    %v3045 = vpack.c.b16 %v2813, %v2811
    %v3046 = vpack.c.b16 %v2816, %v2814
    %v3047 = vpack.c.b16 %v2817, %v2815
    %v3048 = vpack.c.b16 %v2820, %v2818
    %v3049 = vpack.c.b16 %v2821, %v2819
    %v3050 = vpack.c.b16 %v2824, %v2822
    %v3051 = vpack.c.b16 %v2825, %v2823
    %v3052 = vpack.c.b16 %v2828, %v2826
    %v3053 = vpack.c.b16 %v2829, %v2827
    %v3054 = vpack.c.b16 %v2832, %v2830
    %v3055 = vpack.c.b16 %v2833, %v2831
    %v3056 = vpack.c.b16 %v2836, %v2834
    %v3057 = vpack.c.b16 %v2837, %v2835
    %v3058 = vpack.c.b16 %v2840, %v2838
    %v3059 = vpack.c.b16 %v2841, %v2839
    %v3060 = vpack.c.b16 %v2844, %v2842
    %v3061 = vpack.c.b16 %v2845, %v2843
    %v3062 = vpack.c.b16 %v2848, %v2846
    %v3063 = vpack.c.b16 %v2849, %v2847
    %v3064 = vpack.c.b16 %v2852, %v2850
    %v3065 = vpack.c.b16 %v2853, %v2851
    %v3066 = vpack.c.b16 %v2856, %v2854
    %v3067 = vpack.c.b16 %v2857, %v2855
    %v3068 = vpack.c.b16 %v2860, %v2858
    %v3069 = vpack.c.b16 %v2861, %v2859
    %v3070 = vpack.c.b16 %v2864, %v2862
    %v3071 = vpack.c.b16 %v2865, %v2863
    %v3072 = vpack.c.b16 %v2868, %v2866
    %v3073 = vpack.c.b16 %v2869, %v2867
    %v3074 = vpack.c.b16 %v2872, %v2870
    %v3075 = vpack.c.b16 %v2873, %v2871
    %v3076 = vpack.c.b16 %v2876, %v2874
    %v3077 = vpack.c.b16 %v2877, %v2875
    %v3078 = vpack.c.b16 %v2880, %v2878
    %v3079 = vpack.c.b16 %v2881, %v2879
    %v3080 = vpack.c.b16 %v2884, %v2882
    %v3081 = vpack.c.b16 %v2885, %v2883
    %v3082 = vpack.c.b16 %v2888, %v2886
    %v3083 = vpack.c.b16 %v2889, %v2887
    %v3084 = vpack.c.b16 %v2892, %v2890
    %v3085 = vpack.c.b16 %v2893, %v2891
    %v3086 = vpack.c.b16 %v2896, %v2894
    %v3087 = vpack.c.b16 %v2897, %v2895
    %v3088 = vpack.c.b16 %v2900, %v2898
    %v3089 = vpack.c.b16 %v2901, %v2899
    %v3090 = vpack.c.b16 %v2904, %v2902
    %v3091 = vpack.c.b16 %v2905, %v2903
    %v3092 = vpack.c.b16 %v2908, %v2906
    %v3093 = vpack.c.b16 %v2909, %v2907
    %v3094 = vpack.c.b16 %v2912, %v2910
    %v3095 = vpack.c.b16 %v2913, %v2911
    %v3096 = vpack.c.b16 %v2916, %v2914
    %v3097 = vpack.c.b16 %v2917, %v2915
    %v3098 = vpack.c.b16 %v2920, %v2918
    %v3099 = vpack.c.b16 %v2921, %v2919
    %v3100 = vpack.c.b16 %v2924, %v2922
    %v3101 = vpack.c.b16 %v2925, %v2923
    %v3102 = vpack.c.b16 %v2928, %v2926
    %v3103 = vpack.c.b16 %v2929, %v2927
    %v3104 = vpack.c.b16 %v2932, %v2930
    %v3105 = vpack.c.b16 %v2933, %v2931
    %v3106 = vpack.c.b16 %v2936, %v2934
    %v3107 = vpack.c.b16 %v2937, %v2935
    %v3108 = vpack.c.b16 %v2940, %v2938
    %v3109 = vpack.c.b16 %v2941, %v2939
    %v3110 = vpack.c.b16 %v2944, %v2942
    %v3111 = vpack.c.b16 %v2945, %v2943
    %v3112 = vpack.c.b16 %v2948, %v2946
    %v3113 = vpack.c.b16 %v2949, %v2947
    %v3114 = vpack.c.b16 %v2952, %v2950
    %v3115 = vpack.c.b16 %v2953, %v2951
    %v3116 = vpack.c.b16 %v2956, %v2954
    %v3117 = vpack.c.b16 %v2957, %v2955
    %v3118 = vpack.c.b16 %v2960, %v2958
    %v3119 = vpack.c.b16 %v2961, %v2959
    %v3120 = vpack.c.b16 %v2964, %v2962
    %v3121 = vpack.c.b16 %v2965, %v2963
    %v3122 = vpack.c.b16 %v2968, %v2966
    %v3123 = vpack.c.b16 %v2969, %v2967
    %v3124 = vpack.c.b16 %v2972, %v2970
    %v3125 = vpack.c.b16 %v2973, %v2971
    %v3126 = vpack.c.b16 %v2976, %v2974
    %v3127 = vpack.c.b16 %v2977, %v2975
    %v3128 = vpack.c.b16 %v2980, %v2978
    %v3129 = vpack.c.b16 %v2981, %v2979
    %v3130 = vpack.c.b16 %v2984, %v2982
    %v3131 = vpack.c.b16 %v2985, %v2983
    %v3132 = vpack.c.b16 %v2988, %v2986
    %v3133 = vpack.c.b16 %v2989, %v2987
    %v3134 = vpack.c.b16 %v2992, %v2990
    %v3135 = vpack.c.b16 %v2993, %v2991
    %v3136 = vpack.c.b16 %v2996, %v2994
    %v3137 = vpack.c.b16 %v2997, %v2995
    %v3138 = vpack.c.b16 %v3000, %v2998
    %v3139 = vpack.c.b16 %v3001, %v2999
    %v3140 = vpack.c.b16 %v3004, %v3002
    %v3141 = vpack.c.b16 %v3005, %v3003
    %v3142 = vpack.c.b16 %v3008, %v3006
    %v3143 = vpack.c.b16 %v3009, %v3007
    %v3144 = vpack.c.b16 %v3012, %v3010
    %v3145 = vpack.c.b16 %v3013, %v3011
    %v3146 = vpack.c.b16 %v3016, %v3014
    %v3147 = vpack.c.b16 %v3017, %v3015
    %v3148 = vpack.c.b16 %v3020, %v3018
    %v3149 = vpack.c.b16 %v3021, %v3019
    %3278 = vmatprep.subr.bf16.mxu0 %v3037
    %3279 = vmatpush1.bf16.msra.mxu0 %v3036
    %3280 = vmatprep.subr.bf16.mxu0 %v3035
    %3281 = vmatpush1.bf16.msra.mxu0 %v3034
    %3282 = vmatprep.subr.bf16.mxu0 %v3033
    %3283 = vmatpush1.bf16.msra.mxu0 %v3032
    %3284 = vmatprep.subr.bf16.mxu0 %v3031
    %3285 = vmatpush1.bf16.msra.mxu0 %v3030
    %3286 = vmatprep.subr.bf16.mxu0 %v3029
    %3287 = vmatpush1.bf16.msra.mxu0 %v3028
    %3288 = vmatprep.subr.bf16.mxu0 %v3027
    %3289 = vmatpush1.bf16.msra.mxu0 %v3026
    %3290 = vmatprep.subr.bf16.mxu0 %v3025
    %3291 = vmatpush1.bf16.msra.mxu0 %v3024
    %3292 = vmatprep.subr.bf16.mxu0 %v3023
    %3293 = vmatpush1.bf16.msra.mxu0 %v3022
    %3294 = vmatprep.subr.bf16.mxu0 %v3053
    %3295 = vmatpush2.bf16.msra.mxu0 %v3052
    %3296 = vmatprep.subr.bf16.mxu0 %v3051
    %3297 = vmatpush2.bf16.msra.mxu0 %v3050
    %3298 = vmatprep.subr.bf16.mxu0 %v3049
    %3299 = vmatpush2.bf16.msra.mxu0 %v3048
    %3300 = vmatprep.subr.bf16.mxu0 %v3047
    %3301 = vmatpush2.bf16.msra.mxu0 %v3046
    %3302 = vmatprep.subr.bf16.mxu0 %v3045
    %3303 = vmatpush2.bf16.msra.mxu0 %v3044
    %3304 = vmatprep.subr.bf16.mxu0 %v3043
    %3305 = vmatpush2.bf16.msra.mxu0 %v3042
    %3306 = vmatprep.subr.bf16.mxu0 %v3041
    %3307 = vmatpush2.bf16.msra.mxu0 %v3040
    %3308 = vmatprep.subr.bf16.mxu0 %v3039
    %3309 = vmatpush2.bf16.msra.mxu0 %v3038
    %3310 = vmatprep.mubr.bf16.mxu0 %v1563
    %3311 = vmatmul.mubr.bf16.gmra.mxu0 %v1562
    %v3312 = vpop.f32.mrf.mxu0
    %v3313 = vadd.f32 %v2632, %v3312
    %v3314 = vpop.f32.mrf.mxu0
    %v3315 = vadd.f32 %v2634, %v3314
    %v3316 = vpop.f32.mrf.mxu0
    %v3317 = vpop.f32.mrf.mxu0
    %3318 = vdwg.mxu0
    %3319 = vmatprep.subr.bf16.mxu0 %v3069
    %3320 = vmatpush1.bf16.msra.mxu0 %v3068
    %3321 = vmatprep.subr.bf16.mxu0 %v3067
    %3322 = vmatpush1.bf16.msra.mxu0 %v3066
    %3323 = vmatprep.subr.bf16.mxu0 %v3065
    %3324 = vmatpush1.bf16.msra.mxu0 %v3064
    %3325 = vmatprep.subr.bf16.mxu0 %v3063
    %3326 = vmatpush1.bf16.msra.mxu0 %v3062
    %3327 = vmatprep.subr.bf16.mxu0 %v3061
    %3328 = vmatpush1.bf16.msra.mxu0 %v3060
    %3329 = vmatprep.subr.bf16.mxu0 %v3059
    %3330 = vmatpush1.bf16.msra.mxu0 %v3058
    %3331 = vmatprep.subr.bf16.mxu0 %v3057
    %3332 = vmatpush1.bf16.msra.mxu0 %v3056
    %3333 = vmatprep.subr.bf16.mxu0 %v3055
    %3334 = vmatpush1.bf16.msra.mxu0 %v3054
    %3335 = vmatprep.subr.bf16.mxu0 %v3085
    %3336 = vmatpush2.bf16.msra.mxu0 %v3084
    %3337 = vmatprep.subr.bf16.mxu0 %v3083
    %3338 = vmatpush2.bf16.msra.mxu0 %v3082
    %3339 = vmatprep.subr.bf16.mxu0 %v3081
    %3340 = vmatpush2.bf16.msra.mxu0 %v3080
    %3341 = vmatprep.subr.bf16.mxu0 %v3079
    %3342 = vmatpush2.bf16.msra.mxu0 %v3078
    %3343 = vmatprep.subr.bf16.mxu0 %v3077
    %3344 = vmatpush2.bf16.msra.mxu0 %v3076
    %3345 = vmatprep.subr.bf16.mxu0 %v3075
    %3346 = vmatpush2.bf16.msra.mxu0 %v3074
    %3347 = vmatprep.subr.bf16.mxu0 %v3073
    %3348 = vmatpush2.bf16.msra.mxu0 %v3072
    %3349 = vmatprep.subr.bf16.mxu0 %v3071
    %3350 = vmatpush2.bf16.msra.mxu0 %v3070
    %3351 = vmatprep.mubr.bf16.mxu0 %v1565
    %3352 = vmatmul.mubr.bf16.gmra.mxu0 %v1564
    %v3353 = vpop.f32.mrf.mxu0
    %v3354 = vadd.f32 %v3313, %v3353
    %v3355 = vpop.f32.mrf.mxu0
    %v3356 = vadd.f32 %v3315, %v3355
    %v3357 = vpop.f32.mrf.mxu0
    %v3358 = vpop.f32.mrf.mxu0
    %3359 = vdwg.mxu0
    %3360 = vmatprep.subr.bf16.mxu0 %v3101
    %3361 = vmatpush1.bf16.msra.mxu0 %v3100
    %3362 = vmatprep.subr.bf16.mxu0 %v3099
    %3363 = vmatpush1.bf16.msra.mxu0 %v3098
    %3364 = vmatprep.subr.bf16.mxu0 %v3097
    %3365 = vmatpush1.bf16.msra.mxu0 %v3096
    %3366 = vmatprep.subr.bf16.mxu0 %v3095
    %3367 = vmatpush1.bf16.msra.mxu0 %v3094
    %3368 = vmatprep.subr.bf16.mxu0 %v3093
    %3369 = vmatpush1.bf16.msra.mxu0 %v3092
    %3370 = vmatprep.subr.bf16.mxu0 %v3091
    %3371 = vmatpush1.bf16.msra.mxu0 %v3090
    %3372 = vmatprep.subr.bf16.mxu0 %v3089
    %3373 = vmatpush1.bf16.msra.mxu0 %v3088
    %3374 = vmatprep.subr.bf16.mxu0 %v3087
    %3375 = vmatpush1.bf16.msra.mxu0 %v3086
    %3376 = vmatprep.subr.bf16.mxu0 %v3117
    %3377 = vmatpush2.bf16.msra.mxu0 %v3116
    %3378 = vmatprep.subr.bf16.mxu0 %v3115
    %3379 = vmatpush2.bf16.msra.mxu0 %v3114
    %3380 = vmatprep.subr.bf16.mxu0 %v3113
    %3381 = vmatpush2.bf16.msra.mxu0 %v3112
    %3382 = vmatprep.subr.bf16.mxu0 %v3111
    %3383 = vmatpush2.bf16.msra.mxu0 %v3110
    %3384 = vmatprep.subr.bf16.mxu0 %v3109
    %3385 = vmatpush2.bf16.msra.mxu0 %v3108
    %3386 = vmatprep.subr.bf16.mxu0 %v3107
    %3387 = vmatpush2.bf16.msra.mxu0 %v3106
    %3388 = vmatprep.subr.bf16.mxu0 %v3105
    %3389 = vmatpush2.bf16.msra.mxu0 %v3104
    %3390 = vmatprep.subr.bf16.mxu0 %v3103
    %3391 = vmatpush2.bf16.msra.mxu0 %v3102
    %3392 = vmatprep.mubr.bf16.mxu0 %v1567
    %3393 = vmatmul.mubr.bf16.gmra.mxu0 %v1566
    %v3394 = vpop.f32.mrf.mxu0
    %v3395 = vadd.f32 %v3354, %v3394
    %v3396 = vpop.f32.mrf.mxu0
    %v3397 = vadd.f32 %v3356, %v3396
    %v3398 = vpop.f32.mrf.mxu0
    %v3399 = vpop.f32.mrf.mxu0
    %3400 = vdwg.mxu0
    %3401 = vmatprep.subr.bf16.mxu0 %v3133
    %3402 = vmatpush1.bf16.msra.mxu0 %v3132
    %3403 = vmatprep.subr.bf16.mxu0 %v3131
    %3404 = vmatpush1.bf16.msra.mxu0 %v3130
    %3405 = vmatprep.subr.bf16.mxu0 %v3129
    %3406 = vmatpush1.bf16.msra.mxu0 %v3128
    %3407 = vmatprep.subr.bf16.mxu0 %v3127
    %3408 = vmatpush1.bf16.msra.mxu0 %v3126
    %3409 = vmatprep.subr.bf16.mxu0 %v3125
    %3410 = vmatpush1.bf16.msra.mxu0 %v3124
    %3411 = vmatprep.subr.bf16.mxu0 %v3123
    %3412 = vmatpush1.bf16.msra.mxu0 %v3122
    %3413 = vmatprep.subr.bf16.mxu0 %v3121
    %3414 = vmatpush1.bf16.msra.mxu0 %v3120
    %3415 = vmatprep.subr.bf16.mxu0 %v3119
    %3416 = vmatpush1.bf16.msra.mxu0 %v3118
    %3417 = vmatprep.subr.bf16.mxu0 %v3149
    %3418 = vmatpush2.bf16.msra.mxu0 %v3148
    %3419 = vmatprep.subr.bf16.mxu0 %v3147
    %3420 = vmatpush2.bf16.msra.mxu0 %v3146
    %3421 = vmatprep.subr.bf16.mxu0 %v3145
    %3422 = vmatpush2.bf16.msra.mxu0 %v3144
    %3423 = vmatprep.subr.bf16.mxu0 %v3143
    %3424 = vmatpush2.bf16.msra.mxu0 %v3142
    %3425 = vmatprep.subr.bf16.mxu0 %v3141
    %3426 = vmatpush2.bf16.msra.mxu0 %v3140
    %3427 = vmatprep.subr.bf16.mxu0 %v3139
    %3428 = vmatpush2.bf16.msra.mxu0 %v3138
    %3429 = vmatprep.subr.bf16.mxu0 %v3137
    %3430 = vmatpush2.bf16.msra.mxu0 %v3136
    %3431 = vmatprep.subr.bf16.mxu0 %v3135
    %3432 = vmatpush2.bf16.msra.mxu0 %v3134
    %3433 = vmatprep.mubr.bf16.mxu0 %v1569
    %3434 = vmatmul.mubr.bf16.gmra.mxu0 %v1568
    %v3435 = vpop.f32.mrf.mxu0
    %v3436 = vadd.f32 %v3395, %v3435
    %v3437 = vpop.f32.mrf.mxu0
    %v3438 = vadd.f32 %v3397, %v3437
    %v3439 = vpop.f32.mrf.mxu0
    %v3440 = vpop.f32.mrf.mxu0
    %3441 = vdwg.mxu0
    %v3442 = vld [vmem:[%s6] sm:$0x3]
    %v3444 = vlaneseq
    %v3445 = vshrl.u32 %v3444, 7
    %v3446 = vsub.s32 0, %v3445
    %v3447 = vrot.slane %v3442, %v3446
    %v3448 = vlaneseq
    %v3449 = vshrl.u32 %v3448, 7
    %v3450 = vsub.s32 1, %v3449
    %v3451 = vrot.slane %v3442, %v3450
    %v3454 = vadd.f32 %v3436, %v3447
    %v3455 = vadd.f32 %v3438, %v3451
    %v3456 = vmax.f32 %v3454, 0.0
    %v3457 = vmax.f32 %v3455, 0.0
    %v3458 = vpack.c.bf16 %v3456, %v3456
    %v3459 = vpack.c.bf16 %v3457, %v3457
    %v3460 = vld [vmem:[#allocation13] sm:$0xf]
    %v3461 = vld [vmem:[#allocation13 + $0x4] sm:$0xf]
    %v3462 = vld [vmem:[#allocation13 + $0x8] sm:$0xf]
    %v3463 = vld [vmem:[#allocation13 + $0xc] sm:$0xf]
    %v3464 = vld [vmem:[#allocation13 + $0x10] sm:$0xf]
    %v3465 = vld [vmem:[#allocation13 + $0x14] sm:$0xf]
    %v3466 = vld [vmem:[#allocation13 + $0x18] sm:$0xf]
    %v3467 = vld [vmem:[#allocation13 + $0x1c] sm:$0xf]
    %v3468 = vld [vmem:[#allocation13 + $0x20] sm:$0xf]
    %v3469 = vld [vmem:[#allocation13 + $0x24] sm:$0xf]
    %v3470 = vld [vmem:[#allocation13 + $0x28] sm:$0xf]
    %v3471 = vld [vmem:[#allocation13 + $0x2c] sm:$0xf]
    %v3472 = vld [vmem:[#allocation13 + $0x30] sm:$0xf]
    %v3473 = vld [vmem:[#allocation13 + $0x34] sm:$0xf]
    %v3474 = vld [vmem:[#allocation13 + $0x38] sm:$0xf]
    %v3475 = vld [vmem:[#allocation13 + $0x3c] sm:$0xf]
    %v3476 = vld [vmem:[#allocation13 + $0x40] sm:$0xf]
    %v3477 = vld [vmem:[#allocation13 + $0x44] sm:$0xf]
    %v3478 = vld [vmem:[#allocation13 + $0x48] sm:$0xf]
    %v3479 = vld [vmem:[#allocation13 + $0x4c] sm:$0xf]
    %v3480 = vld [vmem:[#allocation13 + $0x50] sm:$0xf]
    %v3481 = vld [vmem:[#allocation13 + $0x54] sm:$0xf]
    %v3482 = vld [vmem:[#allocation13 + $0x58] sm:$0xf]
    %v3483 = vld [vmem:[#allocation13 + $0x5c] sm:$0xf]
    %v3484 = vld [vmem:[#allocation13 + $0x60] sm:$0xf]
    %v3485 = vld [vmem:[#allocation13 + $0x64] sm:$0xf]
    %v3486 = vld [vmem:[#allocation13 + $0x68] sm:$0xf]
    %v3487 = vld [vmem:[#allocation13 + $0x6c] sm:$0xf]
    %v3488 = vld [vmem:[#allocation13 + $0x70] sm:$0xf]
    %v3489 = vld [vmem:[#allocation13 + $0x74] sm:$0xf]
    %v3490 = vld [vmem:[#allocation13 + $0x78] sm:$0xf]
    %v3491 = vld [vmem:[#allocation13 + $0x7c] sm:$0xf]
    %v3492 = vld [vmem:[%s8] sm:$0x1]
    %v3494 = vlaneseq
    %v3495 = vshrl.u32 %v3494, 7
    %v3496 = vsub.s32 0, %v3495
    %v3497 = vrot.slane %v3492, %v3496
    %v3531 = vunpack.c.l.b16 %v3460
    %v3532 = vunpack.c.l.b16 %v3461
    %v3533 = vunpack.c.l.b16 %v3462
    %v3534 = vunpack.c.l.b16 %v3463
    %v3535 = vunpack.c.l.b16 %v3464
    %v3536 = vunpack.c.l.b16 %v3465
    %v3537 = vunpack.c.l.b16 %v3466
    %v3538 = vunpack.c.l.b16 %v3467
    %v3539 = vunpack.c.l.b16 %v3468
    %v3540 = vunpack.c.l.b16 %v3469
    %v3541 = vunpack.c.l.b16 %v3470
    %v3542 = vunpack.c.l.b16 %v3471
    %v3543 = vunpack.c.l.b16 %v3472
    %v3544 = vunpack.c.l.b16 %v3473
    %v3545 = vunpack.c.l.b16 %v3474
    %v3546 = vunpack.c.l.b16 %v3475
    %v3547 = vunpack.c.l.b16 %v3476
    %v3548 = vunpack.c.l.b16 %v3477
    %v3549 = vunpack.c.l.b16 %v3478
    %v3550 = vunpack.c.l.b16 %v3479
    %v3551 = vunpack.c.l.b16 %v3480
    %v3552 = vunpack.c.l.b16 %v3481
    %v3553 = vunpack.c.l.b16 %v3482
    %v3554 = vunpack.c.l.b16 %v3483
    %v3555 = vunpack.c.l.b16 %v3484
    %v3556 = vunpack.c.l.b16 %v3485
    %v3557 = vunpack.c.l.b16 %v3486
    %v3558 = vunpack.c.l.b16 %v3487
    %v3559 = vunpack.c.l.b16 %v3488
    %v3560 = vunpack.c.l.b16 %v3489
    %v3561 = vunpack.c.l.b16 %v3490
    %v3562 = vunpack.c.l.b16 %v3491
    %v3563 = vpack.c.b16 %v3532, %v3531
    %v3564 = vpack.c.b16 %v3534, %v3533
    %v3565 = vpack.c.b16 %v3536, %v3535
    %v3566 = vpack.c.b16 %v3538, %v3537
    %v3567 = vpack.c.b16 %v3540, %v3539
    %v3568 = vpack.c.b16 %v3542, %v3541
    %v3569 = vpack.c.b16 %v3544, %v3543
    %v3570 = vpack.c.b16 %v3546, %v3545
    %v3571 = vpack.c.b16 %v3548, %v3547
    %v3572 = vpack.c.b16 %v3550, %v3549
    %v3573 = vpack.c.b16 %v3552, %v3551
    %v3574 = vpack.c.b16 %v3554, %v3553
    %v3575 = vpack.c.b16 %v3556, %v3555
    %v3576 = vpack.c.b16 %v3558, %v3557
    %v3577 = vpack.c.b16 %v3560, %v3559
    %v3578 = vpack.c.b16 %v3562, %v3561
    %3595 = vmatprep.subr.bf16.mxu0 0
    %3596 = vmatpush1.bf16.msra.mxu0 %v3570
    %3597 = vmatprep.subr.bf16.mxu0 0
    %3598 = vmatpush1.bf16.msra.mxu0 %v3569
    %3599 = vmatprep.subr.bf16.mxu0 0
    %3600 = vmatpush1.bf16.msra.mxu0 %v3568
    %3601 = vmatprep.subr.bf16.mxu0 0
    %3602 = vmatpush1.bf16.msra.mxu0 %v3567
    %3603 = vmatprep.subr.bf16.mxu0 0
    %3604 = vmatpush1.bf16.msra.mxu0 %v3566
    %3605 = vmatprep.subr.bf16.mxu0 0
    %3606 = vmatpush1.bf16.msra.mxu0 %v3565
    %3607 = vmatprep.subr.bf16.mxu0 0
    %3608 = vmatpush1.bf16.msra.mxu0 %v3564
    %3609 = vmatprep.subr.bf16.mxu0 0
    %3610 = vmatpush1.bf16.msra.mxu0 %v3563
    %3611 = vmatprep.subr.bf16.mxu0 0
    %3612 = vmatpush2.bf16.msra.mxu0 %v3578
    %3613 = vmatprep.subr.bf16.mxu0 0
    %3614 = vmatpush2.bf16.msra.mxu0 %v3577
    %3615 = vmatprep.subr.bf16.mxu0 0
    %3616 = vmatpush2.bf16.msra.mxu0 %v3576
    %3617 = vmatprep.subr.bf16.mxu0 0
    %3618 = vmatpush2.bf16.msra.mxu0 %v3575
    %3619 = vmatprep.subr.bf16.mxu0 0
    %3620 = vmatpush2.bf16.msra.mxu0 %v3574
    %3621 = vmatprep.subr.bf16.mxu0 0
    %3622 = vmatpush2.bf16.msra.mxu0 %v3573
    %3623 = vmatprep.subr.bf16.mxu0 0
    %3624 = vmatpush2.bf16.msra.mxu0 %v3572
    %3625 = vmatprep.subr.bf16.mxu0 0
    %3626 = vmatpush2.bf16.msra.mxu0 %v3571
    %3627 = vmatprep.mubr.bf16.mxu0 %v3459
    %3628 = vmatmul.mubr.bf16.gmra.mxu0 %v3458
    %v3629 = vpop.f32.mrf.mxu0
    %v3630 = vadd.f32 %v3497, %v3629
    %v3631 = vpop.f32.mrf.mxu0
    %v3632 = vpop.f32.mrf.mxu0
    %v3633 = vpop.f32.mrf.mxu0
    %3634 = vdwg.mxu0
    %3635 = vst [vmem:[#allocation14] sm:$0xff] %v3630
    // Predicated region
    $region66: #{tpu_custom_call.1} parent=1 // pred_check
      _
    $region67: #{tpu_custom_call.1} parent=1 // pred_check_branch
      %3637 = sbr.rel (0) target = $region69
    $region68: #{tpu_custom_call.1} parent=1 // pred_region
      %s3639 = ssub.s32 128, 128
      %3640 = vsyncadd [#allocation4], %s3639
      %s3642 = sshll.u32 [#allocation14], 4
      %s3643 = int_to_ptr.vmem [resolvable:$true] %s3642
      %3645 = dma.vmem_to_hbm [thread:$0]  %s3643, 128, %s9, [#allocation4]
    $region69: #{tpu_custom_call.1} parent=1 // pred_fallthru
      _
    // Predicated region
    $region70: #{tpu_custom_call.1} parent=1 // pred_check
      _
    $region71: #{tpu_custom_call.1} parent=1 // pred_check_branch
      %3647 = sbr.rel (0) target = $region73
    $region72: #{tpu_custom_call.1} parent=1 // pred_region
      %3648 = dma.done [#allocation4], 128
    $region73: #{tpu_custom_call.1} parent=1 // pred_fallthru
      _
    %3649 = vsyncpa [#allocation3], 1
    %3650 = vsyncpa [#allocation6], 1
    %3651 = vsyncpa [#allocation9], 1
    %3652 = vsyncpa [#allocation12], 1
    %3653 = vsyncpa [#allocation4], 1

</llo_original>
